<compile_context>
chip_gen: v7x
topology: tpu7x:2x2x1
jax: 0.10.0
libtpu: 0.0.40
codegen_flags: <defaults>
</compile_context>

<pallas_src>
import functools
import math

import jax
import jax.numpy as jnp
from jax.experimental import pallas as pl
from jax.experimental.pallas import tpu as pltpu

_NEG_PAD = -1e30   # additive mask for padded keys (kept f32, added after bf16 matmul)
_NEG_BLK = -3e30   # strictly more negative: cross-batch (off-block-diagonal) entries


def _co_attention_kernel(q_ref, k_ref, mask_ref,
                         wq_ref, bq_ref, wk_ref, bk_ref, wv_ref, bv_ref,
                         wo_ref, bo_ref,
                         w1_ref, b1_ref, w2_ref, b2_ref,
                         g1_ref, be1_ref, g2_ref, be2_ref,
                         out_ref, *, num_heads, eps):
    f32 = jnp.float32
    bf16 = jnp.bfloat16

    BM, E = q_ref.shape            # BM = B_blk * L
    BK, _ = k_ref.shape            # BK = B_blk * S
    H = num_heads
    Dh = E // H

    # ---- flat 2-D activations straight from the HBM blocks (no reshapes) ----
    q2 = q_ref[...]                            # (BM, E)  f32 (kept for residual)
    q2_bf = q2.astype(bf16)
    k2_bf = k_ref[...].astype(bf16)            # (BK, Kd) bf16

    # ---- input projections: bf16 MXU inputs, f32 accumulation + f32 bias ----
    # wq/bq are pre-scaled by 1/sqrt(Dh) on the host.
    qp = jnp.dot(q2_bf, wq_ref[...], preferred_element_type=f32) + bq_ref[...]   # (BM, E)
    kp = jnp.dot(k2_bf, wk_ref[...], preferred_element_type=f32) + bk_ref[...]   # (BK, E)
    vp = jnp.dot(k2_bf, wv_ref[...], preferred_element_type=f32) + bv_ref[...]   # (BK, E)

    # bf16 casts hoisted out of the head loop; one K transpose for all heads
    # (f32 transpose -> tile-aligned per-head sublane slices, tiny bf16 casts).
    qp_bf = qp.astype(bf16)                    # (BM, E)
    vp_bf = vp.astype(bf16)                    # (BK, E)
    kpT = jnp.transpose(kp)                    # (E, BK) f32

    # Host-precomputed block-diagonal additive mask: attn_mask + key padding
    # on the diagonal blocks, large-negative off-diagonal. Stays f32.
    mask = mask_ref[...]                       # (BM, BK)

    # ---- attention: one dense (BM, BK) score matmul per head ----
    heads = []
    for h in range(H):
        sl = slice(h * Dh, (h + 1) * Dh)
        kh_t = kpT[sl, :].astype(bf16)                                  # (Dh, BK)
        s = jnp.dot(qp_bf[:, sl], kh_t,
                    preferred_element_type=f32) + mask                  # (BM, BK)
        m = jnp.max(s, axis=-1, keepdims=True)
        p = jnp.exp(s - m)                                              # masked -> 0
        denom = jnp.sum(p, axis=-1, keepdims=True)
        oh = jnp.dot(p.astype(bf16), vp_bf[:, sl],
                     preferred_element_type=f32)                        # (BM, Dh)
        # fold 1/denom into the narrow Dh-lane head output (EUP reciprocal)
        heads.append(oh * pl.reciprocal(denom, approx=True))

    # lane-concat the heads once, single (BM,E)x(E,E) out-projection (K=E)
    attn_cat = jnp.concatenate(heads, axis=-1).astype(bf16)             # (BM, E)
    attn = jnp.dot(attn_cat, wo_ref[...],
                   preferred_element_type=f32) + bo_ref[...]            # (BM, E)

    # ---- residual + LayerNorm 1 (dropout1 = identity), f32 ----
    x = q2 + attn
    mu = jnp.mean(x, axis=-1, keepdims=True)
    xc = x - mu
    var = jnp.mean(xc * xc, axis=-1, keepdims=True)
    x = xc * jax.lax.rsqrt(var + eps) * g1_ref[...] + be1_ref[...]

    # ---- feed-forward: linear2(relu(linear1(x))) (dropouts = identity) ----
    h1 = jnp.dot(x.astype(bf16), w1_ref[...],
                 preferred_element_type=f32) + b1_ref[...]              # (BM, HID)
    h1 = jnp.maximum(h1, 0.0)
    ff = jnp.dot(h1.astype(bf16), w2_ref[...],
                 preferred_element_type=f32) + b2_ref[...]              # (BM, E)

    # ---- residual + LayerNorm 2 (dropout2 = identity) ----
    y = x + ff
    mu2 = jnp.mean(y, axis=-1, keepdims=True)
    yc = y - mu2
    var2 = jnp.mean(yc * yc, axis=-1, keepdims=True)
    y = yc * jax.lax.rsqrt(var2 + eps) * g2_ref[...] + be2_ref[...]

    out_ref[...] = y.astype(out_ref.dtype)     # flat (BM, E) store, no reshape


def _default_batch_block(N, L, S):
    """One grid step on single-TensorCore chips (v5e/v6e); two 'parallel'
    steps on v7x (megacore) when the split keeps (8,128)-aligned blocks."""
    try:
        kind = jax.devices()[0].device_kind.lower()
    except Exception:
        kind = ""
    if "v7" in kind and N % 2 == 0:
        b = N // 2
        if (b * L) % 8 == 0 and (b * S) % 8 == 0:
            return b
    return N


def co_attention_forward(q, k, key_padding_mask, attn_mask, params, *,
                         num_heads, batch_block=None):
    """q: (L, N, E) f32, k: (S, N, Kd) f32, key_padding_mask: (N, S) bool
    (True = ignore), attn_mask: (L, S) additive f32.
    Returns a dict like the PyTorch module."""
    L, N, E = q.shape
    S, _, Kd = k.shape
    assert E % num_heads == 0
    Dh = E // num_heads
    scale = 1.0 / math.sqrt(Dh)
    f32, bf16 = jnp.float32, jnp.bfloat16

    B_blk = batch_block if batch_block is not None else _default_batch_block(N, L, S)
    assert N % B_blk == 0
    num_blocks = N // B_blk
    if num_blocks > 1:
        assert (B_blk * L) % 8 == 0 and (B_blk * S) % 8 == 0
    BM, BK = B_blk * L, B_blk * S

    # ---- flat 2-D activation layout (wrapper-side reshapes are free) ----
    q_flat = jnp.transpose(q, (1, 0, 2)).reshape(N * L, E).astype(f32)    # (N*L, E)
    k_flat = jnp.transpose(k, (1, 0, 2)).reshape(N * S, Kd).astype(f32)   # (N*S, Kd)

    # ---- additive mask, assembled block-diagonally per grid step ----
    kpm_add = jnp.where(key_padding_mask, jnp.float32(_NEG_PAD),
                        jnp.float32(0.0)).astype(f32)                     # (N, S)
    mask_nls = attn_mask.astype(f32)[None, :, :] + kpm_add[:, None, :]    # (N, L, S)
    mask_grp = mask_nls.reshape(num_blocks, B_blk, L, S)
    eye = jnp.eye(B_blk, dtype=bool)
    bd = jnp.where(eye[None, :, None, :, None],
                   mask_grp[:, :, :, None, :],
                   jnp.float32(_NEG_BLK))                # (G, B_blk, L, B_blk, S)
    mask_flat = bd.reshape(N * L, BK)                    # (N*L, B_blk*S)

    row = lambda b: b.reshape(1, -1).astype(f32)
    # Pre-transposed (in, out) bf16 weights; q weight/bias pre-scaled by 1/sqrt(Dh).
    wq_t = (params['q_proj_w'].T * scale).astype(bf16)   # (E, E)
    bq = row(params['q_proj_b'] * scale)
    wk_t = params['k_proj_w'].T.astype(bf16)             # (Kd, E)
    bk = row(params['k_proj_b'])
    wv_t = params['v_proj_w'].T.astype(bf16)             # (Kd, E)
    bv = row(params['v_proj_b'])
    wo_t = params['out_proj_w'].T.astype(bf16)           # (E, E)
    bo = row(params['out_proj_b'])
    w1_t = params['linear1_w'].T.astype(bf16)            # (E, HID)
    b1 = row(params['linear1_b'])
    w2_t = params['linear2_w'].T.astype(bf16)            # (HID, E)
    b2 = row(params['linear2_b'])

    weights = (wq_t, bq, wk_t, bk, wv_t, bv, wo_t, bo, w1_t, b1, w2_t, b2,
               row(params['norm1_w']), row(params['norm1_b']),
               row(params['norm2_w']), row(params['norm2_b']))

    def full_spec(arr):
        return pl.BlockSpec(arr.shape, lambda b: (0, 0))

    in_specs = [
        pl.BlockSpec((BM, E), lambda b: (b, 0)),     # q  (flat batch block)
        pl.BlockSpec((BK, Kd), lambda b: (b, 0)),    # k  (flat batch block)
        pl.BlockSpec((BM, BK), lambda b: (b, 0)),    # block-diag additive mask
    ] + [full_spec(w) for w in weights]

    kernel = functools.partial(_co_attention_kernel,
                               num_heads=num_heads, eps=1e-5)

    out_flat = pl.pallas_call(
        kernel,
        out_shape=jax.ShapeDtypeStruct((N * L, E), f32),
        grid=(num_blocks,),
        in_specs=in_specs,
        out_specs=pl.BlockSpec((BM, E), lambda b: (b, 0)),
        compiler_params=pltpu.CompilerParams(
            dimension_semantics=("parallel",)),
    )(q_flat, k_flat, mask_flat, *weights)

    q_out = jnp.transpose(out_flat.reshape(N, L, E), (1, 0, 2))   # back to (L, N, E)
    return {'q': q_out, 'k': k, 'key_padding_mask': key_padding_mask,
            'attn_mask': attn_mask}


def init_params(key, embed_dim, hidden_dim, kdim):
    ks = jax.random.split(key, 8)
    s = 0.05
    return {
        # nn.MultiheadAttention with kdim != embed_dim: separate q/k/v proj weights
        'q_proj_w': s * jax.random.normal(ks[0], (embed_dim, embed_dim), jnp.float32),
        'k_proj_w': s * jax.random.normal(ks[1], (embed_dim, kdim), jnp.float32),
        'v_proj_w': s * jax.random.normal(ks[2], (embed_dim, kdim), jnp.float32),
        'q_proj_b': jnp.zeros((embed_dim,), jnp.float32),
        'k_proj_b': jnp.zeros((embed_dim,), jnp.float32),
        'v_proj_b': jnp.zeros((embed_dim,), jnp.float32),
        'out_proj_w': s * jax.random.normal(ks[3], (embed_dim, embed_dim), jnp.float32),
        'out_proj_b': jnp.zeros((embed_dim,), jnp.float32),
        'linear1_w': s * jax.random.normal(ks[4], (hidden_dim, embed_dim), jnp.float32),
        'linear1_b': jnp.zeros((hidden_dim,), jnp.float32),
        'linear2_w': s * jax.random.normal(ks[5], (embed_dim, hidden_dim), jnp.float32),
        'linear2_b': jnp.zeros((embed_dim,), jnp.float32),
        'norm1_w': jnp.ones((embed_dim,), jnp.float32),
        'norm1_b': jnp.zeros((embed_dim,), jnp.float32),
        'norm2_w': jnp.ones((embed_dim,), jnp.float32),
        'norm2_b': jnp.zeros((embed_dim,), jnp.float32),
    }


if __name__ == "__main__":
    # Small shapes consistent with the module's forward.
    L, S, N = 8, 16, 32         # query seq len, key seq len, batch
    E, Kd = 32, 16              # embed_dim, kdim (=vdim)
    H, HID = 4, 64              # num_heads, hidden_dim

    key = jax.random.PRNGKey(0)
    kq, kk, kam, kp = jax.random.split(key, 4)

    q = jax.random.normal(kq, (L, N, E), jnp.float32)
    k = jax.random.normal(kk, (S, N, Kd), jnp.float32)
    attn_mask = 0.1 * jax.random.normal(kam, (L, S), jnp.float32)   # additive float mask
    key_padding_mask = (jnp.zeros((N, S), dtype=bool)
                        .at[1, S - 1].set(True)
                        .at[3, :4].set(True))

    params = init_params(kp, E, HID, Kd)

    out = co_attention_forward(q, k, key_padding_mask, attn_mask, params, num_heads=H)
    q_out = jax.block_until_ready(out['q'])

    assert q_out.shape == (L, N, E)
    assert bool(jnp.all(jnp.isfinite(q_out)))
    print("KERNEL_OK")
</pallas_src>

<mosaic_0001>
module attributes {stable_mosaic.version = 11 : i64} {
  func.func @_co_attention_kernel(%arg0: i32, %arg1: memref<256x32xf32, #tpu.memory_space<vmem>>, %arg2: memref<512x16xf32, #tpu.memory_space<vmem>>, %arg3: memref<256x512xf32, #tpu.memory_space<vmem>>, %arg4: memref<32x32xbf16, #tpu.memory_space<vmem>>, %arg5: memref<1x32xf32, #tpu.memory_space<vmem>>, %arg6: memref<16x32xbf16, #tpu.memory_space<vmem>>, %arg7: memref<1x32xf32, #tpu.memory_space<vmem>>, %arg8: memref<16x32xbf16, #tpu.memory_space<vmem>>, %arg9: memref<1x32xf32, #tpu.memory_space<vmem>>, %arg10: memref<32x32xbf16, #tpu.memory_space<vmem>>, %arg11: memref<1x32xf32, #tpu.memory_space<vmem>>, %arg12: memref<32x64xbf16, #tpu.memory_space<vmem>>, %arg13: memref<1x64xf32, #tpu.memory_space<vmem>>, %arg14: memref<64x32xbf16, #tpu.memory_space<vmem>>, %arg15: memref<1x32xf32, #tpu.memory_space<vmem>>, %arg16: memref<1x32xf32, #tpu.memory_space<vmem>>, %arg17: memref<1x32xf32, #tpu.memory_space<vmem>>, %arg18: memref<1x32xf32, #tpu.memory_space<vmem>>, %arg19: memref<1x32xf32, #tpu.memory_space<vmem>>, %arg20: memref<256x32xf32, #tpu.memory_space<vmem>>) attributes {dimension_semantics = [#tpu.dimension_semantics<parallel>], iteration_bounds = array<i64: 1>, scalar_prefetch = 0 : i64, scratch_operands = 0 : i64, tpu.core_type = #tpu.core_type<tc>, window_params = [{transform_indices = @transform_0, window_bounds = array<i64: 256, 32>}, {transform_indices = @transform_1, window_bounds = array<i64: 512, 16>}, {transform_indices = @transform_2, window_bounds = array<i64: 256, 512>}, {pipeline_mode = #tpu.pipeline_mode<synchronous>, transform_indices = @transform_3, window_bounds = array<i64: 32, 32>}, {pipeline_mode = #tpu.pipeline_mode<synchronous>, transform_indices = @transform_4, window_bounds = array<i64: 1, 32>}, {pipeline_mode = #tpu.pipeline_mode<synchronous>, transform_indices = @transform_5, window_bounds = array<i64: 16, 32>}, {pipeline_mode = #tpu.pipeline_mode<synchronous>, transform_indices = @transform_6, window_bounds = array<i64: 1, 32>}, {pipeline_mode = #tpu.pipeline_mode<synchronous>, transform_indices = @transform_7, window_bounds = array<i64: 16, 32>}, {pipeline_mode = #tpu.pipeline_mode<synchronous>, transform_indices = @transform_8, window_bounds = array<i64: 1, 32>}, {pipeline_mode = #tpu.pipeline_mode<synchronous>, transform_indices = @transform_9, window_bounds = array<i64: 32, 32>}, {pipeline_mode = #tpu.pipeline_mode<synchronous>, transform_indices = @transform_10, window_bounds = array<i64: 1, 32>}, {pipeline_mode = #tpu.pipeline_mode<synchronous>, transform_indices = @transform_11, window_bounds = array<i64: 32, 64>}, {pipeline_mode = #tpu.pipeline_mode<synchronous>, transform_indices = @transform_12, window_bounds = array<i64: 1, 64>}, {pipeline_mode = #tpu.pipeline_mode<synchronous>, transform_indices = @transform_13, window_bounds = array<i64: 64, 32>}, {pipeline_mode = #tpu.pipeline_mode<synchronous>, transform_indices = @transform_14, window_bounds = array<i64: 1, 32>}, {pipeline_mode = #tpu.pipeline_mode<synchronous>, transform_indices = @transform_15, window_bounds = array<i64: 1, 32>}, {pipeline_mode = #tpu.pipeline_mode<synchronous>, transform_indices = @transform_16, window_bounds = array<i64: 1, 32>}, {pipeline_mode = #tpu.pipeline_mode<synchronous>, transform_indices = @transform_17, window_bounds = array<i64: 1, 32>}, {pipeline_mode = #tpu.pipeline_mode<synchronous>, transform_indices = @transform_18, window_bounds = array<i64: 1, 32>}, {transform_indices = @transform_19, window_bounds = array<i64: 256, 32>}]} {
    %c0 = arith.constant 0 : index
    %c0_0 = arith.constant 0 : index
    %0 = vector.load %arg1[%c0, %c0_0] : memref<256x32xf32, #tpu.memory_space<vmem>>, vector<256x32xf32>
    %1 = arith.truncf %0 : vector<256x32xf32> to vector<256x32xbf16>
    %c0_1 = arith.constant 0 : index
    %c0_2 = arith.constant 0 : index
    %2 = vector.load %arg2[%c0_1, %c0_2] : memref<512x16xf32, #tpu.memory_space<vmem>>, vector<512x16xf32>
    %3 = arith.truncf %2 : vector<512x16xf32> to vector<512x16xbf16>
    %c0_3 = arith.constant 0 : index
    %c0_4 = arith.constant 0 : index
    %4 = vector.load %arg4[%c0_3, %c0_4] : memref<32x32xbf16, #tpu.memory_space<vmem>>, vector<32x32xbf16>
    %cst = arith.constant dense<0.000000e+00> : vector<256x32xf32>
    %5 = tpu.matmul %1, %4, %cst {dimension_numbers = #tpu.dot_dimension_numbers<[1], [0], [0], [1], [0, 0, 1, 1], [], []>} : vector<256x32xbf16>, vector<32x32xbf16>, vector<256x32xf32> -> vector<256x32xf32>
    %c0_5 = arith.constant 0 : index
    %c0_6 = arith.constant 0 : index
    %6 = vector.load %arg5[%c0_5, %c0_6] : memref<1x32xf32, #tpu.memory_space<vmem>>, vector<1x32xf32>
    %7 = vector.broadcast %6 : vector<1x32xf32> to vector<256x32xf32>
    %8 = arith.addf %5, %7 : vector<256x32xf32>
    %c0_7 = arith.constant 0 : index
    %c0_8 = arith.constant 0 : index
    %9 = vector.load %arg6[%c0_7, %c0_8] : memref<16x32xbf16, #tpu.memory_space<vmem>>, vector<16x32xbf16>
    %cst_9 = arith.constant dense<0.000000e+00> : vector<512x32xf32>
    %10 = tpu.matmul %3, %9, %cst_9 {dimension_numbers = #tpu.dot_dimension_numbers<[1], [0], [0], [1], [0, 0, 1, 1], [], []>} : vector<512x16xbf16>, vector<16x32xbf16>, vector<512x32xf32> -> vector<512x32xf32>
    %c0_10 = arith.constant 0 : index
    %c0_11 = arith.constant 0 : index
    %11 = vector.load %arg7[%c0_10, %c0_11] : memref<1x32xf32, #tpu.memory_space<vmem>>, vector<1x32xf32>
    %12 = vector.broadcast %11 : vector<1x32xf32> to vector<512x32xf32>
    %13 = arith.addf %10, %12 : vector<512x32xf32>
    %c0_12 = arith.constant 0 : index
    %c0_13 = arith.constant 0 : index
    %14 = vector.load %arg8[%c0_12, %c0_13] : memref<16x32xbf16, #tpu.memory_space<vmem>>, vector<16x32xbf16>
    %cst_14 = arith.constant dense<0.000000e+00> : vector<512x32xf32>
    %15 = tpu.matmul %3, %14, %cst_14 {dimension_numbers = #tpu.dot_dimension_numbers<[1], [0], [0], [1], [0, 0, 1, 1], [], []>} : vector<512x16xbf16>, vector<16x32xbf16>, vector<512x32xf32> -> vector<512x32xf32>
    %c0_15 = arith.constant 0 : index
    %c0_16 = arith.constant 0 : index
    %16 = vector.load %arg9[%c0_15, %c0_16] : memref<1x32xf32, #tpu.memory_space<vmem>>, vector<1x32xf32>
    %17 = vector.broadcast %16 : vector<1x32xf32> to vector<512x32xf32>
    %18 = arith.addf %15, %17 : vector<512x32xf32>
    %19 = arith.truncf %8 : vector<256x32xf32> to vector<256x32xbf16>
    %20 = arith.truncf %18 : vector<512x32xf32> to vector<512x32xbf16>
    %21 = tpu.transpose %13, [1, 0] : vector<512x32xf32> -> vector<32x512xf32>
    %c0_17 = arith.constant 0 : index
    %c0_18 = arith.constant 0 : index
    %22 = vector.load %arg3[%c0_17, %c0_18] : memref<256x512xf32, #tpu.memory_space<vmem>>, vector<256x512xf32>
    %23 = vector.extract_strided_slice %21 {offsets = [0, 0], sizes = [8, 512], strides = [1, 1]} : vector<32x512xf32> to vector<8x512xf32>
    %24 = arith.truncf %23 : vector<8x512xf32> to vector<8x512xbf16>
    %25 = vector.extract_strided_slice %19 {offsets = [0, 0], sizes = [256, 8], strides = [1, 1]} : vector<256x32xbf16> to vector<256x8xbf16>
    %cst_19 = arith.constant dense<0.000000e+00> : vector<256x512xf32>
    %26 = tpu.matmul %25, %24, %cst_19 {dimension_numbers = #tpu.dot_dimension_numbers<[1], [0], [0], [1], [0, 0, 1, 1], [], []>} : vector<256x8xbf16>, vector<8x512xbf16>, vector<256x512xf32> -> vector<256x512xf32>
    %27 = arith.addf %26, %22 : vector<256x512xf32>
    %cst_20 = arith.constant dense<0xFF800000> : vector<256xf32>
    %28 = vector.multi_reduction <maximumf>, %27, %cst_20 [1] : vector<256x512xf32> to vector<256xf32>
    %29 = vector.shape_cast %28 : vector<256xf32> to vector<256x1xf32>
    %30 = vector.broadcast %29 : vector<256x1xf32> to vector<256x512xf32>
    %31 = arith.subf %27, %30 : vector<256x512xf32>
    %32 = math.exp %31 : vector<256x512xf32>
    %cst_21 = arith.constant dense<0.000000e+00> : vector<256xf32>
    %33 = vector.multi_reduction <add>, %32, %cst_21 [1] : vector<256x512xf32> to vector<256xf32>
    %34 = vector.shape_cast %33 : vector<256xf32> to vector<256x1xf32>
    %35 = arith.truncf %32 : vector<256x512xf32> to vector<256x512xbf16>
    %36 = vector.extract_strided_slice %20 {offsets = [0, 0], sizes = [512, 8], strides = [1, 1]} : vector<512x32xbf16> to vector<512x8xbf16>
    %cst_22 = arith.constant dense<0.000000e+00> : vector<256x8xf32>
    %37 = tpu.matmul %35, %36, %cst_22 {dimension_numbers = #tpu.dot_dimension_numbers<[1], [0], [0], [1], [0, 0, 1, 1], [], []>} : vector<256x512xbf16>, vector<512x8xbf16>, vector<256x8xf32> -> vector<256x8xf32>
    %38 = tpu.reciprocal %34 {approx = true} : vector<256x1xf32> -> vector<256x1xf32>
    %39 = vector.broadcast %38 : vector<256x1xf32> to vector<256x8xf32>
    %40 = arith.mulf %37, %39 : vector<256x8xf32>
    %41 = vector.extract_strided_slice %21 {offsets = [8, 0], sizes = [8, 512], strides = [1, 1]} : vector<32x512xf32> to vector<8x512xf32>
    %42 = arith.truncf %41 : vector<8x512xf32> to vector<8x512xbf16>
    %43 = vector.extract_strided_slice %19 {offsets = [0, 8], sizes = [256, 8], strides = [1, 1]} : vector<256x32xbf16> to vector<256x8xbf16>
    %cst_23 = arith.constant dense<0.000000e+00> : vector<256x512xf32>
    %44 = tpu.matmul %43, %42, %cst_23 {dimension_numbers = #tpu.dot_dimension_numbers<[1], [0], [0], [1], [0, 0, 1, 1], [], []>} : vector<256x8xbf16>, vector<8x512xbf16>, vector<256x512xf32> -> vector<256x512xf32>
    %45 = arith.addf %44, %22 : vector<256x512xf32>
    %cst_24 = arith.constant dense<0xFF800000> : vector<256xf32>
    %46 = vector.multi_reduction <maximumf>, %45, %cst_24 [1] : vector<256x512xf32> to vector<256xf32>
    %47 = vector.shape_cast %46 : vector<256xf32> to vector<256x1xf32>
    %48 = vector.broadcast %47 : vector<256x1xf32> to vector<256x512xf32>
    %49 = arith.subf %45, %48 : vector<256x512xf32>
    %50 = math.exp %49 : vector<256x512xf32>
    %cst_25 = arith.constant dense<0.000000e+00> : vector<256xf32>
    %51 = vector.multi_reduction <add>, %50, %cst_25 [1] : vector<256x512xf32> to vector<256xf32>
    %52 = vector.shape_cast %51 : vector<256xf32> to vector<256x1xf32>
    %53 = arith.truncf %50 : vector<256x512xf32> to vector<256x512xbf16>
    %54 = vector.extract_strided_slice %20 {offsets = [0, 8], sizes = [512, 8], strides = [1, 1]} : vector<512x32xbf16> to vector<512x8xbf16>
    %cst_26 = arith.constant dense<0.000000e+00> : vector<256x8xf32>
    %55 = tpu.matmul %53, %54, %cst_26 {dimension_numbers = #tpu.dot_dimension_numbers<[1], [0], [0], [1], [0, 0, 1, 1], [], []>} : vector<256x512xbf16>, vector<512x8xbf16>, vector<256x8xf32> -> vector<256x8xf32>
    %56 = tpu.reciprocal %52 {approx = true} : vector<256x1xf32> -> vector<256x1xf32>
    %57 = vector.broadcast %56 : vector<256x1xf32> to vector<256x8xf32>
    %58 = arith.mulf %55, %57 : vector<256x8xf32>
    %59 = vector.extract_strided_slice %21 {offsets = [16, 0], sizes = [8, 512], strides = [1, 1]} : vector<32x512xf32> to vector<8x512xf32>
    %60 = arith.truncf %59 : vector<8x512xf32> to vector<8x512xbf16>
    %61 = vector.extract_strided_slice %19 {offsets = [0, 16], sizes = [256, 8], strides = [1, 1]} : vector<256x32xbf16> to vector<256x8xbf16>
    %cst_27 = arith.constant dense<0.000000e+00> : vector<256x512xf32>
    %62 = tpu.matmul %61, %60, %cst_27 {dimension_numbers = #tpu.dot_dimension_numbers<[1], [0], [0], [1], [0, 0, 1, 1], [], []>} : vector<256x8xbf16>, vector<8x512xbf16>, vector<256x512xf32> -> vector<256x512xf32>
    %63 = arith.addf %62, %22 : vector<256x512xf32>
    %cst_28 = arith.constant dense<0xFF800000> : vector<256xf32>
    %64 = vector.multi_reduction <maximumf>, %63, %cst_28 [1] : vector<256x512xf32> to vector<256xf32>
    %65 = vector.shape_cast %64 : vector<256xf32> to vector<256x1xf32>
    %66 = vector.broadcast %65 : vector<256x1xf32> to vector<256x512xf32>
    %67 = arith.subf %63, %66 : vector<256x512xf32>
    %68 = math.exp %67 : vector<256x512xf32>
    %cst_29 = arith.constant dense<0.000000e+00> : vector<256xf32>
    %69 = vector.multi_reduction <add>, %68, %cst_29 [1] : vector<256x512xf32> to vector<256xf32>
    %70 = vector.shape_cast %69 : vector<256xf32> to vector<256x1xf32>
    %71 = arith.truncf %68 : vector<256x512xf32> to vector<256x512xbf16>
    %72 = vector.extract_strided_slice %20 {offsets = [0, 16], sizes = [512, 8], strides = [1, 1]} : vector<512x32xbf16> to vector<512x8xbf16>
    %cst_30 = arith.constant dense<0.000000e+00> : vector<256x8xf32>
    %73 = tpu.matmul %71, %72, %cst_30 {dimension_numbers = #tpu.dot_dimension_numbers<[1], [0], [0], [1], [0, 0, 1, 1], [], []>} : vector<256x512xbf16>, vector<512x8xbf16>, vector<256x8xf32> -> vector<256x8xf32>
    %74 = tpu.reciprocal %70 {approx = true} : vector<256x1xf32> -> vector<256x1xf32>
    %75 = vector.broadcast %74 : vector<256x1xf32> to vector<256x8xf32>
    %76 = arith.mulf %73, %75 : vector<256x8xf32>
    %77 = vector.extract_strided_slice %21 {offsets = [24, 0], sizes = [8, 512], strides = [1, 1]} : vector<32x512xf32> to vector<8x512xf32>
    %78 = arith.truncf %77 : vector<8x512xf32> to vector<8x512xbf16>
    %79 = vector.extract_strided_slice %19 {offsets = [0, 24], sizes = [256, 8], strides = [1, 1]} : vector<256x32xbf16> to vector<256x8xbf16>
    %cst_31 = arith.constant dense<0.000000e+00> : vector<256x512xf32>
    %80 = tpu.matmul %79, %78, %cst_31 {dimension_numbers = #tpu.dot_dimension_numbers<[1], [0], [0], [1], [0, 0, 1, 1], [], []>} : vector<256x8xbf16>, vector<8x512xbf16>, vector<256x512xf32> -> vector<256x512xf32>
    %81 = arith.addf %80, %22 : vector<256x512xf32>
    %cst_32 = arith.constant dense<0xFF800000> : vector<256xf32>
    %82 = vector.multi_reduction <maximumf>, %81, %cst_32 [1] : vector<256x512xf32> to vector<256xf32>
    %83 = vector.shape_cast %82 : vector<256xf32> to vector<256x1xf32>
    %84 = vector.broadcast %83 : vector<256x1xf32> to vector<256x512xf32>
    %85 = arith.subf %81, %84 : vector<256x512xf32>
    %86 = math.exp %85 : vector<256x512xf32>
    %cst_33 = arith.constant dense<0.000000e+00> : vector<256xf32>
    %87 = vector.multi_reduction <add>, %86, %cst_33 [1] : vector<256x512xf32> to vector<256xf32>
    %88 = vector.shape_cast %87 : vector<256xf32> to vector<256x1xf32>
    %89 = arith.truncf %86 : vector<256x512xf32> to vector<256x512xbf16>
    %90 = vector.extract_strided_slice %20 {offsets = [0, 24], sizes = [512, 8], strides = [1, 1]} : vector<512x32xbf16> to vector<512x8xbf16>
    %cst_34 = arith.constant dense<0.000000e+00> : vector<256x8xf32>
    %91 = tpu.matmul %89, %90, %cst_34 {dimension_numbers = #tpu.dot_dimension_numbers<[1], [0], [0], [1], [0, 0, 1, 1], [], []>} : vector<256x512xbf16>, vector<512x8xbf16>, vector<256x8xf32> -> vector<256x8xf32>
    %92 = tpu.reciprocal %88 {approx = true} : vector<256x1xf32> -> vector<256x1xf32>
    %93 = vector.broadcast %92 : vector<256x1xf32> to vector<256x8xf32>
    %94 = arith.mulf %91, %93 : vector<256x8xf32>
    %95 = tpu.concatenate %40, %58, %76, %94 in 1 : vector<256x8xf32>, vector<256x8xf32>, vector<256x8xf32>, vector<256x8xf32> -> vector<256x32xf32>
    %96 = arith.truncf %95 : vector<256x32xf32> to vector<256x32xbf16>
    %c0_35 = arith.constant 0 : index
    %c0_36 = arith.constant 0 : index
    %97 = vector.load %arg10[%c0_35, %c0_36] : memref<32x32xbf16, #tpu.memory_space<vmem>>, vector<32x32xbf16>
    %cst_37 = arith.constant dense<0.000000e+00> : vector<256x32xf32>
    %98 = tpu.matmul %96, %97, %cst_37 {dimension_numbers = #tpu.dot_dimension_numbers<[1], [0], [0], [1], [0, 0, 1, 1], [], []>} : vector<256x32xbf16>, vector<32x32xbf16>, vector<256x32xf32> -> vector<256x32xf32>
    %c0_38 = arith.constant 0 : index
    %c0_39 = arith.constant 0 : index
    %99 = vector.load %arg11[%c0_38, %c0_39] : memref<1x32xf32, #tpu.memory_space<vmem>>, vector<1x32xf32>
    %100 = vector.broadcast %99 : vector<1x32xf32> to vector<256x32xf32>
    %101 = arith.addf %98, %100 : vector<256x32xf32>
    %102 = arith.addf %0, %101 : vector<256x32xf32>
    %cst_40 = arith.constant dense<0.000000e+00> : vector<256xf32>
    %103 = vector.multi_reduction <add>, %102, %cst_40 [1] : vector<256x32xf32> to vector<256xf32>
    %104 = vector.shape_cast %103 : vector<256xf32> to vector<256x1xf32>
    %cst_41 = arith.constant 3.200000e+01 : f32
    %105 = vector.broadcast %cst_41 : f32 to vector<256x1xf32>
    %106 = arith.divf %104, %105 : vector<256x1xf32>
    %107 = vector.broadcast %106 : vector<256x1xf32> to vector<256x32xf32>
    %108 = arith.subf %102, %107 : vector<256x32xf32>
    %109 = arith.mulf %108, %108 : vector<256x32xf32>
    %cst_42 = arith.constant dense<0.000000e+00> : vector<256xf32>
    %110 = vector.multi_reduction <add>, %109, %cst_42 [1] : vector<256x32xf32> to vector<256xf32>
    %111 = vector.shape_cast %110 : vector<256xf32> to vector<256x1xf32>
    %cst_43 = arith.constant 3.200000e+01 : f32
    %112 = vector.broadcast %cst_43 : f32 to vector<256x1xf32>
    %113 = arith.divf %111, %112 : vector<256x1xf32>
    %cst_44 = arith.constant 9.99999974E-6 : f32
    %114 = vector.broadcast %cst_44 : f32 to vector<256x1xf32>
    %115 = arith.addf %113, %114 : vector<256x1xf32>
    %116 = math.rsqrt %115 : vector<256x1xf32>
    %117 = vector.broadcast %116 : vector<256x1xf32> to vector<256x32xf32>
    %118 = arith.mulf %108, %117 : vector<256x32xf32>
    %c0_45 = arith.constant 0 : index
    %c0_46 = arith.constant 0 : index
    %119 = vector.load %arg16[%c0_45, %c0_46] : memref<1x32xf32, #tpu.memory_space<vmem>>, vector<1x32xf32>
    %120 = vector.broadcast %119 : vector<1x32xf32> to vector<256x32xf32>
    %121 = arith.mulf %118, %120 : vector<256x32xf32>
    %c0_47 = arith.constant 0 : index
    %c0_48 = arith.constant 0 : index
    %122 = vector.load %arg17[%c0_47, %c0_48] : memref<1x32xf32, #tpu.memory_space<vmem>>, vector<1x32xf32>
    %123 = vector.broadcast %122 : vector<1x32xf32> to vector<256x32xf32>
    %124 = arith.addf %121, %123 : vector<256x32xf32>
    %125 = arith.truncf %124 : vector<256x32xf32> to vector<256x32xbf16>
    %c0_49 = arith.constant 0 : index
    %c0_50 = arith.constant 0 : index
    %126 = vector.load %arg12[%c0_49, %c0_50] : memref<32x64xbf16, #tpu.memory_space<vmem>>, vector<32x64xbf16>
    %cst_51 = arith.constant dense<0.000000e+00> : vector<256x64xf32>
    %127 = tpu.matmul %125, %126, %cst_51 {dimension_numbers = #tpu.dot_dimension_numbers<[1], [0], [0], [1], [0, 0, 1, 1], [], []>} : vector<256x32xbf16>, vector<32x64xbf16>, vector<256x64xf32> -> vector<256x64xf32>
    %c0_52 = arith.constant 0 : index
    %c0_53 = arith.constant 0 : index
    %128 = vector.load %arg13[%c0_52, %c0_53] : memref<1x64xf32, #tpu.memory_space<vmem>>, vector<1x64xf32>
    %129 = vector.broadcast %128 : vector<1x64xf32> to vector<256x64xf32>
    %130 = arith.addf %127, %129 : vector<256x64xf32>
    %cst_54 = arith.constant 0.000000e+00 : f32
    %131 = vector.broadcast %cst_54 : f32 to vector<256x64xf32>
    %132 = arith.maximumf %130, %131 : vector<256x64xf32>
    %133 = arith.truncf %132 : vector<256x64xf32> to vector<256x64xbf16>
    %c0_55 = arith.constant 0 : index
    %c0_56 = arith.constant 0 : index
    %134 = vector.load %arg14[%c0_55, %c0_56] : memref<64x32xbf16, #tpu.memory_space<vmem>>, vector<64x32xbf16>
    %cst_57 = arith.constant dense<0.000000e+00> : vector<256x32xf32>
    %135 = tpu.matmul %133, %134, %cst_57 {dimension_numbers = #tpu.dot_dimension_numbers<[1], [0], [0], [1], [0, 0, 1, 1], [], []>} : vector<256x64xbf16>, vector<64x32xbf16>, vector<256x32xf32> -> vector<256x32xf32>
    %c0_58 = arith.constant 0 : index
    %c0_59 = arith.constant 0 : index
    %136 = vector.load %arg15[%c0_58, %c0_59] : memref<1x32xf32, #tpu.memory_space<vmem>>, vector<1x32xf32>
    %137 = vector.broadcast %136 : vector<1x32xf32> to vector<256x32xf32>
    %138 = arith.addf %135, %137 : vector<256x32xf32>
    %139 = arith.addf %124, %138 : vector<256x32xf32>
    %cst_60 = arith.constant dense<0.000000e+00> : vector<256xf32>
    %140 = vector.multi_reduction <add>, %139, %cst_60 [1] : vector<256x32xf32> to vector<256xf32>
    %141 = vector.shape_cast %140 : vector<256xf32> to vector<256x1xf32>
    %cst_61 = arith.constant 3.200000e+01 : f32
    %142 = vector.broadcast %cst_61 : f32 to vector<256x1xf32>
    %143 = arith.divf %141, %142 : vector<256x1xf32>
    %144 = vector.broadcast %143 : vector<256x1xf32> to vector<256x32xf32>
    %145 = arith.subf %139, %144 : vector<256x32xf32>
    %146 = arith.mulf %145, %145 : vector<256x32xf32>
    %cst_62 = arith.constant dense<0.000000e+00> : vector<256xf32>
    %147 = vector.multi_reduction <add>, %146, %cst_62 [1] : vector<256x32xf32> to vector<256xf32>
    %148 = vector.shape_cast %147 : vector<256xf32> to vector<256x1xf32>
    %cst_63 = arith.constant 3.200000e+01 : f32
    %149 = vector.broadcast %cst_63 : f32 to vector<256x1xf32>
    %150 = arith.divf %148, %149 : vector<256x1xf32>
    %cst_64 = arith.constant 9.99999974E-6 : f32
    %151 = vector.broadcast %cst_64 : f32 to vector<256x1xf32>
    %152 = arith.addf %150, %151 : vector<256x1xf32>
    %153 = math.rsqrt %152 : vector<256x1xf32>
    %154 = vector.broadcast %153 : vector<256x1xf32> to vector<256x32xf32>
    %155 = arith.mulf %145, %154 : vector<256x32xf32>
    %c0_65 = arith.constant 0 : index
    %c0_66 = arith.constant 0 : index
    %156 = vector.load %arg18[%c0_65, %c0_66] : memref<1x32xf32, #tpu.memory_space<vmem>>, vector<1x32xf32>
    %157 = vector.broadcast %156 : vector<1x32xf32> to vector<256x32xf32>
    %158 = arith.mulf %155, %157 : vector<256x32xf32>
    %c0_67 = arith.constant 0 : index
    %c0_68 = arith.constant 0 : index
    %159 = vector.load %arg19[%c0_67, %c0_68] : memref<1x32xf32, #tpu.memory_space<vmem>>, vector<1x32xf32>
    %160 = vector.broadcast %159 : vector<1x32xf32> to vector<256x32xf32>
    %161 = arith.addf %158, %160 : vector<256x32xf32>
    %c0_69 = arith.constant 0 : index
    %c0_70 = arith.constant 0 : index
    %162 = vector.load %arg20[%c0_69, %c0_70] : memref<256x32xf32, #tpu.memory_space<vmem>>, vector<256x32xf32>
    tpu.vector_store %arg20[%c0_69, %c0_70], %161 {strides = array<i32>} : memref<256x32xf32, #tpu.memory_space<vmem>>, vector<256x32xf32>,
    return
  }
  func.func @transform_0(%arg0: i32) -> (i32, i32) {
    %c0_i32 = arith.constant 0 : i32
    %c0_i32_0 = arith.constant 0 : i32
    return %arg0, %c0_i32 : i32, i32
  }
  func.func @transform_1(%arg0: i32) -> (i32, i32) {
    %c0_i32 = arith.constant 0 : i32
    %c0_i32_0 = arith.constant 0 : i32
    return %arg0, %c0_i32 : i32, i32
  }
  func.func @transform_2(%arg0: i32) -> (i32, i32) {
    %c0_i32 = arith.constant 0 : i32
    %c0_i32_0 = arith.constant 0 : i32
    return %arg0, %c0_i32 : i32, i32
  }
  func.func @transform_3(%arg0: i32) -> (i32, i32) {
    %c0_i32 = arith.constant 0 : i32
    %c0_i32_0 = arith.constant 0 : i32
    %c0_i32_1 = arith.constant 0 : i32
    return %c0_i32, %c0_i32_0 : i32, i32
  }
  func.func @transform_4(%arg0: i32) -> (i32, i32) {
    %c0_i32 = arith.constant 0 : i32
    %c0_i32_0 = arith.constant 0 : i32
    %c0_i32_1 = arith.constant 0 : i32
    return %c0_i32, %c0_i32_0 : i32, i32
  }
  func.func @transform_5(%arg0: i32) -> (i32, i32) {
    %c0_i32 = arith.constant 0 : i32
    %c0_i32_0 = arith.constant 0 : i32
    %c0_i32_1 = arith.constant 0 : i32
    return %c0_i32, %c0_i32_0 : i32, i32
  }
  func.func @transform_6(%arg0: i32) -> (i32, i32) {
    %c0_i32 = arith.constant 0 : i32
    %c0_i32_0 = arith.constant 0 : i32
    %c0_i32_1 = arith.constant 0 : i32
    return %c0_i32, %c0_i32_0 : i32, i32
  }
  func.func @transform_7(%arg0: i32) -> (i32, i32) {
    %c0_i32 = arith.constant 0 : i32
    %c0_i32_0 = arith.constant 0 : i32
    %c0_i32_1 = arith.constant 0 : i32
    return %c0_i32, %c0_i32_0 : i32, i32
  }
  func.func @transform_8(%arg0: i32) -> (i32, i32) {
    %c0_i32 = arith.constant 0 : i32
    %c0_i32_0 = arith.constant 0 : i32
    %c0_i32_1 = arith.constant 0 : i32
    return %c0_i32, %c0_i32_0 : i32, i32
  }
  func.func @transform_9(%arg0: i32) -> (i32, i32) {
    %c0_i32 = arith.constant 0 : i32
    %c0_i32_0 = arith.constant 0 : i32
    %c0_i32_1 = arith.constant 0 : i32
    return %c0_i32, %c0_i32_0 : i32, i32
  }
  func.func @transform_10(%arg0: i32) -> (i32, i32) {
    %c0_i32 = arith.constant 0 : i32
    %c0_i32_0 = arith.constant 0 : i32
    %c0_i32_1 = arith.constant 0 : i32
    return %c0_i32, %c0_i32_0 : i32, i32
  }
  func.func @transform_11(%arg0: i32) -> (i32, i32) {
    %c0_i32 = arith.constant 0 : i32
    %c0_i32_0 = arith.constant 0 : i32
    %c0_i32_1 = arith.constant 0 : i32
    return %c0_i32, %c0_i32_0 : i32, i32
  }
  func.func @transform_12(%arg0: i32) -> (i32, i32) {
    %c0_i32 = arith.constant 0 : i32
    %c0_i32_0 = arith.constant 0 : i32
    %c0_i32_1 = arith.constant 0 : i32
    return %c0_i32, %c0_i32_0 : i32, i32
  }
  func.func @transform_13(%arg0: i32) -> (i32, i32) {
    %c0_i32 = arith.constant 0 : i32
    %c0_i32_0 = arith.constant 0 : i32
    %c0_i32_1 = arith.constant 0 : i32
    return %c0_i32, %c0_i32_0 : i32, i32
  }
  func.func @transform_14(%arg0: i32) -> (i32, i32) {
    %c0_i32 = arith.constant 0 : i32
    %c0_i32_0 = arith.constant 0 : i32
    %c0_i32_1 = arith.constant 0 : i32
    return %c0_i32, %c0_i32_0 : i32, i32
  }
  func.func @transform_15(%arg0: i32) -> (i32, i32) {
    %c0_i32 = arith.constant 0 : i32
    %c0_i32_0 = arith.constant 0 : i32
    %c0_i32_1 = arith.constant 0 : i32
    return %c0_i32, %c0_i32_0 : i32, i32
  }
  func.func @transform_16(%arg0: i32) -> (i32, i32) {
    %c0_i32 = arith.constant 0 : i32
    %c0_i32_0 = arith.constant 0 : i32
    %c0_i32_1 = arith.constant 0 : i32
    return %c0_i32, %c0_i32_0 : i32, i32
  }
  func.func @transform_17(%arg0: i32) -> (i32, i32) {
    %c0_i32 = arith.constant 0 : i32
    %c0_i32_0 = arith.constant 0 : i32
    %c0_i32_1 = arith.constant 0 : i32
    return %c0_i32, %c0_i32_0 : i32, i32
  }
  func.func @transform_18(%arg0: i32) -> (i32, i32) {
    %c0_i32 = arith.constant 0 : i32
    %c0_i32_0 = arith.constant 0 : i32
    %c0_i32_1 = arith.constant 0 : i32
    return %c0_i32, %c0_i32_0 : i32, i32
  }
  func.func @transform_19(%arg0: i32) -> (i32, i32) {
    %c0_i32 = arith.constant 0 : i32
    %c0_i32_0 = arith.constant 0 : i32
    return %arg0, %c0_i32 : i32, i32
  }
}

</mosaic_0001>

<llo_original>
// kernel: tpu_custom_call.1
$region0: #{tpu_custom_call.1}
  #allocation0 [shape = 'u32[]', space=smem, size = 0x4, offset = 0x4, fixed_abs, tag = 'smem constant byte address 0x4 - core index']
  #allocation1 [shape = 'u32[144,128]{1,0:T(1,128)}', space=vmem, size = 0x12000, scoped, tag = 'internal scratch']
  %s0 = inlined_call_operand.vmem [shape: f32[256,32], index: 0, kind: input, shape index: {}]
  %s1 = inlined_call_operand.vmem [shape: f32[512,16], index: 1, kind: input, shape index: {}]
  %s2 = inlined_call_operand.hbm [shape: f32[256,512], index: 2, kind: input, shape index: {}]
  %s3 = inlined_call_operand.vmem [shape: bf16[32,32], index: 3, kind: input, shape index: {}]
  %s4 = inlined_call_operand.vmem [shape: f32[1,32], index: 4, kind: input, shape index: {}]
  %s5 = inlined_call_operand.vmem [shape: bf16[16,32], index: 5, kind: input, shape index: {}]
  %s6 = inlined_call_operand.vmem [shape: f32[1,32], index: 6, kind: input, shape index: {}]
  %s7 = inlined_call_operand.vmem [shape: bf16[16,32], index: 7, kind: input, shape index: {}]
  %s8 = inlined_call_operand.vmem [shape: f32[1,32], index: 8, kind: input, shape index: {}]
  %s9 = inlined_call_operand.vmem [shape: bf16[32,32], index: 9, kind: input, shape index: {}]
  %s10 = inlined_call_operand.vmem [shape: f32[1,32], index: 10, kind: input, shape index: {}]
  %s11 = inlined_call_operand.vmem [shape: bf16[32,64], index: 11, kind: input, shape index: {}]
  %s12 = inlined_call_operand.vmem [shape: f32[1,64], index: 12, kind: input, shape index: {}]
  %s13 = inlined_call_operand.vmem [shape: bf16[64,32], index: 13, kind: input, shape index: {}]
  %s14 = inlined_call_operand.vmem [shape: f32[1,32], index: 14, kind: input, shape index: {}]
  %s15 = inlined_call_operand.vmem [shape: f32[1,32], index: 15, kind: input, shape index: {}]
  %s16 = inlined_call_operand.vmem [shape: f32[1,32], index: 16, kind: input, shape index: {}]
  %s17 = inlined_call_operand.vmem [shape: f32[1,32], index: 17, kind: input, shape index: {}]
  %s18 = inlined_call_operand.vmem [shape: f32[1,32], index: 18, kind: input, shape index: {}]
  %s19 = inlined_call_operand.vmem [shape: f32[256,32], index: 19, kind: output, shape index: {}]
  %s20 = sld [smem:[#allocation0]]
  $region90: #{tpu_custom_call.1} parent=0
    _
  %s22 = ssub.s32 1, %s20
  %s23 = scalar_select 0, %s22, %s20
  $region1: #{tpu_custom_call.1} parent=0
    #allocation2 [shape = 'u8[524288]{0}', space=vmem, size = 0x80000, scoped, tag = 'input window, operand 2, single buffered']
    #allocation3 [shape = 's32[1]{0}', space=sflag, size = 0x4, scoped, tag = 'scoped memory for tpu_custom_call.1']
    %24 = vsyncpa [#allocation3], 0
    // Predicated region
    $region2: #{tpu_custom_call.1} parent=1 // pred_check
      _
    $region3: #{tpu_custom_call.1} parent=1 // pred_check_branch
      %26 = sbr.rel (0) target = $region5
    $region4: #{tpu_custom_call.1} parent=1 // pred_region
      _
    $region5: #{tpu_custom_call.1} parent=1 // pred_fallthru
      _
    // Predicated region
    $region6: #{tpu_custom_call.1} parent=1 // pred_check
      _
    $region7: #{tpu_custom_call.1} parent=1 // pred_check_branch
      %28 = sbr.rel (0) target = $region9
    $region8: #{tpu_custom_call.1} parent=1 // pred_region
      _
    $region9: #{tpu_custom_call.1} parent=1 // pred_fallthru
      _
    // Predicated region
    $region10: #{tpu_custom_call.1} parent=1 // pred_check
      _
    $region11: #{tpu_custom_call.1} parent=1 // pred_check_branch
      %30 = sbr.rel (0) target = $region13
    $region12: #{tpu_custom_call.1} parent=1 // pred_region
      %s32 = ssub.s32 16384, 16384
      %33 = vsyncadd [#allocation3], %s32
      %s34 = sshll.u32 [#allocation2], 4
      %s35 = int_to_ptr.vmem [resolvable:$true] %s34
      %40 = dma.hbm_to_vmem [thread:$0]  %s2, 16384, %s35, [#allocation3], 512, 512, 32
    $region13: #{tpu_custom_call.1} parent=1 // pred_fallthru
      _
    // Predicated region
    $region14: #{tpu_custom_call.1} parent=1 // pred_check
      _
    $region15: #{tpu_custom_call.1} parent=1 // pred_check_branch
      %42 = sbr.rel (0) target = $region17
    $region16: #{tpu_custom_call.1} parent=1 // pred_region
      _
    $region17: #{tpu_custom_call.1} parent=1 // pred_fallthru
      _
    // Predicated region
    $region18: #{tpu_custom_call.1} parent=1 // pred_check
      _
    $region19: #{tpu_custom_call.1} parent=1 // pred_check_branch
      %44 = sbr.rel (0) target = $region21
    $region20: #{tpu_custom_call.1} parent=1 // pred_region
      _
    $region21: #{tpu_custom_call.1} parent=1 // pred_fallthru
      _
    // Predicated region
    $region22: #{tpu_custom_call.1} parent=1 // pred_check
      _
    $region23: #{tpu_custom_call.1} parent=1 // pred_check_branch
      %46 = sbr.rel (0) target = $region25
    $region24: #{tpu_custom_call.1} parent=1 // pred_region
      _
    $region25: #{tpu_custom_call.1} parent=1 // pred_fallthru
      _
    // Predicated region
    $region26: #{tpu_custom_call.1} parent=1 // pred_check
      _
    $region27: #{tpu_custom_call.1} parent=1 // pred_check_branch
      %48 = sbr.rel (0) target = $region29
    $region28: #{tpu_custom_call.1} parent=1 // pred_region
      _
    $region29: #{tpu_custom_call.1} parent=1 // pred_fallthru
      _
    // Predicated region
    $region30: #{tpu_custom_call.1} parent=1 // pred_check
      _
    $region31: #{tpu_custom_call.1} parent=1 // pred_check_branch
      %50 = sbr.rel (0) target = $region33
    $region32: #{tpu_custom_call.1} parent=1 // pred_region
      _
    $region33: #{tpu_custom_call.1} parent=1 // pred_fallthru
      _
    // Predicated region
    $region34: #{tpu_custom_call.1} parent=1 // pred_check
      _
    $region35: #{tpu_custom_call.1} parent=1 // pred_check_branch
      %52 = sbr.rel (0) target = $region37
    $region36: #{tpu_custom_call.1} parent=1 // pred_region
      _
    $region37: #{tpu_custom_call.1} parent=1 // pred_fallthru
      _
    // Predicated region
    $region38: #{tpu_custom_call.1} parent=1 // pred_check
      _
    $region39: #{tpu_custom_call.1} parent=1 // pred_check_branch
      %54 = sbr.rel (0) target = $region41
    $region40: #{tpu_custom_call.1} parent=1 // pred_region
      _
    $region41: #{tpu_custom_call.1} parent=1 // pred_fallthru
      _
    // Predicated region
    $region42: #{tpu_custom_call.1} parent=1 // pred_check
      _
    $region43: #{tpu_custom_call.1} parent=1 // pred_check_branch
      %56 = sbr.rel (0) target = $region45
    $region44: #{tpu_custom_call.1} parent=1 // pred_region
      _
    $region45: #{tpu_custom_call.1} parent=1 // pred_fallthru
      _
    // Predicated region
    $region46: #{tpu_custom_call.1} parent=1 // pred_check
      _
    $region47: #{tpu_custom_call.1} parent=1 // pred_check_branch
      %58 = sbr.rel (0) target = $region49
    $region48: #{tpu_custom_call.1} parent=1 // pred_region
      _
    $region49: #{tpu_custom_call.1} parent=1 // pred_fallthru
      _
    // Predicated region
    $region50: #{tpu_custom_call.1} parent=1 // pred_check
      _
    $region51: #{tpu_custom_call.1} parent=1 // pred_check_branch
      %60 = sbr.rel (0) target = $region53
    $region52: #{tpu_custom_call.1} parent=1 // pred_region
      _
    $region53: #{tpu_custom_call.1} parent=1 // pred_fallthru
      _
    // Predicated region
    $region54: #{tpu_custom_call.1} parent=1 // pred_check
      _
    $region55: #{tpu_custom_call.1} parent=1 // pred_check_branch
      %62 = sbr.rel (0) target = $region57
    $region56: #{tpu_custom_call.1} parent=1 // pred_region
      _
    $region57: #{tpu_custom_call.1} parent=1 // pred_fallthru
      _
    // Predicated region
    $region58: #{tpu_custom_call.1} parent=1 // pred_check
      _
    $region59: #{tpu_custom_call.1} parent=1 // pred_check_branch
      %64 = sbr.rel (0) target = $region61
    $region60: #{tpu_custom_call.1} parent=1 // pred_region
      _
    $region61: #{tpu_custom_call.1} parent=1 // pred_fallthru
      _
    // Predicated region
    $region62: #{tpu_custom_call.1} parent=1 // pred_check
      _
    $region63: #{tpu_custom_call.1} parent=1 // pred_check_branch
      %66 = sbr.rel (0) target = $region65
    $region64: #{tpu_custom_call.1} parent=1 // pred_region
      _
    $region65: #{tpu_custom_call.1} parent=1 // pred_fallthru
      _
    // Predicated region
    $region66: #{tpu_custom_call.1} parent=1 // pred_check
      _
    $region67: #{tpu_custom_call.1} parent=1 // pred_check_branch
      %68 = sbr.rel (0) target = $region69
    $region68: #{tpu_custom_call.1} parent=1 // pred_region
      _
    $region69: #{tpu_custom_call.1} parent=1 // pred_fallthru
      _
    // Predicated region
    $region70: #{tpu_custom_call.1} parent=1 // pred_check
      _
    $region71: #{tpu_custom_call.1} parent=1 // pred_check_branch
      %70 = sbr.rel (0) target = $region73
    $region72: #{tpu_custom_call.1} parent=1 // pred_region
      _
    $region73: #{tpu_custom_call.1} parent=1 // pred_fallthru
      _
    // Predicated region
    $region74: #{tpu_custom_call.1} parent=1 // pred_check
      _
    $region75: #{tpu_custom_call.1} parent=1 // pred_check_branch
      %72 = sbr.rel (0) target = $region77
    $region76: #{tpu_custom_call.1} parent=1 // pred_region
      _
    $region77: #{tpu_custom_call.1} parent=1 // pred_fallthru
      _
    // Predicated region
    $region78: #{tpu_custom_call.1} parent=1 // pred_check
      _
    $region79: #{tpu_custom_call.1} parent=1 // pred_check_branch
      %74 = sbr.rel (0) target = $region81
    $region80: #{tpu_custom_call.1} parent=1 // pred_region
      %75 = dma.done [#allocation3], 16384
    $region81: #{tpu_custom_call.1} parent=1 // pred_fallthru
      _
    %v77 = vld [vmem:[%s0] sm:$0xff]
    %v78 = vld [vmem:[%s0 + $0x8] sm:$0xff]
    %v79 = vld [vmem:[%s0 + $0x10] sm:$0xff]
    %v80 = vld [vmem:[%s0 + $0x18] sm:$0xff]
    %v81 = vld [vmem:[%s0 + $0x20] sm:$0xff]
    %v82 = vld [vmem:[%s0 + $0x28] sm:$0xff]
    %v83 = vld [vmem:[%s0 + $0x30] sm:$0xff]
    %v84 = vld [vmem:[%s0 + $0x38] sm:$0xff]
    %v85 = vld [vmem:[%s0 + $0x40] sm:$0xff]
    %v86 = vld [vmem:[%s0 + $0x48] sm:$0xff]
    %v87 = vld [vmem:[%s0 + $0x50] sm:$0xff]
    %v88 = vld [vmem:[%s0 + $0x58] sm:$0xff]
    %v89 = vld [vmem:[%s0 + $0x60] sm:$0xff]
    %v90 = vld [vmem:[%s0 + $0x68] sm:$0xff]
    %v91 = vld [vmem:[%s0 + $0x70] sm:$0xff]
    %v92 = vld [vmem:[%s0 + $0x78] sm:$0xff]
    %v93 = vld [vmem:[%s0 + $0x80] sm:$0xff]
    %v94 = vld [vmem:[%s0 + $0x88] sm:$0xff]
    %v95 = vld [vmem:[%s0 + $0x90] sm:$0xff]
    %v96 = vld [vmem:[%s0 + $0x98] sm:$0xff]
    %v97 = vld [vmem:[%s0 + $0xa0] sm:$0xff]
    %v98 = vld [vmem:[%s0 + $0xa8] sm:$0xff]
    %v99 = vld [vmem:[%s0 + $0xb0] sm:$0xff]
    %v100 = vld [vmem:[%s0 + $0xb8] sm:$0xff]
    %v101 = vld [vmem:[%s0 + $0xc0] sm:$0xff]
    %v102 = vld [vmem:[%s0 + $0xc8] sm:$0xff]
    %v103 = vld [vmem:[%s0 + $0xd0] sm:$0xff]
    %v104 = vld [vmem:[%s0 + $0xd8] sm:$0xff]
    %v105 = vld [vmem:[%s0 + $0xe0] sm:$0xff]
    %v106 = vld [vmem:[%s0 + $0xe8] sm:$0xff]
    %v107 = vld [vmem:[%s0 + $0xf0] sm:$0xff]
    %v108 = vld [vmem:[%s0 + $0xf8] sm:$0xff]
    %v109 = vpack.c.bf16 %v78, %v77
    %v110 = vpack.c.bf16 %v80, %v79
    %v111 = vpack.c.bf16 %v82, %v81
    %v112 = vpack.c.bf16 %v84, %v83
    %v113 = vpack.c.bf16 %v86, %v85
    %v114 = vpack.c.bf16 %v88, %v87
    %v115 = vpack.c.bf16 %v90, %v89
    %v116 = vpack.c.bf16 %v92, %v91
    %v117 = vpack.c.bf16 %v94, %v93
    %v118 = vpack.c.bf16 %v96, %v95
    %v119 = vpack.c.bf16 %v98, %v97
    %v120 = vpack.c.bf16 %v100, %v99
    %v121 = vpack.c.bf16 %v102, %v101
    %v122 = vpack.c.bf16 %v104, %v103
    %v123 = vpack.c.bf16 %v106, %v105
    %v124 = vpack.c.bf16 %v108, %v107
    %v125 = vld [vmem:[%s1] sm:$0xff]
    %v126 = vld [vmem:[%s1 + $0x8] sm:$0xff]
    %v127 = vld [vmem:[%s1 + $0x10] sm:$0xff]
    %v128 = vld [vmem:[%s1 + $0x18] sm:$0xff]
    %v129 = vld [vmem:[%s1 + $0x20] sm:$0xff]
    %v130 = vld [vmem:[%s1 + $0x28] sm:$0xff]
    %v131 = vld [vmem:[%s1 + $0x30] sm:$0xff]
    %v132 = vld [vmem:[%s1 + $0x38] sm:$0xff]
    %v133 = vld [vmem:[%s1 + $0x40] sm:$0xff]
    %v134 = vld [vmem:[%s1 + $0x48] sm:$0xff]
    %v135 = vld [vmem:[%s1 + $0x50] sm:$0xff]
    %v136 = vld [vmem:[%s1 + $0x58] sm:$0xff]
    %v137 = vld [vmem:[%s1 + $0x60] sm:$0xff]
    %v138 = vld [vmem:[%s1 + $0x68] sm:$0xff]
    %v139 = vld [vmem:[%s1 + $0x70] sm:$0xff]
    %v140 = vld [vmem:[%s1 + $0x78] sm:$0xff]
    %v141 = vld [vmem:[%s1 + $0x80] sm:$0xff]
    %v142 = vld [vmem:[%s1 + $0x88] sm:$0xff]
    %v143 = vld [vmem:[%s1 + $0x90] sm:$0xff]
    %v144 = vld [vmem:[%s1 + $0x98] sm:$0xff]
    %v145 = vld [vmem:[%s1 + $0xa0] sm:$0xff]
    %v146 = vld [vmem:[%s1 + $0xa8] sm:$0xff]
    %v147 = vld [vmem:[%s1 + $0xb0] sm:$0xff]
    %v148 = vld [vmem:[%s1 + $0xb8] sm:$0xff]
    %v149 = vld [vmem:[%s1 + $0xc0] sm:$0xff]
    %v150 = vld [vmem:[%s1 + $0xc8] sm:$0xff]
    %v151 = vld [vmem:[%s1 + $0xd0] sm:$0xff]
    %v152 = vld [vmem:[%s1 + $0xd8] sm:$0xff]
    %v153 = vld [vmem:[%s1 + $0xe0] sm:$0xff]
    %v154 = vld [vmem:[%s1 + $0xe8] sm:$0xff]
    %v155 = vld [vmem:[%s1 + $0xf0] sm:$0xff]
    %v156 = vld [vmem:[%s1 + $0xf8] sm:$0xff]
    %v157 = vld [vmem:[%s1 + $0x100] sm:$0xff]
    %v158 = vld [vmem:[%s1 + $0x108] sm:$0xff]
    %v159 = vld [vmem:[%s1 + $0x110] sm:$0xff]
    %v160 = vld [vmem:[%s1 + $0x118] sm:$0xff]
    %v161 = vld [vmem:[%s1 + $0x120] sm:$0xff]
    %v162 = vld [vmem:[%s1 + $0x128] sm:$0xff]
    %v163 = vld [vmem:[%s1 + $0x130] sm:$0xff]
    %v164 = vld [vmem:[%s1 + $0x138] sm:$0xff]
    %v165 = vld [vmem:[%s1 + $0x140] sm:$0xff]
    %v166 = vld [vmem:[%s1 + $0x148] sm:$0xff]
    %v167 = vld [vmem:[%s1 + $0x150] sm:$0xff]
    %v168 = vld [vmem:[%s1 + $0x158] sm:$0xff]
    %v169 = vld [vmem:[%s1 + $0x160] sm:$0xff]
    %v170 = vld [vmem:[%s1 + $0x168] sm:$0xff]
    %v171 = vld [vmem:[%s1 + $0x170] sm:$0xff]
    %v172 = vld [vmem:[%s1 + $0x178] sm:$0xff]
    %v173 = vld [vmem:[%s1 + $0x180] sm:$0xff]
    %v174 = vld [vmem:[%s1 + $0x188] sm:$0xff]
    %v175 = vld [vmem:[%s1 + $0x190] sm:$0xff]
    %v176 = vld [vmem:[%s1 + $0x198] sm:$0xff]
    %v177 = vld [vmem:[%s1 + $0x1a0] sm:$0xff]
    %v178 = vld [vmem:[%s1 + $0x1a8] sm:$0xff]
    %v179 = vld [vmem:[%s1 + $0x1b0] sm:$0xff]
    %v180 = vld [vmem:[%s1 + $0x1b8] sm:$0xff]
    %v181 = vld [vmem:[%s1 + $0x1c0] sm:$0xff]
    %v182 = vld [vmem:[%s1 + $0x1c8] sm:$0xff]
    %v183 = vld [vmem:[%s1 + $0x1d0] sm:$0xff]
    %v184 = vld [vmem:[%s1 + $0x1d8] sm:$0xff]
    %v185 = vld [vmem:[%s1 + $0x1e0] sm:$0xff]
    %v186 = vld [vmem:[%s1 + $0x1e8] sm:$0xff]
    %v187 = vld [vmem:[%s1 + $0x1f0] sm:$0xff]
    %v188 = vld [vmem:[%s1 + $0x1f8] sm:$0xff]
    %v189 = vpack.c.bf16 %v126, %v125
    %v190 = vpack.c.bf16 %v128, %v127
    %v191 = vpack.c.bf16 %v130, %v129
    %v192 = vpack.c.bf16 %v132, %v131
    %v193 = vpack.c.bf16 %v134, %v133
    %v194 = vpack.c.bf16 %v136, %v135
    %v195 = vpack.c.bf16 %v138, %v137
    %v196 = vpack.c.bf16 %v140, %v139
    %v197 = vpack.c.bf16 %v142, %v141
    %v198 = vpack.c.bf16 %v144, %v143
    %v199 = vpack.c.bf16 %v146, %v145
    %v200 = vpack.c.bf16 %v148, %v147
    %v201 = vpack.c.bf16 %v150, %v149
    %v202 = vpack.c.bf16 %v152, %v151
    %v203 = vpack.c.bf16 %v154, %v153
    %v204 = vpack.c.bf16 %v156, %v155
    %v205 = vpack.c.bf16 %v158, %v157
    %v206 = vpack.c.bf16 %v160, %v159
    %v207 = vpack.c.bf16 %v162, %v161
    %v208 = vpack.c.bf16 %v164, %v163
    %v209 = vpack.c.bf16 %v166, %v165
    %v210 = vpack.c.bf16 %v168, %v167
    %v211 = vpack.c.bf16 %v170, %v169
    %v212 = vpack.c.bf16 %v172, %v171
    %v213 = vpack.c.bf16 %v174, %v173
    %v214 = vpack.c.bf16 %v176, %v175
    %v215 = vpack.c.bf16 %v178, %v177
    %v216 = vpack.c.bf16 %v180, %v179
    %v217 = vpack.c.bf16 %v182, %v181
    %v218 = vpack.c.bf16 %v184, %v183
    %v219 = vpack.c.bf16 %v186, %v185
    %v220 = vpack.c.bf16 %v188, %v187
    %v221 = vld [vmem:[%s3] sm:$0xf]
    %v222 = vld [vmem:[%s3 + $0x4] sm:$0xf]
    %v223 = vld [vmem:[%s3 + $0x8] sm:$0xf]
    %v224 = vld [vmem:[%s3 + $0xc] sm:$0xf]
    %v225 = vld [vmem:[%s4] sm:$0x1]
    %v227 = vlaneseq
    %v228 = vshrl.u32 %v227, 7
    %v229 = vsub.s32 0, %v228
    %v230 = vrot.slane %v225, %v229
    %v236 = vunpack.c.l.b16 %v221
    %v237 = vunpack.c.l.b16 %v222
    %v238 = vunpack.c.l.b16 %v223
    %v239 = vunpack.c.l.b16 %v224
    %v240 = vpack.c.b16 %v237, %v236
    %v241 = vpack.c.b16 %v239, %v238
    %vm244 = vcmask 261120
    %v246 = vsel %vm244, %v109, 0
    %v249 = vsel %vm244, %v110, 0
    %v252 = vsel %vm244, %v111, 0
    %v255 = vsel %vm244, %v112, 0
    %v258 = vsel %vm244, %v113, 0
    %v261 = vsel %vm244, %v114, 0
    %v264 = vsel %vm244, %v115, 0
    %v267 = vsel %vm244, %v116, 0
    %v270 = vsel %vm244, %v117, 0
    %v273 = vsel %vm244, %v118, 0
    %v276 = vsel %vm244, %v119, 0
    %v279 = vsel %vm244, %v120, 0
    %v282 = vsel %vm244, %v121, 0
    %v285 = vsel %vm244, %v122, 0
    %v288 = vsel %vm244, %v123, 0
    %v291 = vsel %vm244, %v124, 0
    %293 = vmatprep.subr.bf16.mxu0 0
    %294 = vmatpush1.bf16.msra.mxu0 %v240
    %295 = vmatprep.subr.bf16.mxu0 0
    %296 = vmatpush1.bf16.msra.mxu0 %v241
    %297 = vmatprep.subr.bf16.mxu0 0
    %298 = vmatpush1.bf16.msra.mxu0 0
    %299 = vmatprep.subr.bf16.mxu0 0
    %300 = vmatpush1.bf16.msra.mxu0 0
    %301 = vmatprep.subr.bf16.mxu0 0
    %302 = vmatpush1.bf16.msra.mxu0 0
    %303 = vmatprep.subr.bf16.mxu0 0
    %304 = vmatpush1.bf16.msra.mxu0 0
    %305 = vmatprep.subr.bf16.mxu0 0
    %306 = vmatpush1.bf16.msra.mxu0 0
    %307 = vmatprep.subr.bf16.mxu0 0
    %308 = vmatpush1.bf16.msra.mxu0 0
    %309 = vmatprep.subr.bf16.mxu0 0
    %310 = vmatpush1.bf16.msra.mxu0 0
    %311 = vmatprep.subr.bf16.mxu0 0
    %312 = vmatpush1.bf16.msra.mxu0 0
    %313 = vmatprep.subr.bf16.mxu0 0
    %314 = vmatpush1.bf16.msra.mxu0 0
    %315 = vmatprep.subr.bf16.mxu0 0
    %316 = vmatpush1.bf16.msra.mxu0 0
    %317 = vmatprep.subr.bf16.mxu0 0
    %318 = vmatpush1.bf16.msra.mxu0 0
    %319 = vmatprep.subr.bf16.mxu0 0
    %320 = vmatpush1.bf16.msra.mxu0 0
    %321 = vmatprep.subr.bf16.mxu0 0
    %322 = vmatpush1.bf16.msra.mxu0 0
    %323 = vmatprep.subr.bf16.mxu0 0
    %324 = vmatpush1.bf16.msra.mxu0 0
    %325 = vmatprep.mubr.bf16.mxu0 0
    %326 = vmatmul.mubr.bf16.gmra.mrb[0].mxu0 %v246
    %v327 = vpop.f32.mrb[0].mxu0
    %v328 = vadd.f32 %v230, %v327
    %v329 = vpop.f32.mrb[0].mxu0
    %v330 = vpop.f32.mrb[0].mxu0
    %v331 = vadd.f32 %v230, %v330
    %v332 = vpop.f32.mrb[0].mxu0
    %333 = vmatprep.mubr.bf16.mxu0 0
    %334 = vmatmul.mubr.bf16.gmra.mrb[0].mxu0 %v249
    %v335 = vpop.f32.mrb[0].mxu0
    %v336 = vadd.f32 %v230, %v335
    %v337 = vpop.f32.mrb[0].mxu0
    %v338 = vpop.f32.mrb[0].mxu0
    %v339 = vadd.f32 %v230, %v338
    %v340 = vpop.f32.mrb[0].mxu0
    %341 = vmatprep.mubr.bf16.mxu0 0
    %342 = vmatmul.mubr.bf16.gmra.mrb[0].mxu0 %v252
    %v343 = vpop.f32.mrb[0].mxu0
    %v344 = vadd.f32 %v230, %v343
    %v345 = vpop.f32.mrb[0].mxu0
    %v346 = vpop.f32.mrb[0].mxu0
    %v347 = vadd.f32 %v230, %v346
    %v348 = vpop.f32.mrb[0].mxu0
    %349 = vmatprep.mubr.bf16.mxu0 0
    %350 = vmatmul.mubr.bf16.gmra.mrb[0].mxu0 %v255
    %v351 = vpop.f32.mrb[0].mxu0
    %v352 = vadd.f32 %v230, %v351
    %v353 = vpop.f32.mrb[0].mxu0
    %v354 = vpop.f32.mrb[0].mxu0
    %v355 = vadd.f32 %v230, %v354
    %v356 = vpop.f32.mrb[0].mxu0
    %357 = vmatprep.mubr.bf16.mxu0 0
    %358 = vmatmul.mubr.bf16.gmra.mrb[0].mxu0 %v258
    %v359 = vpop.f32.mrb[0].mxu0
    %v360 = vadd.f32 %v230, %v359
    %v361 = vpop.f32.mrb[0].mxu0
    %v362 = vpop.f32.mrb[0].mxu0
    %v363 = vadd.f32 %v230, %v362
    %v364 = vpop.f32.mrb[0].mxu0
    %365 = vmatprep.mubr.bf16.mxu0 0
    %366 = vmatmul.mubr.bf16.gmra.mrb[0].mxu0 %v261
    %v367 = vpop.f32.mrb[0].mxu0
    %v368 = vadd.f32 %v230, %v367
    %v369 = vpop.f32.mrb[0].mxu0
    %v370 = vpop.f32.mrb[0].mxu0
    %v371 = vadd.f32 %v230, %v370
    %v372 = vpop.f32.mrb[0].mxu0
    %373 = vmatprep.mubr.bf16.mxu0 0
    %374 = vmatmul.mubr.bf16.gmra.mrb[0].mxu0 %v264
    %v375 = vpop.f32.mrb[0].mxu0
    %v376 = vadd.f32 %v230, %v375
    %v377 = vpop.f32.mrb[0].mxu0
    %v378 = vpop.f32.mrb[0].mxu0
    %v379 = vadd.f32 %v230, %v378
    %v380 = vpop.f32.mrb[0].mxu0
    %381 = vmatprep.mubr.bf16.mxu0 0
    %382 = vmatmul.mubr.bf16.gmra.mrb[0].mxu0 %v267
    %v383 = vpop.f32.mrb[0].mxu0
    %v384 = vadd.f32 %v230, %v383
    %v385 = vpop.f32.mrb[0].mxu0
    %v386 = vpop.f32.mrb[0].mxu0
    %v387 = vadd.f32 %v230, %v386
    %v388 = vpop.f32.mrb[0].mxu0
    %389 = vmatprep.mubr.bf16.mxu0 0
    %390 = vmatmul.mubr.bf16.gmra.mrb[0].mxu0 %v270
    %v391 = vpop.f32.mrb[0].mxu0
    %v392 = vadd.f32 %v230, %v391
    %v393 = vpop.f32.mrb[0].mxu0
    %v394 = vpop.f32.mrb[0].mxu0
    %v395 = vadd.f32 %v230, %v394
    %v396 = vpop.f32.mrb[0].mxu0
    %397 = vmatprep.mubr.bf16.mxu0 0
    %398 = vmatmul.mubr.bf16.gmra.mrb[0].mxu0 %v273
    %v399 = vpop.f32.mrb[0].mxu0
    %v400 = vadd.f32 %v230, %v399
    %v401 = vpop.f32.mrb[0].mxu0
    %v402 = vpop.f32.mrb[0].mxu0
    %v403 = vadd.f32 %v230, %v402
    %v404 = vpop.f32.mrb[0].mxu0
    %405 = vmatprep.mubr.bf16.mxu0 0
    %406 = vmatmul.mubr.bf16.gmra.mrb[0].mxu0 %v276
    %v407 = vpop.f32.mrb[0].mxu0
    %v408 = vadd.f32 %v230, %v407
    %v409 = vpop.f32.mrb[0].mxu0
    %v410 = vpop.f32.mrb[0].mxu0
    %v411 = vadd.f32 %v230, %v410
    %v412 = vpop.f32.mrb[0].mxu0
    %413 = vmatprep.mubr.bf16.mxu0 0
    %414 = vmatmul.mubr.bf16.gmra.mrb[0].mxu0 %v279
    %v415 = vpop.f32.mrb[0].mxu0
    %v416 = vadd.f32 %v230, %v415
    %v417 = vpop.f32.mrb[0].mxu0
    %v418 = vpop.f32.mrb[0].mxu0
    %v419 = vadd.f32 %v230, %v418
    %v420 = vpop.f32.mrb[0].mxu0
    %421 = vmatprep.mubr.bf16.mxu0 0
    %422 = vmatmul.mubr.bf16.gmra.mrb[0].mxu0 %v282
    %v423 = vpop.f32.mrb[0].mxu0
    %v424 = vadd.f32 %v230, %v423
    %v425 = vpop.f32.mrb[0].mxu0
    %v426 = vpop.f32.mrb[0].mxu0
    %v427 = vadd.f32 %v230, %v426
    %v428 = vpop.f32.mrb[0].mxu0
    %429 = vmatprep.mubr.bf16.mxu0 0
    %430 = vmatmul.mubr.bf16.gmra.mrb[0].mxu0 %v285
    %v431 = vpop.f32.mrb[0].mxu0
    %v432 = vadd.f32 %v230, %v431
    %v433 = vpop.f32.mrb[0].mxu0
    %v434 = vpop.f32.mrb[0].mxu0
    %v435 = vadd.f32 %v230, %v434
    %v436 = vpop.f32.mrb[0].mxu0
    %437 = vmatprep.mubr.bf16.mxu0 0
    %438 = vmatmul.mubr.bf16.gmra.mrb[0].mxu0 %v288
    %v439 = vpop.f32.mrb[0].mxu0
    %v440 = vadd.f32 %v230, %v439
    %v441 = vpop.f32.mrb[0].mxu0
    %v442 = vpop.f32.mrb[0].mxu0
    %v443 = vadd.f32 %v230, %v442
    %v444 = vpop.f32.mrb[0].mxu0
    %445 = vmatprep.mubr.bf16.mxu0 0
    %446 = vmatmul.mubr.bf16.gmra.mrb[0].mxu0 %v291
    %v447 = vpop.f32.mrb[0].mxu0
    %v448 = vadd.f32 %v230, %v447
    %v449 = vpop.f32.mrb[0].mxu0
    %v450 = vpop.f32.mrb[0].mxu0
    %v451 = vadd.f32 %v230, %v450
    %v452 = vpop.f32.mrb[0].mxu0
    %453 = vdwg.mxu0
    %v454 = vld [vmem:[%s5] sm:$0xf]
    %v455 = vld [vmem:[%s5 + $0x4] sm:$0xf]
    %v456 = vld [vmem:[%s6] sm:$0x1]
    %v458 = vlaneseq
    %v459 = vshrl.u32 %v458, 7
    %v460 = vsub.s32 0, %v459
    %v461 = vrot.slane %v456, %v460
    %v465 = vunpack.c.l.b16 %v454
    %v466 = vunpack.c.l.b16 %v455
    %v467 = vpack.c.b16 %v466, %v465
    %vm469 = vcmask 130048
    %v471 = vsel %vm469, %v189, 0
    %v474 = vsel %vm469, %v190, 0
    %v477 = vsel %vm469, %v191, 0
    %v480 = vsel %vm469, %v192, 0
    %v483 = vsel %vm469, %v193, 0
    %v486 = vsel %vm469, %v194, 0
    %v489 = vsel %vm469, %v195, 0
    %v492 = vsel %vm469, %v196, 0
    %v495 = vsel %vm469, %v197, 0
    %v498 = vsel %vm469, %v198, 0
    %v501 = vsel %vm469, %v199, 0
    %v504 = vsel %vm469, %v200, 0
    %v507 = vsel %vm469, %v201, 0
    %v510 = vsel %vm469, %v202, 0
    %v513 = vsel %vm469, %v203, 0
    %v516 = vsel %vm469, %v204, 0
    %v519 = vsel %vm469, %v205, 0
    %v522 = vsel %vm469, %v206, 0
    %v525 = vsel %vm469, %v207, 0
    %v528 = vsel %vm469, %v208, 0
    %v531 = vsel %vm469, %v209, 0
    %v534 = vsel %vm469, %v210, 0
    %v537 = vsel %vm469, %v211, 0
    %v540 = vsel %vm469, %v212, 0
    %v543 = vsel %vm469, %v213, 0
    %v546 = vsel %vm469, %v214, 0
    %v549 = vsel %vm469, %v215, 0
    %v552 = vsel %vm469, %v216, 0
    %v555 = vsel %vm469, %v217, 0
    %v558 = vsel %vm469, %v218, 0
    %v561 = vsel %vm469, %v219, 0
    %v564 = vsel %vm469, %v220, 0
    %566 = vmatprep.subr.bf16.mxu0 0
    %567 = vmatpush1.bf16.msra.mxu0 %v467
    %568 = vmatprep.subr.bf16.mxu0 0
    %569 = vmatpush1.bf16.msra.mxu0 0
    %570 = vmatprep.subr.bf16.mxu0 0
    %571 = vmatpush1.bf16.msra.mxu0 0
    %572 = vmatprep.subr.bf16.mxu0 0
    %573 = vmatpush1.bf16.msra.mxu0 0
    %574 = vmatprep.subr.bf16.mxu0 0
    %575 = vmatpush1.bf16.msra.mxu0 0
    %576 = vmatprep.subr.bf16.mxu0 0
    %577 = vmatpush1.bf16.msra.mxu0 0
    %578 = vmatprep.subr.bf16.mxu0 0
    %579 = vmatpush1.bf16.msra.mxu0 0
    %580 = vmatprep.subr.bf16.mxu0 0
    %581 = vmatpush1.bf16.msra.mxu0 0
    %582 = vmatprep.subr.bf16.mxu0 0
    %583 = vmatpush1.bf16.msra.mxu0 0
    %584 = vmatprep.subr.bf16.mxu0 0
    %585 = vmatpush1.bf16.msra.mxu0 0
    %586 = vmatprep.subr.bf16.mxu0 0
    %587 = vmatpush1.bf16.msra.mxu0 0
    %588 = vmatprep.subr.bf16.mxu0 0
    %589 = vmatpush1.bf16.msra.mxu0 0
    %590 = vmatprep.subr.bf16.mxu0 0
    %591 = vmatpush1.bf16.msra.mxu0 0
    %592 = vmatprep.subr.bf16.mxu0 0
    %593 = vmatpush1.bf16.msra.mxu0 0
    %594 = vmatprep.subr.bf16.mxu0 0
    %595 = vmatpush1.bf16.msra.mxu0 0
    %596 = vmatprep.subr.bf16.mxu0 0
    %597 = vmatpush1.bf16.msra.mxu0 0
    %598 = vmatprep.mubr.bf16.mxu0 0
    %599 = vmatmul.mubr.bf16.gmra.mrb[0].mxu0 %v471
    %v600 = vpop.f32.mrb[0].mxu0
    %v601 = vadd.f32 %v461, %v600
    %v602 = vpop.f32.mrb[0].mxu0
    %v603 = vpop.f32.mrb[0].mxu0
    %v604 = vadd.f32 %v461, %v603
    %v605 = vpop.f32.mrb[0].mxu0
    %606 = vmatprep.mubr.bf16.mxu0 0
    %607 = vmatmul.mubr.bf16.gmra.mrb[0].mxu0 %v474
    %v608 = vpop.f32.mrb[0].mxu0
    %v609 = vadd.f32 %v461, %v608
    %v610 = vpop.f32.mrb[0].mxu0
    %v611 = vpop.f32.mrb[0].mxu0
    %v612 = vadd.f32 %v461, %v611
    %v613 = vpop.f32.mrb[0].mxu0
    %614 = vmatprep.mubr.bf16.mxu0 0
    %615 = vmatmul.mubr.bf16.gmra.mrb[0].mxu0 %v477
    %v616 = vpop.f32.mrb[0].mxu0
    %v617 = vadd.f32 %v461, %v616
    %v618 = vpop.f32.mrb[0].mxu0
    %v619 = vpop.f32.mrb[0].mxu0
    %v620 = vadd.f32 %v461, %v619
    %v621 = vpop.f32.mrb[0].mxu0
    %622 = vmatprep.mubr.bf16.mxu0 0
    %623 = vmatmul.mubr.bf16.gmra.mrb[0].mxu0 %v480
    %v624 = vpop.f32.mrb[0].mxu0
    %v625 = vadd.f32 %v461, %v624
    %v626 = vpop.f32.mrb[0].mxu0
    %v627 = vpop.f32.mrb[0].mxu0
    %v628 = vadd.f32 %v461, %v627
    %v629 = vpop.f32.mrb[0].mxu0
    %630 = vmatprep.mubr.bf16.mxu0 0
    %631 = vmatmul.mubr.bf16.gmra.mrb[0].mxu0 %v483
    %v632 = vpop.f32.mrb[0].mxu0
    %v633 = vadd.f32 %v461, %v632
    %v634 = vpop.f32.mrb[0].mxu0
    %v635 = vpop.f32.mrb[0].mxu0
    %v636 = vadd.f32 %v461, %v635
    %v637 = vpop.f32.mrb[0].mxu0
    %638 = vmatprep.mubr.bf16.mxu0 0
    %639 = vmatmul.mubr.bf16.gmra.mrb[0].mxu0 %v486
    %v640 = vpop.f32.mrb[0].mxu0
    %v641 = vadd.f32 %v461, %v640
    %v642 = vpop.f32.mrb[0].mxu0
    %v643 = vpop.f32.mrb[0].mxu0
    %v644 = vadd.f32 %v461, %v643
    %v645 = vpop.f32.mrb[0].mxu0
    %646 = vmatprep.mubr.bf16.mxu0 0
    %647 = vmatmul.mubr.bf16.gmra.mrb[0].mxu0 %v489
    %v648 = vpop.f32.mrb[0].mxu0
    %v649 = vadd.f32 %v461, %v648
    %v650 = vpop.f32.mrb[0].mxu0
    %v651 = vpop.f32.mrb[0].mxu0
    %v652 = vadd.f32 %v461, %v651
    %v653 = vpop.f32.mrb[0].mxu0
    %654 = vmatprep.mubr.bf16.mxu0 0
    %655 = vmatmul.mubr.bf16.gmra.mrb[0].mxu0 %v492
    %v656 = vpop.f32.mrb[0].mxu0
    %v657 = vadd.f32 %v461, %v656
    %v658 = vpop.f32.mrb[0].mxu0
    %v659 = vpop.f32.mrb[0].mxu0
    %v660 = vadd.f32 %v461, %v659
    %v661 = vpop.f32.mrb[0].mxu0
    %662 = vmatprep.mubr.bf16.mxu0 0
    %663 = vmatmul.mubr.bf16.gmra.mrb[0].mxu0 %v495
    %v664 = vpop.f32.mrb[0].mxu0
    %v665 = vadd.f32 %v461, %v664
    %v666 = vpop.f32.mrb[0].mxu0
    %v667 = vpop.f32.mrb[0].mxu0
    %v668 = vadd.f32 %v461, %v667
    %v669 = vpop.f32.mrb[0].mxu0
    %670 = vmatprep.mubr.bf16.mxu0 0
    %671 = vmatmul.mubr.bf16.gmra.mrb[0].mxu0 %v498
    %v672 = vpop.f32.mrb[0].mxu0
    %v673 = vadd.f32 %v461, %v672
    %v674 = vpop.f32.mrb[0].mxu0
    %v675 = vpop.f32.mrb[0].mxu0
    %v676 = vadd.f32 %v461, %v675
    %v677 = vpop.f32.mrb[0].mxu0
    %678 = vmatprep.mubr.bf16.mxu0 0
    %679 = vmatmul.mubr.bf16.gmra.mrb[0].mxu0 %v501
    %v680 = vpop.f32.mrb[0].mxu0
    %v681 = vadd.f32 %v461, %v680
    %v682 = vpop.f32.mrb[0].mxu0
    %v683 = vpop.f32.mrb[0].mxu0
    %v684 = vadd.f32 %v461, %v683
    %v685 = vpop.f32.mrb[0].mxu0
    %686 = vmatprep.mubr.bf16.mxu0 0
    %687 = vmatmul.mubr.bf16.gmra.mrb[0].mxu0 %v504
    %v688 = vpop.f32.mrb[0].mxu0
    %v689 = vadd.f32 %v461, %v688
    %v690 = vpop.f32.mrb[0].mxu0
    %v691 = vpop.f32.mrb[0].mxu0
    %v692 = vadd.f32 %v461, %v691
    %v693 = vpop.f32.mrb[0].mxu0
    %694 = vmatprep.mubr.bf16.mxu0 0
    %695 = vmatmul.mubr.bf16.gmra.mrb[0].mxu0 %v507
    %v696 = vpop.f32.mrb[0].mxu0
    %v697 = vadd.f32 %v461, %v696
    %v698 = vpop.f32.mrb[0].mxu0
    %v699 = vpop.f32.mrb[0].mxu0
    %v700 = vadd.f32 %v461, %v699
    %v701 = vpop.f32.mrb[0].mxu0
    %702 = vmatprep.mubr.bf16.mxu0 0
    %703 = vmatmul.mubr.bf16.gmra.mrb[0].mxu0 %v510
    %v704 = vpop.f32.mrb[0].mxu0
    %v705 = vadd.f32 %v461, %v704
    %v706 = vpop.f32.mrb[0].mxu0
    %v707 = vpop.f32.mrb[0].mxu0
    %v708 = vadd.f32 %v461, %v707
    %v709 = vpop.f32.mrb[0].mxu0
    %710 = vmatprep.mubr.bf16.mxu0 0
    %711 = vmatmul.mubr.bf16.gmra.mrb[0].mxu0 %v513
    %v712 = vpop.f32.mrb[0].mxu0
    %v713 = vadd.f32 %v461, %v712
    %v714 = vpop.f32.mrb[0].mxu0
    %v715 = vpop.f32.mrb[0].mxu0
    %v716 = vadd.f32 %v461, %v715
    %v717 = vpop.f32.mrb[0].mxu0
    %718 = vmatprep.mubr.bf16.mxu0 0
    %719 = vmatmul.mubr.bf16.gmra.mrb[0].mxu0 %v516
    %v720 = vpop.f32.mrb[0].mxu0
    %v721 = vadd.f32 %v461, %v720
    %v722 = vpop.f32.mrb[0].mxu0
    %v723 = vpop.f32.mrb[0].mxu0
    %v724 = vadd.f32 %v461, %v723
    %v725 = vpop.f32.mrb[0].mxu0
    %726 = vmatprep.mubr.bf16.mxu0 0
    %727 = vmatmul.mubr.bf16.gmra.mrb[0].mxu0 %v519
    %v728 = vpop.f32.mrb[0].mxu0
    %v729 = vadd.f32 %v461, %v728
    %v730 = vpop.f32.mrb[0].mxu0
    %v731 = vpop.f32.mrb[0].mxu0
    %v732 = vadd.f32 %v461, %v731
    %v733 = vpop.f32.mrb[0].mxu0
    %734 = vmatprep.mubr.bf16.mxu0 0
    %735 = vmatmul.mubr.bf16.gmra.mrb[0].mxu0 %v522
    %v736 = vpop.f32.mrb[0].mxu0
    %v737 = vadd.f32 %v461, %v736
    %v738 = vpop.f32.mrb[0].mxu0
    %v739 = vpop.f32.mrb[0].mxu0
    %v740 = vadd.f32 %v461, %v739
    %v741 = vpop.f32.mrb[0].mxu0
    %742 = vmatprep.mubr.bf16.mxu0 0
    %743 = vmatmul.mubr.bf16.gmra.mrb[0].mxu0 %v525
    %v744 = vpop.f32.mrb[0].mxu0
    %v745 = vadd.f32 %v461, %v744
    %v746 = vpop.f32.mrb[0].mxu0
    %v747 = vpop.f32.mrb[0].mxu0
    %v748 = vadd.f32 %v461, %v747
    %v749 = vpop.f32.mrb[0].mxu0
    %750 = vmatprep.mubr.bf16.mxu0 0
    %751 = vmatmul.mubr.bf16.gmra.mrb[0].mxu0 %v528
    %v752 = vpop.f32.mrb[0].mxu0
    %v753 = vadd.f32 %v461, %v752
    %v754 = vpop.f32.mrb[0].mxu0
    %v755 = vpop.f32.mrb[0].mxu0
    %v756 = vadd.f32 %v461, %v755
    %v757 = vpop.f32.mrb[0].mxu0
    %758 = vmatprep.mubr.bf16.mxu0 0
    %759 = vmatmul.mubr.bf16.gmra.mrb[0].mxu0 %v531
    %v760 = vpop.f32.mrb[0].mxu0
    %v761 = vadd.f32 %v461, %v760
    %v762 = vpop.f32.mrb[0].mxu0
    %v763 = vpop.f32.mrb[0].mxu0
    %v764 = vadd.f32 %v461, %v763
    %v765 = vpop.f32.mrb[0].mxu0
    %766 = vmatprep.mubr.bf16.mxu0 0
    %767 = vmatmul.mubr.bf16.gmra.mrb[0].mxu0 %v534
    %v768 = vpop.f32.mrb[0].mxu0
    %v769 = vadd.f32 %v461, %v768
    %v770 = vpop.f32.mrb[0].mxu0
    %v771 = vpop.f32.mrb[0].mxu0
    %v772 = vadd.f32 %v461, %v771
    %v773 = vpop.f32.mrb[0].mxu0
    %774 = vmatprep.mubr.bf16.mxu0 0
    %775 = vmatmul.mubr.bf16.gmra.mrb[0].mxu0 %v537
    %v776 = vpop.f32.mrb[0].mxu0
    %v777 = vadd.f32 %v461, %v776
    %v778 = vpop.f32.mrb[0].mxu0
    %v779 = vpop.f32.mrb[0].mxu0
    %v780 = vadd.f32 %v461, %v779
    %v781 = vpop.f32.mrb[0].mxu0
    %782 = vmatprep.mubr.bf16.mxu0 0
    %783 = vmatmul.mubr.bf16.gmra.mrb[0].mxu0 %v540
    %v784 = vpop.f32.mrb[0].mxu0
    %v785 = vadd.f32 %v461, %v784
    %v786 = vpop.f32.mrb[0].mxu0
    %v787 = vpop.f32.mrb[0].mxu0
    %v788 = vadd.f32 %v461, %v787
    %v789 = vpop.f32.mrb[0].mxu0
    %790 = vmatprep.mubr.bf16.mxu0 0
    %791 = vmatmul.mubr.bf16.gmra.mrb[0].mxu0 %v543
    %v792 = vpop.f32.mrb[0].mxu0
    %v793 = vadd.f32 %v461, %v792
    %v794 = vpop.f32.mrb[0].mxu0
    %v795 = vpop.f32.mrb[0].mxu0
    %v796 = vadd.f32 %v461, %v795
    %v797 = vpop.f32.mrb[0].mxu0
    %798 = vmatprep.mubr.bf16.mxu0 0
    %799 = vmatmul.mubr.bf16.gmra.mrb[0].mxu0 %v546
    %v800 = vpop.f32.mrb[0].mxu0
    %v801 = vadd.f32 %v461, %v800
    %v802 = vpop.f32.mrb[0].mxu0
    %v803 = vpop.f32.mrb[0].mxu0
    %v804 = vadd.f32 %v461, %v803
    %v805 = vpop.f32.mrb[0].mxu0
    %806 = vmatprep.mubr.bf16.mxu0 0
    %807 = vmatmul.mubr.bf16.gmra.mrb[0].mxu0 %v549
    %v808 = vpop.f32.mrb[0].mxu0
    %v809 = vadd.f32 %v461, %v808
    %v810 = vpop.f32.mrb[0].mxu0
    %v811 = vpop.f32.mrb[0].mxu0
    %v812 = vadd.f32 %v461, %v811
    %v813 = vpop.f32.mrb[0].mxu0
    %814 = vmatprep.mubr.bf16.mxu0 0
    %815 = vmatmul.mubr.bf16.gmra.mrb[0].mxu0 %v552
    %v816 = vpop.f32.mrb[0].mxu0
    %v817 = vadd.f32 %v461, %v816
    %v818 = vpop.f32.mrb[0].mxu0
    %v819 = vpop.f32.mrb[0].mxu0
    %v820 = vadd.f32 %v461, %v819
    %v821 = vpop.f32.mrb[0].mxu0
    %822 = vmatprep.mubr.bf16.mxu0 0
    %823 = vmatmul.mubr.bf16.gmra.mrb[0].mxu0 %v555
    %v824 = vpop.f32.mrb[0].mxu0
    %v825 = vadd.f32 %v461, %v824
    %v826 = vpop.f32.mrb[0].mxu0
    %v827 = vpop.f32.mrb[0].mxu0
    %v828 = vadd.f32 %v461, %v827
    %v829 = vpop.f32.mrb[0].mxu0
    %830 = vmatprep.mubr.bf16.mxu0 0
    %831 = vmatmul.mubr.bf16.gmra.mrb[0].mxu0 %v558
    %v832 = vpop.f32.mrb[0].mxu0
    %v833 = vadd.f32 %v461, %v832
    %v834 = vpop.f32.mrb[0].mxu0
    %v835 = vpop.f32.mrb[0].mxu0
    %v836 = vadd.f32 %v461, %v835
    %v837 = vpop.f32.mrb[0].mxu0
    %838 = vmatprep.mubr.bf16.mxu0 0
    %839 = vmatmul.mubr.bf16.gmra.mrb[0].mxu0 %v561
    %v840 = vpop.f32.mrb[0].mxu0
    %v841 = vadd.f32 %v461, %v840
    %v842 = vpop.f32.mrb[0].mxu0
    %v843 = vpop.f32.mrb[0].mxu0
    %v844 = vadd.f32 %v461, %v843
    %v845 = vpop.f32.mrb[0].mxu0
    %846 = vmatprep.mubr.bf16.mxu0 0
    %847 = vmatmul.mubr.bf16.gmra.mrb[0].mxu0 %v564
    %v848 = vpop.f32.mrb[0].mxu0
    %v849 = vadd.f32 %v461, %v848
    %v850 = vpop.f32.mrb[0].mxu0
    %v851 = vpop.f32.mrb[0].mxu0
    %v852 = vadd.f32 %v461, %v851
    %v853 = vpop.f32.mrb[0].mxu0
    %854 = vdwg.mxu0
    %v855 = vld [vmem:[%s7] sm:$0xf]
    %v856 = vld [vmem:[%s7 + $0x4] sm:$0xf]
    %v857 = vld [vmem:[%s8] sm:$0x1]
    %v859 = vlaneseq
    %v860 = vshrl.u32 %v859, 7
    %v861 = vsub.s32 0, %v860
    %v862 = vrot.slane %v857, %v861
    %v866 = vunpack.c.l.b16 %v855
    %v867 = vunpack.c.l.b16 %v856
    %v868 = vpack.c.b16 %v867, %v866
    %870 = vmatprep.subr.bf16.mxu0 0
    %871 = vmatpush1.bf16.msra.mxu0 %v868
    %872 = vmatprep.subr.bf16.mxu0 0
    %873 = vmatpush1.bf16.msra.mxu0 0
    %874 = vmatprep.subr.bf16.mxu0 0
    %875 = vmatpush1.bf16.msra.mxu0 0
    %876 = vmatprep.subr.bf16.mxu0 0
    %877 = vmatpush1.bf16.msra.mxu0 0
    %878 = vmatprep.subr.bf16.mxu0 0
    %879 = vmatpush1.bf16.msra.mxu0 0
    %880 = vmatprep.subr.bf16.mxu0 0
    %881 = vmatpush1.bf16.msra.mxu0 0
    %882 = vmatprep.subr.bf16.mxu0 0
    %883 = vmatpush1.bf16.msra.mxu0 0
    %884 = vmatprep.subr.bf16.mxu0 0
    %885 = vmatpush1.bf16.msra.mxu0 0
    %886 = vmatprep.subr.bf16.mxu0 0
    %887 = vmatpush1.bf16.msra.mxu0 0
    %888 = vmatprep.subr.bf16.mxu0 0
    %889 = vmatpush1.bf16.msra.mxu0 0
    %890 = vmatprep.subr.bf16.mxu0 0
    %891 = vmatpush1.bf16.msra.mxu0 0
    %892 = vmatprep.subr.bf16.mxu0 0
    %893 = vmatpush1.bf16.msra.mxu0 0
    %894 = vmatprep.subr.bf16.mxu0 0
    %895 = vmatpush1.bf16.msra.mxu0 0
    %896 = vmatprep.subr.bf16.mxu0 0
    %897 = vmatpush1.bf16.msra.mxu0 0
    %898 = vmatprep.subr.bf16.mxu0 0
    %899 = vmatpush1.bf16.msra.mxu0 0
    %900 = vmatprep.subr.bf16.mxu0 0
    %901 = vmatpush1.bf16.msra.mxu0 0
    %902 = vmatprep.mubr.bf16.mxu0 0
    %903 = vmatmul.mubr.bf16.gmra.mrb[0].mxu0 %v471
    %v904 = vpop.f32.mrb[0].mxu0
    %v905 = vadd.f32 %v862, %v904
    %v906 = vpop.f32.mrb[0].mxu0
    %v907 = vpop.f32.mrb[0].mxu0
    %v908 = vadd.f32 %v862, %v907
    %v909 = vpop.f32.mrb[0].mxu0
    %910 = vmatprep.mubr.bf16.mxu0 0
    %911 = vmatmul.mubr.bf16.gmra.mrb[0].mxu0 %v474
    %v912 = vpop.f32.mrb[0].mxu0
    %v913 = vadd.f32 %v862, %v912
    %v914 = vpop.f32.mrb[0].mxu0
    %v915 = vpop.f32.mrb[0].mxu0
    %v916 = vadd.f32 %v862, %v915
    %v917 = vpop.f32.mrb[0].mxu0
    %918 = vmatprep.mubr.bf16.mxu0 0
    %919 = vmatmul.mubr.bf16.gmra.mrb[0].mxu0 %v477
    %v920 = vpop.f32.mrb[0].mxu0
    %v921 = vadd.f32 %v862, %v920
    %v922 = vpop.f32.mrb[0].mxu0
    %v923 = vpop.f32.mrb[0].mxu0
    %v924 = vadd.f32 %v862, %v923
    %v925 = vpop.f32.mrb[0].mxu0
    %926 = vmatprep.mubr.bf16.mxu0 0
    %927 = vmatmul.mubr.bf16.gmra.mrb[0].mxu0 %v480
    %v928 = vpop.f32.mrb[0].mxu0
    %v929 = vadd.f32 %v862, %v928
    %v930 = vpop.f32.mrb[0].mxu0
    %v931 = vpop.f32.mrb[0].mxu0
    %v932 = vadd.f32 %v862, %v931
    %v933 = vpop.f32.mrb[0].mxu0
    %934 = vmatprep.mubr.bf16.mxu0 0
    %935 = vmatmul.mubr.bf16.gmra.mrb[0].mxu0 %v483
    %v936 = vpop.f32.mrb[0].mxu0
    %v937 = vadd.f32 %v862, %v936
    %v938 = vpop.f32.mrb[0].mxu0
    %v939 = vpop.f32.mrb[0].mxu0
    %v940 = vadd.f32 %v862, %v939
    %v941 = vpop.f32.mrb[0].mxu0
    %942 = vmatprep.mubr.bf16.mxu0 0
    %943 = vmatmul.mubr.bf16.gmra.mrb[0].mxu0 %v486
    %v944 = vpop.f32.mrb[0].mxu0
    %v945 = vadd.f32 %v862, %v944
    %v946 = vpop.f32.mrb[0].mxu0
    %v947 = vpop.f32.mrb[0].mxu0
    %v948 = vadd.f32 %v862, %v947
    %v949 = vpop.f32.mrb[0].mxu0
    %950 = vmatprep.mubr.bf16.mxu0 0
    %951 = vmatmul.mubr.bf16.gmra.mrb[0].mxu0 %v489
    %v952 = vpop.f32.mrb[0].mxu0
    %v953 = vadd.f32 %v862, %v952
    %v954 = vpop.f32.mrb[0].mxu0
    %v955 = vpop.f32.mrb[0].mxu0
    %v956 = vadd.f32 %v862, %v955
    %v957 = vpop.f32.mrb[0].mxu0
    %958 = vmatprep.mubr.bf16.mxu0 0
    %959 = vmatmul.mubr.bf16.gmra.mrb[0].mxu0 %v492
    %v960 = vpop.f32.mrb[0].mxu0
    %v961 = vadd.f32 %v862, %v960
    %v962 = vpop.f32.mrb[0].mxu0
    %v963 = vpop.f32.mrb[0].mxu0
    %v964 = vadd.f32 %v862, %v963
    %v965 = vpop.f32.mrb[0].mxu0
    %966 = vmatprep.mubr.bf16.mxu0 0
    %967 = vmatmul.mubr.bf16.gmra.mrb[0].mxu0 %v495
    %v968 = vpop.f32.mrb[0].mxu0
    %v969 = vadd.f32 %v862, %v968
    %v970 = vpop.f32.mrb[0].mxu0
    %v971 = vpop.f32.mrb[0].mxu0
    %v972 = vadd.f32 %v862, %v971
    %v973 = vpop.f32.mrb[0].mxu0
    %974 = vmatprep.mubr.bf16.mxu0 0
    %975 = vmatmul.mubr.bf16.gmra.mrb[0].mxu0 %v498
    %v976 = vpop.f32.mrb[0].mxu0
    %v977 = vadd.f32 %v862, %v976
    %v978 = vpop.f32.mrb[0].mxu0
    %v979 = vpop.f32.mrb[0].mxu0
    %v980 = vadd.f32 %v862, %v979
    %v981 = vpop.f32.mrb[0].mxu0
    %982 = vmatprep.mubr.bf16.mxu0 0
    %983 = vmatmul.mubr.bf16.gmra.mrb[0].mxu0 %v501
    %v984 = vpop.f32.mrb[0].mxu0
    %v985 = vadd.f32 %v862, %v984
    %v986 = vpop.f32.mrb[0].mxu0
    %v987 = vpop.f32.mrb[0].mxu0
    %v988 = vadd.f32 %v862, %v987
    %v989 = vpop.f32.mrb[0].mxu0
    %990 = vmatprep.mubr.bf16.mxu0 0
    %991 = vmatmul.mubr.bf16.gmra.mrb[0].mxu0 %v504
    %v992 = vpop.f32.mrb[0].mxu0
    %v993 = vadd.f32 %v862, %v992
    %v994 = vpop.f32.mrb[0].mxu0
    %v995 = vpop.f32.mrb[0].mxu0
    %v996 = vadd.f32 %v862, %v995
    %v997 = vpop.f32.mrb[0].mxu0
    %998 = vmatprep.mubr.bf16.mxu0 0
    %999 = vmatmul.mubr.bf16.gmra.mrb[0].mxu0 %v507
    %v1000 = vpop.f32.mrb[0].mxu0
    %v1001 = vadd.f32 %v862, %v1000
    %v1002 = vpop.f32.mrb[0].mxu0
    %v1003 = vpop.f32.mrb[0].mxu0
    %v1004 = vadd.f32 %v862, %v1003
    %v1005 = vpop.f32.mrb[0].mxu0
    %1006 = vmatprep.mubr.bf16.mxu0 0
    %1007 = vmatmul.mubr.bf16.gmra.mrb[0].mxu0 %v510
    %v1008 = vpop.f32.mrb[0].mxu0
    %v1009 = vadd.f32 %v862, %v1008
    %v1010 = vpop.f32.mrb[0].mxu0
    %v1011 = vpop.f32.mrb[0].mxu0
    %v1012 = vadd.f32 %v862, %v1011
    %v1013 = vpop.f32.mrb[0].mxu0
    %1014 = vmatprep.mubr.bf16.mxu0 0
    %1015 = vmatmul.mubr.bf16.gmra.mrb[0].mxu0 %v513
    %v1016 = vpop.f32.mrb[0].mxu0
    %v1017 = vadd.f32 %v862, %v1016
    %v1018 = vpop.f32.mrb[0].mxu0
    %v1019 = vpop.f32.mrb[0].mxu0
    %v1020 = vadd.f32 %v862, %v1019
    %v1021 = vpop.f32.mrb[0].mxu0
    %1022 = vmatprep.mubr.bf16.mxu0 0
    %1023 = vmatmul.mubr.bf16.gmra.mrb[0].mxu0 %v516
    %v1024 = vpop.f32.mrb[0].mxu0
    %v1025 = vadd.f32 %v862, %v1024
    %v1026 = vpop.f32.mrb[0].mxu0
    %v1027 = vpop.f32.mrb[0].mxu0
    %v1028 = vadd.f32 %v862, %v1027
    %v1029 = vpop.f32.mrb[0].mxu0
    %1030 = vmatprep.mubr.bf16.mxu0 0
    %1031 = vmatmul.mubr.bf16.gmra.mrb[0].mxu0 %v519
    %v1032 = vpop.f32.mrb[0].mxu0
    %v1033 = vadd.f32 %v862, %v1032
    %v1034 = vpop.f32.mrb[0].mxu0
    %v1035 = vpop.f32.mrb[0].mxu0
    %v1036 = vadd.f32 %v862, %v1035
    %v1037 = vpop.f32.mrb[0].mxu0
    %1038 = vmatprep.mubr.bf16.mxu0 0
    %1039 = vmatmul.mubr.bf16.gmra.mrb[0].mxu0 %v522
    %v1040 = vpop.f32.mrb[0].mxu0
    %v1041 = vadd.f32 %v862, %v1040
    %v1042 = vpop.f32.mrb[0].mxu0
    %v1043 = vpop.f32.mrb[0].mxu0
    %v1044 = vadd.f32 %v862, %v1043
    %v1045 = vpop.f32.mrb[0].mxu0
    %1046 = vmatprep.mubr.bf16.mxu0 0
    %1047 = vmatmul.mubr.bf16.gmra.mrb[0].mxu0 %v525
    %v1048 = vpop.f32.mrb[0].mxu0
    %v1049 = vadd.f32 %v862, %v1048
    %v1050 = vpop.f32.mrb[0].mxu0
    %v1051 = vpop.f32.mrb[0].mxu0
    %v1052 = vadd.f32 %v862, %v1051
    %v1053 = vpop.f32.mrb[0].mxu0
    %1054 = vmatprep.mubr.bf16.mxu0 0
    %1055 = vmatmul.mubr.bf16.gmra.mrb[0].mxu0 %v528
    %v1056 = vpop.f32.mrb[0].mxu0
    %v1057 = vadd.f32 %v862, %v1056
    %v1058 = vpop.f32.mrb[0].mxu0
    %v1059 = vpop.f32.mrb[0].mxu0
    %v1060 = vadd.f32 %v862, %v1059
    %v1061 = vpop.f32.mrb[0].mxu0
    %1062 = vmatprep.mubr.bf16.mxu0 0
    %1063 = vmatmul.mubr.bf16.gmra.mrb[0].mxu0 %v531
    %v1064 = vpop.f32.mrb[0].mxu0
    %v1065 = vadd.f32 %v862, %v1064
    %v1066 = vpop.f32.mrb[0].mxu0
    %v1067 = vpop.f32.mrb[0].mxu0
    %v1068 = vadd.f32 %v862, %v1067
    %v1069 = vpop.f32.mrb[0].mxu0
    %1070 = vmatprep.mubr.bf16.mxu0 0
    %1071 = vmatmul.mubr.bf16.gmra.mrb[0].mxu0 %v534
    %v1072 = vpop.f32.mrb[0].mxu0
    %v1073 = vadd.f32 %v862, %v1072
    %v1074 = vpop.f32.mrb[0].mxu0
    %v1075 = vpop.f32.mrb[0].mxu0
    %v1076 = vadd.f32 %v862, %v1075
    %v1077 = vpop.f32.mrb[0].mxu0
    %1078 = vmatprep.mubr.bf16.mxu0 0
    %1079 = vmatmul.mubr.bf16.gmra.mrb[0].mxu0 %v537
    %v1080 = vpop.f32.mrb[0].mxu0
    %v1081 = vadd.f32 %v862, %v1080
    %v1082 = vpop.f32.mrb[0].mxu0
    %v1083 = vpop.f32.mrb[0].mxu0
    %v1084 = vadd.f32 %v862, %v1083
    %v1085 = vpop.f32.mrb[0].mxu0
    %1086 = vmatprep.mubr.bf16.mxu0 0
    %1087 = vmatmul.mubr.bf16.gmra.mrb[0].mxu0 %v540
    %v1088 = vpop.f32.mrb[0].mxu0
    %v1089 = vadd.f32 %v862, %v1088
    %v1090 = vpop.f32.mrb[0].mxu0
    %v1091 = vpop.f32.mrb[0].mxu0
    %v1092 = vadd.f32 %v862, %v1091
    %v1093 = vpop.f32.mrb[0].mxu0
    %1094 = vmatprep.mubr.bf16.mxu0 0
    %1095 = vmatmul.mubr.bf16.gmra.mrb[0].mxu0 %v543
    %v1096 = vpop.f32.mrb[0].mxu0
    %v1097 = vadd.f32 %v862, %v1096
    %v1098 = vpop.f32.mrb[0].mxu0
    %v1099 = vpop.f32.mrb[0].mxu0
    %v1100 = vadd.f32 %v862, %v1099
    %v1101 = vpop.f32.mrb[0].mxu0
    %1102 = vmatprep.mubr.bf16.mxu0 0
    %1103 = vmatmul.mubr.bf16.gmra.mrb[0].mxu0 %v546
    %v1104 = vpop.f32.mrb[0].mxu0
    %v1105 = vadd.f32 %v862, %v1104
    %v1106 = vpop.f32.mrb[0].mxu0
    %v1107 = vpop.f32.mrb[0].mxu0
    %v1108 = vadd.f32 %v862, %v1107
    %v1109 = vpop.f32.mrb[0].mxu0
    %1110 = vmatprep.mubr.bf16.mxu0 0
    %1111 = vmatmul.mubr.bf16.gmra.mrb[0].mxu0 %v549
    %v1112 = vpop.f32.mrb[0].mxu0
    %v1113 = vadd.f32 %v862, %v1112
    %v1114 = vpop.f32.mrb[0].mxu0
    %v1115 = vpop.f32.mrb[0].mxu0
    %v1116 = vadd.f32 %v862, %v1115
    %v1117 = vpop.f32.mrb[0].mxu0
    %1118 = vmatprep.mubr.bf16.mxu0 0
    %1119 = vmatmul.mubr.bf16.gmra.mrb[0].mxu0 %v552
    %v1120 = vpop.f32.mrb[0].mxu0
    %v1121 = vadd.f32 %v862, %v1120
    %v1122 = vpop.f32.mrb[0].mxu0
    %v1123 = vpop.f32.mrb[0].mxu0
    %v1124 = vadd.f32 %v862, %v1123
    %v1125 = vpop.f32.mrb[0].mxu0
    %1126 = vmatprep.mubr.bf16.mxu0 0
    %1127 = vmatmul.mubr.bf16.gmra.mrb[0].mxu0 %v555
    %v1128 = vpop.f32.mrb[0].mxu0
    %v1129 = vadd.f32 %v862, %v1128
    %v1130 = vpop.f32.mrb[0].mxu0
    %v1131 = vpop.f32.mrb[0].mxu0
    %v1132 = vadd.f32 %v862, %v1131
    %v1133 = vpop.f32.mrb[0].mxu0
    %1134 = vmatprep.mubr.bf16.mxu0 0
    %1135 = vmatmul.mubr.bf16.gmra.mrb[0].mxu0 %v558
    %v1136 = vpop.f32.mrb[0].mxu0
    %v1137 = vadd.f32 %v862, %v1136
    %v1138 = vpop.f32.mrb[0].mxu0
    %v1139 = vpop.f32.mrb[0].mxu0
    %v1140 = vadd.f32 %v862, %v1139
    %v1141 = vpop.f32.mrb[0].mxu0
    %1142 = vmatprep.mubr.bf16.mxu0 0
    %1143 = vmatmul.mubr.bf16.gmra.mrb[0].mxu0 %v561
    %v1144 = vpop.f32.mrb[0].mxu0
    %v1145 = vadd.f32 %v862, %v1144
    %v1146 = vpop.f32.mrb[0].mxu0
    %v1147 = vpop.f32.mrb[0].mxu0
    %v1148 = vadd.f32 %v862, %v1147
    %v1149 = vpop.f32.mrb[0].mxu0
    %1150 = vmatprep.mubr.bf16.mxu0 0
    %1151 = vmatmul.mubr.bf16.gmra.mrb[0].mxu0 %v564
    %v1152 = vpop.f32.mrb[0].mxu0
    %v1153 = vadd.f32 %v862, %v1152
    %v1154 = vpop.f32.mrb[0].mxu0
    %v1155 = vpop.f32.mrb[0].mxu0
    %v1156 = vadd.f32 %v862, %v1155
    %v1157 = vpop.f32.mrb[0].mxu0
    %1158 = vdwg.mxu0
    %v1159 = vpack.c.bf16 %v331, %v328
    %v1160 = vpack.c.bf16 %v339, %v336
    %v1161 = vpack.c.bf16 %v347, %v344
    %v1162 = vpack.c.bf16 %v355, %v352
    %v1163 = vpack.c.bf16 %v363, %v360
    %v1164 = vpack.c.bf16 %v371, %v368
    %v1165 = vpack.c.bf16 %v379, %v376
    %v1166 = vpack.c.bf16 %v387, %v384
    %v1167 = vpack.c.bf16 %v395, %v392
    %v1168 = vpack.c.bf16 %v403, %v400
    %v1169 = vpack.c.bf16 %v411, %v408
    %v1170 = vpack.c.bf16 %v419, %v416
    %v1171 = vpack.c.bf16 %v427, %v424
    %v1172 = vpack.c.bf16 %v435, %v432
    %v1173 = vpack.c.bf16 %v443, %v440
    %v1174 = vpack.c.bf16 %v451, %v448
    %v1175 = vpack.c.bf16 %v908, %v905
    %v1176 = vpack.c.bf16 %v916, %v913
    %v1177 = vpack.c.bf16 %v924, %v921
    %v1178 = vpack.c.bf16 %v932, %v929
    %v1179 = vpack.c.bf16 %v940, %v937
    %v1180 = vpack.c.bf16 %v948, %v945
    %v1181 = vpack.c.bf16 %v956, %v953
    %v1182 = vpack.c.bf16 %v964, %v961
    %v1183 = vpack.c.bf16 %v972, %v969
    %v1184 = vpack.c.bf16 %v980, %v977
    %v1185 = vpack.c.bf16 %v988, %v985
    %v1186 = vpack.c.bf16 %v996, %v993
    %v1187 = vpack.c.bf16 %v1004, %v1001
    %v1188 = vpack.c.bf16 %v1012, %v1009
    %v1189 = vpack.c.bf16 %v1020, %v1017
    %v1190 = vpack.c.bf16 %v1028, %v1025
    %v1191 = vpack.c.bf16 %v1036, %v1033
    %v1192 = vpack.c.bf16 %v1044, %v1041
    %v1193 = vpack.c.bf16 %v1052, %v1049
    %v1194 = vpack.c.bf16 %v1060, %v1057
    %v1195 = vpack.c.bf16 %v1068, %v1065
    %v1196 = vpack.c.bf16 %v1076, %v1073
    %v1197 = vpack.c.bf16 %v1084, %v1081
    %v1198 = vpack.c.bf16 %v1092, %v1089
    %v1199 = vpack.c.bf16 %v1100, %v1097
    %v1200 = vpack.c.bf16 %v1108, %v1105
    %v1201 = vpack.c.bf16 %v1116, %v1113
    %v1202 = vpack.c.bf16 %v1124, %v1121
    %v1203 = vpack.c.bf16 %v1132, %v1129
    %v1204 = vpack.c.bf16 %v1140, %v1137
    %v1205 = vpack.c.bf16 %v1148, %v1145
    %v1206 = vpack.c.bf16 %v1156, %v1153
    %1207 = vxpose.xlu0.b32.start [1/16] %v601, 128
    %1208 = vxpose.xlu0.b32.cont [2/16] %v604, 128
    %1209 = vxpose.xlu0.b32.cont [3/16] %v609, 128
    %1210 = vxpose.xlu0.b32.cont [4/16] %v612, 128
    %1211 = vxpose.xlu0.b32.cont [5/16] %v617, 128
    %1212 = vxpose.xlu0.b32.cont [6/16] %v620, 128
    %1213 = vxpose.xlu0.b32.cont [7/16] %v625, 128
    %1214 = vxpose.xlu0.b32.cont [8/16] %v628, 128
    %1215 = vxpose.xlu0.b32.cont [9/16] %v633, 128
    %1216 = vxpose.xlu0.b32.cont [10/16] %v636, 128
    %1217 = vxpose.xlu0.b32.cont [11/16] %v641, 128
    %1218 = vxpose.xlu0.b32.cont [12/16] %v644, 128
    %1219 = vxpose.xlu0.b32.cont [13/16] %v649, 128
    %1220 = vxpose.xlu0.b32.cont [14/16] %v652, 128
    %1221 = vxpose.xlu0.b32.cont [15/16] %v657, 128
    %1222 = vxpose.xlu0.b32.end [16/16] %v660, 128
    %v1223 = vpop.trf.xlu0
    %v1224 = vpop.trf.xlu0
    %v1225 = vpop.trf.xlu0
    %v1226 = vpop.trf.xlu0
    %v1227 = vpop.trf.xlu0
    %v1228 = vpop.trf.xlu0
    %v1229 = vpop.trf.xlu0
    %v1230 = vpop.trf.xlu0
    %v1231 = vpop.trf.xlu0
    %v1232 = vpop.trf.xlu0
    %v1233 = vpop.trf.xlu0
    %v1234 = vpop.trf.xlu0
    %v1235 = vpop.trf.xlu0
    %v1236 = vpop.trf.xlu0
    %v1237 = vpop.trf.xlu0
    %v1238 = vpop.trf.xlu0
    %1239 = vxpose.xlu0.b32.start [1/16] %v665, 128
    %1240 = vxpose.xlu0.b32.cont [2/16] %v668, 128
    %1241 = vxpose.xlu0.b32.cont [3/16] %v673, 128
    %1242 = vxpose.xlu0.b32.cont [4/16] %v676, 128
    %1243 = vxpose.xlu0.b32.cont [5/16] %v681, 128
    %1244 = vxpose.xlu0.b32.cont [6/16] %v684, 128
    %1245 = vxpose.xlu0.b32.cont [7/16] %v689, 128
    %1246 = vxpose.xlu0.b32.cont [8/16] %v692, 128
    %1247 = vxpose.xlu0.b32.cont [9/16] %v697, 128
    %1248 = vxpose.xlu0.b32.cont [10/16] %v700, 128
    %1249 = vxpose.xlu0.b32.cont [11/16] %v705, 128
    %1250 = vxpose.xlu0.b32.cont [12/16] %v708, 128
    %1251 = vxpose.xlu0.b32.cont [13/16] %v713, 128
    %1252 = vxpose.xlu0.b32.cont [14/16] %v716, 128
    %1253 = vxpose.xlu0.b32.cont [15/16] %v721, 128
    %1254 = vxpose.xlu0.b32.end [16/16] %v724, 128
    %v1255 = vpop.trf.xlu0
    %v1256 = vpop.trf.xlu0
    %v1257 = vpop.trf.xlu0
    %v1258 = vpop.trf.xlu0
    %v1259 = vpop.trf.xlu0
    %v1260 = vpop.trf.xlu0
    %v1261 = vpop.trf.xlu0
    %v1262 = vpop.trf.xlu0
    %v1263 = vpop.trf.xlu0
    %v1264 = vpop.trf.xlu0
    %v1265 = vpop.trf.xlu0
    %v1266 = vpop.trf.xlu0
    %v1267 = vpop.trf.xlu0
    %v1268 = vpop.trf.xlu0
    %v1269 = vpop.trf.xlu0
    %v1270 = vpop.trf.xlu0
    %1271 = vxpose.xlu0.b32.start [1/16] %v729, 128
    %1272 = vxpose.xlu0.b32.cont [2/16] %v732, 128
    %1273 = vxpose.xlu0.b32.cont [3/16] %v737, 128
    %1274 = vxpose.xlu0.b32.cont [4/16] %v740, 128
    %1275 = vxpose.xlu0.b32.cont [5/16] %v745, 128
    %1276 = vxpose.xlu0.b32.cont [6/16] %v748, 128
    %1277 = vxpose.xlu0.b32.cont [7/16] %v753, 128
    %1278 = vxpose.xlu0.b32.cont [8/16] %v756, 128
    %1279 = vxpose.xlu0.b32.cont [9/16] %v761, 128
    %1280 = vxpose.xlu0.b32.cont [10/16] %v764, 128
    %1281 = vxpose.xlu0.b32.cont [11/16] %v769, 128
    %1282 = vxpose.xlu0.b32.cont [12/16] %v772, 128
    %1283 = vxpose.xlu0.b32.cont [13/16] %v777, 128
    %1284 = vxpose.xlu0.b32.cont [14/16] %v780, 128
    %1285 = vxpose.xlu0.b32.cont [15/16] %v785, 128
    %1286 = vxpose.xlu0.b32.end [16/16] %v788, 128
    %v1287 = vpop.trf.xlu0
    %v1288 = vpop.trf.xlu0
    %v1289 = vpop.trf.xlu0
    %v1290 = vpop.trf.xlu0
    %v1291 = vpop.trf.xlu0
    %v1292 = vpop.trf.xlu0
    %v1293 = vpop.trf.xlu0
    %v1294 = vpop.trf.xlu0
    %v1295 = vpop.trf.xlu0
    %v1296 = vpop.trf.xlu0
    %v1297 = vpop.trf.xlu0
    %v1298 = vpop.trf.xlu0
    %v1299 = vpop.trf.xlu0
    %v1300 = vpop.trf.xlu0
    %v1301 = vpop.trf.xlu0
    %v1302 = vpop.trf.xlu0
    %1303 = vxpose.xlu0.b32.start [1/16] %v793, 128
    %1304 = vxpose.xlu0.b32.cont [2/16] %v796, 128
    %1305 = vxpose.xlu0.b32.cont [3/16] %v801, 128
    %1306 = vxpose.xlu0.b32.cont [4/16] %v804, 128
    %1307 = vxpose.xlu0.b32.cont [5/16] %v809, 128
    %1308 = vxpose.xlu0.b32.cont [6/16] %v812, 128
    %1309 = vxpose.xlu0.b32.cont [7/16] %v817, 128
    %1310 = vxpose.xlu0.b32.cont [8/16] %v820, 128
    %1311 = vxpose.xlu0.b32.cont [9/16] %v825, 128
    %1312 = vxpose.xlu0.b32.cont [10/16] %v828, 128
    %1313 = vxpose.xlu0.b32.cont [11/16] %v833, 128
    %1314 = vxpose.xlu0.b32.cont [12/16] %v836, 128
    %1315 = vxpose.xlu0.b32.cont [13/16] %v841, 128
    %1316 = vxpose.xlu0.b32.cont [14/16] %v844, 128
    %1317 = vxpose.xlu0.b32.cont [15/16] %v849, 128
    %1318 = vxpose.xlu0.b32.end [16/16] %v852, 128
    %v1319 = vpop.trf.xlu0
    %v1320 = vpop.trf.xlu0
    %v1321 = vpop.trf.xlu0
    %v1322 = vpop.trf.xlu0
    %v1323 = vpop.trf.xlu0
    %v1324 = vpop.trf.xlu0
    %v1325 = vpop.trf.xlu0
    %v1326 = vpop.trf.xlu0
    %v1327 = vpop.trf.xlu0
    %v1328 = vpop.trf.xlu0
    %v1329 = vpop.trf.xlu0
    %v1330 = vpop.trf.xlu0
    %v1331 = vpop.trf.xlu0
    %v1332 = vpop.trf.xlu0
    %v1333 = vpop.trf.xlu0
    %v1334 = vpop.trf.xlu0
    %v1335 = vld [vmem:[#allocation2] sm:$0xff]
    %v1336 = vld [vmem:[#allocation2 + $0x8] sm:$0xff]
    %v1337 = vld [vmem:[#allocation2 + $0x10] sm:$0xff]
    %v1338 = vld [vmem:[#allocation2 + $0x18] sm:$0xff]
    %v1339 = vld [vmem:[#allocation2 + $0x20] sm:$0xff]
    %v1340 = vld [vmem:[#allocation2 + $0x28] sm:$0xff]
    %v1341 = vld [vmem:[#allocation2 + $0x30] sm:$0xff]
    %v1342 = vld [vmem:[#allocation2 + $0x38] sm:$0xff]
    %v1343 = vld [vmem:[#allocation2 + $0x40] sm:$0xff]
    %v1344 = vld [vmem:[#allocation2 + $0x48] sm:$0xff]
    %v1345 = vld [vmem:[#allocation2 + $0x50] sm:$0xff]
    %v1346 = vld [vmem:[#allocation2 + $0x58] sm:$0xff]
    %v1347 = vld [vmem:[#allocation2 + $0x60] sm:$0xff]
    %v1348 = vld [vmem:[#allocation2 + $0x68] sm:$0xff]
    %v1349 = vld [vmem:[#allocation2 + $0x70] sm:$0xff]
    %v1350 = vld [vmem:[#allocation2 + $0x78] sm:$0xff]
    %v1351 = vld [vmem:[#allocation2 + $0x80] sm:$0xff]
    %v1352 = vld [vmem:[#allocation2 + $0x88] sm:$0xff]
    %v1353 = vld [vmem:[#allocation2 + $0x90] sm:$0xff]
    %v1354 = vld [vmem:[#allocation2 + $0x98] sm:$0xff]
    %v1355 = vld [vmem:[#allocation2 + $0xa0] sm:$0xff]
    %v1356 = vld [vmem:[#allocation2 + $0xa8] sm:$0xff]
    %v1357 = vld [vmem:[#allocation2 + $0xb0] sm:$0xff]
    %v1358 = vld [vmem:[#allocation2 + $0xb8] sm:$0xff]
    %v1359 = vld [vmem:[#allocation2 + $0xc0] sm:$0xff]
    %v1360 = vld [vmem:[#allocation2 + $0xc8] sm:$0xff]
    %v1361 = vld [vmem:[#allocation2 + $0xd0] sm:$0xff]
    %v1362 = vld [vmem:[#allocation2 + $0xd8] sm:$0xff]
    %v1363 = vld [vmem:[#allocation2 + $0xe0] sm:$0xff]
    %v1364 = vld [vmem:[#allocation2 + $0xe8] sm:$0xff]
    %v1365 = vld [vmem:[#allocation2 + $0xf0] sm:$0xff]
    %v1366 = vld [vmem:[#allocation2 + $0xf8] sm:$0xff]
    %v1367 = vld [vmem:[#allocation2 + $0x100] sm:$0xff]
    %v1368 = vld [vmem:[#allocation2 + $0x108] sm:$0xff]
    %v1369 = vld [vmem:[#allocation2 + $0x110] sm:$0xff]
    %v1370 = vld [vmem:[#allocation2 + $0x118] sm:$0xff]
    %v1371 = vld [vmem:[#allocation2 + $0x120] sm:$0xff]
    %v1372 = vld [vmem:[#allocation2 + $0x128] sm:$0xff]
    %v1373 = vld [vmem:[#allocation2 + $0x130] sm:$0xff]
    %v1374 = vld [vmem:[#allocation2 + $0x138] sm:$0xff]
    %v1375 = vld [vmem:[#allocation2 + $0x140] sm:$0xff]
    %v1376 = vld [vmem:[#allocation2 + $0x148] sm:$0xff]
    %v1377 = vld [vmem:[#allocation2 + $0x150] sm:$0xff]
    %v1378 = vld [vmem:[#allocation2 + $0x158] sm:$0xff]
    %v1379 = vld [vmem:[#allocation2 + $0x160] sm:$0xff]
    %v1380 = vld [vmem:[#allocation2 + $0x168] sm:$0xff]
    %v1381 = vld [vmem:[#allocation2 + $0x170] sm:$0xff]
    %v1382 = vld [vmem:[#allocation2 + $0x178] sm:$0xff]
    %v1383 = vld [vmem:[#allocation2 + $0x180] sm:$0xff]
    %v1384 = vld [vmem:[#allocation2 + $0x188] sm:$0xff]
    %v1385 = vld [vmem:[#allocation2 + $0x190] sm:$0xff]
    %v1386 = vld [vmem:[#allocation2 + $0x198] sm:$0xff]
    %v1387 = vld [vmem:[#allocation2 + $0x1a0] sm:$0xff]
    %v1388 = vld [vmem:[#allocation2 + $0x1a8] sm:$0xff]
    %v1389 = vld [vmem:[#allocation2 + $0x1b0] sm:$0xff]
    %v1390 = vld [vmem:[#allocation2 + $0x1b8] sm:$0xff]
    %v1391 = vld [vmem:[#allocation2 + $0x1c0] sm:$0xff]
    %v1392 = vld [vmem:[#allocation2 + $0x1c8] sm:$0xff]
    %v1393 = vld [vmem:[#allocation2 + $0x1d0] sm:$0xff]
    %v1394 = vld [vmem:[#allocation2 + $0x1d8] sm:$0xff]
    %v1395 = vld [vmem:[#allocation2 + $0x1e0] sm:$0xff]
    %v1396 = vld [vmem:[#allocation2 + $0x1e8] sm:$0xff]
    %v1397 = vld [vmem:[#allocation2 + $0x1f0] sm:$0xff]
    %v1398 = vld [vmem:[#allocation2 + $0x1f8] sm:$0xff]
    %v1399 = vld [vmem:[#allocation2 + $0x200] sm:$0xff]
    %v1400 = vld [vmem:[#allocation2 + $0x208] sm:$0xff]
    %v1401 = vld [vmem:[#allocation2 + $0x210] sm:$0xff]
    %v1402 = vld [vmem:[#allocation2 + $0x218] sm:$0xff]
    %v1403 = vld [vmem:[#allocation2 + $0x220] sm:$0xff]
    %v1404 = vld [vmem:[#allocation2 + $0x228] sm:$0xff]
    %v1405 = vld [vmem:[#allocation2 + $0x230] sm:$0xff]
    %v1406 = vld [vmem:[#allocation2 + $0x238] sm:$0xff]
    %v1407 = vld [vmem:[#allocation2 + $0x240] sm:$0xff]
    %v1408 = vld [vmem:[#allocation2 + $0x248] sm:$0xff]
    %v1409 = vld [vmem:[#allocation2 + $0x250] sm:$0xff]
    %v1410 = vld [vmem:[#allocation2 + $0x258] sm:$0xff]
    %v1411 = vld [vmem:[#allocation2 + $0x260] sm:$0xff]
    %v1412 = vld [vmem:[#allocation2 + $0x268] sm:$0xff]
    %v1413 = vld [vmem:[#allocation2 + $0x270] sm:$0xff]
    %v1414 = vld [vmem:[#allocation2 + $0x278] sm:$0xff]
    %v1415 = vld [vmem:[#allocation2 + $0x280] sm:$0xff]
    %v1416 = vld [vmem:[#allocation2 + $0x288] sm:$0xff]
    %v1417 = vld [vmem:[#allocation2 + $0x290] sm:$0xff]
    %v1418 = vld [vmem:[#allocation2 + $0x298] sm:$0xff]
    %v1419 = vld [vmem:[#allocation2 + $0x2a0] sm:$0xff]
    %v1420 = vld [vmem:[#allocation2 + $0x2a8] sm:$0xff]
    %v1421 = vld [vmem:[#allocation2 + $0x2b0] sm:$0xff]
    %v1422 = vld [vmem:[#allocation2 + $0x2b8] sm:$0xff]
    %v1423 = vld [vmem:[#allocation2 + $0x2c0] sm:$0xff]
    %v1424 = vld [vmem:[#allocation2 + $0x2c8] sm:$0xff]
    %v1425 = vld [vmem:[#allocation2 + $0x2d0] sm:$0xff]
    %v1426 = vld [vmem:[#allocation2 + $0x2d8] sm:$0xff]
    %v1427 = vld [vmem:[#allocation2 + $0x2e0] sm:$0xff]
    %v1428 = vld [vmem:[#allocation2 + $0x2e8] sm:$0xff]
    %v1429 = vld [vmem:[#allocation2 + $0x2f0] sm:$0xff]
    %v1430 = vld [vmem:[#allocation2 + $0x2f8] sm:$0xff]
    %v1431 = vld [vmem:[#allocation2 + $0x300] sm:$0xff]
    %v1432 = vld [vmem:[#allocation2 + $0x308] sm:$0xff]
    %v1433 = vld [vmem:[#allocation2 + $0x310] sm:$0xff]
    %v1434 = vld [vmem:[#allocation2 + $0x318] sm:$0xff]
    %v1435 = vld [vmem:[#allocation2 + $0x320] sm:$0xff]
    %v1436 = vld [vmem:[#allocation2 + $0x328] sm:$0xff]
    %v1437 = vld [vmem:[#allocation2 + $0x330] sm:$0xff]
    %v1438 = vld [vmem:[#allocation2 + $0x338] sm:$0xff]
    %v1439 = vld [vmem:[#allocation2 + $0x340] sm:$0xff]
    %v1440 = vld [vmem:[#allocation2 + $0x348] sm:$0xff]
    %v1441 = vld [vmem:[#allocation2 + $0x350] sm:$0xff]
    %v1442 = vld [vmem:[#allocation2 + $0x358] sm:$0xff]
    %v1443 = vld [vmem:[#allocation2 + $0x360] sm:$0xff]
    %v1444 = vld [vmem:[#allocation2 + $0x368] sm:$0xff]
    %v1445 = vld [vmem:[#allocation2 + $0x370] sm:$0xff]
    %v1446 = vld [vmem:[#allocation2 + $0x378] sm:$0xff]
    %v1447 = vld [vmem:[#allocation2 + $0x380] sm:$0xff]
    %v1448 = vld [vmem:[#allocation2 + $0x388] sm:$0xff]
    %v1449 = vld [vmem:[#allocation2 + $0x390] sm:$0xff]
    %v1450 = vld [vmem:[#allocation2 + $0x398] sm:$0xff]
    %v1451 = vld [vmem:[#allocation2 + $0x3a0] sm:$0xff]
    %v1452 = vld [vmem:[#allocation2 + $0x3a8] sm:$0xff]
    %v1453 = vld [vmem:[#allocation2 + $0x3b0] sm:$0xff]
    %v1454 = vld [vmem:[#allocation2 + $0x3b8] sm:$0xff]
    %v1455 = vld [vmem:[#allocation2 + $0x3c0] sm:$0xff]
    %v1456 = vld [vmem:[#allocation2 + $0x3c8] sm:$0xff]
    %v1457 = vld [vmem:[#allocation2 + $0x3d0] sm:$0xff]
    %v1458 = vld [vmem:[#allocation2 + $0x3d8] sm:$0xff]
    %v1459 = vld [vmem:[#allocation2 + $0x3e0] sm:$0xff]
    %v1460 = vld [vmem:[#allocation2 + $0x3e8] sm:$0xff]
    %v1461 = vld [vmem:[#allocation2 + $0x3f0] sm:$0xff]
    %v1462 = vld [vmem:[#allocation2 + $0x3f8] sm:$0xff]
    %v1463 = vpack.c.bf16 %v1223, %v1223
    %v1464 = vpack.c.bf16 %v1255, %v1255
    %v1465 = vpack.c.bf16 %v1287, %v1287
    %v1466 = vpack.c.bf16 %v1319, %v1319
    %vm1467 = vcmask 64512
    %v1469 = vsel %vm1467, %v1159, 0
    %v1472 = vsel %vm1467, %v1160, 0
    %v1475 = vsel %vm1467, %v1161, 0
    %v1478 = vsel %vm1467, %v1162, 0
    %v1481 = vsel %vm1467, %v1163, 0
    %v1484 = vsel %vm1467, %v1164, 0
    %v1487 = vsel %vm1467, %v1165, 0
    %v1490 = vsel %vm1467, %v1166, 0
    %v1493 = vsel %vm1467, %v1167, 0
    %v1496 = vsel %vm1467, %v1168, 0
    %v1499 = vsel %vm1467, %v1169, 0
    %v1502 = vsel %vm1467, %v1170, 0
    %v1505 = vsel %vm1467, %v1171, 0
    %v1508 = vsel %vm1467, %v1172, 0
    %v1511 = vsel %vm1467, %v1173, 0
    %v1514 = vsel %vm1467, %v1174, 0
    %vm1516 = vcmask 1043456
    %v1518 = vsel %vm1516, %v1463, 0
    %v1521 = vsel %vm1516, %v1464, 0
    %v1524 = vsel %vm1516, %v1465, 0
    %v1527 = vsel %vm1516, %v1466, 0
    %1529 = vmatprep.subr.bf16.mxu0 %v1521
    %1530 = vmatpush1.bf16.msra.mxu0 %v1518
    %1531 = vmatprep.subr.bf16.mxu0 0
    %1532 = vmatpush1.bf16.msra.mxu0 0
    %1533 = vmatprep.subr.bf16.mxu0 0
    %1534 = vmatpush1.bf16.msra.mxu0 0
    %1535 = vmatprep.subr.bf16.mxu0 0
    %1536 = vmatpush1.bf16.msra.mxu0 0
    %1537 = vmatprep.subr.bf16.mxu0 0
    %1538 = vmatpush1.bf16.msra.mxu0 0
    %1539 = vmatprep.subr.bf16.mxu0 0
    %1540 = vmatpush1.bf16.msra.mxu0 0
    %1541 = vmatprep.subr.bf16.mxu0 0
    %1542 = vmatpush1.bf16.msra.mxu0 0
    %1543 = vmatprep.subr.bf16.mxu0 0
    %1544 = vmatpush1.bf16.msra.mxu0 0
    %1545 = vmatprep.subr.bf16.mxu0 0
    %1546 = vmatpush1.bf16.msra.mxu0 0
    %1547 = vmatprep.subr.bf16.mxu0 0
    %1548 = vmatpush1.bf16.msra.mxu0 0
    %1549 = vmatprep.subr.bf16.mxu0 0
    %1550 = vmatpush1.bf16.msra.mxu0 0
    %1551 = vmatprep.subr.bf16.mxu0 0
    %1552 = vmatpush1.bf16.msra.mxu0 0
    %1553 = vmatprep.subr.bf16.mxu0 0
    %1554 = vmatpush1.bf16.msra.mxu0 0
    %1555 = vmatprep.subr.bf16.mxu0 0
    %1556 = vmatpush1.bf16.msra.mxu0 0
    %1557 = vmatprep.subr.bf16.mxu0 0
    %1558 = vmatpush1.bf16.msra.mxu0 0
    %1559 = vmatprep.subr.bf16.mxu0 0
    %1560 = vmatpush1.bf16.msra.mxu0 0
    %1561 = vmatprep.mubr.bf16.mxu0 0
    %1562 = vmatmul.mubr.bf16.gmra.mrb[0].mxu0 %v1469
    %v1563 = vpop.f32.mrb[0].mxu0
    %v1564 = vadd.f32 %v1335, %v1563
    %v1565 = vpop.f32.mrb[0].mxu0
    %v1566 = vadd.f32 %v1336, %v1565
    %v1567 = vpop.f32.mrb[0].mxu0
    %v1568 = vadd.f32 %v1339, %v1567
    %v1569 = vpop.f32.mrb[0].mxu0
    %v1570 = vadd.f32 %v1340, %v1569
    %1571 = vmatprep.mubr.bf16.mxu0 0
    %1572 = vmatmul.mubr.bf16.gmra.mrb[0].mxu0 %v1472
    %v1573 = vpop.f32.mrb[0].mxu0
    %v1574 = vadd.f32 %v1343, %v1573
    %v1575 = vpop.f32.mrb[0].mxu0
    %v1576 = vadd.f32 %v1344, %v1575
    %v1577 = vpop.f32.mrb[0].mxu0
    %v1578 = vadd.f32 %v1347, %v1577
    %v1579 = vpop.f32.mrb[0].mxu0
    %v1580 = vadd.f32 %v1348, %v1579
    %1581 = vmatprep.mubr.bf16.mxu0 0
    %1582 = vmatmul.mubr.bf16.gmra.mrb[0].mxu0 %v1475
    %v1583 = vpop.f32.mrb[0].mxu0
    %v1584 = vadd.f32 %v1351, %v1583
    %v1585 = vpop.f32.mrb[0].mxu0
    %v1586 = vadd.f32 %v1352, %v1585
    %v1587 = vpop.f32.mrb[0].mxu0
    %v1588 = vadd.f32 %v1355, %v1587
    %v1589 = vpop.f32.mrb[0].mxu0
    %v1590 = vadd.f32 %v1356, %v1589
    %1591 = vmatprep.mubr.bf16.mxu0 0
    %1592 = vmatmul.mubr.bf16.gmra.mrb[0].mxu0 %v1478
    %v1593 = vpop.f32.mrb[0].mxu0
    %v1594 = vadd.f32 %v1359, %v1593
    %v1595 = vpop.f32.mrb[0].mxu0
    %v1596 = vadd.f32 %v1360, %v1595
    %v1597 = vpop.f32.mrb[0].mxu0
    %v1598 = vadd.f32 %v1363, %v1597
    %v1599 = vpop.f32.mrb[0].mxu0
    %v1600 = vadd.f32 %v1364, %v1599
    %1601 = vmatprep.mubr.bf16.mxu0 0
    %1602 = vmatmul.mubr.bf16.gmra.mrb[0].mxu0 %v1481
    %v1603 = vpop.f32.mrb[0].mxu0
    %v1604 = vadd.f32 %v1367, %v1603
    %v1605 = vpop.f32.mrb[0].mxu0
    %v1606 = vadd.f32 %v1368, %v1605
    %v1607 = vpop.f32.mrb[0].mxu0
    %v1608 = vadd.f32 %v1371, %v1607
    %v1609 = vpop.f32.mrb[0].mxu0
    %v1610 = vadd.f32 %v1372, %v1609
    %1611 = vmatprep.mubr.bf16.mxu0 0
    %1612 = vmatmul.mubr.bf16.gmra.mrb[0].mxu0 %v1484
    %v1613 = vpop.f32.mrb[0].mxu0
    %v1614 = vadd.f32 %v1375, %v1613
    %v1615 = vpop.f32.mrb[0].mxu0
    %v1616 = vadd.f32 %v1376, %v1615
    %v1617 = vpop.f32.mrb[0].mxu0
    %v1618 = vadd.f32 %v1379, %v1617
    %v1619 = vpop.f32.mrb[0].mxu0
    %v1620 = vadd.f32 %v1380, %v1619
    %1621 = vmatprep.mubr.bf16.mxu0 0
    %1622 = vmatmul.mubr.bf16.gmra.mrb[0].mxu0 %v1487
    %v1623 = vpop.f32.mrb[0].mxu0
    %v1624 = vadd.f32 %v1383, %v1623
    %v1625 = vpop.f32.mrb[0].mxu0
    %v1626 = vadd.f32 %v1384, %v1625
    %v1627 = vpop.f32.mrb[0].mxu0
    %v1628 = vadd.f32 %v1387, %v1627
    %v1629 = vpop.f32.mrb[0].mxu0
    %v1630 = vadd.f32 %v1388, %v1629
    %1631 = vmatprep.mubr.bf16.mxu0 0
    %1632 = vmatmul.mubr.bf16.gmra.mrb[0].mxu0 %v1490
    %v1633 = vpop.f32.mrb[0].mxu0
    %v1634 = vadd.f32 %v1391, %v1633
    %v1635 = vpop.f32.mrb[0].mxu0
    %v1636 = vadd.f32 %v1392, %v1635
    %v1637 = vpop.f32.mrb[0].mxu0
    %v1638 = vadd.f32 %v1395, %v1637
    %v1639 = vpop.f32.mrb[0].mxu0
    %v1640 = vadd.f32 %v1396, %v1639
    %1641 = vmatprep.mubr.bf16.mxu0 0
    %1642 = vmatmul.mubr.bf16.gmra.mrb[0].mxu0 %v1493
    %v1643 = vpop.f32.mrb[0].mxu0
    %v1644 = vadd.f32 %v1399, %v1643
    %v1645 = vpop.f32.mrb[0].mxu0
    %v1646 = vadd.f32 %v1400, %v1645
    %v1647 = vpop.f32.mrb[0].mxu0
    %v1648 = vadd.f32 %v1403, %v1647
    %v1649 = vpop.f32.mrb[0].mxu0
    %v1650 = vadd.f32 %v1404, %v1649
    %1651 = vmatprep.mubr.bf16.mxu0 0
    %1652 = vmatmul.mubr.bf16.gmra.mrb[0].mxu0 %v1496
    %v1653 = vpop.f32.mrb[0].mxu0
    %v1654 = vadd.f32 %v1407, %v1653
    %v1655 = vpop.f32.mrb[0].mxu0
    %v1656 = vadd.f32 %v1408, %v1655
    %v1657 = vpop.f32.mrb[0].mxu0
    %v1658 = vadd.f32 %v1411, %v1657
    %v1659 = vpop.f32.mrb[0].mxu0
    %v1660 = vadd.f32 %v1412, %v1659
    %1661 = vmatprep.mubr.bf16.mxu0 0
    %1662 = vmatmul.mubr.bf16.gmra.mrb[0].mxu0 %v1499
    %v1663 = vpop.f32.mrb[0].mxu0
    %v1664 = vadd.f32 %v1415, %v1663
    %v1665 = vpop.f32.mrb[0].mxu0
    %v1666 = vadd.f32 %v1416, %v1665
    %v1667 = vpop.f32.mrb[0].mxu0
    %v1668 = vadd.f32 %v1419, %v1667
    %v1669 = vpop.f32.mrb[0].mxu0
    %v1670 = vadd.f32 %v1420, %v1669
    %1671 = vmatprep.mubr.bf16.mxu0 0
    %1672 = vmatmul.mubr.bf16.gmra.mrb[0].mxu0 %v1502
    %v1673 = vpop.f32.mrb[0].mxu0
    %v1674 = vadd.f32 %v1423, %v1673
    %v1675 = vpop.f32.mrb[0].mxu0
    %v1676 = vadd.f32 %v1424, %v1675
    %v1677 = vpop.f32.mrb[0].mxu0
    %v1678 = vadd.f32 %v1427, %v1677
    %v1679 = vpop.f32.mrb[0].mxu0
    %v1680 = vadd.f32 %v1428, %v1679
    %1681 = vmatprep.mubr.bf16.mxu0 0
    %1682 = vmatmul.mubr.bf16.gmra.mrb[0].mxu0 %v1505
    %v1683 = vpop.f32.mrb[0].mxu0
    %v1684 = vadd.f32 %v1431, %v1683
    %v1685 = vpop.f32.mrb[0].mxu0
    %v1686 = vadd.f32 %v1432, %v1685
    %v1687 = vpop.f32.mrb[0].mxu0
    %v1688 = vadd.f32 %v1435, %v1687
    %v1689 = vpop.f32.mrb[0].mxu0
    %v1690 = vadd.f32 %v1436, %v1689
    %1691 = vmatprep.mubr.bf16.mxu0 0
    %1692 = vmatmul.mubr.bf16.gmra.mrb[0].mxu0 %v1508
    %v1693 = vpop.f32.mrb[0].mxu0
    %v1694 = vadd.f32 %v1439, %v1693
    %v1695 = vpop.f32.mrb[0].mxu0
    %v1696 = vadd.f32 %v1440, %v1695
    %v1697 = vpop.f32.mrb[0].mxu0
    %v1698 = vadd.f32 %v1443, %v1697
    %v1699 = vpop.f32.mrb[0].mxu0
    %v1700 = vadd.f32 %v1444, %v1699
    %1701 = vmatprep.mubr.bf16.mxu0 0
    %1702 = vmatmul.mubr.bf16.gmra.mrb[0].mxu0 %v1511
    %v1703 = vpop.f32.mrb[0].mxu0
    %v1704 = vadd.f32 %v1447, %v1703
    %v1705 = vpop.f32.mrb[0].mxu0
    %v1706 = vadd.f32 %v1448, %v1705
    %v1707 = vpop.f32.mrb[0].mxu0
    %v1708 = vadd.f32 %v1451, %v1707
    %v1709 = vpop.f32.mrb[0].mxu0
    %v1710 = vadd.f32 %v1452, %v1709
    %1711 = vmatprep.mubr.bf16.mxu0 0
    %1712 = vmatmul.mubr.bf16.gmra.mrb[0].mxu0 %v1514
    %v1713 = vpop.f32.mrb[0].mxu0
    %v1714 = vadd.f32 %v1455, %v1713
    %v1715 = vpop.f32.mrb[0].mxu0
    %v1716 = vadd.f32 %v1456, %v1715
    %v1717 = vpop.f32.mrb[0].mxu0
    %v1718 = vadd.f32 %v1459, %v1717
    %v1719 = vpop.f32.mrb[0].mxu0
    %v1720 = vadd.f32 %v1460, %v1719
    %1721 = vdwg.mxu0
    %1722 = vmatprep.subr.bf16.mxu0 %v1527
    %1723 = vmatpush1.bf16.msra.mxu0 %v1524
    %1724 = vmatprep.subr.bf16.mxu0 0
    %1725 = vmatpush1.bf16.msra.mxu0 0
    %1726 = vmatprep.subr.bf16.mxu0 0
    %1727 = vmatpush1.bf16.msra.mxu0 0
    %1728 = vmatprep.subr.bf16.mxu0 0
    %1729 = vmatpush1.bf16.msra.mxu0 0
    %1730 = vmatprep.subr.bf16.mxu0 0
    %1731 = vmatpush1.bf16.msra.mxu0 0
    %1732 = vmatprep.subr.bf16.mxu0 0
    %1733 = vmatpush1.bf16.msra.mxu0 0
    %1734 = vmatprep.subr.bf16.mxu0 0
    %1735 = vmatpush1.bf16.msra.mxu0 0
    %1736 = vmatprep.subr.bf16.mxu0 0
    %1737 = vmatpush1.bf16.msra.mxu0 0
    %1738 = vmatprep.subr.bf16.mxu0 0
    %1739 = vmatpush1.bf16.msra.mxu0 0
    %1740 = vmatprep.subr.bf16.mxu0 0
    %1741 = vmatpush1.bf16.msra.mxu0 0
    %1742 = vmatprep.subr.bf16.mxu0 0
    %1743 = vmatpush1.bf16.msra.mxu0 0
    %1744 = vmatprep.subr.bf16.mxu0 0
    %1745 = vmatpush1.bf16.msra.mxu0 0
    %1746 = vmatprep.subr.bf16.mxu0 0
    %1747 = vmatpush1.bf16.msra.mxu0 0
    %1748 = vmatprep.subr.bf16.mxu0 0
    %1749 = vmatpush1.bf16.msra.mxu0 0
    %1750 = vmatprep.subr.bf16.mxu0 0
    %1751 = vmatpush1.bf16.msra.mxu0 0
    %1752 = vmatprep.subr.bf16.mxu0 0
    %1753 = vmatpush1.bf16.msra.mxu0 0
    %1754 = vmatprep.mubr.bf16.mxu0 0
    %1755 = vmatmul.mubr.bf16.gmra.mrb[0].mxu0 %v1469
    %v1756 = vpop.f32.mrb[0].mxu0
    %v1757 = vadd.f32 %v1337, %v1756
    %v1758 = vpop.f32.mrb[0].mxu0
    %v1759 = vadd.f32 %v1338, %v1758
    %v1760 = vpop.f32.mrb[0].mxu0
    %v1761 = vadd.f32 %v1341, %v1760
    %v1762 = vpop.f32.mrb[0].mxu0
    %v1763 = vadd.f32 %v1342, %v1762
    %1764 = vmatprep.mubr.bf16.mxu0 0
    %1765 = vmatmul.mubr.bf16.gmra.mrb[0].mxu0 %v1472
    %v1766 = vpop.f32.mrb[0].mxu0
    %v1767 = vadd.f32 %v1345, %v1766
    %v1768 = vpop.f32.mrb[0].mxu0
    %v1769 = vadd.f32 %v1346, %v1768
    %v1770 = vpop.f32.mrb[0].mxu0
    %v1771 = vadd.f32 %v1349, %v1770
    %v1772 = vpop.f32.mrb[0].mxu0
    %v1773 = vadd.f32 %v1350, %v1772
    %1774 = vmatprep.mubr.bf16.mxu0 0
    %1775 = vmatmul.mubr.bf16.gmra.mrb[0].mxu0 %v1475
    %v1776 = vpop.f32.mrb[0].mxu0
    %v1777 = vadd.f32 %v1353, %v1776
    %v1778 = vpop.f32.mrb[0].mxu0
    %v1779 = vadd.f32 %v1354, %v1778
    %v1780 = vpop.f32.mrb[0].mxu0
    %v1781 = vadd.f32 %v1357, %v1780
    %v1782 = vpop.f32.mrb[0].mxu0
    %v1783 = vadd.f32 %v1358, %v1782
    %1784 = vmatprep.mubr.bf16.mxu0 0
    %1785 = vmatmul.mubr.bf16.gmra.mrb[0].mxu0 %v1478
    %v1786 = vpop.f32.mrb[0].mxu0
    %v1787 = vadd.f32 %v1361, %v1786
    %v1788 = vpop.f32.mrb[0].mxu0
    %v1789 = vadd.f32 %v1362, %v1788
    %v1790 = vpop.f32.mrb[0].mxu0
    %v1791 = vadd.f32 %v1365, %v1790
    %v1792 = vpop.f32.mrb[0].mxu0
    %v1793 = vadd.f32 %v1366, %v1792
    %1794 = vmatprep.mubr.bf16.mxu0 0
    %1795 = vmatmul.mubr.bf16.gmra.mrb[0].mxu0 %v1481
    %v1796 = vpop.f32.mrb[0].mxu0
    %v1797 = vadd.f32 %v1369, %v1796
    %v1798 = vpop.f32.mrb[0].mxu0
    %v1799 = vadd.f32 %v1370, %v1798
    %v1800 = vpop.f32.mrb[0].mxu0
    %v1801 = vadd.f32 %v1373, %v1800
    %v1802 = vpop.f32.mrb[0].mxu0
    %v1803 = vadd.f32 %v1374, %v1802
    %1804 = vmatprep.mubr.bf16.mxu0 0
    %1805 = vmatmul.mubr.bf16.gmra.mrb[0].mxu0 %v1484
    %v1806 = vpop.f32.mrb[0].mxu0
    %v1807 = vadd.f32 %v1377, %v1806
    %v1808 = vpop.f32.mrb[0].mxu0
    %v1809 = vadd.f32 %v1378, %v1808
    %v1810 = vpop.f32.mrb[0].mxu0
    %v1811 = vadd.f32 %v1381, %v1810
    %v1812 = vpop.f32.mrb[0].mxu0
    %v1813 = vadd.f32 %v1382, %v1812
    %1814 = vmatprep.mubr.bf16.mxu0 0
    %1815 = vmatmul.mubr.bf16.gmra.mrb[0].mxu0 %v1487
    %v1816 = vpop.f32.mrb[0].mxu0
    %v1817 = vadd.f32 %v1385, %v1816
    %v1818 = vpop.f32.mrb[0].mxu0
    %v1819 = vadd.f32 %v1386, %v1818
    %v1820 = vpop.f32.mrb[0].mxu0
    %v1821 = vadd.f32 %v1389, %v1820
    %v1822 = vpop.f32.mrb[0].mxu0
    %v1823 = vadd.f32 %v1390, %v1822
    %1824 = vmatprep.mubr.bf16.mxu0 0
    %1825 = vmatmul.mubr.bf16.gmra.mrb[0].mxu0 %v1490
    %v1826 = vpop.f32.mrb[0].mxu0
    %v1827 = vadd.f32 %v1393, %v1826
    %v1828 = vpop.f32.mrb[0].mxu0
    %v1829 = vadd.f32 %v1394, %v1828
    %v1830 = vpop.f32.mrb[0].mxu0
    %v1831 = vadd.f32 %v1397, %v1830
    %v1832 = vpop.f32.mrb[0].mxu0
    %v1833 = vadd.f32 %v1398, %v1832
    %1834 = vmatprep.mubr.bf16.mxu0 0
    %1835 = vmatmul.mubr.bf16.gmra.mrb[0].mxu0 %v1493
    %v1836 = vpop.f32.mrb[0].mxu0
    %v1837 = vadd.f32 %v1401, %v1836
    %v1838 = vpop.f32.mrb[0].mxu0
    %v1839 = vadd.f32 %v1402, %v1838
    %v1840 = vpop.f32.mrb[0].mxu0
    %v1841 = vadd.f32 %v1405, %v1840
    %v1842 = vpop.f32.mrb[0].mxu0
    %v1843 = vadd.f32 %v1406, %v1842
    %1844 = vmatprep.mubr.bf16.mxu0 0
    %1845 = vmatmul.mubr.bf16.gmra.mrb[0].mxu0 %v1496
    %v1846 = vpop.f32.mrb[0].mxu0
    %v1847 = vadd.f32 %v1409, %v1846
    %v1848 = vpop.f32.mrb[0].mxu0
    %v1849 = vadd.f32 %v1410, %v1848
    %v1850 = vpop.f32.mrb[0].mxu0
    %v1851 = vadd.f32 %v1413, %v1850
    %v1852 = vpop.f32.mrb[0].mxu0
    %v1853 = vadd.f32 %v1414, %v1852
    %1854 = vmatprep.mubr.bf16.mxu0 0
    %1855 = vmatmul.mubr.bf16.gmra.mrb[0].mxu0 %v1499
    %v1856 = vpop.f32.mrb[0].mxu0
    %v1857 = vadd.f32 %v1417, %v1856
    %v1858 = vpop.f32.mrb[0].mxu0
    %v1859 = vadd.f32 %v1418, %v1858
    %v1860 = vpop.f32.mrb[0].mxu0
    %v1861 = vadd.f32 %v1421, %v1860
    %v1862 = vpop.f32.mrb[0].mxu0
    %v1863 = vadd.f32 %v1422, %v1862
    %1864 = vmatprep.mubr.bf16.mxu0 0
    %1865 = vmatmul.mubr.bf16.gmra.mrb[0].mxu0 %v1502
    %v1866 = vpop.f32.mrb[0].mxu0
    %v1867 = vadd.f32 %v1425, %v1866
    %v1868 = vpop.f32.mrb[0].mxu0
    %v1869 = vadd.f32 %v1426, %v1868
    %v1870 = vpop.f32.mrb[0].mxu0
    %v1871 = vadd.f32 %v1429, %v1870
    %v1872 = vpop.f32.mrb[0].mxu0
    %v1873 = vadd.f32 %v1430, %v1872
    %1874 = vmatprep.mubr.bf16.mxu0 0
    %1875 = vmatmul.mubr.bf16.gmra.mrb[0].mxu0 %v1505
    %v1876 = vpop.f32.mrb[0].mxu0
    %v1877 = vadd.f32 %v1433, %v1876
    %v1878 = vpop.f32.mrb[0].mxu0
    %v1879 = vadd.f32 %v1434, %v1878
    %v1880 = vpop.f32.mrb[0].mxu0
    %v1881 = vadd.f32 %v1437, %v1880
    %v1882 = vpop.f32.mrb[0].mxu0
    %v1883 = vadd.f32 %v1438, %v1882
    %1884 = vmatprep.mubr.bf16.mxu0 0
    %1885 = vmatmul.mubr.bf16.gmra.mrb[0].mxu0 %v1508
    %v1886 = vpop.f32.mrb[0].mxu0
    %v1887 = vadd.f32 %v1441, %v1886
    %v1888 = vpop.f32.mrb[0].mxu0
    %v1889 = vadd.f32 %v1442, %v1888
    %v1890 = vpop.f32.mrb[0].mxu0
    %v1891 = vadd.f32 %v1445, %v1890
    %v1892 = vpop.f32.mrb[0].mxu0
    %v1893 = vadd.f32 %v1446, %v1892
    %1894 = vmatprep.mubr.bf16.mxu0 0
    %1895 = vmatmul.mubr.bf16.gmra.mrb[0].mxu0 %v1511
    %v1896 = vpop.f32.mrb[0].mxu0
    %v1897 = vadd.f32 %v1449, %v1896
    %v1898 = vpop.f32.mrb[0].mxu0
    %v1899 = vadd.f32 %v1450, %v1898
    %v1900 = vpop.f32.mrb[0].mxu0
    %v1901 = vadd.f32 %v1453, %v1900
    %v1902 = vpop.f32.mrb[0].mxu0
    %v1903 = vadd.f32 %v1454, %v1902
    %1904 = vmatprep.mubr.bf16.mxu0 0
    %1905 = vmatmul.mubr.bf16.gmra.mrb[0].mxu0 %v1514
    %v1906 = vpop.f32.mrb[0].mxu0
    %v1907 = vadd.f32 %v1457, %v1906
    %v1908 = vpop.f32.mrb[0].mxu0
    %v1909 = vadd.f32 %v1458, %v1908
    %v1910 = vpop.f32.mrb[0].mxu0
    %v1911 = vadd.f32 %v1461, %v1910
    %v1912 = vpop.f32.mrb[0].mxu0
    %v1913 = vadd.f32 %v1462, %v1912
    %1914 = vdwg.mxu0
    %v1915 = vmax.f32 %v1564, %v1566
    %v1916 = vmax.f32 %v1915, %v1757
    %v1917 = vmax.f32 %v1916, %v1759
    %1918 = vmax.xlane.f32.xlu0 %v1917
    %v1919 = vpop.xlane.xlu0 %1918
    %v1920 = vmax.f32 %v1568, %v1570
    %v1921 = vmax.f32 %v1920, %v1761
    %v1922 = vmax.f32 %v1921, %v1763
    %1923 = vmax.xlane.f32.xlu0 %v1922
    %v1924 = vpop.xlane.xlu0 %1923
    %v1925 = vmax.f32 %v1574, %v1576
    %v1926 = vmax.f32 %v1925, %v1767
    %v1927 = vmax.f32 %v1926, %v1769
    %1928 = vmax.xlane.f32.xlu0 %v1927
    %v1929 = vpop.xlane.xlu0 %1928
    %v1930 = vmax.f32 %v1578, %v1580
    %v1931 = vmax.f32 %v1930, %v1771
    %v1932 = vmax.f32 %v1931, %v1773
    %1933 = vmax.xlane.f32.xlu0 %v1932
    %v1934 = vpop.xlane.xlu0 %1933
    %v1935 = vmax.f32 %v1584, %v1586
    %v1936 = vmax.f32 %v1935, %v1777
    %v1937 = vmax.f32 %v1936, %v1779
    %1938 = vmax.xlane.f32.xlu0 %v1937
    %v1939 = vpop.xlane.xlu0 %1938
    %v1940 = vmax.f32 %v1588, %v1590
    %v1941 = vmax.f32 %v1940, %v1781
    %v1942 = vmax.f32 %v1941, %v1783
    %1943 = vmax.xlane.f32.xlu0 %v1942
    %v1944 = vpop.xlane.xlu0 %1943
    %v1945 = vmax.f32 %v1594, %v1596
    %v1946 = vmax.f32 %v1945, %v1787
    %v1947 = vmax.f32 %v1946, %v1789
    %1948 = vmax.xlane.f32.xlu0 %v1947
    %v1949 = vpop.xlane.xlu0 %1948
    %v1950 = vmax.f32 %v1598, %v1600
    %v1951 = vmax.f32 %v1950, %v1791
    %v1952 = vmax.f32 %v1951, %v1793
    %1953 = vmax.xlane.f32.xlu0 %v1952
    %v1954 = vpop.xlane.xlu0 %1953
    %v1955 = vmax.f32 %v1604, %v1606
    %v1956 = vmax.f32 %v1955, %v1797
    %v1957 = vmax.f32 %v1956, %v1799
    %1958 = vmax.xlane.f32.xlu0 %v1957
    %v1959 = vpop.xlane.xlu0 %1958
    %v1960 = vmax.f32 %v1608, %v1610
    %v1961 = vmax.f32 %v1960, %v1801
    %v1962 = vmax.f32 %v1961, %v1803
    %1963 = vmax.xlane.f32.xlu0 %v1962
    %v1964 = vpop.xlane.xlu0 %1963
    %v1965 = vmax.f32 %v1614, %v1616
    %v1966 = vmax.f32 %v1965, %v1807
    %v1967 = vmax.f32 %v1966, %v1809
    %1968 = vmax.xlane.f32.xlu0 %v1967
    %v1969 = vpop.xlane.xlu0 %1968
    %v1970 = vmax.f32 %v1618, %v1620
    %v1971 = vmax.f32 %v1970, %v1811
    %v1972 = vmax.f32 %v1971, %v1813
    %1973 = vmax.xlane.f32.xlu0 %v1972
    %v1974 = vpop.xlane.xlu0 %1973
    %v1975 = vmax.f32 %v1624, %v1626
    %v1976 = vmax.f32 %v1975, %v1817
    %v1977 = vmax.f32 %v1976, %v1819
    %1978 = vmax.xlane.f32.xlu0 %v1977
    %v1979 = vpop.xlane.xlu0 %1978
    %v1980 = vmax.f32 %v1628, %v1630
    %v1981 = vmax.f32 %v1980, %v1821
    %v1982 = vmax.f32 %v1981, %v1823
    %1983 = vmax.xlane.f32.xlu0 %v1982
    %v1984 = vpop.xlane.xlu0 %1983
    %v1985 = vmax.f32 %v1634, %v1636
    %v1986 = vmax.f32 %v1985, %v1827
    %v1987 = vmax.f32 %v1986, %v1829
    %1988 = vmax.xlane.f32.xlu0 %v1987
    %v1989 = vpop.xlane.xlu0 %1988
    %v1990 = vmax.f32 %v1638, %v1640
    %v1991 = vmax.f32 %v1990, %v1831
    %v1992 = vmax.f32 %v1991, %v1833
    %1993 = vmax.xlane.f32.xlu0 %v1992
    %v1994 = vpop.xlane.xlu0 %1993
    %v1995 = vmax.f32 %v1644, %v1646
    %v1996 = vmax.f32 %v1995, %v1837
    %v1997 = vmax.f32 %v1996, %v1839
    %1998 = vmax.xlane.f32.xlu0 %v1997
    %v1999 = vpop.xlane.xlu0 %1998
    %v2000 = vmax.f32 %v1648, %v1650
    %v2001 = vmax.f32 %v2000, %v1841
    %v2002 = vmax.f32 %v2001, %v1843
    %2003 = vmax.xlane.f32.xlu0 %v2002
    %v2004 = vpop.xlane.xlu0 %2003
    %v2005 = vmax.f32 %v1654, %v1656
    %v2006 = vmax.f32 %v2005, %v1847
    %v2007 = vmax.f32 %v2006, %v1849
    %2008 = vmax.xlane.f32.xlu0 %v2007
    %v2009 = vpop.xlane.xlu0 %2008
    %v2010 = vmax.f32 %v1658, %v1660
    %v2011 = vmax.f32 %v2010, %v1851
    %v2012 = vmax.f32 %v2011, %v1853
    %2013 = vmax.xlane.f32.xlu0 %v2012
    %v2014 = vpop.xlane.xlu0 %2013
    %v2015 = vmax.f32 %v1664, %v1666
    %v2016 = vmax.f32 %v2015, %v1857
    %v2017 = vmax.f32 %v2016, %v1859
    %2018 = vmax.xlane.f32.xlu0 %v2017
    %v2019 = vpop.xlane.xlu0 %2018
    %v2020 = vmax.f32 %v1668, %v1670
    %v2021 = vmax.f32 %v2020, %v1861
    %v2022 = vmax.f32 %v2021, %v1863
    %2023 = vmax.xlane.f32.xlu0 %v2022
    %v2024 = vpop.xlane.xlu0 %2023
    %v2025 = vmax.f32 %v1674, %v1676
    %v2026 = vmax.f32 %v2025, %v1867
    %v2027 = vmax.f32 %v2026, %v1869
    %2028 = vmax.xlane.f32.xlu0 %v2027
    %v2029 = vpop.xlane.xlu0 %2028
    %v2030 = vmax.f32 %v1678, %v1680
    %v2031 = vmax.f32 %v2030, %v1871
    %v2032 = vmax.f32 %v2031, %v1873
    %2033 = vmax.xlane.f32.xlu0 %v2032
    %v2034 = vpop.xlane.xlu0 %2033
    %v2035 = vmax.f32 %v1684, %v1686
    %v2036 = vmax.f32 %v2035, %v1877
    %v2037 = vmax.f32 %v2036, %v1879
    %2038 = vmax.xlane.f32.xlu0 %v2037
    %v2039 = vpop.xlane.xlu0 %2038
    %v2040 = vmax.f32 %v1688, %v1690
    %v2041 = vmax.f32 %v2040, %v1881
    %v2042 = vmax.f32 %v2041, %v1883
    %2043 = vmax.xlane.f32.xlu0 %v2042
    %v2044 = vpop.xlane.xlu0 %2043
    %v2045 = vmax.f32 %v1694, %v1696
    %v2046 = vmax.f32 %v2045, %v1887
    %v2047 = vmax.f32 %v2046, %v1889
    %2048 = vmax.xlane.f32.xlu0 %v2047
    %v2049 = vpop.xlane.xlu0 %2048
    %v2050 = vmax.f32 %v1698, %v1700
    %v2051 = vmax.f32 %v2050, %v1891
    %v2052 = vmax.f32 %v2051, %v1893
    %2053 = vmax.xlane.f32.xlu0 %v2052
    %v2054 = vpop.xlane.xlu0 %2053
    %v2055 = vmax.f32 %v1704, %v1706
    %v2056 = vmax.f32 %v2055, %v1897
    %v2057 = vmax.f32 %v2056, %v1899
    %2058 = vmax.xlane.f32.xlu0 %v2057
    %v2059 = vpop.xlane.xlu0 %2058
    %v2060 = vmax.f32 %v1708, %v1710
    %v2061 = vmax.f32 %v2060, %v1901
    %v2062 = vmax.f32 %v2061, %v1903
    %2063 = vmax.xlane.f32.xlu0 %v2062
    %v2064 = vpop.xlane.xlu0 %2063
    %v2065 = vmax.f32 %v1714, %v1716
    %v2066 = vmax.f32 %v2065, %v1907
    %v2067 = vmax.f32 %v2066, %v1909
    %2068 = vmax.xlane.f32.xlu0 %v2067
    %v2069 = vpop.xlane.xlu0 %2068
    %v2070 = vmax.f32 %v1718, %v1720
    %v2071 = vmax.f32 %v2070, %v1911
    %v2072 = vmax.f32 %v2071, %v1913
    %2073 = vmax.xlane.f32.xlu0 %v2072
    %v2074 = vpop.xlane.xlu0 %2073
    %v2075 = vsub.f32 %v1564, %v1919
    %v2076 = vsub.f32 %v1566, %v1919
    %v2077 = vsub.f32 %v1757, %v1919
    %v2078 = vsub.f32 %v1759, %v1919
    %v2079 = vsub.f32 %v1568, %v1924
    %v2080 = vsub.f32 %v1570, %v1924
    %v2081 = vsub.f32 %v1761, %v1924
    %v2082 = vsub.f32 %v1763, %v1924
    %v2083 = vsub.f32 %v1574, %v1929
    %v2084 = vsub.f32 %v1576, %v1929
    %v2085 = vsub.f32 %v1767, %v1929
    %v2086 = vsub.f32 %v1769, %v1929
    %v2087 = vsub.f32 %v1578, %v1934
    %v2088 = vsub.f32 %v1580, %v1934
    %v2089 = vsub.f32 %v1771, %v1934
    %v2090 = vsub.f32 %v1773, %v1934
    %v2091 = vsub.f32 %v1584, %v1939
    %v2092 = vsub.f32 %v1586, %v1939
    %v2093 = vsub.f32 %v1777, %v1939
    %v2094 = vsub.f32 %v1779, %v1939
    %v2095 = vsub.f32 %v1588, %v1944
    %v2096 = vsub.f32 %v1590, %v1944
    %v2097 = vsub.f32 %v1781, %v1944
    %v2098 = vsub.f32 %v1783, %v1944
    %v2099 = vsub.f32 %v1594, %v1949
    %v2100 = vsub.f32 %v1596, %v1949
    %v2101 = vsub.f32 %v1787, %v1949
    %v2102 = vsub.f32 %v1789, %v1949
    %v2103 = vsub.f32 %v1598, %v1954
    %v2104 = vsub.f32 %v1600, %v1954
    %v2105 = vsub.f32 %v1791, %v1954
    %v2106 = vsub.f32 %v1793, %v1954
    %v2107 = vsub.f32 %v1604, %v1959
    %v2108 = vsub.f32 %v1606, %v1959
    %v2109 = vsub.f32 %v1797, %v1959
    %v2110 = vsub.f32 %v1799, %v1959
    %v2111 = vsub.f32 %v1608, %v1964
    %v2112 = vsub.f32 %v1610, %v1964
    %v2113 = vsub.f32 %v1801, %v1964
    %v2114 = vsub.f32 %v1803, %v1964
    %v2115 = vsub.f32 %v1614, %v1969
    %v2116 = vsub.f32 %v1616, %v1969
    %v2117 = vsub.f32 %v1807, %v1969
    %v2118 = vsub.f32 %v1809, %v1969
    %v2119 = vsub.f32 %v1618, %v1974
    %v2120 = vsub.f32 %v1620, %v1974
    %v2121 = vsub.f32 %v1811, %v1974
    %v2122 = vsub.f32 %v1813, %v1974
    %v2123 = vsub.f32 %v1624, %v1979
    %v2124 = vsub.f32 %v1626, %v1979
    %v2125 = vsub.f32 %v1817, %v1979
    %v2126 = vsub.f32 %v1819, %v1979
    %v2127 = vsub.f32 %v1628, %v1984
    %v2128 = vsub.f32 %v1630, %v1984
    %v2129 = vsub.f32 %v1821, %v1984
    %v2130 = vsub.f32 %v1823, %v1984
    %v2131 = vsub.f32 %v1634, %v1989
    %v2132 = vsub.f32 %v1636, %v1989
    %v2133 = vsub.f32 %v1827, %v1989
    %v2134 = vsub.f32 %v1829, %v1989
    %v2135 = vsub.f32 %v1638, %v1994
    %v2136 = vsub.f32 %v1640, %v1994
    %v2137 = vsub.f32 %v1831, %v1994
    %v2138 = vsub.f32 %v1833, %v1994
    %v2139 = vsub.f32 %v1644, %v1999
    %v2140 = vsub.f32 %v1646, %v1999
    %v2141 = vsub.f32 %v1837, %v1999
    %v2142 = vsub.f32 %v1839, %v1999
    %v2143 = vsub.f32 %v1648, %v2004
    %v2144 = vsub.f32 %v1650, %v2004
    %v2145 = vsub.f32 %v1841, %v2004
    %v2146 = vsub.f32 %v1843, %v2004
    %v2147 = vsub.f32 %v1654, %v2009
    %v2148 = vsub.f32 %v1656, %v2009
    %v2149 = vsub.f32 %v1847, %v2009
    %v2150 = vsub.f32 %v1849, %v2009
    %v2151 = vsub.f32 %v1658, %v2014
    %v2152 = vsub.f32 %v1660, %v2014
    %v2153 = vsub.f32 %v1851, %v2014
    %v2154 = vsub.f32 %v1853, %v2014
    %v2155 = vsub.f32 %v1664, %v2019
    %v2156 = vsub.f32 %v1666, %v2019
    %v2157 = vsub.f32 %v1857, %v2019
    %v2158 = vsub.f32 %v1859, %v2019
    %v2159 = vsub.f32 %v1668, %v2024
    %v2160 = vsub.f32 %v1670, %v2024
    %v2161 = vsub.f32 %v1861, %v2024
    %v2162 = vsub.f32 %v1863, %v2024
    %v2163 = vsub.f32 %v1674, %v2029
    %v2164 = vsub.f32 %v1676, %v2029
    %v2165 = vsub.f32 %v1867, %v2029
    %v2166 = vsub.f32 %v1869, %v2029
    %v2167 = vsub.f32 %v1678, %v2034
    %v2168 = vsub.f32 %v1680, %v2034
    %v2169 = vsub.f32 %v1871, %v2034
    %v2170 = vsub.f32 %v1873, %v2034
    %v2171 = vsub.f32 %v1684, %v2039
    %v2172 = vsub.f32 %v1686, %v2039
    %v2173 = vsub.f32 %v1877, %v2039
    %v2174 = vsub.f32 %v1879, %v2039
    %v2175 = vsub.f32 %v1688, %v2044
    %v2176 = vsub.f32 %v1690, %v2044
    %v2177 = vsub.f32 %v1881, %v2044
    %v2178 = vsub.f32 %v1883, %v2044
    %v2179 = vsub.f32 %v1694, %v2049
    %v2180 = vsub.f32 %v1696, %v2049
    %v2181 = vsub.f32 %v1887, %v2049
    %v2182 = vsub.f32 %v1889, %v2049
    %v2183 = vsub.f32 %v1698, %v2054
    %v2184 = vsub.f32 %v1700, %v2054
    %v2185 = vsub.f32 %v1891, %v2054
    %v2186 = vsub.f32 %v1893, %v2054
    %v2187 = vsub.f32 %v1704, %v2059
    %v2188 = vsub.f32 %v1706, %v2059
    %v2189 = vsub.f32 %v1897, %v2059
    %v2190 = vsub.f32 %v1899, %v2059
    %v2191 = vsub.f32 %v1708, %v2064
    %v2192 = vsub.f32 %v1710, %v2064
    %v2193 = vsub.f32 %v1901, %v2064
    %v2194 = vsub.f32 %v1903, %v2064
    %v2195 = vsub.f32 %v1714, %v2069
    %v2196 = vsub.f32 %v1716, %v2069
    %v2197 = vsub.f32 %v1907, %v2069
    %v2198 = vsub.f32 %v1909, %v2069
    %v2199 = vsub.f32 %v1718, %v2074
    %v2200 = vsub.f32 %v1720, %v2074
    %v2201 = vsub.f32 %v1911, %v2074
    %v2202 = vsub.f32 %v1913, %v2074
    %v2203 = vmul.f32 %v2075, 1.442695
    %v2204 = vpow.pop %v2203
    %v2205 = vmul.f32 %v2076, 1.442695
    %v2206 = vpow.pop %v2205
    %v2207 = vmul.f32 %v2077, 1.442695
    %v2208 = vpow.pop %v2207
    %v2209 = vmul.f32 %v2078, 1.442695
    %v2210 = vpow.pop %v2209
    %v2211 = vmul.f32 %v2079, 1.442695
    %v2212 = vpow.pop %v2211
    %v2213 = vmul.f32 %v2080, 1.442695
    %v2214 = vpow.pop %v2213
    %v2215 = vmul.f32 %v2081, 1.442695
    %v2216 = vpow.pop %v2215
    %v2217 = vmul.f32 %v2082, 1.442695
    %v2218 = vpow.pop %v2217
    %v2219 = vmul.f32 %v2083, 1.442695
    %v2220 = vpow.pop %v2219
    %v2221 = vmul.f32 %v2084, 1.442695
    %v2222 = vpow.pop %v2221
    %v2223 = vmul.f32 %v2085, 1.442695
    %v2224 = vpow.pop %v2223
    %v2225 = vmul.f32 %v2086, 1.442695
    %v2226 = vpow.pop %v2225
    %v2227 = vmul.f32 %v2087, 1.442695
    %v2228 = vpow.pop %v2227
    %v2229 = vmul.f32 %v2088, 1.442695
    %v2230 = vpow.pop %v2229
    %v2231 = vmul.f32 %v2089, 1.442695
    %v2232 = vpow.pop %v2231
    %v2233 = vmul.f32 %v2090, 1.442695
    %v2234 = vpow.pop %v2233
    %v2235 = vmul.f32 %v2091, 1.442695
    %v2236 = vpow.pop %v2235
    %v2237 = vmul.f32 %v2092, 1.442695
    %v2238 = vpow.pop %v2237
    %v2239 = vmul.f32 %v2093, 1.442695
    %v2240 = vpow.pop %v2239
    %v2241 = vmul.f32 %v2094, 1.442695
    %v2242 = vpow.pop %v2241
    %v2243 = vmul.f32 %v2095, 1.442695
    %v2244 = vpow.pop %v2243
    %v2245 = vmul.f32 %v2096, 1.442695
    %v2246 = vpow.pop %v2245
    %v2247 = vmul.f32 %v2097, 1.442695
    %v2248 = vpow.pop %v2247
    %v2249 = vmul.f32 %v2098, 1.442695
    %v2250 = vpow.pop %v2249
    %v2251 = vmul.f32 %v2099, 1.442695
    %v2252 = vpow.pop %v2251
    %v2253 = vmul.f32 %v2100, 1.442695
    %v2254 = vpow.pop %v2253
    %v2255 = vmul.f32 %v2101, 1.442695
    %v2256 = vpow.pop %v2255
    %v2257 = vmul.f32 %v2102, 1.442695
    %v2258 = vpow.pop %v2257
    %v2259 = vmul.f32 %v2103, 1.442695
    %v2260 = vpow.pop %v2259
    %v2261 = vmul.f32 %v2104, 1.442695
    %v2262 = vpow.pop %v2261
    %v2263 = vmul.f32 %v2105, 1.442695
    %v2264 = vpow.pop %v2263
    %v2265 = vmul.f32 %v2106, 1.442695
    %v2266 = vpow.pop %v2265
    %v2267 = vmul.f32 %v2107, 1.442695
    %v2268 = vpow.pop %v2267
    %v2269 = vmul.f32 %v2108, 1.442695
    %v2270 = vpow.pop %v2269
    %v2271 = vmul.f32 %v2109, 1.442695
    %v2272 = vpow.pop %v2271
    %v2273 = vmul.f32 %v2110, 1.442695
    %v2274 = vpow.pop %v2273
    %v2275 = vmul.f32 %v2111, 1.442695
    %v2276 = vpow.pop %v2275
    %v2277 = vmul.f32 %v2112, 1.442695
    %v2278 = vpow.pop %v2277
    %v2279 = vmul.f32 %v2113, 1.442695
    %v2280 = vpow.pop %v2279
    %v2281 = vmul.f32 %v2114, 1.442695
    %v2282 = vpow.pop %v2281
    %v2283 = vmul.f32 %v2115, 1.442695
    %v2284 = vpow.pop %v2283
    %v2285 = vmul.f32 %v2116, 1.442695
    %v2286 = vpow.pop %v2285
    %v2287 = vmul.f32 %v2117, 1.442695
    %v2288 = vpow.pop %v2287
    %v2289 = vmul.f32 %v2118, 1.442695
    %v2290 = vpow.pop %v2289
    %v2291 = vmul.f32 %v2119, 1.442695
    %v2292 = vpow.pop %v2291
    %v2293 = vmul.f32 %v2120, 1.442695
    %v2294 = vpow.pop %v2293
    %v2295 = vmul.f32 %v2121, 1.442695
    %v2296 = vpow.pop %v2295
    %v2297 = vmul.f32 %v2122, 1.442695
    %v2298 = vpow.pop %v2297
    %v2299 = vmul.f32 %v2123, 1.442695
    %v2300 = vpow.pop %v2299
    %v2301 = vmul.f32 %v2124, 1.442695
    %v2302 = vpow.pop %v2301
    %v2303 = vmul.f32 %v2125, 1.442695
    %v2304 = vpow.pop %v2303
    %v2305 = vmul.f32 %v2126, 1.442695
    %v2306 = vpow.pop %v2305
    %v2307 = vmul.f32 %v2127, 1.442695
    %v2308 = vpow.pop %v2307
    %v2309 = vmul.f32 %v2128, 1.442695
    %v2310 = vpow.pop %v2309
    %v2311 = vmul.f32 %v2129, 1.442695
    %v2312 = vpow.pop %v2311
    %v2313 = vmul.f32 %v2130, 1.442695
    %v2314 = vpow.pop %v2313
    %v2315 = vmul.f32 %v2131, 1.442695
    %v2316 = vpow.pop %v2315
    %v2317 = vmul.f32 %v2132, 1.442695
    %v2318 = vpow.pop %v2317
    %v2319 = vmul.f32 %v2133, 1.442695
    %v2320 = vpow.pop %v2319
    %v2321 = vmul.f32 %v2134, 1.442695
    %v2322 = vpow.pop %v2321
    %v2323 = vmul.f32 %v2135, 1.442695
    %v2324 = vpow.pop %v2323
    %v2325 = vmul.f32 %v2136, 1.442695
    %v2326 = vpow.pop %v2325
    %v2327 = vmul.f32 %v2137, 1.442695
    %v2328 = vpow.pop %v2327
    %v2329 = vmul.f32 %v2138, 1.442695
    %v2330 = vpow.pop %v2329
    %v2331 = vmul.f32 %v2139, 1.442695
    %v2332 = vpow.pop %v2331
    %v2333 = vmul.f32 %v2140, 1.442695
    %v2334 = vpow.pop %v2333
    %v2335 = vmul.f32 %v2141, 1.442695
    %v2336 = vpow.pop %v2335
    %v2337 = vmul.f32 %v2142, 1.442695
    %v2338 = vpow.pop %v2337
    %v2339 = vmul.f32 %v2143, 1.442695
    %v2340 = vpow.pop %v2339
    %v2341 = vmul.f32 %v2144, 1.442695
    %v2342 = vpow.pop %v2341
    %v2343 = vmul.f32 %v2145, 1.442695
    %v2344 = vpow.pop %v2343
    %v2345 = vmul.f32 %v2146, 1.442695
    %v2346 = vpow.pop %v2345
    %v2347 = vmul.f32 %v2147, 1.442695
    %v2348 = vpow.pop %v2347
    %v2349 = vmul.f32 %v2148, 1.442695
    %v2350 = vpow.pop %v2349
    %v2351 = vmul.f32 %v2149, 1.442695
    %v2352 = vpow.pop %v2351
    %v2353 = vmul.f32 %v2150, 1.442695
    %v2354 = vpow.pop %v2353
    %v2355 = vmul.f32 %v2151, 1.442695
    %v2356 = vpow.pop %v2355
    %v2357 = vmul.f32 %v2152, 1.442695
    %v2358 = vpow.pop %v2357
    %v2359 = vmul.f32 %v2153, 1.442695
    %v2360 = vpow.pop %v2359
    %v2361 = vmul.f32 %v2154, 1.442695
    %v2362 = vpow.pop %v2361
    %v2363 = vmul.f32 %v2155, 1.442695
    %v2364 = vpow.pop %v2363
    %v2365 = vmul.f32 %v2156, 1.442695
    %v2366 = vpow.pop %v2365
    %v2367 = vmul.f32 %v2157, 1.442695
    %v2368 = vpow.pop %v2367
    %v2369 = vmul.f32 %v2158, 1.442695
    %v2370 = vpow.pop %v2369
    %v2371 = vmul.f32 %v2159, 1.442695
    %v2372 = vpow.pop %v2371
    %v2373 = vmul.f32 %v2160, 1.442695
    %v2374 = vpow.pop %v2373
    %v2375 = vmul.f32 %v2161, 1.442695
    %v2376 = vpow.pop %v2375
    %v2377 = vmul.f32 %v2162, 1.442695
    %v2378 = vpow.pop %v2377
    %v2379 = vmul.f32 %v2163, 1.442695
    %v2380 = vpow.pop %v2379
    %v2381 = vmul.f32 %v2164, 1.442695
    %v2382 = vpow.pop %v2381
    %v2383 = vmul.f32 %v2165, 1.442695
    %v2384 = vpow.pop %v2383
    %v2385 = vmul.f32 %v2166, 1.442695
    %v2386 = vpow.pop %v2385
    %v2387 = vmul.f32 %v2167, 1.442695
    %v2388 = vpow.pop %v2387
    %v2389 = vmul.f32 %v2168, 1.442695
    %v2390 = vpow.pop %v2389
    %v2391 = vmul.f32 %v2169, 1.442695
    %v2392 = vpow.pop %v2391
    %v2393 = vmul.f32 %v2170, 1.442695
    %v2394 = vpow.pop %v2393
    %v2395 = vmul.f32 %v2171, 1.442695
    %v2396 = vpow.pop %v2395
    %v2397 = vmul.f32 %v2172, 1.442695
    %v2398 = vpow.pop %v2397
    %v2399 = vmul.f32 %v2173, 1.442695
    %v2400 = vpow.pop %v2399
    %v2401 = vmul.f32 %v2174, 1.442695
    %v2402 = vpow.pop %v2401
    %v2403 = vmul.f32 %v2175, 1.442695
    %v2404 = vpow.pop %v2403
    %v2405 = vmul.f32 %v2176, 1.442695
    %v2406 = vpow.pop %v2405
    %v2407 = vmul.f32 %v2177, 1.442695
    %v2408 = vpow.pop %v2407
    %v2409 = vmul.f32 %v2178, 1.442695
    %v2410 = vpow.pop %v2409
    %v2411 = vmul.f32 %v2179, 1.442695
    %v2412 = vpow.pop %v2411
    %v2413 = vmul.f32 %v2180, 1.442695
    %v2414 = vpow.pop %v2413
    %v2415 = vmul.f32 %v2181, 1.442695
    %v2416 = vpow.pop %v2415
    %v2417 = vmul.f32 %v2182, 1.442695
    %v2418 = vpow.pop %v2417
    %v2419 = vmul.f32 %v2183, 1.442695
    %v2420 = vpow.pop %v2419
    %v2421 = vmul.f32 %v2184, 1.442695
    %v2422 = vpow.pop %v2421
    %v2423 = vmul.f32 %v2185, 1.442695
    %v2424 = vpow.pop %v2423
    %v2425 = vmul.f32 %v2186, 1.442695
    %v2426 = vpow.pop %v2425
    %v2427 = vmul.f32 %v2187, 1.442695
    %v2428 = vpow.pop %v2427
    %v2429 = vmul.f32 %v2188, 1.442695
    %v2430 = vpow.pop %v2429
    %v2431 = vmul.f32 %v2189, 1.442695
    %v2432 = vpow.pop %v2431
    %v2433 = vmul.f32 %v2190, 1.442695
    %v2434 = vpow.pop %v2433
    %v2435 = vmul.f32 %v2191, 1.442695
    %v2436 = vpow.pop %v2435
    %v2437 = vmul.f32 %v2192, 1.442695
    %v2438 = vpow.pop %v2437
    %v2439 = vmul.f32 %v2193, 1.442695
    %v2440 = vpow.pop %v2439
    %v2441 = vmul.f32 %v2194, 1.442695
    %v2442 = vpow.pop %v2441
    %v2443 = vmul.f32 %v2195, 1.442695
    %v2444 = vpow.pop %v2443
    %v2445 = vmul.f32 %v2196, 1.442695
    %v2446 = vpow.pop %v2445
    %v2447 = vmul.f32 %v2197, 1.442695
    %v2448 = vpow.pop %v2447
    %v2449 = vmul.f32 %v2198, 1.442695
    %v2450 = vpow.pop %v2449
    %v2451 = vmul.f32 %v2199, 1.442695
    %v2452 = vpow.pop %v2451
    %v2453 = vmul.f32 %v2200, 1.442695
    %v2454 = vpow.pop %v2453
    %v2455 = vmul.f32 %v2201, 1.442695
    %v2456 = vpow.pop %v2455
    %v2457 = vmul.f32 %v2202, 1.442695
    %v2458 = vpow.pop %v2457
    %v2459 = vadd.f32 %v2204, %v2206
    %v2460 = vadd.f32 %v2459, %v2208
    %v2461 = vadd.f32 %v2460, %v2210
    %2462 = vadd.xlane.f32.xlu0 %v2461
    %v2463 = vpop.xlane.xlu0 %2462
    %v2464 = vadd.f32 %v2212, %v2214
    %v2465 = vadd.f32 %v2464, %v2216
    %v2466 = vadd.f32 %v2465, %v2218
    %2467 = vadd.xlane.f32.xlu0 %v2466
    %v2468 = vpop.xlane.xlu0 %2467
    %v2469 = vadd.f32 %v2220, %v2222
    %v2470 = vadd.f32 %v2469, %v2224
    %v2471 = vadd.f32 %v2470, %v2226
    %2472 = vadd.xlane.f32.xlu0 %v2471
    %v2473 = vpop.xlane.xlu0 %2472
    %v2474 = vadd.f32 %v2228, %v2230
    %v2475 = vadd.f32 %v2474, %v2232
    %v2476 = vadd.f32 %v2475, %v2234
    %2477 = vadd.xlane.f32.xlu0 %v2476
    %v2478 = vpop.xlane.xlu0 %2477
    %v2479 = vadd.f32 %v2236, %v2238
    %v2480 = vadd.f32 %v2479, %v2240
    %v2481 = vadd.f32 %v2480, %v2242
    %2482 = vadd.xlane.f32.xlu0 %v2481
    %v2483 = vpop.xlane.xlu0 %2482
    %v2484 = vadd.f32 %v2244, %v2246
    %v2485 = vadd.f32 %v2484, %v2248
    %v2486 = vadd.f32 %v2485, %v2250
    %2487 = vadd.xlane.f32.xlu0 %v2486
    %v2488 = vpop.xlane.xlu0 %2487
    %v2489 = vadd.f32 %v2252, %v2254
    %v2490 = vadd.f32 %v2489, %v2256
    %v2491 = vadd.f32 %v2490, %v2258
    %2492 = vadd.xlane.f32.xlu0 %v2491
    %v2493 = vpop.xlane.xlu0 %2492
    %v2494 = vadd.f32 %v2260, %v2262
    %v2495 = vadd.f32 %v2494, %v2264
    %v2496 = vadd.f32 %v2495, %v2266
    %2497 = vadd.xlane.f32.xlu0 %v2496
    %v2498 = vpop.xlane.xlu0 %2497
    %v2499 = vadd.f32 %v2268, %v2270
    %v2500 = vadd.f32 %v2499, %v2272
    %v2501 = vadd.f32 %v2500, %v2274
    %2502 = vadd.xlane.f32.xlu0 %v2501
    %v2503 = vpop.xlane.xlu0 %2502
    %v2504 = vadd.f32 %v2276, %v2278
    %v2505 = vadd.f32 %v2504, %v2280
    %v2506 = vadd.f32 %v2505, %v2282
    %2507 = vadd.xlane.f32.xlu0 %v2506
    %v2508 = vpop.xlane.xlu0 %2507
    %v2509 = vadd.f32 %v2284, %v2286
    %v2510 = vadd.f32 %v2509, %v2288
    %v2511 = vadd.f32 %v2510, %v2290
    %2512 = vadd.xlane.f32.xlu0 %v2511
    %v2513 = vpop.xlane.xlu0 %2512
    %v2514 = vadd.f32 %v2292, %v2294
    %v2515 = vadd.f32 %v2514, %v2296
    %v2516 = vadd.f32 %v2515, %v2298
    %2517 = vadd.xlane.f32.xlu0 %v2516
    %v2518 = vpop.xlane.xlu0 %2517
    %v2519 = vadd.f32 %v2300, %v2302
    %v2520 = vadd.f32 %v2519, %v2304
    %v2521 = vadd.f32 %v2520, %v2306
    %2522 = vadd.xlane.f32.xlu0 %v2521
    %v2523 = vpop.xlane.xlu0 %2522
    %v2524 = vadd.f32 %v2308, %v2310
    %v2525 = vadd.f32 %v2524, %v2312
    %v2526 = vadd.f32 %v2525, %v2314
    %2527 = vadd.xlane.f32.xlu0 %v2526
    %v2528 = vpop.xlane.xlu0 %2527
    %v2529 = vadd.f32 %v2316, %v2318
    %v2530 = vadd.f32 %v2529, %v2320
    %v2531 = vadd.f32 %v2530, %v2322
    %2532 = vadd.xlane.f32.xlu0 %v2531
    %v2533 = vpop.xlane.xlu0 %2532
    %v2534 = vadd.f32 %v2324, %v2326
    %v2535 = vadd.f32 %v2534, %v2328
    %v2536 = vadd.f32 %v2535, %v2330
    %2537 = vadd.xlane.f32.xlu0 %v2536
    %v2538 = vpop.xlane.xlu0 %2537
    %v2539 = vadd.f32 %v2332, %v2334
    %v2540 = vadd.f32 %v2539, %v2336
    %v2541 = vadd.f32 %v2540, %v2338
    %2542 = vadd.xlane.f32.xlu0 %v2541
    %v2543 = vpop.xlane.xlu0 %2542
    %v2544 = vadd.f32 %v2340, %v2342
    %v2545 = vadd.f32 %v2544, %v2344
    %v2546 = vadd.f32 %v2545, %v2346
    %2547 = vadd.xlane.f32.xlu0 %v2546
    %v2548 = vpop.xlane.xlu0 %2547
    %v2549 = vadd.f32 %v2348, %v2350
    %v2550 = vadd.f32 %v2549, %v2352
    %v2551 = vadd.f32 %v2550, %v2354
    %2552 = vadd.xlane.f32.xlu0 %v2551
    %v2553 = vpop.xlane.xlu0 %2552
    %v2554 = vadd.f32 %v2356, %v2358
    %v2555 = vadd.f32 %v2554, %v2360
    %v2556 = vadd.f32 %v2555, %v2362
    %2557 = vadd.xlane.f32.xlu0 %v2556
    %v2558 = vpop.xlane.xlu0 %2557
    %v2559 = vadd.f32 %v2364, %v2366
    %v2560 = vadd.f32 %v2559, %v2368
    %v2561 = vadd.f32 %v2560, %v2370
    %2562 = vadd.xlane.f32.xlu0 %v2561
    %v2563 = vpop.xlane.xlu0 %2562
    %v2564 = vadd.f32 %v2372, %v2374
    %v2565 = vadd.f32 %v2564, %v2376
    %v2566 = vadd.f32 %v2565, %v2378
    %2567 = vadd.xlane.f32.xlu0 %v2566
    %v2568 = vpop.xlane.xlu0 %2567
    %v2569 = vadd.f32 %v2380, %v2382
    %v2570 = vadd.f32 %v2569, %v2384
    %v2571 = vadd.f32 %v2570, %v2386
    %2572 = vadd.xlane.f32.xlu0 %v2571
    %v2573 = vpop.xlane.xlu0 %2572
    %v2574 = vadd.f32 %v2388, %v2390
    %v2575 = vadd.f32 %v2574, %v2392
    %v2576 = vadd.f32 %v2575, %v2394
    %2577 = vadd.xlane.f32.xlu0 %v2576
    %v2578 = vpop.xlane.xlu0 %2577
    %v2579 = vadd.f32 %v2396, %v2398
    %v2580 = vadd.f32 %v2579, %v2400
    %v2581 = vadd.f32 %v2580, %v2402
    %2582 = vadd.xlane.f32.xlu0 %v2581
    %v2583 = vpop.xlane.xlu0 %2582
    %v2584 = vadd.f32 %v2404, %v2406
    %v2585 = vadd.f32 %v2584, %v2408
    %v2586 = vadd.f32 %v2585, %v2410
    %2587 = vadd.xlane.f32.xlu0 %v2586
    %v2588 = vpop.xlane.xlu0 %2587
    %v2589 = vadd.f32 %v2412, %v2414
    %v2590 = vadd.f32 %v2589, %v2416
    %v2591 = vadd.f32 %v2590, %v2418
    %2592 = vadd.xlane.f32.xlu0 %v2591
    %v2593 = vpop.xlane.xlu0 %2592
    %v2594 = vadd.f32 %v2420, %v2422
    %v2595 = vadd.f32 %v2594, %v2424
    %v2596 = vadd.f32 %v2595, %v2426
    %2597 = vadd.xlane.f32.xlu0 %v2596
    %v2598 = vpop.xlane.xlu0 %2597
    %v2599 = vadd.f32 %v2428, %v2430
    %v2600 = vadd.f32 %v2599, %v2432
    %v2601 = vadd.f32 %v2600, %v2434
    %2602 = vadd.xlane.f32.xlu0 %v2601
    %v2603 = vpop.xlane.xlu0 %2602
    %v2604 = vadd.f32 %v2436, %v2438
    %v2605 = vadd.f32 %v2604, %v2440
    %v2606 = vadd.f32 %v2605, %v2442
    %2607 = vadd.xlane.f32.xlu0 %v2606
    %v2608 = vpop.xlane.xlu0 %2607
    %v2609 = vadd.f32 %v2444, %v2446
    %v2610 = vadd.f32 %v2609, %v2448
    %v2611 = vadd.f32 %v2610, %v2450
    %2612 = vadd.xlane.f32.xlu0 %v2611
    %v2613 = vpop.xlane.xlu0 %2612
    %v2614 = vadd.f32 %v2452, %v2454
    %v2615 = vadd.f32 %v2614, %v2456
    %v2616 = vadd.f32 %v2615, %v2458
    %2617 = vadd.xlane.f32.xlu0 %v2616
    %v2618 = vpop.xlane.xlu0 %2617
    %v2619 = vpack.c.bf16 %v2212, %v2204
    %v2620 = vpack.c.bf16 %v2214, %v2206
    %v2621 = vpack.c.bf16 %v2216, %v2208
    %v2622 = vpack.c.bf16 %v2218, %v2210
    %v2623 = vpack.c.bf16 %v2228, %v2220
    %v2624 = vpack.c.bf16 %v2230, %v2222
    %v2625 = vpack.c.bf16 %v2232, %v2224
    %v2626 = vpack.c.bf16 %v2234, %v2226
    %v2627 = vpack.c.bf16 %v2244, %v2236
    %v2628 = vpack.c.bf16 %v2246, %v2238
    %v2629 = vpack.c.bf16 %v2248, %v2240
    %v2630 = vpack.c.bf16 %v2250, %v2242
    %v2631 = vpack.c.bf16 %v2260, %v2252
    %v2632 = vpack.c.bf16 %v2262, %v2254
    %v2633 = vpack.c.bf16 %v2264, %v2256
    %v2634 = vpack.c.bf16 %v2266, %v2258
    %v2635 = vpack.c.bf16 %v2276, %v2268
    %v2636 = vpack.c.bf16 %v2278, %v2270
    %v2637 = vpack.c.bf16 %v2280, %v2272
    %v2638 = vpack.c.bf16 %v2282, %v2274
    %v2639 = vpack.c.bf16 %v2292, %v2284
    %v2640 = vpack.c.bf16 %v2294, %v2286
    %v2641 = vpack.c.bf16 %v2296, %v2288
    %v2642 = vpack.c.bf16 %v2298, %v2290
    %v2643 = vpack.c.bf16 %v2308, %v2300
    %v2644 = vpack.c.bf16 %v2310, %v2302
    %v2645 = vpack.c.bf16 %v2312, %v2304
    %v2646 = vpack.c.bf16 %v2314, %v2306
    %v2647 = vpack.c.bf16 %v2324, %v2316
    %v2648 = vpack.c.bf16 %v2326, %v2318
    %v2649 = vpack.c.bf16 %v2328, %v2320
    %v2650 = vpack.c.bf16 %v2330, %v2322
    %v2651 = vpack.c.bf16 %v2340, %v2332
    %v2652 = vpack.c.bf16 %v2342, %v2334
    %v2653 = vpack.c.bf16 %v2344, %v2336
    %v2654 = vpack.c.bf16 %v2346, %v2338
    %v2655 = vpack.c.bf16 %v2356, %v2348
    %v2656 = vpack.c.bf16 %v2358, %v2350
    %v2657 = vpack.c.bf16 %v2360, %v2352
    %v2658 = vpack.c.bf16 %v2362, %v2354
    %v2659 = vpack.c.bf16 %v2372, %v2364
    %v2660 = vpack.c.bf16 %v2374, %v2366
    %v2661 = vpack.c.bf16 %v2376, %v2368
    %v2662 = vpack.c.bf16 %v2378, %v2370
    %v2663 = vpack.c.bf16 %v2388, %v2380
    %v2664 = vpack.c.bf16 %v2390, %v2382
    %v2665 = vpack.c.bf16 %v2392, %v2384
    %v2666 = vpack.c.bf16 %v2394, %v2386
    %v2667 = vpack.c.bf16 %v2404, %v2396
    %v2668 = vpack.c.bf16 %v2406, %v2398
    %v2669 = vpack.c.bf16 %v2408, %v2400
    %v2670 = vpack.c.bf16 %v2410, %v2402
    %v2671 = vpack.c.bf16 %v2420, %v2412
    %v2672 = vpack.c.bf16 %v2422, %v2414
    %v2673 = vpack.c.bf16 %v2424, %v2416
    %v2674 = vpack.c.bf16 %v2426, %v2418
    %v2675 = vpack.c.bf16 %v2436, %v2428
    %v2676 = vpack.c.bf16 %v2438, %v2430
    %v2677 = vpack.c.bf16 %v2440, %v2432
    %v2678 = vpack.c.bf16 %v2442, %v2434
    %v2679 = vpack.c.bf16 %v2452, %v2444
    %v2680 = vpack.c.bf16 %v2454, %v2446
    %v2681 = vpack.c.bf16 %v2456, %v2448
    %v2682 = vpack.c.bf16 %v2458, %v2450
    %2683 = vmatprep.subr.bf16.mxu0 0
    %2684 = vmatpush1.bf16.msra.mxu0 %v1175
    %2685 = vmatprep.subr.bf16.mxu0 0
    %2686 = vmatpush1.bf16.msra.mxu0 %v1176
    %2687 = vmatprep.subr.bf16.mxu0 0
    %2688 = vmatpush1.bf16.msra.mxu0 %v1177
    %2689 = vmatprep.subr.bf16.mxu0 0
    %2690 = vmatpush1.bf16.msra.mxu0 %v1178
    %2691 = vmatprep.subr.bf16.mxu0 0
    %2692 = vmatpush1.bf16.msra.mxu0 %v1179
    %2693 = vmatprep.subr.bf16.mxu0 0
    %2694 = vmatpush1.bf16.msra.mxu0 %v1180
    %2695 = vmatprep.subr.bf16.mxu0 0
    %2696 = vmatpush1.bf16.msra.mxu0 %v1181
    %2697 = vmatprep.subr.bf16.mxu0 0
    %2698 = vmatpush1.bf16.msra.mxu0 %v1182
    %2699 = vmatprep.subr.bf16.mxu0 0
    %2700 = vmatpush1.bf16.msra.mxu0 %v1183
    %2701 = vmatprep.subr.bf16.mxu0 0
    %2702 = vmatpush1.bf16.msra.mxu0 %v1184
    %2703 = vmatprep.subr.bf16.mxu0 0
    %2704 = vmatpush1.bf16.msra.mxu0 %v1185
    %2705 = vmatprep.subr.bf16.mxu0 0
    %2706 = vmatpush1.bf16.msra.mxu0 %v1186
    %2707 = vmatprep.subr.bf16.mxu0 0
    %2708 = vmatpush1.bf16.msra.mxu0 %v1187
    %2709 = vmatprep.subr.bf16.mxu0 0
    %2710 = vmatpush1.bf16.msra.mxu0 %v1188
    %2711 = vmatprep.subr.bf16.mxu0 0
    %2712 = vmatpush1.bf16.msra.mxu0 %v1189
    %2713 = vmatprep.subr.bf16.mxu0 0
    %2714 = vmatpush1.bf16.msra.mxu0 %v1190
    %2715 = vmatprep.mubr.bf16.mxu0 %v2620
    %2716 = vmatmul.mubr.bf16.gmra.mrb[0].mxu0 %v2619
    %v2717 = vpop.f32.mrb[0].mxu0
    %v2718 = vadd.f32 0.0, %v2717
    %v2719 = vpop.f32.mrb[0].mxu0
    %v2720 = vpop.f32.mrb[0].mxu0
    %v2721 = vadd.f32 0.0, %v2720
    %v2722 = vpop.f32.mrb[0].mxu0
    %2723 = vmatprep.mubr.bf16.mxu0 %v2624
    %2724 = vmatmul.mubr.bf16.gmra.mrb[0].mxu0 %v2623
    %v2725 = vpop.f32.mrb[0].mxu0
    %v2726 = vadd.f32 0.0, %v2725
    %v2727 = vpop.f32.mrb[0].mxu0
    %v2728 = vpop.f32.mrb[0].mxu0
    %v2729 = vadd.f32 0.0, %v2728
    %v2730 = vpop.f32.mrb[0].mxu0
    %2731 = vmatprep.mubr.bf16.mxu0 %v2628
    %2732 = vmatmul.mubr.bf16.gmra.mrb[0].mxu0 %v2627
    %v2733 = vpop.f32.mrb[0].mxu0
    %v2734 = vadd.f32 0.0, %v2733
    %v2735 = vpop.f32.mrb[0].mxu0
    %v2736 = vpop.f32.mrb[0].mxu0
    %v2737 = vadd.f32 0.0, %v2736
    %v2738 = vpop.f32.mrb[0].mxu0
    %2739 = vmatprep.mubr.bf16.mxu0 %v2632
    %2740 = vmatmul.mubr.bf16.gmra.mrb[0].mxu0 %v2631
    %v2741 = vpop.f32.mrb[0].mxu0
    %v2742 = vadd.f32 0.0, %v2741
    %v2743 = vpop.f32.mrb[0].mxu0
    %v2744 = vpop.f32.mrb[0].mxu0
    %v2745 = vadd.f32 0.0, %v2744
    %v2746 = vpop.f32.mrb[0].mxu0
    %2747 = vmatprep.mubr.bf16.mxu0 %v2636
    %2748 = vmatmul.mubr.bf16.gmra.mrb[0].mxu0 %v2635
    %v2749 = vpop.f32.mrb[0].mxu0
    %v2750 = vadd.f32 0.0, %v2749
    %v2751 = vpop.f32.mrb[0].mxu0
    %v2752 = vpop.f32.mrb[0].mxu0
    %v2753 = vadd.f32 0.0, %v2752
    %v2754 = vpop.f32.mrb[0].mxu0
    %2755 = vmatprep.mubr.bf16.mxu0 %v2640
    %2756 = vmatmul.mubr.bf16.gmra.mrb[0].mxu0 %v2639
    %v2757 = vpop.f32.mrb[0].mxu0
    %v2758 = vadd.f32 0.0, %v2757
    %v2759 = vpop.f32.mrb[0].mxu0
    %v2760 = vpop.f32.mrb[0].mxu0
    %v2761 = vadd.f32 0.0, %v2760
    %v2762 = vpop.f32.mrb[0].mxu0
    %2763 = vmatprep.mubr.bf16.mxu0 %v2644
    %2764 = vmatmul.mubr.bf16.gmra.mrb[0].mxu0 %v2643
    %v2765 = vpop.f32.mrb[0].mxu0
    %v2766 = vadd.f32 0.0, %v2765
    %v2767 = vpop.f32.mrb[0].mxu0
    %v2768 = vpop.f32.mrb[0].mxu0
    %v2769 = vadd.f32 0.0, %v2768
    %v2770 = vpop.f32.mrb[0].mxu0
    %2771 = vmatprep.mubr.bf16.mxu0 %v2648
    %2772 = vmatmul.mubr.bf16.gmra.mrb[0].mxu0 %v2647
    %v2773 = vpop.f32.mrb[0].mxu0
    %v2774 = vadd.f32 0.0, %v2773
    %v2775 = vpop.f32.mrb[0].mxu0
    %v2776 = vpop.f32.mrb[0].mxu0
    %v2777 = vadd.f32 0.0, %v2776
    %v2778 = vpop.f32.mrb[0].mxu0
    %2779 = vmatprep.mubr.bf16.mxu0 %v2652
    %2780 = vmatmul.mubr.bf16.gmra.mrb[0].mxu0 %v2651
    %v2781 = vpop.f32.mrb[0].mxu0
    %v2782 = vadd.f32 0.0, %v2781
    %v2783 = vpop.f32.mrb[0].mxu0
    %v2784 = vpop.f32.mrb[0].mxu0
    %v2785 = vadd.f32 0.0, %v2784
    %v2786 = vpop.f32.mrb[0].mxu0
    %2787 = vmatprep.mubr.bf16.mxu0 %v2656
    %2788 = vmatmul.mubr.bf16.gmra.mrb[0].mxu0 %v2655
    %v2789 = vpop.f32.mrb[0].mxu0
    %v2790 = vadd.f32 0.0, %v2789
    %v2791 = vpop.f32.mrb[0].mxu0
    %v2792 = vpop.f32.mrb[0].mxu0
    %v2793 = vadd.f32 0.0, %v2792
    %v2794 = vpop.f32.mrb[0].mxu0
    %2795 = vmatprep.mubr.bf16.mxu0 %v2660
    %2796 = vmatmul.mubr.bf16.gmra.mrb[0].mxu0 %v2659
    %v2797 = vpop.f32.mrb[0].mxu0
    %v2798 = vadd.f32 0.0, %v2797
    %v2799 = vpop.f32.mrb[0].mxu0
    %v2800 = vpop.f32.mrb[0].mxu0
    %v2801 = vadd.f32 0.0, %v2800
    %v2802 = vpop.f32.mrb[0].mxu0
    %2803 = vmatprep.mubr.bf16.mxu0 %v2664
    %2804 = vmatmul.mubr.bf16.gmra.mrb[0].mxu0 %v2663
    %v2805 = vpop.f32.mrb[0].mxu0
    %v2806 = vadd.f32 0.0, %v2805
    %v2807 = vpop.f32.mrb[0].mxu0
    %v2808 = vpop.f32.mrb[0].mxu0
    %v2809 = vadd.f32 0.0, %v2808
    %v2810 = vpop.f32.mrb[0].mxu0
    %2811 = vmatprep.mubr.bf16.mxu0 %v2668
    %2812 = vmatmul.mubr.bf16.gmra.mrb[0].mxu0 %v2667
    %v2813 = vpop.f32.mrb[0].mxu0
    %v2814 = vadd.f32 0.0, %v2813
    %v2815 = vpop.f32.mrb[0].mxu0
    %v2816 = vpop.f32.mrb[0].mxu0
    %v2817 = vadd.f32 0.0, %v2816
    %v2818 = vpop.f32.mrb[0].mxu0
    %2819 = vmatprep.mubr.bf16.mxu0 %v2672
    %2820 = vmatmul.mubr.bf16.gmra.mrb[0].mxu0 %v2671
    %v2821 = vpop.f32.mrb[0].mxu0
    %v2822 = vadd.f32 0.0, %v2821
    %v2823 = vpop.f32.mrb[0].mxu0
    %v2824 = vpop.f32.mrb[0].mxu0
    %v2825 = vadd.f32 0.0, %v2824
    %v2826 = vpop.f32.mrb[0].mxu0
    %2827 = vmatprep.mubr.bf16.mxu0 %v2676
    %2828 = vmatmul.mubr.bf16.gmra.mrb[0].mxu0 %v2675
    %v2829 = vpop.f32.mrb[0].mxu0
    %v2830 = vadd.f32 0.0, %v2829
    %v2831 = vpop.f32.mrb[0].mxu0
    %v2832 = vpop.f32.mrb[0].mxu0
    %v2833 = vadd.f32 0.0, %v2832
    %v2834 = vpop.f32.mrb[0].mxu0
    %2835 = vmatprep.mubr.bf16.mxu0 %v2680
    %2836 = vmatmul.mubr.bf16.gmra.mrb[0].mxu0 %v2679
    %v2837 = vpop.f32.mrb[0].mxu0
    %v2838 = vadd.f32 0.0, %v2837
    %v2839 = vpop.f32.mrb[0].mxu0
    %v2840 = vpop.f32.mrb[0].mxu0
    %v2841 = vadd.f32 0.0, %v2840
    %v2842 = vpop.f32.mrb[0].mxu0
    %2843 = vdwg.mxu0
    %2844 = vmatprep.subr.bf16.mxu0 0
    %2845 = vmatpush1.bf16.msra.mxu0 %v1191
    %2846 = vmatprep.subr.bf16.mxu0 0
    %2847 = vmatpush1.bf16.msra.mxu0 %v1192
    %2848 = vmatprep.subr.bf16.mxu0 0
    %2849 = vmatpush1.bf16.msra.mxu0 %v1193
    %2850 = vmatprep.subr.bf16.mxu0 0
    %2851 = vmatpush1.bf16.msra.mxu0 %v1194
    %2852 = vmatprep.subr.bf16.mxu0 0
    %2853 = vmatpush1.bf16.msra.mxu0 %v1195
    %2854 = vmatprep.subr.bf16.mxu0 0
    %2855 = vmatpush1.bf16.msra.mxu0 %v1196
    %2856 = vmatprep.subr.bf16.mxu0 0
    %2857 = vmatpush1.bf16.msra.mxu0 %v1197
    %2858 = vmatprep.subr.bf16.mxu0 0
    %2859 = vmatpush1.bf16.msra.mxu0 %v1198
    %2860 = vmatprep.subr.bf16.mxu0 0
    %2861 = vmatpush1.bf16.msra.mxu0 %v1199
    %2862 = vmatprep.subr.bf16.mxu0 0
    %2863 = vmatpush1.bf16.msra.mxu0 %v1200
    %2864 = vmatprep.subr.bf16.mxu0 0
    %2865 = vmatpush1.bf16.msra.mxu0 %v1201
    %2866 = vmatprep.subr.bf16.mxu0 0
    %2867 = vmatpush1.bf16.msra.mxu0 %v1202
    %2868 = vmatprep.subr.bf16.mxu0 0
    %2869 = vmatpush1.bf16.msra.mxu0 %v1203
    %2870 = vmatprep.subr.bf16.mxu0 0
    %2871 = vmatpush1.bf16.msra.mxu0 %v1204
    %2872 = vmatprep.subr.bf16.mxu0 0
    %2873 = vmatpush1.bf16.msra.mxu0 %v1205
    %2874 = vmatprep.subr.bf16.mxu0 0
    %2875 = vmatpush1.bf16.msra.mxu0 %v1206
    %2876 = vmatprep.mubr.bf16.mxu0 %v2622
    %2877 = vmatmul.mubr.bf16.gmra.mrb[0].mxu0 %v2621
    %v2878 = vpop.f32.mrb[0].mxu0
    %v2879 = vadd.f32 %v2718, %v2878
    %v2880 = vpop.f32.mrb[0].mxu0
    %v2881 = vpop.f32.mrb[0].mxu0
    %v2882 = vadd.f32 %v2721, %v2881
    %v2883 = vpop.f32.mrb[0].mxu0
    %2884 = vmatprep.mubr.bf16.mxu0 %v2626
    %2885 = vmatmul.mubr.bf16.gmra.mrb[0].mxu0 %v2625
    %v2886 = vpop.f32.mrb[0].mxu0
    %v2887 = vadd.f32 %v2726, %v2886
    %v2888 = vpop.f32.mrb[0].mxu0
    %v2889 = vpop.f32.mrb[0].mxu0
    %v2890 = vadd.f32 %v2729, %v2889
    %v2891 = vpop.f32.mrb[0].mxu0
    %2892 = vmatprep.mubr.bf16.mxu0 %v2630
    %2893 = vmatmul.mubr.bf16.gmra.mrb[0].mxu0 %v2629
    %v2894 = vpop.f32.mrb[0].mxu0
    %v2895 = vadd.f32 %v2734, %v2894
    %v2896 = vpop.f32.mrb[0].mxu0
    %v2897 = vpop.f32.mrb[0].mxu0
    %v2898 = vadd.f32 %v2737, %v2897
    %v2899 = vpop.f32.mrb[0].mxu0
    %2900 = vmatprep.mubr.bf16.mxu0 %v2634
    %2901 = vmatmul.mubr.bf16.gmra.mrb[0].mxu0 %v2633
    %v2902 = vpop.f32.mrb[0].mxu0
    %v2903 = vadd.f32 %v2742, %v2902
    %v2904 = vpop.f32.mrb[0].mxu0
    %v2905 = vpop.f32.mrb[0].mxu0
    %v2906 = vadd.f32 %v2745, %v2905
    %v2907 = vpop.f32.mrb[0].mxu0
    %2908 = vmatprep.mubr.bf16.mxu0 %v2638
    %2909 = vmatmul.mubr.bf16.gmra.mrb[0].mxu0 %v2637
    %v2910 = vpop.f32.mrb[0].mxu0
    %v2911 = vadd.f32 %v2750, %v2910
    %v2912 = vpop.f32.mrb[0].mxu0
    %v2913 = vpop.f32.mrb[0].mxu0
    %v2914 = vadd.f32 %v2753, %v2913
    %v2915 = vpop.f32.mrb[0].mxu0
    %2916 = vmatprep.mubr.bf16.mxu0 %v2642
    %2917 = vmatmul.mubr.bf16.gmra.mrb[0].mxu0 %v2641
    %v2918 = vpop.f32.mrb[0].mxu0
    %v2919 = vadd.f32 %v2758, %v2918
    %v2920 = vpop.f32.mrb[0].mxu0
    %v2921 = vpop.f32.mrb[0].mxu0
    %v2922 = vadd.f32 %v2761, %v2921
    %v2923 = vpop.f32.mrb[0].mxu0
    %2924 = vmatprep.mubr.bf16.mxu0 %v2646
    %2925 = vmatmul.mubr.bf16.gmra.mrb[0].mxu0 %v2645
    %v2926 = vpop.f32.mrb[0].mxu0
    %v2927 = vadd.f32 %v2766, %v2926
    %v2928 = vpop.f32.mrb[0].mxu0
    %v2929 = vpop.f32.mrb[0].mxu0
    %v2930 = vadd.f32 %v2769, %v2929
    %v2931 = vpop.f32.mrb[0].mxu0
    %2932 = vmatprep.mubr.bf16.mxu0 %v2650
    %2933 = vmatmul.mubr.bf16.gmra.mrb[0].mxu0 %v2649
    %v2934 = vpop.f32.mrb[0].mxu0
    %v2935 = vadd.f32 %v2774, %v2934
    %v2936 = vpop.f32.mrb[0].mxu0
    %v2937 = vpop.f32.mrb[0].mxu0
    %v2938 = vadd.f32 %v2777, %v2937
    %v2939 = vpop.f32.mrb[0].mxu0
    %2940 = vmatprep.mubr.bf16.mxu0 %v2654
    %2941 = vmatmul.mubr.bf16.gmra.mrb[0].mxu0 %v2653
    %v2942 = vpop.f32.mrb[0].mxu0
    %v2943 = vadd.f32 %v2782, %v2942
    %v2944 = vpop.f32.mrb[0].mxu0
    %v2945 = vpop.f32.mrb[0].mxu0
    %v2946 = vadd.f32 %v2785, %v2945
    %v2947 = vpop.f32.mrb[0].mxu0
    %2948 = vmatprep.mubr.bf16.mxu0 %v2658
    %2949 = vmatmul.mubr.bf16.gmra.mrb[0].mxu0 %v2657
    %v2950 = vpop.f32.mrb[0].mxu0
    %v2951 = vadd.f32 %v2790, %v2950
    %v2952 = vpop.f32.mrb[0].mxu0
    %v2953 = vpop.f32.mrb[0].mxu0
    %v2954 = vadd.f32 %v2793, %v2953
    %v2955 = vpop.f32.mrb[0].mxu0
    %2956 = vmatprep.mubr.bf16.mxu0 %v2662
    %2957 = vmatmul.mubr.bf16.gmra.mrb[0].mxu0 %v2661
    %v2958 = vpop.f32.mrb[0].mxu0
    %v2959 = vadd.f32 %v2798, %v2958
    %v2960 = vpop.f32.mrb[0].mxu0
    %v2961 = vpop.f32.mrb[0].mxu0
    %v2962 = vadd.f32 %v2801, %v2961
    %v2963 = vpop.f32.mrb[0].mxu0
    %2964 = vmatprep.mubr.bf16.mxu0 %v2666
    %2965 = vmatmul.mubr.bf16.gmra.mrb[0].mxu0 %v2665
    %v2966 = vpop.f32.mrb[0].mxu0
    %v2967 = vadd.f32 %v2806, %v2966
    %v2968 = vpop.f32.mrb[0].mxu0
    %v2969 = vpop.f32.mrb[0].mxu0
    %v2970 = vadd.f32 %v2809, %v2969
    %v2971 = vpop.f32.mrb[0].mxu0
    %2972 = vmatprep.mubr.bf16.mxu0 %v2670
    %2973 = vmatmul.mubr.bf16.gmra.mrb[0].mxu0 %v2669
    %v2974 = vpop.f32.mrb[0].mxu0
    %v2975 = vadd.f32 %v2814, %v2974
    %v2976 = vpop.f32.mrb[0].mxu0
    %v2977 = vpop.f32.mrb[0].mxu0
    %v2978 = vadd.f32 %v2817, %v2977
    %v2979 = vpop.f32.mrb[0].mxu0
    %2980 = vmatprep.mubr.bf16.mxu0 %v2674
    %2981 = vmatmul.mubr.bf16.gmra.mrb[0].mxu0 %v2673
    %v2982 = vpop.f32.mrb[0].mxu0
    %v2983 = vadd.f32 %v2822, %v2982
    %v2984 = vpop.f32.mrb[0].mxu0
    %v2985 = vpop.f32.mrb[0].mxu0
    %v2986 = vadd.f32 %v2825, %v2985
    %v2987 = vpop.f32.mrb[0].mxu0
    %2988 = vmatprep.mubr.bf16.mxu0 %v2678
    %2989 = vmatmul.mubr.bf16.gmra.mrb[0].mxu0 %v2677
    %v2990 = vpop.f32.mrb[0].mxu0
    %v2991 = vadd.f32 %v2830, %v2990
    %v2992 = vpop.f32.mrb[0].mxu0
    %v2993 = vpop.f32.mrb[0].mxu0
    %v2994 = vadd.f32 %v2833, %v2993
    %v2995 = vpop.f32.mrb[0].mxu0
    %2996 = vmatprep.mubr.bf16.mxu0 %v2682
    %2997 = vmatmul.mubr.bf16.gmra.mrb[0].mxu0 %v2681
    %v2998 = vpop.f32.mrb[0].mxu0
    %v2999 = vadd.f32 %v2838, %v2998
    %v3000 = vpop.f32.mrb[0].mxu0
    %v3001 = vpop.f32.mrb[0].mxu0
    %v3002 = vadd.f32 %v2841, %v3001
    %v3003 = vpop.f32.mrb[0].mxu0
    %3004 = vdwg.mxu0
    %v3005 = vrcp.pop %v2463
    %v3006 = vrcp.pop %v2468
    %v3007 = vrcp.pop %v2473
    %v3008 = vrcp.pop %v2478
    %v3009 = vrcp.pop %v2483
    %v3010 = vrcp.pop %v2488
    %v3011 = vrcp.pop %v2493
    %v3012 = vrcp.pop %v2498
    %v3013 = vrcp.pop %v2503
    %v3014 = vrcp.pop %v2508
    %v3015 = vrcp.pop %v2513
    %v3016 = vrcp.pop %v2518
    %v3017 = vrcp.pop %v2523
    %v3018 = vrcp.pop %v2528
    %v3019 = vrcp.pop %v2533
    %v3020 = vrcp.pop %v2538
    %v3021 = vrcp.pop %v2543
    %v3022 = vrcp.pop %v2548
    %v3023 = vrcp.pop %v2553
    %v3024 = vrcp.pop %v2558
    %v3025 = vrcp.pop %v2563
    %v3026 = vrcp.pop %v2568
    %v3027 = vrcp.pop %v2573
    %v3028 = vrcp.pop %v2578
    %v3029 = vrcp.pop %v2583
    %v3030 = vrcp.pop %v2588
    %v3031 = vrcp.pop %v2593
    %v3032 = vrcp.pop %v2598
    %v3033 = vrcp.pop %v2603
    %v3034 = vrcp.pop %v2608
    %v3035 = vrcp.pop %v2613
    %v3036 = vrcp.pop %v2618
    %v3037 = vmul.f32 %v2879, %v3005
    %v3038 = vmul.f32 %v2882, %v3006
    %v3039 = vmul.f32 %v2887, %v3007
    %v3040 = vmul.f32 %v2890, %v3008
    %v3041 = vmul.f32 %v2895, %v3009
    %v3042 = vmul.f32 %v2898, %v3010
    %v3043 = vmul.f32 %v2903, %v3011
    %v3044 = vmul.f32 %v2906, %v3012
    %v3045 = vmul.f32 %v2911, %v3013
    %v3046 = vmul.f32 %v2914, %v3014
    %v3047 = vmul.f32 %v2919, %v3015
    %v3048 = vmul.f32 %v2922, %v3016
    %v3049 = vmul.f32 %v2927, %v3017
    %v3050 = vmul.f32 %v2930, %v3018
    %v3051 = vmul.f32 %v2935, %v3019
    %v3052 = vmul.f32 %v2938, %v3020
    %v3053 = vmul.f32 %v2943, %v3021
    %v3054 = vmul.f32 %v2946, %v3022
    %v3055 = vmul.f32 %v2951, %v3023
    %v3056 = vmul.f32 %v2954, %v3024
    %v3057 = vmul.f32 %v2959, %v3025
    %v3058 = vmul.f32 %v2962, %v3026
    %v3059 = vmul.f32 %v2967, %v3027
    %v3060 = vmul.f32 %v2970, %v3028
    %v3061 = vmul.f32 %v2975, %v3029
    %v3062 = vmul.f32 %v2978, %v3030
    %v3063 = vmul.f32 %v2983, %v3031
    %v3064 = vmul.f32 %v2986, %v3032
    %v3065 = vmul.f32 %v2991, %v3033
    %v3066 = vmul.f32 %v2994, %v3034
    %v3067 = vmul.f32 %v2999, %v3035
    %v3068 = vmul.f32 %v3002, %v3036
    %v3069 = vpack.c.bf16 %v1224, %v1224
    %v3070 = vpack.c.bf16 %v1256, %v1256
    %v3071 = vpack.c.bf16 %v1288, %v1288
    %v3072 = vpack.c.bf16 %v1320, %v1320
    %3089 = vrot.lane.b32.xlu0 %v1159, 120
    %v3090 = vpop.permute.xlu0 %3089
    %3091 = vrot.lane.b32.xlu0 %v1160, 120
    %v3092 = vpop.permute.xlu0 %3091
    %3093 = vrot.lane.b32.xlu0 %v1161, 120
    %v3094 = vpop.permute.xlu0 %3093
    %3095 = vrot.lane.b32.xlu0 %v1162, 120
    %v3096 = vpop.permute.xlu0 %3095
    %3097 = vrot.lane.b32.xlu0 %v1163, 120
    %v3098 = vpop.permute.xlu0 %3097
    %3099 = vrot.lane.b32.xlu0 %v1164, 120
    %v3100 = vpop.permute.xlu0 %3099
    %3101 = vrot.lane.b32.xlu0 %v1165, 120
    %v3102 = vpop.permute.xlu0 %3101
    %3103 = vrot.lane.b32.xlu0 %v1166, 120
    %v3104 = vpop.permute.xlu0 %3103
    %3105 = vrot.lane.b32.xlu0 %v1167, 120
    %v3106 = vpop.permute.xlu0 %3105
    %3107 = vrot.lane.b32.xlu0 %v1168, 120
    %v3108 = vpop.permute.xlu0 %3107
    %3109 = vrot.lane.b32.xlu0 %v1169, 120
    %v3110 = vpop.permute.xlu0 %3109
    %3111 = vrot.lane.b32.xlu0 %v1170, 120
    %v3112 = vpop.permute.xlu0 %3111
    %3113 = vrot.lane.b32.xlu0 %v1171, 120
    %v3114 = vpop.permute.xlu0 %3113
    %3115 = vrot.lane.b32.xlu0 %v1172, 120
    %v3116 = vpop.permute.xlu0 %3115
    %3117 = vrot.lane.b32.xlu0 %v1173, 120
    %v3118 = vpop.permute.xlu0 %3117
    %3119 = vrot.lane.b32.xlu0 %v1174, 120
    %v3120 = vpop.permute.xlu0 %3119
    %v3122 = vsel %vm1467, %v3090, 0
    %v3125 = vsel %vm1467, %v3092, 0
    %v3128 = vsel %vm1467, %v3094, 0
    %v3131 = vsel %vm1467, %v3096, 0
    %v3134 = vsel %vm1467, %v3098, 0
    %v3137 = vsel %vm1467, %v3100, 0
    %v3140 = vsel %vm1467, %v3102, 0
    %v3143 = vsel %vm1467, %v3104, 0
    %v3146 = vsel %vm1467, %v3106, 0
    %v3149 = vsel %vm1467, %v3108, 0
    %v3152 = vsel %vm1467, %v3110, 0
    %v3155 = vsel %vm1467, %v3112, 0
    %v3158 = vsel %vm1467, %v3114, 0
    %v3161 = vsel %vm1467, %v3116, 0
    %v3164 = vsel %vm1467, %v3118, 0
    %v3167 = vsel %vm1467, %v3120, 0
    %v3170 = vsel %vm1516, %v3069, 0
    %v3173 = vsel %vm1516, %v3070, 0
    %v3176 = vsel %vm1516, %v3071, 0
    %v3179 = vsel %vm1516, %v3072, 0
    %3181 = vmatprep.subr.bf16.mxu0 %v3173
    %3182 = vmatpush1.bf16.msra.mxu0 %v3170
    %3183 = vmatprep.subr.bf16.mxu0 0
    %3184 = vmatpush1.bf16.msra.mxu0 0
    %3185 = vmatprep.subr.bf16.mxu0 0
    %3186 = vmatpush1.bf16.msra.mxu0 0
    %3187 = vmatprep.subr.bf16.mxu0 0
    %3188 = vmatpush1.bf16.msra.mxu0 0
    %3189 = vmatprep.subr.bf16.mxu0 0
    %3190 = vmatpush1.bf16.msra.mxu0 0
    %3191 = vmatprep.subr.bf16.mxu0 0
    %3192 = vmatpush1.bf16.msra.mxu0 0
    %3193 = vmatprep.subr.bf16.mxu0 0
    %3194 = vmatpush1.bf16.msra.mxu0 0
    %3195 = vmatprep.subr.bf16.mxu0 0
    %3196 = vmatpush1.bf16.msra.mxu0 0
    %3197 = vmatprep.subr.bf16.mxu0 0
    %3198 = vmatpush1.bf16.msra.mxu0 0
    %3199 = vmatprep.subr.bf16.mxu0 0
    %3200 = vmatpush1.bf16.msra.mxu0 0
    %3201 = vmatprep.subr.bf16.mxu0 0
    %3202 = vmatpush1.bf16.msra.mxu0 0
    %3203 = vmatprep.subr.bf16.mxu0 0
    %3204 = vmatpush1.bf16.msra.mxu0 0
    %3205 = vmatprep.subr.bf16.mxu0 0
    %3206 = vmatpush1.bf16.msra.mxu0 0
    %3207 = vmatprep.subr.bf16.mxu0 0
    %3208 = vmatpush1.bf16.msra.mxu0 0
    %3209 = vmatprep.subr.bf16.mxu0 0
    %3210 = vmatpush1.bf16.msra.mxu0 0
    %3211 = vmatprep.subr.bf16.mxu0 0
    %3212 = vmatpush1.bf16.msra.mxu0 0
    %3213 = vmatprep.mubr.bf16.mxu0 0
    %3214 = vmatmul.mubr.bf16.gmra.mrb[0].mxu0 %v3122
    %v3215 = vpop.f32.mrb[0].mxu0
    %v3216 = vadd.f32 %v1335, %v3215
    %v3217 = vpop.f32.mrb[0].mxu0
    %v3218 = vadd.f32 %v1336, %v3217
    %v3219 = vpop.f32.mrb[0].mxu0
    %v3220 = vadd.f32 %v1339, %v3219
    %v3221 = vpop.f32.mrb[0].mxu0
    %v3222 = vadd.f32 %v1340, %v3221
    %3223 = vmatprep.mubr.bf16.mxu0 0
    %3224 = vmatmul.mubr.bf16.gmra.mrb[0].mxu0 %v3125
    %v3225 = vpop.f32.mrb[0].mxu0
    %v3226 = vadd.f32 %v1343, %v3225
    %v3227 = vpop.f32.mrb[0].mxu0
    %v3228 = vadd.f32 %v1344, %v3227
    %v3229 = vpop.f32.mrb[0].mxu0
    %v3230 = vadd.f32 %v1347, %v3229
    %v3231 = vpop.f32.mrb[0].mxu0
    %v3232 = vadd.f32 %v1348, %v3231
    %3233 = vmatprep.mubr.bf16.mxu0 0
    %3234 = vmatmul.mubr.bf16.gmra.mrb[0].mxu0 %v3128
    %v3235 = vpop.f32.mrb[0].mxu0
    %v3236 = vadd.f32 %v1351, %v3235
    %v3237 = vpop.f32.mrb[0].mxu0
    %v3238 = vadd.f32 %v1352, %v3237
    %v3239 = vpop.f32.mrb[0].mxu0
    %v3240 = vadd.f32 %v1355, %v3239
    %v3241 = vpop.f32.mrb[0].mxu0
    %v3242 = vadd.f32 %v1356, %v3241
    %3243 = vmatprep.mubr.bf16.mxu0 0
    %3244 = vmatmul.mubr.bf16.gmra.mrb[0].mxu0 %v3131
    %v3245 = vpop.f32.mrb[0].mxu0
    %v3246 = vadd.f32 %v1359, %v3245
    %v3247 = vpop.f32.mrb[0].mxu0
    %v3248 = vadd.f32 %v1360, %v3247
    %v3249 = vpop.f32.mrb[0].mxu0
    %v3250 = vadd.f32 %v1363, %v3249
    %v3251 = vpop.f32.mrb[0].mxu0
    %v3252 = vadd.f32 %v1364, %v3251
    %3253 = vmatprep.mubr.bf16.mxu0 0
    %3254 = vmatmul.mubr.bf16.gmra.mrb[0].mxu0 %v3134
    %v3255 = vpop.f32.mrb[0].mxu0
    %v3256 = vadd.f32 %v1367, %v3255
    %v3257 = vpop.f32.mrb[0].mxu0
    %v3258 = vadd.f32 %v1368, %v3257
    %v3259 = vpop.f32.mrb[0].mxu0
    %v3260 = vadd.f32 %v1371, %v3259
    %v3261 = vpop.f32.mrb[0].mxu0
    %v3262 = vadd.f32 %v1372, %v3261
    %3263 = vmatprep.mubr.bf16.mxu0 0
    %3264 = vmatmul.mubr.bf16.gmra.mrb[0].mxu0 %v3137
    %v3265 = vpop.f32.mrb[0].mxu0
    %v3266 = vadd.f32 %v1375, %v3265
    %v3267 = vpop.f32.mrb[0].mxu0
    %v3268 = vadd.f32 %v1376, %v3267
    %v3269 = vpop.f32.mrb[0].mxu0
    %v3270 = vadd.f32 %v1379, %v3269
    %v3271 = vpop.f32.mrb[0].mxu0
    %v3272 = vadd.f32 %v1380, %v3271
    %3273 = vmatprep.mubr.bf16.mxu0 0
    %3274 = vmatmul.mubr.bf16.gmra.mrb[0].mxu0 %v3140
    %v3275 = vpop.f32.mrb[0].mxu0
    %v3276 = vadd.f32 %v1383, %v3275
    %v3277 = vpop.f32.mrb[0].mxu0
    %v3278 = vadd.f32 %v1384, %v3277
    %v3279 = vpop.f32.mrb[0].mxu0
    %v3280 = vadd.f32 %v1387, %v3279
    %v3281 = vpop.f32.mrb[0].mxu0
    %v3282 = vadd.f32 %v1388, %v3281
    %3283 = vmatprep.mubr.bf16.mxu0 0
    %3284 = vmatmul.mubr.bf16.gmra.mrb[0].mxu0 %v3143
    %v3285 = vpop.f32.mrb[0].mxu0
    %v3286 = vadd.f32 %v1391, %v3285
    %v3287 = vpop.f32.mrb[0].mxu0
    %v3288 = vadd.f32 %v1392, %v3287
    %v3289 = vpop.f32.mrb[0].mxu0
    %v3290 = vadd.f32 %v1395, %v3289
    %v3291 = vpop.f32.mrb[0].mxu0
    %v3292 = vadd.f32 %v1396, %v3291
    %3293 = vmatprep.mubr.bf16.mxu0 0
    %3294 = vmatmul.mubr.bf16.gmra.mrb[0].mxu0 %v3146
    %v3295 = vpop.f32.mrb[0].mxu0
    %v3296 = vadd.f32 %v1399, %v3295
    %v3297 = vpop.f32.mrb[0].mxu0
    %v3298 = vadd.f32 %v1400, %v3297
    %v3299 = vpop.f32.mrb[0].mxu0
    %v3300 = vadd.f32 %v1403, %v3299
    %v3301 = vpop.f32.mrb[0].mxu0
    %v3302 = vadd.f32 %v1404, %v3301
    %3303 = vmatprep.mubr.bf16.mxu0 0
    %3304 = vmatmul.mubr.bf16.gmra.mrb[0].mxu0 %v3149
    %v3305 = vpop.f32.mrb[0].mxu0
    %v3306 = vadd.f32 %v1407, %v3305
    %v3307 = vpop.f32.mrb[0].mxu0
    %v3308 = vadd.f32 %v1408, %v3307
    %v3309 = vpop.f32.mrb[0].mxu0
    %v3310 = vadd.f32 %v1411, %v3309
    %v3311 = vpop.f32.mrb[0].mxu0
    %v3312 = vadd.f32 %v1412, %v3311
    %3313 = vmatprep.mubr.bf16.mxu0 0
    %3314 = vmatmul.mubr.bf16.gmra.mrb[0].mxu0 %v3152
    %v3315 = vpop.f32.mrb[0].mxu0
    %v3316 = vadd.f32 %v1415, %v3315
    %v3317 = vpop.f32.mrb[0].mxu0
    %v3318 = vadd.f32 %v1416, %v3317
    %v3319 = vpop.f32.mrb[0].mxu0
    %v3320 = vadd.f32 %v1419, %v3319
    %v3321 = vpop.f32.mrb[0].mxu0
    %v3322 = vadd.f32 %v1420, %v3321
    %3323 = vmatprep.mubr.bf16.mxu0 0
    %3324 = vmatmul.mubr.bf16.gmra.mrb[0].mxu0 %v3155
    %v3325 = vpop.f32.mrb[0].mxu0
    %v3326 = vadd.f32 %v1423, %v3325
    %v3327 = vpop.f32.mrb[0].mxu0
    %v3328 = vadd.f32 %v1424, %v3327
    %v3329 = vpop.f32.mrb[0].mxu0
    %v3330 = vadd.f32 %v1427, %v3329
    %v3331 = vpop.f32.mrb[0].mxu0
    %v3332 = vadd.f32 %v1428, %v3331
    %3333 = vmatprep.mubr.bf16.mxu0 0
    %3334 = vmatmul.mubr.bf16.gmra.mrb[0].mxu0 %v3158
    %v3335 = vpop.f32.mrb[0].mxu0
    %v3336 = vadd.f32 %v1431, %v3335
    %v3337 = vpop.f32.mrb[0].mxu0
    %v3338 = vadd.f32 %v1432, %v3337
    %v3339 = vpop.f32.mrb[0].mxu0
    %v3340 = vadd.f32 %v1435, %v3339
    %v3341 = vpop.f32.mrb[0].mxu0
    %v3342 = vadd.f32 %v1436, %v3341
    %3343 = vmatprep.mubr.bf16.mxu0 0
    %3344 = vmatmul.mubr.bf16.gmra.mrb[0].mxu0 %v3161
    %v3345 = vpop.f32.mrb[0].mxu0
    %v3346 = vadd.f32 %v1439, %v3345
    %v3347 = vpop.f32.mrb[0].mxu0
    %v3348 = vadd.f32 %v1440, %v3347
    %v3349 = vpop.f32.mrb[0].mxu0
    %v3350 = vadd.f32 %v1443, %v3349
    %v3351 = vpop.f32.mrb[0].mxu0
    %v3352 = vadd.f32 %v1444, %v3351
    %3353 = vmatprep.mubr.bf16.mxu0 0
    %3354 = vmatmul.mubr.bf16.gmra.mrb[0].mxu0 %v3164
    %v3355 = vpop.f32.mrb[0].mxu0
    %v3356 = vadd.f32 %v1447, %v3355
    %v3357 = vpop.f32.mrb[0].mxu0
    %v3358 = vadd.f32 %v1448, %v3357
    %v3359 = vpop.f32.mrb[0].mxu0
    %v3360 = vadd.f32 %v1451, %v3359
    %v3361 = vpop.f32.mrb[0].mxu0
    %v3362 = vadd.f32 %v1452, %v3361
    %3363 = vmatprep.mubr.bf16.mxu0 0
    %3364 = vmatmul.mubr.bf16.gmra.mrb[0].mxu0 %v3167
    %v3365 = vpop.f32.mrb[0].mxu0
    %v3366 = vadd.f32 %v1455, %v3365
    %v3367 = vpop.f32.mrb[0].mxu0
    %v3368 = vadd.f32 %v1456, %v3367
    %v3369 = vpop.f32.mrb[0].mxu0
    %v3370 = vadd.f32 %v1459, %v3369
    %v3371 = vpop.f32.mrb[0].mxu0
    %v3372 = vadd.f32 %v1460, %v3371
    %3373 = vdwg.mxu0
    %3374 = vmatprep.subr.bf16.mxu0 %v3179
    %3375 = vmatpush1.bf16.msra.mxu0 %v3176
    %3376 = vmatprep.subr.bf16.mxu0 0
    %3377 = vmatpush1.bf16.msra.mxu0 0
    %3378 = vmatprep.subr.bf16.mxu0 0
    %3379 = vmatpush1.bf16.msra.mxu0 0
    %3380 = vmatprep.subr.bf16.mxu0 0
    %3381 = vmatpush1.bf16.msra.mxu0 0
    %3382 = vmatprep.subr.bf16.mxu0 0
    %3383 = vmatpush1.bf16.msra.mxu0 0
    %3384 = vmatprep.subr.bf16.mxu0 0
    %3385 = vmatpush1.bf16.msra.mxu0 0
    %3386 = vmatprep.subr.bf16.mxu0 0
    %3387 = vmatpush1.bf16.msra.mxu0 0
    %3388 = vmatprep.subr.bf16.mxu0 0
    %3389 = vmatpush1.bf16.msra.mxu0 0
    %3390 = vmatprep.subr.bf16.mxu0 0
    %3391 = vmatpush1.bf16.msra.mxu0 0
    %3392 = vmatprep.subr.bf16.mxu0 0
    %3393 = vmatpush1.bf16.msra.mxu0 0
    %3394 = vmatprep.subr.bf16.mxu0 0
    %3395 = vmatpush1.bf16.msra.mxu0 0
    %3396 = vmatprep.subr.bf16.mxu0 0
    %3397 = vmatpush1.bf16.msra.mxu0 0
    %3398 = vmatprep.subr.bf16.mxu0 0
    %3399 = vmatpush1.bf16.msra.mxu0 0
    %3400 = vmatprep.subr.bf16.mxu0 0
    %3401 = vmatpush1.bf16.msra.mxu0 0
    %3402 = vmatprep.subr.bf16.mxu0 0
    %3403 = vmatpush1.bf16.msra.mxu0 0
    %3404 = vmatprep.subr.bf16.mxu0 0
    %3405 = vmatpush1.bf16.msra.mxu0 0
    %3406 = vmatprep.mubr.bf16.mxu0 0
    %3407 = vmatmul.mubr.bf16.gmra.mrb[0].mxu0 %v3122
    %v3408 = vpop.f32.mrb[0].mxu0
    %v3409 = vadd.f32 %v1337, %v3408
    %v3410 = vpop.f32.mrb[0].mxu0
    %v3411 = vadd.f32 %v1338, %v3410
    %v3412 = vpop.f32.mrb[0].mxu0
    %v3413 = vadd.f32 %v1341, %v3412
    %v3414 = vpop.f32.mrb[0].mxu0
    %v3415 = vadd.f32 %v1342, %v3414
    %3416 = vmatprep.mubr.bf16.mxu0 0
    %3417 = vmatmul.mubr.bf16.gmra.mrb[0].mxu0 %v3125
    %v3418 = vpop.f32.mrb[0].mxu0
    %v3419 = vadd.f32 %v1345, %v3418
    %v3420 = vpop.f32.mrb[0].mxu0
    %v3421 = vadd.f32 %v1346, %v3420
    %v3422 = vpop.f32.mrb[0].mxu0
    %v3423 = vadd.f32 %v1349, %v3422
    %v3424 = vpop.f32.mrb[0].mxu0
    %v3425 = vadd.f32 %v1350, %v3424
    %3426 = vmatprep.mubr.bf16.mxu0 0
    %3427 = vmatmul.mubr.bf16.gmra.mrb[0].mxu0 %v3128
    %v3428 = vpop.f32.mrb[0].mxu0
    %v3429 = vadd.f32 %v1353, %v3428
    %v3430 = vpop.f32.mrb[0].mxu0
    %v3431 = vadd.f32 %v1354, %v3430
    %v3432 = vpop.f32.mrb[0].mxu0
    %v3433 = vadd.f32 %v1357, %v3432
    %v3434 = vpop.f32.mrb[0].mxu0
    %v3435 = vadd.f32 %v1358, %v3434
    %3436 = vmatprep.mubr.bf16.mxu0 0
    %3437 = vmatmul.mubr.bf16.gmra.mrb[0].mxu0 %v3131
    %v3438 = vpop.f32.mrb[0].mxu0
    %v3439 = vadd.f32 %v1361, %v3438
    %v3440 = vpop.f32.mrb[0].mxu0
    %v3441 = vadd.f32 %v1362, %v3440
    %v3442 = vpop.f32.mrb[0].mxu0
    %v3443 = vadd.f32 %v1365, %v3442
    %v3444 = vpop.f32.mrb[0].mxu0
    %v3445 = vadd.f32 %v1366, %v3444
    %3446 = vmatprep.mubr.bf16.mxu0 0
    %3447 = vmatmul.mubr.bf16.gmra.mrb[0].mxu0 %v3134
    %v3448 = vpop.f32.mrb[0].mxu0
    %v3449 = vadd.f32 %v1369, %v3448
    %v3450 = vpop.f32.mrb[0].mxu0
    %v3451 = vadd.f32 %v1370, %v3450
    %v3452 = vpop.f32.mrb[0].mxu0
    %v3453 = vadd.f32 %v1373, %v3452
    %v3454 = vpop.f32.mrb[0].mxu0
    %v3455 = vadd.f32 %v1374, %v3454
    %3456 = vmatprep.mubr.bf16.mxu0 0
    %3457 = vmatmul.mubr.bf16.gmra.mrb[0].mxu0 %v3137
    %v3458 = vpop.f32.mrb[0].mxu0
    %v3459 = vadd.f32 %v1377, %v3458
    %v3460 = vpop.f32.mrb[0].mxu0
    %v3461 = vadd.f32 %v1378, %v3460
    %v3462 = vpop.f32.mrb[0].mxu0
    %v3463 = vadd.f32 %v1381, %v3462
    %v3464 = vpop.f32.mrb[0].mxu0
    %v3465 = vadd.f32 %v1382, %v3464
    %3466 = vmatprep.mubr.bf16.mxu0 0
    %3467 = vmatmul.mubr.bf16.gmra.mrb[0].mxu0 %v3140
    %v3468 = vpop.f32.mrb[0].mxu0
    %v3469 = vadd.f32 %v1385, %v3468
    %v3470 = vpop.f32.mrb[0].mxu0
    %v3471 = vadd.f32 %v1386, %v3470
    %v3472 = vpop.f32.mrb[0].mxu0
    %v3473 = vadd.f32 %v1389, %v3472
    %v3474 = vpop.f32.mrb[0].mxu0
    %v3475 = vadd.f32 %v1390, %v3474
    %3476 = vmatprep.mubr.bf16.mxu0 0
    %3477 = vmatmul.mubr.bf16.gmra.mrb[0].mxu0 %v3143
    %v3478 = vpop.f32.mrb[0].mxu0
    %v3479 = vadd.f32 %v1393, %v3478
    %v3480 = vpop.f32.mrb[0].mxu0
    %v3481 = vadd.f32 %v1394, %v3480
    %v3482 = vpop.f32.mrb[0].mxu0
    %v3483 = vadd.f32 %v1397, %v3482
    %v3484 = vpop.f32.mrb[0].mxu0
    %v3485 = vadd.f32 %v1398, %v3484
    %3486 = vmatprep.mubr.bf16.mxu0 0
    %3487 = vmatmul.mubr.bf16.gmra.mrb[0].mxu0 %v3146
    %v3488 = vpop.f32.mrb[0].mxu0
    %v3489 = vadd.f32 %v1401, %v3488
    %v3490 = vpop.f32.mrb[0].mxu0
    %v3491 = vadd.f32 %v1402, %v3490
    %v3492 = vpop.f32.mrb[0].mxu0
    %v3493 = vadd.f32 %v1405, %v3492
    %v3494 = vpop.f32.mrb[0].mxu0
    %v3495 = vadd.f32 %v1406, %v3494
    %3496 = vmatprep.mubr.bf16.mxu0 0
    %3497 = vmatmul.mubr.bf16.gmra.mrb[0].mxu0 %v3149
    %v3498 = vpop.f32.mrb[0].mxu0
    %v3499 = vadd.f32 %v1409, %v3498
    %v3500 = vpop.f32.mrb[0].mxu0
    %v3501 = vadd.f32 %v1410, %v3500
    %v3502 = vpop.f32.mrb[0].mxu0
    %v3503 = vadd.f32 %v1413, %v3502
    %v3504 = vpop.f32.mrb[0].mxu0
    %v3505 = vadd.f32 %v1414, %v3504
    %3506 = vmatprep.mubr.bf16.mxu0 0
    %3507 = vmatmul.mubr.bf16.gmra.mrb[0].mxu0 %v3152
    %v3508 = vpop.f32.mrb[0].mxu0
    %v3509 = vadd.f32 %v1417, %v3508
    %v3510 = vpop.f32.mrb[0].mxu0
    %v3511 = vadd.f32 %v1418, %v3510
    %v3512 = vpop.f32.mrb[0].mxu0
    %v3513 = vadd.f32 %v1421, %v3512
    %v3514 = vpop.f32.mrb[0].mxu0
    %v3515 = vadd.f32 %v1422, %v3514
    %3516 = vmatprep.mubr.bf16.mxu0 0
    %3517 = vmatmul.mubr.bf16.gmra.mrb[0].mxu0 %v3155
    %v3518 = vpop.f32.mrb[0].mxu0
    %v3519 = vadd.f32 %v1425, %v3518
    %v3520 = vpop.f32.mrb[0].mxu0
    %v3521 = vadd.f32 %v1426, %v3520
    %v3522 = vpop.f32.mrb[0].mxu0
    %v3523 = vadd.f32 %v1429, %v3522
    %v3524 = vpop.f32.mrb[0].mxu0
    %v3525 = vadd.f32 %v1430, %v3524
    %3526 = vmatprep.mubr.bf16.mxu0 0
    %3527 = vmatmul.mubr.bf16.gmra.mrb[0].mxu0 %v3158
    %v3528 = vpop.f32.mrb[0].mxu0
    %v3529 = vadd.f32 %v1433, %v3528
    %v3530 = vpop.f32.mrb[0].mxu0
    %v3531 = vadd.f32 %v1434, %v3530
    %v3532 = vpop.f32.mrb[0].mxu0
    %v3533 = vadd.f32 %v1437, %v3532
    %v3534 = vpop.f32.mrb[0].mxu0
    %v3535 = vadd.f32 %v1438, %v3534
    %3536 = vmatprep.mubr.bf16.mxu0 0
    %3537 = vmatmul.mubr.bf16.gmra.mrb[0].mxu0 %v3161
    %v3538 = vpop.f32.mrb[0].mxu0
    %v3539 = vadd.f32 %v1441, %v3538
    %v3540 = vpop.f32.mrb[0].mxu0
    %v3541 = vadd.f32 %v1442, %v3540
    %v3542 = vpop.f32.mrb[0].mxu0
    %v3543 = vadd.f32 %v1445, %v3542
    %v3544 = vpop.f32.mrb[0].mxu0
    %v3545 = vadd.f32 %v1446, %v3544
    %3546 = vmatprep.mubr.bf16.mxu0 0
    %3547 = vmatmul.mubr.bf16.gmra.mrb[0].mxu0 %v3164
    %v3548 = vpop.f32.mrb[0].mxu0
    %v3549 = vadd.f32 %v1449, %v3548
    %v3550 = vpop.f32.mrb[0].mxu0
    %v3551 = vadd.f32 %v1450, %v3550
    %v3552 = vpop.f32.mrb[0].mxu0
    %v3553 = vadd.f32 %v1453, %v3552
    %v3554 = vpop.f32.mrb[0].mxu0
    %v3555 = vadd.f32 %v1454, %v3554
    %3556 = vmatprep.mubr.bf16.mxu0 0
    %3557 = vmatmul.mubr.bf16.gmra.mrb[0].mxu0 %v3167
    %v3558 = vpop.f32.mrb[0].mxu0
    %v3559 = vadd.f32 %v1457, %v3558
    %v3560 = vpop.f32.mrb[0].mxu0
    %v3561 = vadd.f32 %v1458, %v3560
    %v3562 = vpop.f32.mrb[0].mxu0
    %v3563 = vadd.f32 %v1461, %v3562
    %v3564 = vpop.f32.mrb[0].mxu0
    %v3565 = vadd.f32 %v1462, %v3564
    %3566 = vdwg.mxu0
    %v3567 = vmax.f32 %v3216, %v3218
    %v3568 = vmax.f32 %v3567, %v3409
    %v3569 = vmax.f32 %v3568, %v3411
    %3570 = vmax.xlane.f32.xlu0 %v3569
    %v3571 = vpop.xlane.xlu0 %3570
    %v3572 = vmax.f32 %v3220, %v3222
    %v3573 = vmax.f32 %v3572, %v3413
    %v3574 = vmax.f32 %v3573, %v3415
    %3575 = vmax.xlane.f32.xlu0 %v3574
    %v3576 = vpop.xlane.xlu0 %3575
    %v3577 = vmax.f32 %v3226, %v3228
    %v3578 = vmax.f32 %v3577, %v3419
    %v3579 = vmax.f32 %v3578, %v3421
    %3580 = vmax.xlane.f32.xlu0 %v3579
    %v3581 = vpop.xlane.xlu0 %3580
    %v3582 = vmax.f32 %v3230, %v3232
    %v3583 = vmax.f32 %v3582, %v3423
    %v3584 = vmax.f32 %v3583, %v3425
    %3585 = vmax.xlane.f32.xlu0 %v3584
    %v3586 = vpop.xlane.xlu0 %3585
    %v3587 = vmax.f32 %v3236, %v3238
    %v3588 = vmax.f32 %v3587, %v3429
    %v3589 = vmax.f32 %v3588, %v3431
    %3590 = vmax.xlane.f32.xlu0 %v3589
    %v3591 = vpop.xlane.xlu0 %3590
    %v3592 = vmax.f32 %v3240, %v3242
    %v3593 = vmax.f32 %v3592, %v3433
    %v3594 = vmax.f32 %v3593, %v3435
    %3595 = vmax.xlane.f32.xlu0 %v3594
    %v3596 = vpop.xlane.xlu0 %3595
    %v3597 = vmax.f32 %v3246, %v3248
    %v3598 = vmax.f32 %v3597, %v3439
    %v3599 = vmax.f32 %v3598, %v3441
    %3600 = vmax.xlane.f32.xlu0 %v3599
    %v3601 = vpop.xlane.xlu0 %3600
    %v3602 = vmax.f32 %v3250, %v3252
    %v3603 = vmax.f32 %v3602, %v3443
    %v3604 = vmax.f32 %v3603, %v3445
    %3605 = vmax.xlane.f32.xlu0 %v3604
    %v3606 = vpop.xlane.xlu0 %3605
    %v3607 = vmax.f32 %v3256, %v3258
    %v3608 = vmax.f32 %v3607, %v3449
    %v3609 = vmax.f32 %v3608, %v3451
    %3610 = vmax.xlane.f32.xlu0 %v3609
    %v3611 = vpop.xlane.xlu0 %3610
    %v3612 = vmax.f32 %v3260, %v3262
    %v3613 = vmax.f32 %v3612, %v3453
    %v3614 = vmax.f32 %v3613, %v3455
    %3615 = vmax.xlane.f32.xlu0 %v3614
    %v3616 = vpop.xlane.xlu0 %3615
    %v3617 = vmax.f32 %v3266, %v3268
    %v3618 = vmax.f32 %v3617, %v3459
    %v3619 = vmax.f32 %v3618, %v3461
    %3620 = vmax.xlane.f32.xlu0 %v3619
    %v3621 = vpop.xlane.xlu0 %3620
    %v3622 = vmax.f32 %v3270, %v3272
    %v3623 = vmax.f32 %v3622, %v3463
    %v3624 = vmax.f32 %v3623, %v3465
    %3625 = vmax.xlane.f32.xlu0 %v3624
    %v3626 = vpop.xlane.xlu0 %3625
    %v3627 = vmax.f32 %v3276, %v3278
    %v3628 = vmax.f32 %v3627, %v3469
    %v3629 = vmax.f32 %v3628, %v3471
    %3630 = vmax.xlane.f32.xlu0 %v3629
    %v3631 = vpop.xlane.xlu0 %3630
    %v3632 = vmax.f32 %v3280, %v3282
    %v3633 = vmax.f32 %v3632, %v3473
    %v3634 = vmax.f32 %v3633, %v3475
    %3635 = vmax.xlane.f32.xlu0 %v3634
    %v3636 = vpop.xlane.xlu0 %3635
    %v3637 = vmax.f32 %v3286, %v3288
    %v3638 = vmax.f32 %v3637, %v3479
    %v3639 = vmax.f32 %v3638, %v3481
    %3640 = vmax.xlane.f32.xlu0 %v3639
    %v3641 = vpop.xlane.xlu0 %3640
    %v3642 = vmax.f32 %v3290, %v3292
    %v3643 = vmax.f32 %v3642, %v3483
    %v3644 = vmax.f32 %v3643, %v3485
    %3645 = vmax.xlane.f32.xlu0 %v3644
    %v3646 = vpop.xlane.xlu0 %3645
    %v3647 = vmax.f32 %v3296, %v3298
    %v3648 = vmax.f32 %v3647, %v3489
    %v3649 = vmax.f32 %v3648, %v3491
    %3650 = vmax.xlane.f32.xlu0 %v3649
    %v3651 = vpop.xlane.xlu0 %3650
    %v3652 = vmax.f32 %v3300, %v3302
    %v3653 = vmax.f32 %v3652, %v3493
    %v3654 = vmax.f32 %v3653, %v3495
    %3655 = vmax.xlane.f32.xlu0 %v3654
    %v3656 = vpop.xlane.xlu0 %3655
    %v3657 = vmax.f32 %v3306, %v3308
    %v3658 = vmax.f32 %v3657, %v3499
    %v3659 = vmax.f32 %v3658, %v3501
    %3660 = vmax.xlane.f32.xlu0 %v3659
    %v3661 = vpop.xlane.xlu0 %3660
    %v3662 = vmax.f32 %v3310, %v3312
    %v3663 = vmax.f32 %v3662, %v3503
    %v3664 = vmax.f32 %v3663, %v3505
    %3665 = vmax.xlane.f32.xlu0 %v3664
    %v3666 = vpop.xlane.xlu0 %3665
    %v3667 = vmax.f32 %v3316, %v3318
    %v3668 = vmax.f32 %v3667, %v3509
    %v3669 = vmax.f32 %v3668, %v3511
    %3670 = vmax.xlane.f32.xlu0 %v3669
    %v3671 = vpop.xlane.xlu0 %3670
    %v3672 = vmax.f32 %v3320, %v3322
    %v3673 = vmax.f32 %v3672, %v3513
    %v3674 = vmax.f32 %v3673, %v3515
    %3675 = vmax.xlane.f32.xlu0 %v3674
    %v3676 = vpop.xlane.xlu0 %3675
    %v3677 = vmax.f32 %v3326, %v3328
    %v3678 = vmax.f32 %v3677, %v3519
    %v3679 = vmax.f32 %v3678, %v3521
    %3680 = vmax.xlane.f32.xlu0 %v3679
    %v3681 = vpop.xlane.xlu0 %3680
    %v3682 = vmax.f32 %v3330, %v3332
    %v3683 = vmax.f32 %v3682, %v3523
    %v3684 = vmax.f32 %v3683, %v3525
    %3685 = vmax.xlane.f32.xlu0 %v3684
    %v3686 = vpop.xlane.xlu0 %3685
    %v3687 = vmax.f32 %v3336, %v3338
    %v3688 = vmax.f32 %v3687, %v3529
    %v3689 = vmax.f32 %v3688, %v3531
    %3690 = vmax.xlane.f32.xlu0 %v3689
    %v3691 = vpop.xlane.xlu0 %3690
    %v3692 = vmax.f32 %v3340, %v3342
    %v3693 = vmax.f32 %v3692, %v3533
    %v3694 = vmax.f32 %v3693, %v3535
    %3695 = vmax.xlane.f32.xlu0 %v3694
    %v3696 = vpop.xlane.xlu0 %3695
    %v3697 = vmax.f32 %v3346, %v3348
    %v3698 = vmax.f32 %v3697, %v3539
    %v3699 = vmax.f32 %v3698, %v3541
    %3700 = vmax.xlane.f32.xlu0 %v3699
    %v3701 = vpop.xlane.xlu0 %3700
    %v3702 = vmax.f32 %v3350, %v3352
    %v3703 = vmax.f32 %v3702, %v3543
    %v3704 = vmax.f32 %v3703, %v3545
    %3705 = vmax.xlane.f32.xlu0 %v3704
    %v3706 = vpop.xlane.xlu0 %3705
    %v3707 = vmax.f32 %v3356, %v3358
    %v3708 = vmax.f32 %v3707, %v3549
    %v3709 = vmax.f32 %v3708, %v3551
    %3710 = vmax.xlane.f32.xlu0 %v3709
    %v3711 = vpop.xlane.xlu0 %3710
    %v3712 = vmax.f32 %v3360, %v3362
    %v3713 = vmax.f32 %v3712, %v3553
    %v3714 = vmax.f32 %v3713, %v3555
    %3715 = vmax.xlane.f32.xlu0 %v3714
    %v3716 = vpop.xlane.xlu0 %3715
    %v3717 = vmax.f32 %v3366, %v3368
    %v3718 = vmax.f32 %v3717, %v3559
    %v3719 = vmax.f32 %v3718, %v3561
    %3720 = vmax.xlane.f32.xlu0 %v3719
    %v3721 = vpop.xlane.xlu0 %3720
    %v3722 = vmax.f32 %v3370, %v3372
    %v3723 = vmax.f32 %v3722, %v3563
    %v3724 = vmax.f32 %v3723, %v3565
    %3725 = vmax.xlane.f32.xlu0 %v3724
    %v3726 = vpop.xlane.xlu0 %3725
    %v3727 = vsub.f32 %v3216, %v3571
    %v3728 = vsub.f32 %v3218, %v3571
    %v3729 = vsub.f32 %v3409, %v3571
    %v3730 = vsub.f32 %v3411, %v3571
    %v3731 = vsub.f32 %v3220, %v3576
    %v3732 = vsub.f32 %v3222, %v3576
    %v3733 = vsub.f32 %v3413, %v3576
    %v3734 = vsub.f32 %v3415, %v3576
    %v3735 = vsub.f32 %v3226, %v3581
    %v3736 = vsub.f32 %v3228, %v3581
    %v3737 = vsub.f32 %v3419, %v3581
    %v3738 = vsub.f32 %v3421, %v3581
    %v3739 = vsub.f32 %v3230, %v3586
    %v3740 = vsub.f32 %v3232, %v3586
    %v3741 = vsub.f32 %v3423, %v3586
    %v3742 = vsub.f32 %v3425, %v3586
    %v3743 = vsub.f32 %v3236, %v3591
    %v3744 = vsub.f32 %v3238, %v3591
    %v3745 = vsub.f32 %v3429, %v3591
    %v3746 = vsub.f32 %v3431, %v3591
    %v3747 = vsub.f32 %v3240, %v3596
    %v3748 = vsub.f32 %v3242, %v3596
    %v3749 = vsub.f32 %v3433, %v3596
    %v3750 = vsub.f32 %v3435, %v3596
    %v3751 = vsub.f32 %v3246, %v3601
    %v3752 = vsub.f32 %v3248, %v3601
    %v3753 = vsub.f32 %v3439, %v3601
    %v3754 = vsub.f32 %v3441, %v3601
    %v3755 = vsub.f32 %v3250, %v3606
    %v3756 = vsub.f32 %v3252, %v3606
    %v3757 = vsub.f32 %v3443, %v3606
    %v3758 = vsub.f32 %v3445, %v3606
    %v3759 = vsub.f32 %v3256, %v3611
    %v3760 = vsub.f32 %v3258, %v3611
    %v3761 = vsub.f32 %v3449, %v3611
    %v3762 = vsub.f32 %v3451, %v3611
    %v3763 = vsub.f32 %v3260, %v3616
    %v3764 = vsub.f32 %v3262, %v3616
    %v3765 = vsub.f32 %v3453, %v3616
    %v3766 = vsub.f32 %v3455, %v3616
    %v3767 = vsub.f32 %v3266, %v3621
    %v3768 = vsub.f32 %v3268, %v3621
    %v3769 = vsub.f32 %v3459, %v3621
    %v3770 = vsub.f32 %v3461, %v3621
    %v3771 = vsub.f32 %v3270, %v3626
    %v3772 = vsub.f32 %v3272, %v3626
    %v3773 = vsub.f32 %v3463, %v3626
    %v3774 = vsub.f32 %v3465, %v3626
    %v3775 = vsub.f32 %v3276, %v3631
    %v3776 = vsub.f32 %v3278, %v3631
    %v3777 = vsub.f32 %v3469, %v3631
    %v3778 = vsub.f32 %v3471, %v3631
    %v3779 = vsub.f32 %v3280, %v3636
    %v3780 = vsub.f32 %v3282, %v3636
    %v3781 = vsub.f32 %v3473, %v3636
    %v3782 = vsub.f32 %v3475, %v3636
    %v3783 = vsub.f32 %v3286, %v3641
    %v3784 = vsub.f32 %v3288, %v3641
    %v3785 = vsub.f32 %v3479, %v3641
    %v3786 = vsub.f32 %v3481, %v3641
    %v3787 = vsub.f32 %v3290, %v3646
    %v3788 = vsub.f32 %v3292, %v3646
    %v3789 = vsub.f32 %v3483, %v3646
    %v3790 = vsub.f32 %v3485, %v3646
    %v3791 = vsub.f32 %v3296, %v3651
    %v3792 = vsub.f32 %v3298, %v3651
    %v3793 = vsub.f32 %v3489, %v3651
    %v3794 = vsub.f32 %v3491, %v3651
    %v3795 = vsub.f32 %v3300, %v3656
    %v3796 = vsub.f32 %v3302, %v3656
    %v3797 = vsub.f32 %v3493, %v3656
    %v3798 = vsub.f32 %v3495, %v3656
    %v3799 = vsub.f32 %v3306, %v3661
    %v3800 = vsub.f32 %v3308, %v3661
    %v3801 = vsub.f32 %v3499, %v3661
    %v3802 = vsub.f32 %v3501, %v3661
    %v3803 = vsub.f32 %v3310, %v3666
    %v3804 = vsub.f32 %v3312, %v3666
    %v3805 = vsub.f32 %v3503, %v3666
    %v3806 = vsub.f32 %v3505, %v3666
    %v3807 = vsub.f32 %v3316, %v3671
    %v3808 = vsub.f32 %v3318, %v3671
    %v3809 = vsub.f32 %v3509, %v3671
    %v3810 = vsub.f32 %v3511, %v3671
    %v3811 = vsub.f32 %v3320, %v3676
    %v3812 = vsub.f32 %v3322, %v3676
    %v3813 = vsub.f32 %v3513, %v3676
    %v3814 = vsub.f32 %v3515, %v3676
    %v3815 = vsub.f32 %v3326, %v3681
    %v3816 = vsub.f32 %v3328, %v3681
    %v3817 = vsub.f32 %v3519, %v3681
    %v3818 = vsub.f32 %v3521, %v3681
    %v3819 = vsub.f32 %v3330, %v3686
    %v3820 = vsub.f32 %v3332, %v3686
    %v3821 = vsub.f32 %v3523, %v3686
    %v3822 = vsub.f32 %v3525, %v3686
    %v3823 = vsub.f32 %v3336, %v3691
    %v3824 = vsub.f32 %v3338, %v3691
    %v3825 = vsub.f32 %v3529, %v3691
    %v3826 = vsub.f32 %v3531, %v3691
    %v3827 = vsub.f32 %v3340, %v3696
    %v3828 = vsub.f32 %v3342, %v3696
    %v3829 = vsub.f32 %v3533, %v3696
    %v3830 = vsub.f32 %v3535, %v3696
    %v3831 = vsub.f32 %v3346, %v3701
    %v3832 = vsub.f32 %v3348, %v3701
    %v3833 = vsub.f32 %v3539, %v3701
    %v3834 = vsub.f32 %v3541, %v3701
    %v3835 = vsub.f32 %v3350, %v3706
    %v3836 = vsub.f32 %v3352, %v3706
    %v3837 = vsub.f32 %v3543, %v3706
    %v3838 = vsub.f32 %v3545, %v3706
    %v3839 = vsub.f32 %v3356, %v3711
    %v3840 = vsub.f32 %v3358, %v3711
    %v3841 = vsub.f32 %v3549, %v3711
    %v3842 = vsub.f32 %v3551, %v3711
    %v3843 = vsub.f32 %v3360, %v3716
    %v3844 = vsub.f32 %v3362, %v3716
    %v3845 = vsub.f32 %v3553, %v3716
    %v3846 = vsub.f32 %v3555, %v3716
    %v3847 = vsub.f32 %v3366, %v3721
    %v3848 = vsub.f32 %v3368, %v3721
    %v3849 = vsub.f32 %v3559, %v3721
    %v3850 = vsub.f32 %v3561, %v3721
    %v3851 = vsub.f32 %v3370, %v3726
    %v3852 = vsub.f32 %v3372, %v3726
    %v3853 = vsub.f32 %v3563, %v3726
    %v3854 = vsub.f32 %v3565, %v3726
    %v3855 = vmul.f32 %v3727, 1.442695
    %v3856 = vpow.pop %v3855
    %v3857 = vmul.f32 %v3728, 1.442695
    %v3858 = vpow.pop %v3857
    %v3859 = vmul.f32 %v3729, 1.442695
    %v3860 = vpow.pop %v3859
    %v3861 = vmul.f32 %v3730, 1.442695
    %v3862 = vpow.pop %v3861
    %v3863 = vmul.f32 %v3731, 1.442695
    %v3864 = vpow.pop %v3863
    %v3865 = vmul.f32 %v3732, 1.442695
    %v3866 = vpow.pop %v3865
    %v3867 = vmul.f32 %v3733, 1.442695
    %v3868 = vpow.pop %v3867
    %v3869 = vmul.f32 %v3734, 1.442695
    %v3870 = vpow.pop %v3869
    %v3871 = vmul.f32 %v3735, 1.442695
    %v3872 = vpow.pop %v3871
    %v3873 = vmul.f32 %v3736, 1.442695
    %v3874 = vpow.pop %v3873
    %v3875 = vmul.f32 %v3737, 1.442695
    %v3876 = vpow.pop %v3875
    %v3877 = vmul.f32 %v3738, 1.442695
    %v3878 = vpow.pop %v3877
    %v3879 = vmul.f32 %v3739, 1.442695
    %v3880 = vpow.pop %v3879
    %v3881 = vmul.f32 %v3740, 1.442695
    %v3882 = vpow.pop %v3881
    %v3883 = vmul.f32 %v3741, 1.442695
    %v3884 = vpow.pop %v3883
    %v3885 = vmul.f32 %v3742, 1.442695
    %v3886 = vpow.pop %v3885
    %v3887 = vmul.f32 %v3743, 1.442695
    %v3888 = vpow.pop %v3887
    %v3889 = vmul.f32 %v3744, 1.442695
    %v3890 = vpow.pop %v3889
    %v3891 = vmul.f32 %v3745, 1.442695
    %v3892 = vpow.pop %v3891
    %v3893 = vmul.f32 %v3746, 1.442695
    %v3894 = vpow.pop %v3893
    %v3895 = vmul.f32 %v3747, 1.442695
    %v3896 = vpow.pop %v3895
    %v3897 = vmul.f32 %v3748, 1.442695
    %v3898 = vpow.pop %v3897
    %v3899 = vmul.f32 %v3749, 1.442695
    %v3900 = vpow.pop %v3899
    %v3901 = vmul.f32 %v3750, 1.442695
    %v3902 = vpow.pop %v3901
    %v3903 = vmul.f32 %v3751, 1.442695
    %v3904 = vpow.pop %v3903
    %v3905 = vmul.f32 %v3752, 1.442695
    %v3906 = vpow.pop %v3905
    %v3907 = vmul.f32 %v3753, 1.442695
    %v3908 = vpow.pop %v3907
    %v3909 = vmul.f32 %v3754, 1.442695
    %v3910 = vpow.pop %v3909
    %v3911 = vmul.f32 %v3755, 1.442695
    %v3912 = vpow.pop %v3911
    %v3913 = vmul.f32 %v3756, 1.442695
    %v3914 = vpow.pop %v3913
    %v3915 = vmul.f32 %v3757, 1.442695
    %v3916 = vpow.pop %v3915
    %v3917 = vmul.f32 %v3758, 1.442695
    %v3918 = vpow.pop %v3917
    %v3919 = vmul.f32 %v3759, 1.442695
    %v3920 = vpow.pop %v3919
    %v3921 = vmul.f32 %v3760, 1.442695
    %v3922 = vpow.pop %v3921
    %v3923 = vmul.f32 %v3761, 1.442695
    %v3924 = vpow.pop %v3923
    %v3925 = vmul.f32 %v3762, 1.442695
    %v3926 = vpow.pop %v3925
    %v3927 = vmul.f32 %v3763, 1.442695
    %v3928 = vpow.pop %v3927
    %v3929 = vmul.f32 %v3764, 1.442695
    %v3930 = vpow.pop %v3929
    %v3931 = vmul.f32 %v3765, 1.442695
    %v3932 = vpow.pop %v3931
    %v3933 = vmul.f32 %v3766, 1.442695
    %v3934 = vpow.pop %v3933
    %v3935 = vmul.f32 %v3767, 1.442695
    %v3936 = vpow.pop %v3935
    %v3937 = vmul.f32 %v3768, 1.442695
    %v3938 = vpow.pop %v3937
    %v3939 = vmul.f32 %v3769, 1.442695
    %v3940 = vpow.pop %v3939
    %v3941 = vmul.f32 %v3770, 1.442695
    %v3942 = vpow.pop %v3941
    %v3943 = vmul.f32 %v3771, 1.442695
    %v3944 = vpow.pop %v3943
    %v3945 = vmul.f32 %v3772, 1.442695
    %v3946 = vpow.pop %v3945
    %v3947 = vmul.f32 %v3773, 1.442695
    %v3948 = vpow.pop %v3947
    %v3949 = vmul.f32 %v3774, 1.442695
    %v3950 = vpow.pop %v3949
    %v3951 = vmul.f32 %v3775, 1.442695
    %v3952 = vpow.pop %v3951
    %v3953 = vmul.f32 %v3776, 1.442695
    %v3954 = vpow.pop %v3953
    %v3955 = vmul.f32 %v3777, 1.442695
    %v3956 = vpow.pop %v3955
    %v3957 = vmul.f32 %v3778, 1.442695
    %v3958 = vpow.pop %v3957
    %v3959 = vmul.f32 %v3779, 1.442695
    %v3960 = vpow.pop %v3959
    %v3961 = vmul.f32 %v3780, 1.442695
    %v3962 = vpow.pop %v3961
    %v3963 = vmul.f32 %v3781, 1.442695
    %v3964 = vpow.pop %v3963
    %v3965 = vmul.f32 %v3782, 1.442695
    %v3966 = vpow.pop %v3965
    %v3967 = vmul.f32 %v3783, 1.442695
    %v3968 = vpow.pop %v3967
    %v3969 = vmul.f32 %v3784, 1.442695
    %v3970 = vpow.pop %v3969
    %v3971 = vmul.f32 %v3785, 1.442695
    %v3972 = vpow.pop %v3971
    %v3973 = vmul.f32 %v3786, 1.442695
    %v3974 = vpow.pop %v3973
    %v3975 = vmul.f32 %v3787, 1.442695
    %v3976 = vpow.pop %v3975
    %v3977 = vmul.f32 %v3788, 1.442695
    %v3978 = vpow.pop %v3977
    %v3979 = vmul.f32 %v3789, 1.442695
    %v3980 = vpow.pop %v3979
    %v3981 = vmul.f32 %v3790, 1.442695
    %v3982 = vpow.pop %v3981
    %v3983 = vmul.f32 %v3791, 1.442695
    %v3984 = vpow.pop %v3983
    %v3985 = vmul.f32 %v3792, 1.442695
    %v3986 = vpow.pop %v3985
    %v3987 = vmul.f32 %v3793, 1.442695
    %v3988 = vpow.pop %v3987
    %v3989 = vmul.f32 %v3794, 1.442695
    %v3990 = vpow.pop %v3989
    %v3991 = vmul.f32 %v3795, 1.442695
    %v3992 = vpow.pop %v3991
    %v3993 = vmul.f32 %v3796, 1.442695
    %v3994 = vpow.pop %v3993
    %v3995 = vmul.f32 %v3797, 1.442695
    %v3996 = vpow.pop %v3995
    %v3997 = vmul.f32 %v3798, 1.442695
    %v3998 = vpow.pop %v3997
    %v3999 = vmul.f32 %v3799, 1.442695
    %v4000 = vpow.pop %v3999
    %v4001 = vmul.f32 %v3800, 1.442695
    %v4002 = vpow.pop %v4001
    %v4003 = vmul.f32 %v3801, 1.442695
    %v4004 = vpow.pop %v4003
    %v4005 = vmul.f32 %v3802, 1.442695
    %v4006 = vpow.pop %v4005
    %v4007 = vmul.f32 %v3803, 1.442695
    %v4008 = vpow.pop %v4007
    %v4009 = vmul.f32 %v3804, 1.442695
    %v4010 = vpow.pop %v4009
    %v4011 = vmul.f32 %v3805, 1.442695
    %v4012 = vpow.pop %v4011
    %v4013 = vmul.f32 %v3806, 1.442695
    %v4014 = vpow.pop %v4013
    %v4015 = vmul.f32 %v3807, 1.442695
    %v4016 = vpow.pop %v4015
    %v4017 = vmul.f32 %v3808, 1.442695
    %v4018 = vpow.pop %v4017
    %v4019 = vmul.f32 %v3809, 1.442695
    %v4020 = vpow.pop %v4019
    %v4021 = vmul.f32 %v3810, 1.442695
    %v4022 = vpow.pop %v4021
    %v4023 = vmul.f32 %v3811, 1.442695
    %v4024 = vpow.pop %v4023
    %v4025 = vmul.f32 %v3812, 1.442695
    %v4026 = vpow.pop %v4025
    %v4027 = vmul.f32 %v3813, 1.442695
    %v4028 = vpow.pop %v4027
    %v4029 = vmul.f32 %v3814, 1.442695
    %v4030 = vpow.pop %v4029
    %v4031 = vmul.f32 %v3815, 1.442695
    %v4032 = vpow.pop %v4031
    %v4033 = vmul.f32 %v3816, 1.442695
    %v4034 = vpow.pop %v4033
    %v4035 = vmul.f32 %v3817, 1.442695
    %v4036 = vpow.pop %v4035
    %v4037 = vmul.f32 %v3818, 1.442695
    %v4038 = vpow.pop %v4037
    %v4039 = vmul.f32 %v3819, 1.442695
    %v4040 = vpow.pop %v4039
    %v4041 = vmul.f32 %v3820, 1.442695
    %v4042 = vpow.pop %v4041
    %v4043 = vmul.f32 %v3821, 1.442695
    %v4044 = vpow.pop %v4043
    %v4045 = vmul.f32 %v3822, 1.442695
    %v4046 = vpow.pop %v4045
    %v4047 = vmul.f32 %v3823, 1.442695
    %v4048 = vpow.pop %v4047
    %v4049 = vmul.f32 %v3824, 1.442695
    %v4050 = vpow.pop %v4049
    %v4051 = vmul.f32 %v3825, 1.442695
    %v4052 = vpow.pop %v4051
    %v4053 = vmul.f32 %v3826, 1.442695
    %v4054 = vpow.pop %v4053
    %v4055 = vmul.f32 %v3827, 1.442695
    %v4056 = vpow.pop %v4055
    %v4057 = vmul.f32 %v3828, 1.442695
    %v4058 = vpow.pop %v4057
    %v4059 = vmul.f32 %v3829, 1.442695
    %v4060 = vpow.pop %v4059
    %v4061 = vmul.f32 %v3830, 1.442695
    %v4062 = vpow.pop %v4061
    %v4063 = vmul.f32 %v3831, 1.442695
    %v4064 = vpow.pop %v4063
    %v4065 = vmul.f32 %v3832, 1.442695
    %v4066 = vpow.pop %v4065
    %v4067 = vmul.f32 %v3833, 1.442695
    %v4068 = vpow.pop %v4067
    %v4069 = vmul.f32 %v3834, 1.442695
    %v4070 = vpow.pop %v4069
    %v4071 = vmul.f32 %v3835, 1.442695
    %v4072 = vpow.pop %v4071
    %v4073 = vmul.f32 %v3836, 1.442695
    %v4074 = vpow.pop %v4073
    %v4075 = vmul.f32 %v3837, 1.442695
    %v4076 = vpow.pop %v4075
    %v4077 = vmul.f32 %v3838, 1.442695
    %v4078 = vpow.pop %v4077
    %v4079 = vmul.f32 %v3839, 1.442695
    %v4080 = vpow.pop %v4079
    %v4081 = vmul.f32 %v3840, 1.442695
    %v4082 = vpow.pop %v4081
    %v4083 = vmul.f32 %v3841, 1.442695
    %v4084 = vpow.pop %v4083
    %v4085 = vmul.f32 %v3842, 1.442695
    %v4086 = vpow.pop %v4085
    %v4087 = vmul.f32 %v3843, 1.442695
    %v4088 = vpow.pop %v4087
    %v4089 = vmul.f32 %v3844, 1.442695
    %v4090 = vpow.pop %v4089
    %v4091 = vmul.f32 %v3845, 1.442695
    %v4092 = vpow.pop %v4091
    %v4093 = vmul.f32 %v3846, 1.442695
    %v4094 = vpow.pop %v4093
    %v4095 = vmul.f32 %v3847, 1.442695
    %v4096 = vpow.pop %v4095
    %v4097 = vmul.f32 %v3848, 1.442695
    %v4098 = vpow.pop %v4097
    %v4099 = vmul.f32 %v3849, 1.442695
    %v4100 = vpow.pop %v4099
    %v4101 = vmul.f32 %v3850, 1.442695
    %v4102 = vpow.pop %v4101
    %v4103 = vmul.f32 %v3851, 1.442695
    %v4104 = vpow.pop %v4103
    %v4105 = vmul.f32 %v3852, 1.442695
    %v4106 = vpow.pop %v4105
    %v4107 = vmul.f32 %v3853, 1.442695
    %v4108 = vpow.pop %v4107
    %v4109 = vmul.f32 %v3854, 1.442695
    %v4110 = vpow.pop %v4109
    %v4111 = vadd.f32 %v3856, %v3858
    %v4112 = vadd.f32 %v4111, %v3860
    %v4113 = vadd.f32 %v4112, %v3862
    %4114 = vadd.xlane.f32.xlu0 %v4113
    %v4115 = vpop.xlane.xlu0 %4114
    %v4116 = vadd.f32 %v3864, %v3866
    %v4117 = vadd.f32 %v4116, %v3868
    %v4118 = vadd.f32 %v4117, %v3870
    %4119 = vadd.xlane.f32.xlu0 %v4118
    %v4120 = vpop.xlane.xlu0 %4119
    %v4121 = vadd.f32 %v3872, %v3874
    %v4122 = vadd.f32 %v4121, %v3876
    %v4123 = vadd.f32 %v4122, %v3878
    %4124 = vadd.xlane.f32.xlu0 %v4123
    %v4125 = vpop.xlane.xlu0 %4124
    %v4126 = vadd.f32 %v3880, %v3882
    %v4127 = vadd.f32 %v4126, %v3884
    %v4128 = vadd.f32 %v4127, %v3886
    %4129 = vadd.xlane.f32.xlu0 %v4128
    %v4130 = vpop.xlane.xlu0 %4129
    %v4131 = vadd.f32 %v3888, %v3890
    %v4132 = vadd.f32 %v4131, %v3892
    %v4133 = vadd.f32 %v4132, %v3894
    %4134 = vadd.xlane.f32.xlu0 %v4133
    %v4135 = vpop.xlane.xlu0 %4134
    %v4136 = vadd.f32 %v3896, %v3898
    %v4137 = vadd.f32 %v4136, %v3900
    %v4138 = vadd.f32 %v4137, %v3902
    %4139 = vadd.xlane.f32.xlu0 %v4138
    %v4140 = vpop.xlane.xlu0 %4139
    %v4141 = vadd.f32 %v3904, %v3906
    %v4142 = vadd.f32 %v4141, %v3908
    %v4143 = vadd.f32 %v4142, %v3910
    %4144 = vadd.xlane.f32.xlu0 %v4143
    %v4145 = vpop.xlane.xlu0 %4144
    %v4146 = vadd.f32 %v3912, %v3914
    %v4147 = vadd.f32 %v4146, %v3916
    %v4148 = vadd.f32 %v4147, %v3918
    %4149 = vadd.xlane.f32.xlu0 %v4148
    %v4150 = vpop.xlane.xlu0 %4149
    %v4151 = vadd.f32 %v3920, %v3922
    %v4152 = vadd.f32 %v4151, %v3924
    %v4153 = vadd.f32 %v4152, %v3926
    %4154 = vadd.xlane.f32.xlu0 %v4153
    %v4155 = vpop.xlane.xlu0 %4154
    %v4156 = vadd.f32 %v3928, %v3930
    %v4157 = vadd.f32 %v4156, %v3932
    %v4158 = vadd.f32 %v4157, %v3934
    %4159 = vadd.xlane.f32.xlu0 %v4158
    %v4160 = vpop.xlane.xlu0 %4159
    %v4161 = vadd.f32 %v3936, %v3938
    %v4162 = vadd.f32 %v4161, %v3940
    %v4163 = vadd.f32 %v4162, %v3942
    %4164 = vadd.xlane.f32.xlu0 %v4163
    %v4165 = vpop.xlane.xlu0 %4164
    %v4166 = vadd.f32 %v3944, %v3946
    %v4167 = vadd.f32 %v4166, %v3948
    %v4168 = vadd.f32 %v4167, %v3950
    %4169 = vadd.xlane.f32.xlu0 %v4168
    %v4170 = vpop.xlane.xlu0 %4169
    %v4171 = vadd.f32 %v3952, %v3954
    %v4172 = vadd.f32 %v4171, %v3956
    %v4173 = vadd.f32 %v4172, %v3958
    %4174 = vadd.xlane.f32.xlu0 %v4173
    %v4175 = vpop.xlane.xlu0 %4174
    %v4176 = vadd.f32 %v3960, %v3962
    %v4177 = vadd.f32 %v4176, %v3964
    %v4178 = vadd.f32 %v4177, %v3966
    %4179 = vadd.xlane.f32.xlu0 %v4178
    %v4180 = vpop.xlane.xlu0 %4179
    %v4181 = vadd.f32 %v3968, %v3970
    %v4182 = vadd.f32 %v4181, %v3972
    %v4183 = vadd.f32 %v4182, %v3974
    %4184 = vadd.xlane.f32.xlu0 %v4183
    %v4185 = vpop.xlane.xlu0 %4184
    %v4186 = vadd.f32 %v3976, %v3978
    %v4187 = vadd.f32 %v4186, %v3980
    %v4188 = vadd.f32 %v4187, %v3982
    %4189 = vadd.xlane.f32.xlu0 %v4188
    %v4190 = vpop.xlane.xlu0 %4189
    %v4191 = vadd.f32 %v3984, %v3986
    %v4192 = vadd.f32 %v4191, %v3988
    %v4193 = vadd.f32 %v4192, %v3990
    %4194 = vadd.xlane.f32.xlu0 %v4193
    %v4195 = vpop.xlane.xlu0 %4194
    %v4196 = vadd.f32 %v3992, %v3994
    %v4197 = vadd.f32 %v4196, %v3996
    %v4198 = vadd.f32 %v4197, %v3998
    %4199 = vadd.xlane.f32.xlu0 %v4198
    %v4200 = vpop.xlane.xlu0 %4199
    %v4201 = vadd.f32 %v4000, %v4002
    %v4202 = vadd.f32 %v4201, %v4004
    %v4203 = vadd.f32 %v4202, %v4006
    %4204 = vadd.xlane.f32.xlu0 %v4203
    %v4205 = vpop.xlane.xlu0 %4204
    %v4206 = vadd.f32 %v4008, %v4010
    %v4207 = vadd.f32 %v4206, %v4012
    %v4208 = vadd.f32 %v4207, %v4014
    %4209 = vadd.xlane.f32.xlu0 %v4208
    %v4210 = vpop.xlane.xlu0 %4209
    %v4211 = vadd.f32 %v4016, %v4018
    %v4212 = vadd.f32 %v4211, %v4020
    %v4213 = vadd.f32 %v4212, %v4022
    %4214 = vadd.xlane.f32.xlu0 %v4213
    %v4215 = vpop.xlane.xlu0 %4214
    %v4216 = vadd.f32 %v4024, %v4026
    %v4217 = vadd.f32 %v4216, %v4028
    %v4218 = vadd.f32 %v4217, %v4030
    %4219 = vadd.xlane.f32.xlu0 %v4218
    %v4220 = vpop.xlane.xlu0 %4219
    %v4221 = vadd.f32 %v4032, %v4034
    %v4222 = vadd.f32 %v4221, %v4036
    %v4223 = vadd.f32 %v4222, %v4038
    %4224 = vadd.xlane.f32.xlu0 %v4223
    %v4225 = vpop.xlane.xlu0 %4224
    %v4226 = vadd.f32 %v4040, %v4042
    %v4227 = vadd.f32 %v4226, %v4044
    %v4228 = vadd.f32 %v4227, %v4046
    %4229 = vadd.xlane.f32.xlu0 %v4228
    %v4230 = vpop.xlane.xlu0 %4229
    %v4231 = vadd.f32 %v4048, %v4050
    %v4232 = vadd.f32 %v4231, %v4052
    %v4233 = vadd.f32 %v4232, %v4054
    %4234 = vadd.xlane.f32.xlu0 %v4233
    %v4235 = vpop.xlane.xlu0 %4234
    %v4236 = vadd.f32 %v4056, %v4058
    %v4237 = vadd.f32 %v4236, %v4060
    %v4238 = vadd.f32 %v4237, %v4062
    %4239 = vadd.xlane.f32.xlu0 %v4238
    %v4240 = vpop.xlane.xlu0 %4239
    %v4241 = vadd.f32 %v4064, %v4066
    %v4242 = vadd.f32 %v4241, %v4068
    %v4243 = vadd.f32 %v4242, %v4070
    %4244 = vadd.xlane.f32.xlu0 %v4243
    %v4245 = vpop.xlane.xlu0 %4244
    %v4246 = vadd.f32 %v4072, %v4074
    %v4247 = vadd.f32 %v4246, %v4076
    %v4248 = vadd.f32 %v4247, %v4078
    %4249 = vadd.xlane.f32.xlu0 %v4248
    %v4250 = vpop.xlane.xlu0 %4249
    %v4251 = vadd.f32 %v4080, %v4082
    %v4252 = vadd.f32 %v4251, %v4084
    %v4253 = vadd.f32 %v4252, %v4086
    %4254 = vadd.xlane.f32.xlu0 %v4253
    %v4255 = vpop.xlane.xlu0 %4254
    %v4256 = vadd.f32 %v4088, %v4090
    %v4257 = vadd.f32 %v4256, %v4092
    %v4258 = vadd.f32 %v4257, %v4094
    %4259 = vadd.xlane.f32.xlu0 %v4258
    %v4260 = vpop.xlane.xlu0 %4259
    %v4261 = vadd.f32 %v4096, %v4098
    %v4262 = vadd.f32 %v4261, %v4100
    %v4263 = vadd.f32 %v4262, %v4102
    %4264 = vadd.xlane.f32.xlu0 %v4263
    %v4265 = vpop.xlane.xlu0 %4264
    %v4266 = vadd.f32 %v4104, %v4106
    %v4267 = vadd.f32 %v4266, %v4108
    %v4268 = vadd.f32 %v4267, %v4110
    %4269 = vadd.xlane.f32.xlu0 %v4268
    %v4270 = vpop.xlane.xlu0 %4269
    %v4271 = vpack.c.bf16 %v3864, %v3856
    %v4272 = vpack.c.bf16 %v3866, %v3858
    %v4273 = vpack.c.bf16 %v3868, %v3860
    %v4274 = vpack.c.bf16 %v3870, %v3862
    %v4275 = vpack.c.bf16 %v3880, %v3872
    %v4276 = vpack.c.bf16 %v3882, %v3874
    %v4277 = vpack.c.bf16 %v3884, %v3876
    %v4278 = vpack.c.bf16 %v3886, %v3878
    %v4279 = vpack.c.bf16 %v3896, %v3888
    %v4280 = vpack.c.bf16 %v3898, %v3890
    %v4281 = vpack.c.bf16 %v3900, %v3892
    %v4282 = vpack.c.bf16 %v3902, %v3894
    %v4283 = vpack.c.bf16 %v3912, %v3904
    %v4284 = vpack.c.bf16 %v3914, %v3906
    %v4285 = vpack.c.bf16 %v3916, %v3908
    %v4286 = vpack.c.bf16 %v3918, %v3910
    %v4287 = vpack.c.bf16 %v3928, %v3920
    %v4288 = vpack.c.bf16 %v3930, %v3922
    %v4289 = vpack.c.bf16 %v3932, %v3924
    %v4290 = vpack.c.bf16 %v3934, %v3926
    %v4291 = vpack.c.bf16 %v3944, %v3936
    %v4292 = vpack.c.bf16 %v3946, %v3938
    %v4293 = vpack.c.bf16 %v3948, %v3940
    %v4294 = vpack.c.bf16 %v3950, %v3942
    %v4295 = vpack.c.bf16 %v3960, %v3952
    %v4296 = vpack.c.bf16 %v3962, %v3954
    %v4297 = vpack.c.bf16 %v3964, %v3956
    %v4298 = vpack.c.bf16 %v3966, %v3958
    %v4299 = vpack.c.bf16 %v3976, %v3968
    %v4300 = vpack.c.bf16 %v3978, %v3970
    %v4301 = vpack.c.bf16 %v3980, %v3972
    %v4302 = vpack.c.bf16 %v3982, %v3974
    %v4303 = vpack.c.bf16 %v3992, %v3984
    %v4304 = vpack.c.bf16 %v3994, %v3986
    %v4305 = vpack.c.bf16 %v3996, %v3988
    %v4306 = vpack.c.bf16 %v3998, %v3990
    %v4307 = vpack.c.bf16 %v4008, %v4000
    %v4308 = vpack.c.bf16 %v4010, %v4002
    %v4309 = vpack.c.bf16 %v4012, %v4004
    %v4310 = vpack.c.bf16 %v4014, %v4006
    %v4311 = vpack.c.bf16 %v4024, %v4016
    %v4312 = vpack.c.bf16 %v4026, %v4018
    %v4313 = vpack.c.bf16 %v4028, %v4020
    %v4314 = vpack.c.bf16 %v4030, %v4022
    %v4315 = vpack.c.bf16 %v4040, %v4032
    %v4316 = vpack.c.bf16 %v4042, %v4034
    %v4317 = vpack.c.bf16 %v4044, %v4036
    %v4318 = vpack.c.bf16 %v4046, %v4038
    %v4319 = vpack.c.bf16 %v4056, %v4048
    %v4320 = vpack.c.bf16 %v4058, %v4050
    %v4321 = vpack.c.bf16 %v4060, %v4052
    %v4322 = vpack.c.bf16 %v4062, %v4054
    %v4323 = vpack.c.bf16 %v4072, %v4064
    %v4324 = vpack.c.bf16 %v4074, %v4066
    %v4325 = vpack.c.bf16 %v4076, %v4068
    %v4326 = vpack.c.bf16 %v4078, %v4070
    %v4327 = vpack.c.bf16 %v4088, %v4080
    %v4328 = vpack.c.bf16 %v4090, %v4082
    %v4329 = vpack.c.bf16 %v4092, %v4084
    %v4330 = vpack.c.bf16 %v4094, %v4086
    %v4331 = vpack.c.bf16 %v4104, %v4096
    %v4332 = vpack.c.bf16 %v4106, %v4098
    %v4333 = vpack.c.bf16 %v4108, %v4100
    %v4334 = vpack.c.bf16 %v4110, %v4102
    %4367 = vrot.lane.b32.xlu0 %v1175, 120
    %v4368 = vpop.permute.xlu0 %4367
    %4369 = vrot.lane.b32.xlu0 %v1176, 120
    %v4370 = vpop.permute.xlu0 %4369
    %4371 = vrot.lane.b32.xlu0 %v1177, 120
    %v4372 = vpop.permute.xlu0 %4371
    %4373 = vrot.lane.b32.xlu0 %v1178, 120
    %v4374 = vpop.permute.xlu0 %4373
    %4375 = vrot.lane.b32.xlu0 %v1179, 120
    %v4376 = vpop.permute.xlu0 %4375
    %4377 = vrot.lane.b32.xlu0 %v1180, 120
    %v4378 = vpop.permute.xlu0 %4377
    %4379 = vrot.lane.b32.xlu0 %v1181, 120
    %v4380 = vpop.permute.xlu0 %4379
    %4381 = vrot.lane.b32.xlu0 %v1182, 120
    %v4382 = vpop.permute.xlu0 %4381
    %4383 = vrot.lane.b32.xlu0 %v1183, 120
    %v4384 = vpop.permute.xlu0 %4383
    %4385 = vrot.lane.b32.xlu0 %v1184, 120
    %v4386 = vpop.permute.xlu0 %4385
    %4387 = vrot.lane.b32.xlu0 %v1185, 120
    %v4388 = vpop.permute.xlu0 %4387
    %4389 = vrot.lane.b32.xlu0 %v1186, 120
    %v4390 = vpop.permute.xlu0 %4389
    %4391 = vrot.lane.b32.xlu0 %v1187, 120
    %v4392 = vpop.permute.xlu0 %4391
    %4393 = vrot.lane.b32.xlu0 %v1188, 120
    %v4394 = vpop.permute.xlu0 %4393
    %4395 = vrot.lane.b32.xlu0 %v1189, 120
    %v4396 = vpop.permute.xlu0 %4395
    %4397 = vrot.lane.b32.xlu0 %v1190, 120
    %v4398 = vpop.permute.xlu0 %4397
    %4399 = vrot.lane.b32.xlu0 %v1191, 120
    %v4400 = vpop.permute.xlu0 %4399
    %4401 = vrot.lane.b32.xlu0 %v1192, 120
    %v4402 = vpop.permute.xlu0 %4401
    %4403 = vrot.lane.b32.xlu0 %v1193, 120
    %v4404 = vpop.permute.xlu0 %4403
    %4405 = vrot.lane.b32.xlu0 %v1194, 120
    %v4406 = vpop.permute.xlu0 %4405
    %4407 = vrot.lane.b32.xlu0 %v1195, 120
    %v4408 = vpop.permute.xlu0 %4407
    %4409 = vrot.lane.b32.xlu0 %v1196, 120
    %v4410 = vpop.permute.xlu0 %4409
    %4411 = vrot.lane.b32.xlu0 %v1197, 120
    %v4412 = vpop.permute.xlu0 %4411
    %4413 = vrot.lane.b32.xlu0 %v1198, 120
    %v4414 = vpop.permute.xlu0 %4413
    %4415 = vrot.lane.b32.xlu0 %v1199, 120
    %v4416 = vpop.permute.xlu0 %4415
    %4417 = vrot.lane.b32.xlu0 %v1200, 120
    %v4418 = vpop.permute.xlu0 %4417
    %4419 = vrot.lane.b32.xlu0 %v1201, 120
    %v4420 = vpop.permute.xlu0 %4419
    %4421 = vrot.lane.b32.xlu0 %v1202, 120
    %v4422 = vpop.permute.xlu0 %4421
    %4423 = vrot.lane.b32.xlu0 %v1203, 120
    %v4424 = vpop.permute.xlu0 %4423
    %4425 = vrot.lane.b32.xlu0 %v1204, 120
    %v4426 = vpop.permute.xlu0 %4425
    %4427 = vrot.lane.b32.xlu0 %v1205, 120
    %v4428 = vpop.permute.xlu0 %4427
    %4429 = vrot.lane.b32.xlu0 %v1206, 120
    %v4430 = vpop.permute.xlu0 %4429
    %4463 = vmatprep.subr.bf16.mxu0 0
    %4464 = vmatpush1.bf16.msra.mxu0 %v4368
    %4465 = vmatprep.subr.bf16.mxu0 0
    %4466 = vmatpush1.bf16.msra.mxu0 %v4370
    %4467 = vmatprep.subr.bf16.mxu0 0
    %4468 = vmatpush1.bf16.msra.mxu0 %v4372
    %4469 = vmatprep.subr.bf16.mxu0 0
    %4470 = vmatpush1.bf16.msra.mxu0 %v4374
    %4471 = vmatprep.subr.bf16.mxu0 0
    %4472 = vmatpush1.bf16.msra.mxu0 %v4376
    %4473 = vmatprep.subr.bf16.mxu0 0
    %4474 = vmatpush1.bf16.msra.mxu0 %v4378
    %4475 = vmatprep.subr.bf16.mxu0 0
    %4476 = vmatpush1.bf16.msra.mxu0 %v4380
    %4477 = vmatprep.subr.bf16.mxu0 0
    %4478 = vmatpush1.bf16.msra.mxu0 %v4382
    %4479 = vmatprep.subr.bf16.mxu0 0
    %4480 = vmatpush1.bf16.msra.mxu0 %v4384
    %4481 = vmatprep.subr.bf16.mxu0 0
    %4482 = vmatpush1.bf16.msra.mxu0 %v4386
    %4483 = vmatprep.subr.bf16.mxu0 0
    %4484 = vmatpush1.bf16.msra.mxu0 %v4388
    %4485 = vmatprep.subr.bf16.mxu0 0
    %4486 = vmatpush1.bf16.msra.mxu0 %v4390
    %4487 = vmatprep.subr.bf16.mxu0 0
    %4488 = vmatpush1.bf16.msra.mxu0 %v4392
    %4489 = vmatprep.subr.bf16.mxu0 0
    %4490 = vmatpush1.bf16.msra.mxu0 %v4394
    %4491 = vmatprep.subr.bf16.mxu0 0
    %4492 = vmatpush1.bf16.msra.mxu0 %v4396
    %4493 = vmatprep.subr.bf16.mxu0 0
    %4494 = vmatpush1.bf16.msra.mxu0 %v4398
    %4495 = vmatprep.mubr.bf16.mxu0 %v4272
    %4496 = vmatmul.mubr.bf16.gmra.mrb[0].mxu0 %v4271
    %v4497 = vpop.f32.mrb[0].mxu0
    %v4498 = vadd.f32 0.0, %v4497
    %v4499 = vpop.f32.mrb[0].mxu0
    %v4500 = vpop.f32.mrb[0].mxu0
    %v4501 = vadd.f32 0.0, %v4500
    %v4502 = vpop.f32.mrb[0].mxu0
    %4503 = vmatprep.mubr.bf16.mxu0 %v4276
    %4504 = vmatmul.mubr.bf16.gmra.mrb[0].mxu0 %v4275
    %v4505 = vpop.f32.mrb[0].mxu0
    %v4506 = vadd.f32 0.0, %v4505
    %v4507 = vpop.f32.mrb[0].mxu0
    %v4508 = vpop.f32.mrb[0].mxu0
    %v4509 = vadd.f32 0.0, %v4508
    %v4510 = vpop.f32.mrb[0].mxu0
    %4511 = vmatprep.mubr.bf16.mxu0 %v4280
    %4512 = vmatmul.mubr.bf16.gmra.mrb[0].mxu0 %v4279
    %v4513 = vpop.f32.mrb[0].mxu0
    %v4514 = vadd.f32 0.0, %v4513
    %v4515 = vpop.f32.mrb[0].mxu0
    %v4516 = vpop.f32.mrb[0].mxu0
    %v4517 = vadd.f32 0.0, %v4516
    %v4518 = vpop.f32.mrb[0].mxu0
    %4519 = vmatprep.mubr.bf16.mxu0 %v4284
    %4520 = vmatmul.mubr.bf16.gmra.mrb[0].mxu0 %v4283
    %v4521 = vpop.f32.mrb[0].mxu0
    %v4522 = vadd.f32 0.0, %v4521
    %v4523 = vpop.f32.mrb[0].mxu0
    %v4524 = vpop.f32.mrb[0].mxu0
    %v4525 = vadd.f32 0.0, %v4524
    %v4526 = vpop.f32.mrb[0].mxu0
    %4527 = vmatprep.mubr.bf16.mxu0 %v4288
    %4528 = vmatmul.mubr.bf16.gmra.mrb[0].mxu0 %v4287
    %v4529 = vpop.f32.mrb[0].mxu0
    %v4530 = vadd.f32 0.0, %v4529
    %v4531 = vpop.f32.mrb[0].mxu0
    %v4532 = vpop.f32.mrb[0].mxu0
    %v4533 = vadd.f32 0.0, %v4532
    %v4534 = vpop.f32.mrb[0].mxu0
    %4535 = vmatprep.mubr.bf16.mxu0 %v4292
    %4536 = vmatmul.mubr.bf16.gmra.mrb[0].mxu0 %v4291
    %v4537 = vpop.f32.mrb[0].mxu0
    %v4538 = vadd.f32 0.0, %v4537
    %v4539 = vpop.f32.mrb[0].mxu0
    %v4540 = vpop.f32.mrb[0].mxu0
    %v4541 = vadd.f32 0.0, %v4540
    %v4542 = vpop.f32.mrb[0].mxu0
    %4543 = vmatprep.mubr.bf16.mxu0 %v4296
    %4544 = vmatmul.mubr.bf16.gmra.mrb[0].mxu0 %v4295
    %v4545 = vpop.f32.mrb[0].mxu0
    %v4546 = vadd.f32 0.0, %v4545
    %v4547 = vpop.f32.mrb[0].mxu0
    %v4548 = vpop.f32.mrb[0].mxu0
    %v4549 = vadd.f32 0.0, %v4548
    %v4550 = vpop.f32.mrb[0].mxu0
    %4551 = vmatprep.mubr.bf16.mxu0 %v4300
    %4552 = vmatmul.mubr.bf16.gmra.mrb[0].mxu0 %v4299
    %v4553 = vpop.f32.mrb[0].mxu0
    %v4554 = vadd.f32 0.0, %v4553
    %v4555 = vpop.f32.mrb[0].mxu0
    %v4556 = vpop.f32.mrb[0].mxu0
    %v4557 = vadd.f32 0.0, %v4556
    %v4558 = vpop.f32.mrb[0].mxu0
    %4559 = vmatprep.mubr.bf16.mxu0 %v4304
    %4560 = vmatmul.mubr.bf16.gmra.mrb[0].mxu0 %v4303
    %v4561 = vpop.f32.mrb[0].mxu0
    %v4562 = vadd.f32 0.0, %v4561
    %v4563 = vpop.f32.mrb[0].mxu0
    %v4564 = vpop.f32.mrb[0].mxu0
    %v4565 = vadd.f32 0.0, %v4564
    %v4566 = vpop.f32.mrb[0].mxu0
    %4567 = vmatprep.mubr.bf16.mxu0 %v4308
    %4568 = vmatmul.mubr.bf16.gmra.mrb[0].mxu0 %v4307
    %v4569 = vpop.f32.mrb[0].mxu0
    %v4570 = vadd.f32 0.0, %v4569
    %v4571 = vpop.f32.mrb[0].mxu0
    %v4572 = vpop.f32.mrb[0].mxu0
    %v4573 = vadd.f32 0.0, %v4572
    %v4574 = vpop.f32.mrb[0].mxu0
    %4575 = vmatprep.mubr.bf16.mxu0 %v4312
    %4576 = vmatmul.mubr.bf16.gmra.mrb[0].mxu0 %v4311
    %v4577 = vpop.f32.mrb[0].mxu0
    %v4578 = vadd.f32 0.0, %v4577
    %v4579 = vpop.f32.mrb[0].mxu0
    %v4580 = vpop.f32.mrb[0].mxu0
    %v4581 = vadd.f32 0.0, %v4580
    %v4582 = vpop.f32.mrb[0].mxu0
    %4583 = vmatprep.mubr.bf16.mxu0 %v4316
    %4584 = vmatmul.mubr.bf16.gmra.mrb[0].mxu0 %v4315
    %v4585 = vpop.f32.mrb[0].mxu0
    %v4586 = vadd.f32 0.0, %v4585
    %v4587 = vpop.f32.mrb[0].mxu0
    %v4588 = vpop.f32.mrb[0].mxu0
    %v4589 = vadd.f32 0.0, %v4588
    %v4590 = vpop.f32.mrb[0].mxu0
    %4591 = vmatprep.mubr.bf16.mxu0 %v4320
    %4592 = vmatmul.mubr.bf16.gmra.mrb[0].mxu0 %v4319
    %v4593 = vpop.f32.mrb[0].mxu0
    %v4594 = vadd.f32 0.0, %v4593
    %v4595 = vpop.f32.mrb[0].mxu0
    %v4596 = vpop.f32.mrb[0].mxu0
    %v4597 = vadd.f32 0.0, %v4596
    %v4598 = vpop.f32.mrb[0].mxu0
    %4599 = vmatprep.mubr.bf16.mxu0 %v4324
    %4600 = vmatmul.mubr.bf16.gmra.mrb[0].mxu0 %v4323
    %v4601 = vpop.f32.mrb[0].mxu0
    %v4602 = vadd.f32 0.0, %v4601
    %v4603 = vpop.f32.mrb[0].mxu0
    %v4604 = vpop.f32.mrb[0].mxu0
    %v4605 = vadd.f32 0.0, %v4604
    %v4606 = vpop.f32.mrb[0].mxu0
    %4607 = vmatprep.mubr.bf16.mxu0 %v4328
    %4608 = vmatmul.mubr.bf16.gmra.mrb[0].mxu0 %v4327
    %v4609 = vpop.f32.mrb[0].mxu0
    %v4610 = vadd.f32 0.0, %v4609
    %v4611 = vpop.f32.mrb[0].mxu0
    %v4612 = vpop.f32.mrb[0].mxu0
    %v4613 = vadd.f32 0.0, %v4612
    %v4614 = vpop.f32.mrb[0].mxu0
    %4615 = vmatprep.mubr.bf16.mxu0 %v4332
    %4616 = vmatmul.mubr.bf16.gmra.mrb[0].mxu0 %v4331
    %v4617 = vpop.f32.mrb[0].mxu0
    %v4618 = vadd.f32 0.0, %v4617
    %v4619 = vpop.f32.mrb[0].mxu0
    %v4620 = vpop.f32.mrb[0].mxu0
    %v4621 = vadd.f32 0.0, %v4620
    %v4622 = vpop.f32.mrb[0].mxu0
    %4623 = vdwg.mxu0
    %4624 = vmatprep.subr.bf16.mxu0 0
    %4625 = vmatpush1.bf16.msra.mxu0 %v4400
    %4626 = vmatprep.subr.bf16.mxu0 0
    %4627 = vmatpush1.bf16.msra.mxu0 %v4402
    %4628 = vmatprep.subr.bf16.mxu0 0
    %4629 = vmatpush1.bf16.msra.mxu0 %v4404
    %4630 = vmatprep.subr.bf16.mxu0 0
    %4631 = vmatpush1.bf16.msra.mxu0 %v4406
    %4632 = vmatprep.subr.bf16.mxu0 0
    %4633 = vmatpush1.bf16.msra.mxu0 %v4408
    %4634 = vmatprep.subr.bf16.mxu0 0
    %4635 = vmatpush1.bf16.msra.mxu0 %v4410
    %4636 = vmatprep.subr.bf16.mxu0 0
    %4637 = vmatpush1.bf16.msra.mxu0 %v4412
    %4638 = vmatprep.subr.bf16.mxu0 0
    %4639 = vmatpush1.bf16.msra.mxu0 %v4414
    %4640 = vmatprep.subr.bf16.mxu0 0
    %4641 = vmatpush1.bf16.msra.mxu0 %v4416
    %4642 = vmatprep.subr.bf16.mxu0 0
    %4643 = vmatpush1.bf16.msra.mxu0 %v4418
    %4644 = vmatprep.subr.bf16.mxu0 0
    %4645 = vmatpush1.bf16.msra.mxu0 %v4420
    %4646 = vmatprep.subr.bf16.mxu0 0
    %4647 = vmatpush1.bf16.msra.mxu0 %v4422
    %4648 = vmatprep.subr.bf16.mxu0 0
    %4649 = vmatpush1.bf16.msra.mxu0 %v4424
    %4650 = vmatprep.subr.bf16.mxu0 0
    %4651 = vmatpush1.bf16.msra.mxu0 %v4426
    %4652 = vmatprep.subr.bf16.mxu0 0
    %4653 = vmatpush1.bf16.msra.mxu0 %v4428
    %4654 = vmatprep.subr.bf16.mxu0 0
    %4655 = vmatpush1.bf16.msra.mxu0 %v4430
    %4656 = vmatprep.mubr.bf16.mxu0 %v4274
    %4657 = vmatmul.mubr.bf16.gmra.mrb[0].mxu0 %v4273
    %v4658 = vpop.f32.mrb[0].mxu0
    %v4659 = vadd.f32 %v4498, %v4658
    %v4660 = vpop.f32.mrb[0].mxu0
    %v4661 = vpop.f32.mrb[0].mxu0
    %v4662 = vadd.f32 %v4501, %v4661
    %v4663 = vpop.f32.mrb[0].mxu0
    %4664 = vmatprep.mubr.bf16.mxu0 %v4278
    %4665 = vmatmul.mubr.bf16.gmra.mrb[0].mxu0 %v4277
    %v4666 = vpop.f32.mrb[0].mxu0
    %v4667 = vadd.f32 %v4506, %v4666
    %v4668 = vpop.f32.mrb[0].mxu0
    %v4669 = vpop.f32.mrb[0].mxu0
    %v4670 = vadd.f32 %v4509, %v4669
    %v4671 = vpop.f32.mrb[0].mxu0
    %4672 = vmatprep.mubr.bf16.mxu0 %v4282
    %4673 = vmatmul.mubr.bf16.gmra.mrb[0].mxu0 %v4281
    %v4674 = vpop.f32.mrb[0].mxu0
    %v4675 = vadd.f32 %v4514, %v4674
    %v4676 = vpop.f32.mrb[0].mxu0
    %v4677 = vpop.f32.mrb[0].mxu0
    %v4678 = vadd.f32 %v4517, %v4677
    %v4679 = vpop.f32.mrb[0].mxu0
    %4680 = vmatprep.mubr.bf16.mxu0 %v4286
    %4681 = vmatmul.mubr.bf16.gmra.mrb[0].mxu0 %v4285
    %v4682 = vpop.f32.mrb[0].mxu0
    %v4683 = vadd.f32 %v4522, %v4682
    %v4684 = vpop.f32.mrb[0].mxu0
    %v4685 = vpop.f32.mrb[0].mxu0
    %v4686 = vadd.f32 %v4525, %v4685
    %v4687 = vpop.f32.mrb[0].mxu0
    %4688 = vmatprep.mubr.bf16.mxu0 %v4290
    %4689 = vmatmul.mubr.bf16.gmra.mrb[0].mxu0 %v4289
    %v4690 = vpop.f32.mrb[0].mxu0
    %v4691 = vadd.f32 %v4530, %v4690
    %v4692 = vpop.f32.mrb[0].mxu0
    %v4693 = vpop.f32.mrb[0].mxu0
    %v4694 = vadd.f32 %v4533, %v4693
    %v4695 = vpop.f32.mrb[0].mxu0
    %4696 = vmatprep.mubr.bf16.mxu0 %v4294
    %4697 = vmatmul.mubr.bf16.gmra.mrb[0].mxu0 %v4293
    %v4698 = vpop.f32.mrb[0].mxu0
    %v4699 = vadd.f32 %v4538, %v4698
    %v4700 = vpop.f32.mrb[0].mxu0
    %v4701 = vpop.f32.mrb[0].mxu0
    %v4702 = vadd.f32 %v4541, %v4701
    %v4703 = vpop.f32.mrb[0].mxu0
    %4704 = vmatprep.mubr.bf16.mxu0 %v4298
    %4705 = vmatmul.mubr.bf16.gmra.mrb[0].mxu0 %v4297
    %v4706 = vpop.f32.mrb[0].mxu0
    %v4707 = vadd.f32 %v4546, %v4706
    %v4708 = vpop.f32.mrb[0].mxu0
    %v4709 = vpop.f32.mrb[0].mxu0
    %v4710 = vadd.f32 %v4549, %v4709
    %v4711 = vpop.f32.mrb[0].mxu0
    %4712 = vmatprep.mubr.bf16.mxu0 %v4302
    %4713 = vmatmul.mubr.bf16.gmra.mrb[0].mxu0 %v4301
    %v4714 = vpop.f32.mrb[0].mxu0
    %v4715 = vadd.f32 %v4554, %v4714
    %v4716 = vpop.f32.mrb[0].mxu0
    %v4717 = vpop.f32.mrb[0].mxu0
    %v4718 = vadd.f32 %v4557, %v4717
    %v4719 = vpop.f32.mrb[0].mxu0
    %4720 = vmatprep.mubr.bf16.mxu0 %v4306
    %4721 = vmatmul.mubr.bf16.gmra.mrb[0].mxu0 %v4305
    %v4722 = vpop.f32.mrb[0].mxu0
    %v4723 = vadd.f32 %v4562, %v4722
    %v4724 = vpop.f32.mrb[0].mxu0
    %v4725 = vpop.f32.mrb[0].mxu0
    %v4726 = vadd.f32 %v4565, %v4725
    %v4727 = vpop.f32.mrb[0].mxu0
    %4728 = vmatprep.mubr.bf16.mxu0 %v4310
    %4729 = vmatmul.mubr.bf16.gmra.mrb[0].mxu0 %v4309
    %v4730 = vpop.f32.mrb[0].mxu0
    %v4731 = vadd.f32 %v4570, %v4730
    %v4732 = vpop.f32.mrb[0].mxu0
    %v4733 = vpop.f32.mrb[0].mxu0
    %v4734 = vadd.f32 %v4573, %v4733
    %v4735 = vpop.f32.mrb[0].mxu0
    %4736 = vmatprep.mubr.bf16.mxu0 %v4314
    %4737 = vmatmul.mubr.bf16.gmra.mrb[0].mxu0 %v4313
    %v4738 = vpop.f32.mrb[0].mxu0
    %v4739 = vadd.f32 %v4578, %v4738
    %v4740 = vpop.f32.mrb[0].mxu0
    %v4741 = vpop.f32.mrb[0].mxu0
    %v4742 = vadd.f32 %v4581, %v4741
    %v4743 = vpop.f32.mrb[0].mxu0
    %4744 = vmatprep.mubr.bf16.mxu0 %v4318
    %4745 = vmatmul.mubr.bf16.gmra.mrb[0].mxu0 %v4317
    %v4746 = vpop.f32.mrb[0].mxu0
    %v4747 = vadd.f32 %v4586, %v4746
    %v4748 = vpop.f32.mrb[0].mxu0
    %v4749 = vpop.f32.mrb[0].mxu0
    %v4750 = vadd.f32 %v4589, %v4749
    %v4751 = vpop.f32.mrb[0].mxu0
    %4752 = vmatprep.mubr.bf16.mxu0 %v4322
    %4753 = vmatmul.mubr.bf16.gmra.mrb[0].mxu0 %v4321
    %v4754 = vpop.f32.mrb[0].mxu0
    %v4755 = vadd.f32 %v4594, %v4754
    %v4756 = vpop.f32.mrb[0].mxu0
    %v4757 = vpop.f32.mrb[0].mxu0
    %v4758 = vadd.f32 %v4597, %v4757
    %v4759 = vpop.f32.mrb[0].mxu0
    %4760 = vmatprep.mubr.bf16.mxu0 %v4326
    %4761 = vmatmul.mubr.bf16.gmra.mrb[0].mxu0 %v4325
    %v4762 = vpop.f32.mrb[0].mxu0
    %v4763 = vadd.f32 %v4602, %v4762
    %v4764 = vpop.f32.mrb[0].mxu0
    %v4765 = vpop.f32.mrb[0].mxu0
    %v4766 = vadd.f32 %v4605, %v4765
    %v4767 = vpop.f32.mrb[0].mxu0
    %4768 = vmatprep.mubr.bf16.mxu0 %v4330
    %4769 = vmatmul.mubr.bf16.gmra.mrb[0].mxu0 %v4329
    %v4770 = vpop.f32.mrb[0].mxu0
    %v4771 = vadd.f32 %v4610, %v4770
    %v4772 = vpop.f32.mrb[0].mxu0
    %v4773 = vpop.f32.mrb[0].mxu0
    %v4774 = vadd.f32 %v4613, %v4773
    %v4775 = vpop.f32.mrb[0].mxu0
    %4776 = vmatprep.mubr.bf16.mxu0 %v4334
    %4777 = vmatmul.mubr.bf16.gmra.mrb[0].mxu0 %v4333
    %v4778 = vpop.f32.mrb[0].mxu0
    %v4779 = vadd.f32 %v4618, %v4778
    %v4780 = vpop.f32.mrb[0].mxu0
    %v4781 = vpop.f32.mrb[0].mxu0
    %v4782 = vadd.f32 %v4621, %v4781
    %v4783 = vpop.f32.mrb[0].mxu0
    %4784 = vdwg.mxu0
    %v4785 = vrcp.pop %v4115
    %v4786 = vrcp.pop %v4120
    %v4787 = vrcp.pop %v4125
    %v4788 = vrcp.pop %v4130
    %v4789 = vrcp.pop %v4135
    %v4790 = vrcp.pop %v4140
    %v4791 = vrcp.pop %v4145
    %v4792 = vrcp.pop %v4150
    %v4793 = vrcp.pop %v4155
    %v4794 = vrcp.pop %v4160
    %v4795 = vrcp.pop %v4165
    %v4796 = vrcp.pop %v4170
    %v4797 = vrcp.pop %v4175
    %v4798 = vrcp.pop %v4180
    %v4799 = vrcp.pop %v4185
    %v4800 = vrcp.pop %v4190
    %v4801 = vrcp.pop %v4195
    %v4802 = vrcp.pop %v4200
    %v4803 = vrcp.pop %v4205
    %v4804 = vrcp.pop %v4210
    %v4805 = vrcp.pop %v4215
    %v4806 = vrcp.pop %v4220
    %v4807 = vrcp.pop %v4225
    %v4808 = vrcp.pop %v4230
    %v4809 = vrcp.pop %v4235
    %v4810 = vrcp.pop %v4240
    %v4811 = vrcp.pop %v4245
    %v4812 = vrcp.pop %v4250
    %v4813 = vrcp.pop %v4255
    %v4814 = vrcp.pop %v4260
    %v4815 = vrcp.pop %v4265
    %v4816 = vrcp.pop %v4270
    %v4817 = vmul.f32 %v4659, %v4785
    %v4818 = vmul.f32 %v4662, %v4786
    %v4819 = vmul.f32 %v4667, %v4787
    %v4820 = vmul.f32 %v4670, %v4788
    %v4821 = vmul.f32 %v4675, %v4789
    %v4822 = vmul.f32 %v4678, %v4790
    %v4823 = vmul.f32 %v4683, %v4791
    %v4824 = vmul.f32 %v4686, %v4792
    %v4825 = vmul.f32 %v4691, %v4793
    %v4826 = vmul.f32 %v4694, %v4794
    %v4827 = vmul.f32 %v4699, %v4795
    %v4828 = vmul.f32 %v4702, %v4796
    %v4829 = vmul.f32 %v4707, %v4797
    %v4830 = vmul.f32 %v4710, %v4798
    %v4831 = vmul.f32 %v4715, %v4799
    %v4832 = vmul.f32 %v4718, %v4800
    %v4833 = vmul.f32 %v4723, %v4801
    %v4834 = vmul.f32 %v4726, %v4802
    %v4835 = vmul.f32 %v4731, %v4803
    %v4836 = vmul.f32 %v4734, %v4804
    %v4837 = vmul.f32 %v4739, %v4805
    %v4838 = vmul.f32 %v4742, %v4806
    %v4839 = vmul.f32 %v4747, %v4807
    %v4840 = vmul.f32 %v4750, %v4808
    %v4841 = vmul.f32 %v4755, %v4809
    %v4842 = vmul.f32 %v4758, %v4810
    %v4843 = vmul.f32 %v4763, %v4811
    %v4844 = vmul.f32 %v4766, %v4812
    %v4845 = vmul.f32 %v4771, %v4813
    %v4846 = vmul.f32 %v4774, %v4814
    %v4847 = vmul.f32 %v4779, %v4815
    %v4848 = vmul.f32 %v4782, %v4816
    %v4849 = vpack.c.bf16 %v1225, %v1225
    %v4850 = vpack.c.bf16 %v1257, %v1257
    %v4851 = vpack.c.bf16 %v1289, %v1289
    %v4852 = vpack.c.bf16 %v1321, %v1321
    %4853 = vrot.lane.b32.xlu0 %v1159, 112
    %v4854 = vpop.permute.xlu0 %4853
    %4855 = vrot.lane.b32.xlu0 %v1160, 112
    %v4856 = vpop.permute.xlu0 %4855
    %4857 = vrot.lane.b32.xlu0 %v1161, 112
    %v4858 = vpop.permute.xlu0 %4857
    %4859 = vrot.lane.b32.xlu0 %v1162, 112
    %v4860 = vpop.permute.xlu0 %4859
    %4861 = vrot.lane.b32.xlu0 %v1163, 112
    %v4862 = vpop.permute.xlu0 %4861
    %4863 = vrot.lane.b32.xlu0 %v1164, 112
    %v4864 = vpop.permute.xlu0 %4863
    %4865 = vrot.lane.b32.xlu0 %v1165, 112
    %v4866 = vpop.permute.xlu0 %4865
    %4867 = vrot.lane.b32.xlu0 %v1166, 112
    %v4868 = vpop.permute.xlu0 %4867
    %4869 = vrot.lane.b32.xlu0 %v1167, 112
    %v4870 = vpop.permute.xlu0 %4869
    %4871 = vrot.lane.b32.xlu0 %v1168, 112
    %v4872 = vpop.permute.xlu0 %4871
    %4873 = vrot.lane.b32.xlu0 %v1169, 112
    %v4874 = vpop.permute.xlu0 %4873
    %4875 = vrot.lane.b32.xlu0 %v1170, 112
    %v4876 = vpop.permute.xlu0 %4875
    %4877 = vrot.lane.b32.xlu0 %v1171, 112
    %v4878 = vpop.permute.xlu0 %4877
    %4879 = vrot.lane.b32.xlu0 %v1172, 112
    %v4880 = vpop.permute.xlu0 %4879
    %4881 = vrot.lane.b32.xlu0 %v1173, 112
    %v4882 = vpop.permute.xlu0 %4881
    %4883 = vrot.lane.b32.xlu0 %v1174, 112
    %v4884 = vpop.permute.xlu0 %4883
    %v4886 = vsel %vm1467, %v4854, 0
    %v4889 = vsel %vm1467, %v4856, 0
    %v4892 = vsel %vm1467, %v4858, 0
    %v4895 = vsel %vm1467, %v4860, 0
    %v4898 = vsel %vm1467, %v4862, 0
    %v4901 = vsel %vm1467, %v4864, 0
    %v4904 = vsel %vm1467, %v4866, 0
    %v4907 = vsel %vm1467, %v4868, 0
    %v4910 = vsel %vm1467, %v4870, 0
    %v4913 = vsel %vm1467, %v4872, 0
    %v4916 = vsel %vm1467, %v4874, 0
    %v4919 = vsel %vm1467, %v4876, 0
    %v4922 = vsel %vm1467, %v4878, 0
    %v4925 = vsel %vm1467, %v4880, 0
    %v4928 = vsel %vm1467, %v4882, 0
    %v4931 = vsel %vm1467, %v4884, 0
    %v4934 = vsel %vm1516, %v4849, 0
    %v4937 = vsel %vm1516, %v4850, 0
    %v4940 = vsel %vm1516, %v4851, 0
    %v4943 = vsel %vm1516, %v4852, 0
    %4945 = vmatprep.subr.bf16.mxu0 %v4937
    %4946 = vmatpush1.bf16.msra.mxu0 %v4934
    %4947 = vmatprep.subr.bf16.mxu0 0
    %4948 = vmatpush1.bf16.msra.mxu0 0
    %4949 = vmatprep.subr.bf16.mxu0 0
    %4950 = vmatpush1.bf16.msra.mxu0 0
    %4951 = vmatprep.subr.bf16.mxu0 0
    %4952 = vmatpush1.bf16.msra.mxu0 0
    %4953 = vmatprep.subr.bf16.mxu0 0
    %4954 = vmatpush1.bf16.msra.mxu0 0
    %4955 = vmatprep.subr.bf16.mxu0 0
    %4956 = vmatpush1.bf16.msra.mxu0 0
    %4957 = vmatprep.subr.bf16.mxu0 0
    %4958 = vmatpush1.bf16.msra.mxu0 0
    %4959 = vmatprep.subr.bf16.mxu0 0
    %4960 = vmatpush1.bf16.msra.mxu0 0
    %4961 = vmatprep.subr.bf16.mxu0 0
    %4962 = vmatpush1.bf16.msra.mxu0 0
    %4963 = vmatprep.subr.bf16.mxu0 0
    %4964 = vmatpush1.bf16.msra.mxu0 0
    %4965 = vmatprep.subr.bf16.mxu0 0
    %4966 = vmatpush1.bf16.msra.mxu0 0
    %4967 = vmatprep.subr.bf16.mxu0 0
    %4968 = vmatpush1.bf16.msra.mxu0 0
    %4969 = vmatprep.subr.bf16.mxu0 0
    %4970 = vmatpush1.bf16.msra.mxu0 0
    %4971 = vmatprep.subr.bf16.mxu0 0
    %4972 = vmatpush1.bf16.msra.mxu0 0
    %4973 = vmatprep.subr.bf16.mxu0 0
    %4974 = vmatpush1.bf16.msra.mxu0 0
    %4975 = vmatprep.subr.bf16.mxu0 0
    %4976 = vmatpush1.bf16.msra.mxu0 0
    %4977 = vmatprep.mubr.bf16.mxu0 0
    %4978 = vmatmul.mubr.bf16.gmra.mrb[0].mxu0 %v4886
    %v4979 = vpop.f32.mrb[0].mxu0
    %v4980 = vadd.f32 %v1335, %v4979
    %v4981 = vpop.f32.mrb[0].mxu0
    %v4982 = vadd.f32 %v1336, %v4981
    %v4983 = vpop.f32.mrb[0].mxu0
    %v4984 = vadd.f32 %v1339, %v4983
    %v4985 = vpop.f32.mrb[0].mxu0
    %v4986 = vadd.f32 %v1340, %v4985
    %4987 = vmatprep.mubr.bf16.mxu0 0
    %4988 = vmatmul.mubr.bf16.gmra.mrb[0].mxu0 %v4889
    %v4989 = vpop.f32.mrb[0].mxu0
    %v4990 = vadd.f32 %v1343, %v4989
    %v4991 = vpop.f32.mrb[0].mxu0
    %v4992 = vadd.f32 %v1344, %v4991
    %v4993 = vpop.f32.mrb[0].mxu0
    %v4994 = vadd.f32 %v1347, %v4993
    %v4995 = vpop.f32.mrb[0].mxu0
    %v4996 = vadd.f32 %v1348, %v4995
    %4997 = vmatprep.mubr.bf16.mxu0 0
    %4998 = vmatmul.mubr.bf16.gmra.mrb[0].mxu0 %v4892
    %v4999 = vpop.f32.mrb[0].mxu0
    %v5000 = vadd.f32 %v1351, %v4999
    %v5001 = vpop.f32.mrb[0].mxu0
    %v5002 = vadd.f32 %v1352, %v5001
    %v5003 = vpop.f32.mrb[0].mxu0
    %v5004 = vadd.f32 %v1355, %v5003
    %v5005 = vpop.f32.mrb[0].mxu0
    %v5006 = vadd.f32 %v1356, %v5005
    %5007 = vmatprep.mubr.bf16.mxu0 0
    %5008 = vmatmul.mubr.bf16.gmra.mrb[0].mxu0 %v4895
    %v5009 = vpop.f32.mrb[0].mxu0
    %v5010 = vadd.f32 %v1359, %v5009
    %v5011 = vpop.f32.mrb[0].mxu0
    %v5012 = vadd.f32 %v1360, %v5011
    %v5013 = vpop.f32.mrb[0].mxu0
    %v5014 = vadd.f32 %v1363, %v5013
    %v5015 = vpop.f32.mrb[0].mxu0
    %v5016 = vadd.f32 %v1364, %v5015
    %5017 = vmatprep.mubr.bf16.mxu0 0
    %5018 = vmatmul.mubr.bf16.gmra.mrb[0].mxu0 %v4898
    %v5019 = vpop.f32.mrb[0].mxu0
    %v5020 = vadd.f32 %v1367, %v5019
    %v5021 = vpop.f32.mrb[0].mxu0
    %v5022 = vadd.f32 %v1368, %v5021
    %v5023 = vpop.f32.mrb[0].mxu0
    %v5024 = vadd.f32 %v1371, %v5023
    %v5025 = vpop.f32.mrb[0].mxu0
    %v5026 = vadd.f32 %v1372, %v5025
    %5027 = vmatprep.mubr.bf16.mxu0 0
    %5028 = vmatmul.mubr.bf16.gmra.mrb[0].mxu0 %v4901
    %v5029 = vpop.f32.mrb[0].mxu0
    %v5030 = vadd.f32 %v1375, %v5029
    %v5031 = vpop.f32.mrb[0].mxu0
    %v5032 = vadd.f32 %v1376, %v5031
    %v5033 = vpop.f32.mrb[0].mxu0
    %v5034 = vadd.f32 %v1379, %v5033
    %v5035 = vpop.f32.mrb[0].mxu0
    %v5036 = vadd.f32 %v1380, %v5035
    %5037 = vmatprep.mubr.bf16.mxu0 0
    %5038 = vmatmul.mubr.bf16.gmra.mrb[0].mxu0 %v4904
    %v5039 = vpop.f32.mrb[0].mxu0
    %v5040 = vadd.f32 %v1383, %v5039
    %v5041 = vpop.f32.mrb[0].mxu0
    %v5042 = vadd.f32 %v1384, %v5041
    %v5043 = vpop.f32.mrb[0].mxu0
    %v5044 = vadd.f32 %v1387, %v5043
    %v5045 = vpop.f32.mrb[0].mxu0
    %v5046 = vadd.f32 %v1388, %v5045
    %5047 = vmatprep.mubr.bf16.mxu0 0
    %5048 = vmatmul.mubr.bf16.gmra.mrb[0].mxu0 %v4907
    %v5049 = vpop.f32.mrb[0].mxu0
    %v5050 = vadd.f32 %v1391, %v5049
    %v5051 = vpop.f32.mrb[0].mxu0
    %v5052 = vadd.f32 %v1392, %v5051
    %v5053 = vpop.f32.mrb[0].mxu0
    %v5054 = vadd.f32 %v1395, %v5053
    %v5055 = vpop.f32.mrb[0].mxu0
    %v5056 = vadd.f32 %v1396, %v5055
    %5057 = vmatprep.mubr.bf16.mxu0 0
    %5058 = vmatmul.mubr.bf16.gmra.mrb[0].mxu0 %v4910
    %v5059 = vpop.f32.mrb[0].mxu0
    %v5060 = vadd.f32 %v1399, %v5059
    %v5061 = vpop.f32.mrb[0].mxu0
    %v5062 = vadd.f32 %v1400, %v5061
    %v5063 = vpop.f32.mrb[0].mxu0
    %v5064 = vadd.f32 %v1403, %v5063
    %v5065 = vpop.f32.mrb[0].mxu0
    %v5066 = vadd.f32 %v1404, %v5065
    %5067 = vmatprep.mubr.bf16.mxu0 0
    %5068 = vmatmul.mubr.bf16.gmra.mrb[0].mxu0 %v4913
    %v5069 = vpop.f32.mrb[0].mxu0
    %v5070 = vadd.f32 %v1407, %v5069
    %v5071 = vpop.f32.mrb[0].mxu0
    %v5072 = vadd.f32 %v1408, %v5071
    %v5073 = vpop.f32.mrb[0].mxu0
    %v5074 = vadd.f32 %v1411, %v5073
    %v5075 = vpop.f32.mrb[0].mxu0
    %v5076 = vadd.f32 %v1412, %v5075
    %5077 = vmatprep.mubr.bf16.mxu0 0
    %5078 = vmatmul.mubr.bf16.gmra.mrb[0].mxu0 %v4916
    %v5079 = vpop.f32.mrb[0].mxu0
    %v5080 = vadd.f32 %v1415, %v5079
    %v5081 = vpop.f32.mrb[0].mxu0
    %v5082 = vadd.f32 %v1416, %v5081
    %v5083 = vpop.f32.mrb[0].mxu0
    %v5084 = vadd.f32 %v1419, %v5083
    %v5085 = vpop.f32.mrb[0].mxu0
    %v5086 = vadd.f32 %v1420, %v5085
    %5087 = vmatprep.mubr.bf16.mxu0 0
    %5088 = vmatmul.mubr.bf16.gmra.mrb[0].mxu0 %v4919
    %v5089 = vpop.f32.mrb[0].mxu0
    %v5090 = vadd.f32 %v1423, %v5089
    %v5091 = vpop.f32.mrb[0].mxu0
    %v5092 = vadd.f32 %v1424, %v5091
    %v5093 = vpop.f32.mrb[0].mxu0
    %v5094 = vadd.f32 %v1427, %v5093
    %v5095 = vpop.f32.mrb[0].mxu0
    %v5096 = vadd.f32 %v1428, %v5095
    %5097 = vmatprep.mubr.bf16.mxu0 0
    %5098 = vmatmul.mubr.bf16.gmra.mrb[0].mxu0 %v4922
    %v5099 = vpop.f32.mrb[0].mxu0
    %v5100 = vadd.f32 %v1431, %v5099
    %v5101 = vpop.f32.mrb[0].mxu0
    %v5102 = vadd.f32 %v1432, %v5101
    %v5103 = vpop.f32.mrb[0].mxu0
    %v5104 = vadd.f32 %v1435, %v5103
    %v5105 = vpop.f32.mrb[0].mxu0
    %v5106 = vadd.f32 %v1436, %v5105
    %5107 = vmatprep.mubr.bf16.mxu0 0
    %5108 = vmatmul.mubr.bf16.gmra.mrb[0].mxu0 %v4925
    %v5109 = vpop.f32.mrb[0].mxu0
    %v5110 = vadd.f32 %v1439, %v5109
    %v5111 = vpop.f32.mrb[0].mxu0
    %v5112 = vadd.f32 %v1440, %v5111
    %v5113 = vpop.f32.mrb[0].mxu0
    %v5114 = vadd.f32 %v1443, %v5113
    %v5115 = vpop.f32.mrb[0].mxu0
    %v5116 = vadd.f32 %v1444, %v5115
    %5117 = vmatprep.mubr.bf16.mxu0 0
    %5118 = vmatmul.mubr.bf16.gmra.mrb[0].mxu0 %v4928
    %v5119 = vpop.f32.mrb[0].mxu0
    %v5120 = vadd.f32 %v1447, %v5119
    %v5121 = vpop.f32.mrb[0].mxu0
    %v5122 = vadd.f32 %v1448, %v5121
    %v5123 = vpop.f32.mrb[0].mxu0
    %v5124 = vadd.f32 %v1451, %v5123
    %v5125 = vpop.f32.mrb[0].mxu0
    %v5126 = vadd.f32 %v1452, %v5125
    %5127 = vmatprep.mubr.bf16.mxu0 0
    %5128 = vmatmul.mubr.bf16.gmra.mrb[0].mxu0 %v4931
    %v5129 = vpop.f32.mrb[0].mxu0
    %v5130 = vadd.f32 %v1455, %v5129
    %v5131 = vpop.f32.mrb[0].mxu0
    %v5132 = vadd.f32 %v1456, %v5131
    %v5133 = vpop.f32.mrb[0].mxu0
    %v5134 = vadd.f32 %v1459, %v5133
    %v5135 = vpop.f32.mrb[0].mxu0
    %v5136 = vadd.f32 %v1460, %v5135
    %5137 = vdwg.mxu0
    %5138 = vmatprep.subr.bf16.mxu0 %v4943
    %5139 = vmatpush1.bf16.msra.mxu0 %v4940
    %5140 = vmatprep.subr.bf16.mxu0 0
    %5141 = vmatpush1.bf16.msra.mxu0 0
    %5142 = vmatprep.subr.bf16.mxu0 0
    %5143 = vmatpush1.bf16.msra.mxu0 0
    %5144 = vmatprep.subr.bf16.mxu0 0
    %5145 = vmatpush1.bf16.msra.mxu0 0
    %5146 = vmatprep.subr.bf16.mxu0 0
    %5147 = vmatpush1.bf16.msra.mxu0 0
    %5148 = vmatprep.subr.bf16.mxu0 0
    %5149 = vmatpush1.bf16.msra.mxu0 0
    %5150 = vmatprep.subr.bf16.mxu0 0
    %5151 = vmatpush1.bf16.msra.mxu0 0
    %5152 = vmatprep.subr.bf16.mxu0 0
    %5153 = vmatpush1.bf16.msra.mxu0 0
    %5154 = vmatprep.subr.bf16.mxu0 0
    %5155 = vmatpush1.bf16.msra.mxu0 0
    %5156 = vmatprep.subr.bf16.mxu0 0
    %5157 = vmatpush1.bf16.msra.mxu0 0
    %5158 = vmatprep.subr.bf16.mxu0 0
    %5159 = vmatpush1.bf16.msra.mxu0 0
    %5160 = vmatprep.subr.bf16.mxu0 0
    %5161 = vmatpush1.bf16.msra.mxu0 0
    %5162 = vmatprep.subr.bf16.mxu0 0
    %5163 = vmatpush1.bf16.msra.mxu0 0
    %5164 = vmatprep.subr.bf16.mxu0 0
    %5165 = vmatpush1.bf16.msra.mxu0 0
    %5166 = vmatprep.subr.bf16.mxu0 0
    %5167 = vmatpush1.bf16.msra.mxu0 0
    %5168 = vmatprep.subr.bf16.mxu0 0
    %5169 = vmatpush1.bf16.msra.mxu0 0
    %5170 = vmatprep.mubr.bf16.mxu0 0
    %5171 = vmatmul.mubr.bf16.gmra.mrb[0].mxu0 %v4886
    %v5172 = vpop.f32.mrb[0].mxu0
    %v5173 = vadd.f32 %v1337, %v5172
    %v5174 = vpop.f32.mrb[0].mxu0
    %v5175 = vadd.f32 %v1338, %v5174
    %v5176 = vpop.f32.mrb[0].mxu0
    %v5177 = vadd.f32 %v1341, %v5176
    %v5178 = vpop.f32.mrb[0].mxu0
    %v5179 = vadd.f32 %v1342, %v5178
    %5180 = vmatprep.mubr.bf16.mxu0 0
    %5181 = vmatmul.mubr.bf16.gmra.mrb[0].mxu0 %v4889
    %v5182 = vpop.f32.mrb[0].mxu0
    %v5183 = vadd.f32 %v1345, %v5182
    %v5184 = vpop.f32.mrb[0].mxu0
    %v5185 = vadd.f32 %v1346, %v5184
    %v5186 = vpop.f32.mrb[0].mxu0
    %v5187 = vadd.f32 %v1349, %v5186
    %v5188 = vpop.f32.mrb[0].mxu0
    %v5189 = vadd.f32 %v1350, %v5188
    %5190 = vmatprep.mubr.bf16.mxu0 0
    %5191 = vmatmul.mubr.bf16.gmra.mrb[0].mxu0 %v4892
    %v5192 = vpop.f32.mrb[0].mxu0
    %v5193 = vadd.f32 %v1353, %v5192
    %v5194 = vpop.f32.mrb[0].mxu0
    %v5195 = vadd.f32 %v1354, %v5194
    %v5196 = vpop.f32.mrb[0].mxu0
    %v5197 = vadd.f32 %v1357, %v5196
    %v5198 = vpop.f32.mrb[0].mxu0
    %v5199 = vadd.f32 %v1358, %v5198
    %5200 = vmatprep.mubr.bf16.mxu0 0
    %5201 = vmatmul.mubr.bf16.gmra.mrb[0].mxu0 %v4895
    %v5202 = vpop.f32.mrb[0].mxu0
    %v5203 = vadd.f32 %v1361, %v5202
    %v5204 = vpop.f32.mrb[0].mxu0
    %v5205 = vadd.f32 %v1362, %v5204
    %v5206 = vpop.f32.mrb[0].mxu0
    %v5207 = vadd.f32 %v1365, %v5206
    %v5208 = vpop.f32.mrb[0].mxu0
    %v5209 = vadd.f32 %v1366, %v5208
    %5210 = vmatprep.mubr.bf16.mxu0 0
    %5211 = vmatmul.mubr.bf16.gmra.mrb[0].mxu0 %v4898
    %v5212 = vpop.f32.mrb[0].mxu0
    %v5213 = vadd.f32 %v1369, %v5212
    %v5214 = vpop.f32.mrb[0].mxu0
    %v5215 = vadd.f32 %v1370, %v5214
    %v5216 = vpop.f32.mrb[0].mxu0
    %v5217 = vadd.f32 %v1373, %v5216
    %v5218 = vpop.f32.mrb[0].mxu0
    %v5219 = vadd.f32 %v1374, %v5218
    %5220 = vmatprep.mubr.bf16.mxu0 0
    %5221 = vmatmul.mubr.bf16.gmra.mrb[0].mxu0 %v4901
    %v5222 = vpop.f32.mrb[0].mxu0
    %v5223 = vadd.f32 %v1377, %v5222
    %v5224 = vpop.f32.mrb[0].mxu0
    %v5225 = vadd.f32 %v1378, %v5224
    %v5226 = vpop.f32.mrb[0].mxu0
    %v5227 = vadd.f32 %v1381, %v5226
    %v5228 = vpop.f32.mrb[0].mxu0
    %v5229 = vadd.f32 %v1382, %v5228
    %5230 = vmatprep.mubr.bf16.mxu0 0
    %5231 = vmatmul.mubr.bf16.gmra.mrb[0].mxu0 %v4904
    %v5232 = vpop.f32.mrb[0].mxu0
    %v5233 = vadd.f32 %v1385, %v5232
    %v5234 = vpop.f32.mrb[0].mxu0
    %v5235 = vadd.f32 %v1386, %v5234
    %v5236 = vpop.f32.mrb[0].mxu0
    %v5237 = vadd.f32 %v1389, %v5236
    %v5238 = vpop.f32.mrb[0].mxu0
    %v5239 = vadd.f32 %v1390, %v5238
    %5240 = vmatprep.mubr.bf16.mxu0 0
    %5241 = vmatmul.mubr.bf16.gmra.mrb[0].mxu0 %v4907
    %v5242 = vpop.f32.mrb[0].mxu0
    %v5243 = vadd.f32 %v1393, %v5242
    %v5244 = vpop.f32.mrb[0].mxu0
    %v5245 = vadd.f32 %v1394, %v5244
    %v5246 = vpop.f32.mrb[0].mxu0
    %v5247 = vadd.f32 %v1397, %v5246
    %v5248 = vpop.f32.mrb[0].mxu0
    %v5249 = vadd.f32 %v1398, %v5248
    %5250 = vmatprep.mubr.bf16.mxu0 0
    %5251 = vmatmul.mubr.bf16.gmra.mrb[0].mxu0 %v4910
    %v5252 = vpop.f32.mrb[0].mxu0
    %v5253 = vadd.f32 %v1401, %v5252
    %v5254 = vpop.f32.mrb[0].mxu0
    %v5255 = vadd.f32 %v1402, %v5254
    %v5256 = vpop.f32.mrb[0].mxu0
    %v5257 = vadd.f32 %v1405, %v5256
    %v5258 = vpop.f32.mrb[0].mxu0
    %v5259 = vadd.f32 %v1406, %v5258
    %5260 = vmatprep.mubr.bf16.mxu0 0
    %5261 = vmatmul.mubr.bf16.gmra.mrb[0].mxu0 %v4913
    %v5262 = vpop.f32.mrb[0].mxu0
    %v5263 = vadd.f32 %v1409, %v5262
    %v5264 = vpop.f32.mrb[0].mxu0
    %v5265 = vadd.f32 %v1410, %v5264
    %v5266 = vpop.f32.mrb[0].mxu0
    %v5267 = vadd.f32 %v1413, %v5266
    %v5268 = vpop.f32.mrb[0].mxu0
    %v5269 = vadd.f32 %v1414, %v5268
    %5270 = vmatprep.mubr.bf16.mxu0 0
    %5271 = vmatmul.mubr.bf16.gmra.mrb[0].mxu0 %v4916
    %v5272 = vpop.f32.mrb[0].mxu0
    %v5273 = vadd.f32 %v1417, %v5272
    %v5274 = vpop.f32.mrb[0].mxu0
    %v5275 = vadd.f32 %v1418, %v5274
    %v5276 = vpop.f32.mrb[0].mxu0
    %v5277 = vadd.f32 %v1421, %v5276
    %v5278 = vpop.f32.mrb[0].mxu0
    %v5279 = vadd.f32 %v1422, %v5278
    %5280 = vmatprep.mubr.bf16.mxu0 0
    %5281 = vmatmul.mubr.bf16.gmra.mrb[0].mxu0 %v4919
    %v5282 = vpop.f32.mrb[0].mxu0
    %v5283 = vadd.f32 %v1425, %v5282
    %v5284 = vpop.f32.mrb[0].mxu0
    %v5285 = vadd.f32 %v1426, %v5284
    %v5286 = vpop.f32.mrb[0].mxu0
    %v5287 = vadd.f32 %v1429, %v5286
    %v5288 = vpop.f32.mrb[0].mxu0
    %v5289 = vadd.f32 %v1430, %v5288
    %5290 = vmatprep.mubr.bf16.mxu0 0
    %5291 = vmatmul.mubr.bf16.gmra.mrb[0].mxu0 %v4922
    %v5292 = vpop.f32.mrb[0].mxu0
    %v5293 = vadd.f32 %v1433, %v5292
    %v5294 = vpop.f32.mrb[0].mxu0
    %v5295 = vadd.f32 %v1434, %v5294
    %v5296 = vpop.f32.mrb[0].mxu0
    %v5297 = vadd.f32 %v1437, %v5296
    %v5298 = vpop.f32.mrb[0].mxu0
    %v5299 = vadd.f32 %v1438, %v5298
    %5300 = vmatprep.mubr.bf16.mxu0 0
    %5301 = vmatmul.mubr.bf16.gmra.mrb[0].mxu0 %v4925
    %v5302 = vpop.f32.mrb[0].mxu0
    %v5303 = vadd.f32 %v1441, %v5302
    %v5304 = vpop.f32.mrb[0].mxu0
    %v5305 = vadd.f32 %v1442, %v5304
    %v5306 = vpop.f32.mrb[0].mxu0
    %v5307 = vadd.f32 %v1445, %v5306
    %v5308 = vpop.f32.mrb[0].mxu0
    %v5309 = vadd.f32 %v1446, %v5308
    %5310 = vmatprep.mubr.bf16.mxu0 0
    %5311 = vmatmul.mubr.bf16.gmra.mrb[0].mxu0 %v4928
    %v5312 = vpop.f32.mrb[0].mxu0
    %v5313 = vadd.f32 %v1449, %v5312
    %v5314 = vpop.f32.mrb[0].mxu0
    %v5315 = vadd.f32 %v1450, %v5314
    %v5316 = vpop.f32.mrb[0].mxu0
    %v5317 = vadd.f32 %v1453, %v5316
    %v5318 = vpop.f32.mrb[0].mxu0
    %v5319 = vadd.f32 %v1454, %v5318
    %5320 = vmatprep.mubr.bf16.mxu0 0
    %5321 = vmatmul.mubr.bf16.gmra.mrb[0].mxu0 %v4931
    %v5322 = vpop.f32.mrb[0].mxu0
    %v5323 = vadd.f32 %v1457, %v5322
    %v5324 = vpop.f32.mrb[0].mxu0
    %v5325 = vadd.f32 %v1458, %v5324
    %v5326 = vpop.f32.mrb[0].mxu0
    %v5327 = vadd.f32 %v1461, %v5326
    %v5328 = vpop.f32.mrb[0].mxu0
    %v5329 = vadd.f32 %v1462, %v5328
    %5330 = vdwg.mxu0
    %v5331 = vmax.f32 %v4980, %v4982
    %v5332 = vmax.f32 %v5331, %v5173
    %v5333 = vmax.f32 %v5332, %v5175
    %5334 = vmax.xlane.f32.xlu0 %v5333
    %v5335 = vpop.xlane.xlu0 %5334
    %v5336 = vmax.f32 %v4984, %v4986
    %v5337 = vmax.f32 %v5336, %v5177
    %v5338 = vmax.f32 %v5337, %v5179
    %5339 = vmax.xlane.f32.xlu0 %v5338
    %v5340 = vpop.xlane.xlu0 %5339
    %v5341 = vmax.f32 %v4990, %v4992
    %v5342 = vmax.f32 %v5341, %v5183
    %v5343 = vmax.f32 %v5342, %v5185
    %5344 = vmax.xlane.f32.xlu0 %v5343
    %v5345 = vpop.xlane.xlu0 %5344
    %v5346 = vmax.f32 %v4994, %v4996
    %v5347 = vmax.f32 %v5346, %v5187
    %v5348 = vmax.f32 %v5347, %v5189
    %5349 = vmax.xlane.f32.xlu0 %v5348
    %v5350 = vpop.xlane.xlu0 %5349
    %v5351 = vmax.f32 %v5000, %v5002
    %v5352 = vmax.f32 %v5351, %v5193
    %v5353 = vmax.f32 %v5352, %v5195
    %5354 = vmax.xlane.f32.xlu0 %v5353
    %v5355 = vpop.xlane.xlu0 %5354
    %v5356 = vmax.f32 %v5004, %v5006
    %v5357 = vmax.f32 %v5356, %v5197
    %v5358 = vmax.f32 %v5357, %v5199
    %5359 = vmax.xlane.f32.xlu0 %v5358
    %v5360 = vpop.xlane.xlu0 %5359
    %v5361 = vmax.f32 %v5010, %v5012
    %v5362 = vmax.f32 %v5361, %v5203
    %v5363 = vmax.f32 %v5362, %v5205
    %5364 = vmax.xlane.f32.xlu0 %v5363
    %v5365 = vpop.xlane.xlu0 %5364
    %v5366 = vmax.f32 %v5014, %v5016
    %v5367 = vmax.f32 %v5366, %v5207
    %v5368 = vmax.f32 %v5367, %v5209
    %5369 = vmax.xlane.f32.xlu0 %v5368
    %v5370 = vpop.xlane.xlu0 %5369
    %v5371 = vmax.f32 %v5020, %v5022
    %v5372 = vmax.f32 %v5371, %v5213
    %v5373 = vmax.f32 %v5372, %v5215
    %5374 = vmax.xlane.f32.xlu0 %v5373
    %v5375 = vpop.xlane.xlu0 %5374
    %v5376 = vmax.f32 %v5024, %v5026
    %v5377 = vmax.f32 %v5376, %v5217
    %v5378 = vmax.f32 %v5377, %v5219
    %5379 = vmax.xlane.f32.xlu0 %v5378
    %v5380 = vpop.xlane.xlu0 %5379
    %v5381 = vmax.f32 %v5030, %v5032
    %v5382 = vmax.f32 %v5381, %v5223
    %v5383 = vmax.f32 %v5382, %v5225
    %5384 = vmax.xlane.f32.xlu0 %v5383
    %v5385 = vpop.xlane.xlu0 %5384
    %v5386 = vmax.f32 %v5034, %v5036
    %v5387 = vmax.f32 %v5386, %v5227
    %v5388 = vmax.f32 %v5387, %v5229
    %5389 = vmax.xlane.f32.xlu0 %v5388
    %v5390 = vpop.xlane.xlu0 %5389
    %v5391 = vmax.f32 %v5040, %v5042
    %v5392 = vmax.f32 %v5391, %v5233
    %v5393 = vmax.f32 %v5392, %v5235
    %5394 = vmax.xlane.f32.xlu0 %v5393
    %v5395 = vpop.xlane.xlu0 %5394
    %v5396 = vmax.f32 %v5044, %v5046
    %v5397 = vmax.f32 %v5396, %v5237
    %v5398 = vmax.f32 %v5397, %v5239
    %5399 = vmax.xlane.f32.xlu0 %v5398
    %v5400 = vpop.xlane.xlu0 %5399
    %v5401 = vmax.f32 %v5050, %v5052
    %v5402 = vmax.f32 %v5401, %v5243
    %v5403 = vmax.f32 %v5402, %v5245
    %5404 = vmax.xlane.f32.xlu0 %v5403
    %v5405 = vpop.xlane.xlu0 %5404
    %v5406 = vmax.f32 %v5054, %v5056
    %v5407 = vmax.f32 %v5406, %v5247
    %v5408 = vmax.f32 %v5407, %v5249
    %5409 = vmax.xlane.f32.xlu0 %v5408
    %v5410 = vpop.xlane.xlu0 %5409
    %v5411 = vmax.f32 %v5060, %v5062
    %v5412 = vmax.f32 %v5411, %v5253
    %v5413 = vmax.f32 %v5412, %v5255
    %5414 = vmax.xlane.f32.xlu0 %v5413
    %v5415 = vpop.xlane.xlu0 %5414
    %v5416 = vmax.f32 %v5064, %v5066
    %v5417 = vmax.f32 %v5416, %v5257
    %v5418 = vmax.f32 %v5417, %v5259
    %5419 = vmax.xlane.f32.xlu0 %v5418
    %v5420 = vpop.xlane.xlu0 %5419
    %v5421 = vmax.f32 %v5070, %v5072
    %v5422 = vmax.f32 %v5421, %v5263
    %v5423 = vmax.f32 %v5422, %v5265
    %5424 = vmax.xlane.f32.xlu0 %v5423
    %v5425 = vpop.xlane.xlu0 %5424
    %v5426 = vmax.f32 %v5074, %v5076
    %v5427 = vmax.f32 %v5426, %v5267
    %v5428 = vmax.f32 %v5427, %v5269
    %5429 = vmax.xlane.f32.xlu0 %v5428
    %v5430 = vpop.xlane.xlu0 %5429
    %v5431 = vmax.f32 %v5080, %v5082
    %v5432 = vmax.f32 %v5431, %v5273
    %v5433 = vmax.f32 %v5432, %v5275
    %5434 = vmax.xlane.f32.xlu0 %v5433
    %v5435 = vpop.xlane.xlu0 %5434
    %v5436 = vmax.f32 %v5084, %v5086
    %v5437 = vmax.f32 %v5436, %v5277
    %v5438 = vmax.f32 %v5437, %v5279
    %5439 = vmax.xlane.f32.xlu0 %v5438
    %v5440 = vpop.xlane.xlu0 %5439
    %v5441 = vmax.f32 %v5090, %v5092
    %v5442 = vmax.f32 %v5441, %v5283
    %v5443 = vmax.f32 %v5442, %v5285
    %5444 = vmax.xlane.f32.xlu0 %v5443
    %v5445 = vpop.xlane.xlu0 %5444
    %v5446 = vmax.f32 %v5094, %v5096
    %v5447 = vmax.f32 %v5446, %v5287
    %v5448 = vmax.f32 %v5447, %v5289
    %5449 = vmax.xlane.f32.xlu0 %v5448
    %v5450 = vpop.xlane.xlu0 %5449
    %v5451 = vmax.f32 %v5100, %v5102
    %v5452 = vmax.f32 %v5451, %v5293
    %v5453 = vmax.f32 %v5452, %v5295
    %5454 = vmax.xlane.f32.xlu0 %v5453
    %v5455 = vpop.xlane.xlu0 %5454
    %v5456 = vmax.f32 %v5104, %v5106
    %v5457 = vmax.f32 %v5456, %v5297
    %v5458 = vmax.f32 %v5457, %v5299
    %5459 = vmax.xlane.f32.xlu0 %v5458
    %v5460 = vpop.xlane.xlu0 %5459
    %v5461 = vmax.f32 %v5110, %v5112
    %v5462 = vmax.f32 %v5461, %v5303
    %v5463 = vmax.f32 %v5462, %v5305
    %5464 = vmax.xlane.f32.xlu0 %v5463
    %v5465 = vpop.xlane.xlu0 %5464
    %v5466 = vmax.f32 %v5114, %v5116
    %v5467 = vmax.f32 %v5466, %v5307
    %v5468 = vmax.f32 %v5467, %v5309
    %5469 = vmax.xlane.f32.xlu0 %v5468
    %v5470 = vpop.xlane.xlu0 %5469
    %v5471 = vmax.f32 %v5120, %v5122
    %v5472 = vmax.f32 %v5471, %v5313
    %v5473 = vmax.f32 %v5472, %v5315
    %5474 = vmax.xlane.f32.xlu0 %v5473
    %v5475 = vpop.xlane.xlu0 %5474
    %v5476 = vmax.f32 %v5124, %v5126
    %v5477 = vmax.f32 %v5476, %v5317
    %v5478 = vmax.f32 %v5477, %v5319
    %5479 = vmax.xlane.f32.xlu0 %v5478
    %v5480 = vpop.xlane.xlu0 %5479
    %v5481 = vmax.f32 %v5130, %v5132
    %v5482 = vmax.f32 %v5481, %v5323
    %v5483 = vmax.f32 %v5482, %v5325
    %5484 = vmax.xlane.f32.xlu0 %v5483
    %v5485 = vpop.xlane.xlu0 %5484
    %v5486 = vmax.f32 %v5134, %v5136
    %v5487 = vmax.f32 %v5486, %v5327
    %v5488 = vmax.f32 %v5487, %v5329
    %5489 = vmax.xlane.f32.xlu0 %v5488
    %v5490 = vpop.xlane.xlu0 %5489
    %v5491 = vsub.f32 %v4980, %v5335
    %v5492 = vsub.f32 %v4982, %v5335
    %v5493 = vsub.f32 %v5173, %v5335
    %v5494 = vsub.f32 %v5175, %v5335
    %v5495 = vsub.f32 %v4984, %v5340
    %v5496 = vsub.f32 %v4986, %v5340
    %v5497 = vsub.f32 %v5177, %v5340
    %v5498 = vsub.f32 %v5179, %v5340
    %v5499 = vsub.f32 %v4990, %v5345
    %v5500 = vsub.f32 %v4992, %v5345
    %v5501 = vsub.f32 %v5183, %v5345
    %v5502 = vsub.f32 %v5185, %v5345
    %v5503 = vsub.f32 %v4994, %v5350
    %v5504 = vsub.f32 %v4996, %v5350
    %v5505 = vsub.f32 %v5187, %v5350
    %v5506 = vsub.f32 %v5189, %v5350
    %v5507 = vsub.f32 %v5000, %v5355
    %v5508 = vsub.f32 %v5002, %v5355
    %v5509 = vsub.f32 %v5193, %v5355
    %v5510 = vsub.f32 %v5195, %v5355
    %v5511 = vsub.f32 %v5004, %v5360
    %v5512 = vsub.f32 %v5006, %v5360
    %v5513 = vsub.f32 %v5197, %v5360
    %v5514 = vsub.f32 %v5199, %v5360
    %v5515 = vsub.f32 %v5010, %v5365
    %v5516 = vsub.f32 %v5012, %v5365
    %v5517 = vsub.f32 %v5203, %v5365
    %v5518 = vsub.f32 %v5205, %v5365
    %v5519 = vsub.f32 %v5014, %v5370
    %v5520 = vsub.f32 %v5016, %v5370
    %v5521 = vsub.f32 %v5207, %v5370
    %v5522 = vsub.f32 %v5209, %v5370
    %v5523 = vsub.f32 %v5020, %v5375
    %v5524 = vsub.f32 %v5022, %v5375
    %v5525 = vsub.f32 %v5213, %v5375
    %v5526 = vsub.f32 %v5215, %v5375
    %v5527 = vsub.f32 %v5024, %v5380
    %v5528 = vsub.f32 %v5026, %v5380
    %v5529 = vsub.f32 %v5217, %v5380
    %v5530 = vsub.f32 %v5219, %v5380
    %v5531 = vsub.f32 %v5030, %v5385
    %v5532 = vsub.f32 %v5032, %v5385
    %v5533 = vsub.f32 %v5223, %v5385
    %v5534 = vsub.f32 %v5225, %v5385
    %v5535 = vsub.f32 %v5034, %v5390
    %v5536 = vsub.f32 %v5036, %v5390
    %v5537 = vsub.f32 %v5227, %v5390
    %v5538 = vsub.f32 %v5229, %v5390
    %v5539 = vsub.f32 %v5040, %v5395
    %v5540 = vsub.f32 %v5042, %v5395
    %v5541 = vsub.f32 %v5233, %v5395
    %v5542 = vsub.f32 %v5235, %v5395
    %v5543 = vsub.f32 %v5044, %v5400
    %v5544 = vsub.f32 %v5046, %v5400
    %v5545 = vsub.f32 %v5237, %v5400
    %v5546 = vsub.f32 %v5239, %v5400
    %v5547 = vsub.f32 %v5050, %v5405
    %v5548 = vsub.f32 %v5052, %v5405
    %v5549 = vsub.f32 %v5243, %v5405
    %v5550 = vsub.f32 %v5245, %v5405
    %v5551 = vsub.f32 %v5054, %v5410
    %v5552 = vsub.f32 %v5056, %v5410
    %v5553 = vsub.f32 %v5247, %v5410
    %v5554 = vsub.f32 %v5249, %v5410
    %v5555 = vsub.f32 %v5060, %v5415
    %v5556 = vsub.f32 %v5062, %v5415
    %v5557 = vsub.f32 %v5253, %v5415
    %v5558 = vsub.f32 %v5255, %v5415
    %v5559 = vsub.f32 %v5064, %v5420
    %v5560 = vsub.f32 %v5066, %v5420
    %v5561 = vsub.f32 %v5257, %v5420
    %v5562 = vsub.f32 %v5259, %v5420
    %v5563 = vsub.f32 %v5070, %v5425
    %v5564 = vsub.f32 %v5072, %v5425
    %v5565 = vsub.f32 %v5263, %v5425
    %v5566 = vsub.f32 %v5265, %v5425
    %v5567 = vsub.f32 %v5074, %v5430
    %v5568 = vsub.f32 %v5076, %v5430
    %v5569 = vsub.f32 %v5267, %v5430
    %v5570 = vsub.f32 %v5269, %v5430
    %v5571 = vsub.f32 %v5080, %v5435
    %v5572 = vsub.f32 %v5082, %v5435
    %v5573 = vsub.f32 %v5273, %v5435
    %v5574 = vsub.f32 %v5275, %v5435
    %v5575 = vsub.f32 %v5084, %v5440
    %v5576 = vsub.f32 %v5086, %v5440
    %v5577 = vsub.f32 %v5277, %v5440
    %v5578 = vsub.f32 %v5279, %v5440
    %v5579 = vsub.f32 %v5090, %v5445
    %v5580 = vsub.f32 %v5092, %v5445
    %v5581 = vsub.f32 %v5283, %v5445
    %v5582 = vsub.f32 %v5285, %v5445
    %v5583 = vsub.f32 %v5094, %v5450
    %v5584 = vsub.f32 %v5096, %v5450
    %v5585 = vsub.f32 %v5287, %v5450
    %v5586 = vsub.f32 %v5289, %v5450
    %v5587 = vsub.f32 %v5100, %v5455
    %v5588 = vsub.f32 %v5102, %v5455
    %v5589 = vsub.f32 %v5293, %v5455
    %v5590 = vsub.f32 %v5295, %v5455
    %v5591 = vsub.f32 %v5104, %v5460
    %v5592 = vsub.f32 %v5106, %v5460
    %v5593 = vsub.f32 %v5297, %v5460
    %v5594 = vsub.f32 %v5299, %v5460
    %v5595 = vsub.f32 %v5110, %v5465
    %v5596 = vsub.f32 %v5112, %v5465
    %v5597 = vsub.f32 %v5303, %v5465
    %v5598 = vsub.f32 %v5305, %v5465
    %v5599 = vsub.f32 %v5114, %v5470
    %v5600 = vsub.f32 %v5116, %v5470
    %v5601 = vsub.f32 %v5307, %v5470
    %v5602 = vsub.f32 %v5309, %v5470
    %v5603 = vsub.f32 %v5120, %v5475
    %v5604 = vsub.f32 %v5122, %v5475
    %v5605 = vsub.f32 %v5313, %v5475
    %v5606 = vsub.f32 %v5315, %v5475
    %v5607 = vsub.f32 %v5124, %v5480
    %v5608 = vsub.f32 %v5126, %v5480
    %v5609 = vsub.f32 %v5317, %v5480
    %v5610 = vsub.f32 %v5319, %v5480
    %v5611 = vsub.f32 %v5130, %v5485
    %v5612 = vsub.f32 %v5132, %v5485
    %v5613 = vsub.f32 %v5323, %v5485
    %v5614 = vsub.f32 %v5325, %v5485
    %v5615 = vsub.f32 %v5134, %v5490
    %v5616 = vsub.f32 %v5136, %v5490
    %v5617 = vsub.f32 %v5327, %v5490
    %v5618 = vsub.f32 %v5329, %v5490
    %v5619 = vmul.f32 %v5491, 1.442695
    %v5620 = vpow.pop %v5619
    %v5621 = vmul.f32 %v5492, 1.442695
    %v5622 = vpow.pop %v5621
    %v5623 = vmul.f32 %v5493, 1.442695
    %v5624 = vpow.pop %v5623
    %v5625 = vmul.f32 %v5494, 1.442695
    %v5626 = vpow.pop %v5625
    %v5627 = vmul.f32 %v5495, 1.442695
    %v5628 = vpow.pop %v5627
    %v5629 = vmul.f32 %v5496, 1.442695
    %v5630 = vpow.pop %v5629
    %v5631 = vmul.f32 %v5497, 1.442695
    %v5632 = vpow.pop %v5631
    %v5633 = vmul.f32 %v5498, 1.442695
    %v5634 = vpow.pop %v5633
    %v5635 = vmul.f32 %v5499, 1.442695
    %v5636 = vpow.pop %v5635
    %v5637 = vmul.f32 %v5500, 1.442695
    %v5638 = vpow.pop %v5637
    %v5639 = vmul.f32 %v5501, 1.442695
    %v5640 = vpow.pop %v5639
    %v5641 = vmul.f32 %v5502, 1.442695
    %v5642 = vpow.pop %v5641
    %v5643 = vmul.f32 %v5503, 1.442695
    %v5644 = vpow.pop %v5643
    %v5645 = vmul.f32 %v5504, 1.442695
    %v5646 = vpow.pop %v5645
    %v5647 = vmul.f32 %v5505, 1.442695
    %v5648 = vpow.pop %v5647
    %v5649 = vmul.f32 %v5506, 1.442695
    %v5650 = vpow.pop %v5649
    %v5651 = vmul.f32 %v5507, 1.442695
    %v5652 = vpow.pop %v5651
    %v5653 = vmul.f32 %v5508, 1.442695
    %v5654 = vpow.pop %v5653
    %v5655 = vmul.f32 %v5509, 1.442695
    %v5656 = vpow.pop %v5655
    %v5657 = vmul.f32 %v5510, 1.442695
    %v5658 = vpow.pop %v5657
    %v5659 = vmul.f32 %v5511, 1.442695
    %v5660 = vpow.pop %v5659
    %v5661 = vmul.f32 %v5512, 1.442695
    %v5662 = vpow.pop %v5661
    %v5663 = vmul.f32 %v5513, 1.442695
    %v5664 = vpow.pop %v5663
    %v5665 = vmul.f32 %v5514, 1.442695
    %v5666 = vpow.pop %v5665
    %v5667 = vmul.f32 %v5515, 1.442695
    %v5668 = vpow.pop %v5667
    %v5669 = vmul.f32 %v5516, 1.442695
    %v5670 = vpow.pop %v5669
    %v5671 = vmul.f32 %v5517, 1.442695
    %v5672 = vpow.pop %v5671
    %v5673 = vmul.f32 %v5518, 1.442695
    %v5674 = vpow.pop %v5673
    %v5675 = vmul.f32 %v5519, 1.442695
    %v5676 = vpow.pop %v5675
    %v5677 = vmul.f32 %v5520, 1.442695
    %v5678 = vpow.pop %v5677
    %v5679 = vmul.f32 %v5521, 1.442695
    %v5680 = vpow.pop %v5679
    %v5681 = vmul.f32 %v5522, 1.442695
    %v5682 = vpow.pop %v5681
    %v5683 = vmul.f32 %v5523, 1.442695
    %v5684 = vpow.pop %v5683
    %v5685 = vmul.f32 %v5524, 1.442695
    %v5686 = vpow.pop %v5685
    %v5687 = vmul.f32 %v5525, 1.442695
    %v5688 = vpow.pop %v5687
    %v5689 = vmul.f32 %v5526, 1.442695
    %v5690 = vpow.pop %v5689
    %v5691 = vmul.f32 %v5527, 1.442695
    %v5692 = vpow.pop %v5691
    %v5693 = vmul.f32 %v5528, 1.442695
    %v5694 = vpow.pop %v5693
    %v5695 = vmul.f32 %v5529, 1.442695
    %v5696 = vpow.pop %v5695
    %v5697 = vmul.f32 %v5530, 1.442695
    %v5698 = vpow.pop %v5697
    %v5699 = vmul.f32 %v5531, 1.442695
    %v5700 = vpow.pop %v5699
    %v5701 = vmul.f32 %v5532, 1.442695
    %v5702 = vpow.pop %v5701
    %v5703 = vmul.f32 %v5533, 1.442695
    %v5704 = vpow.pop %v5703
    %v5705 = vmul.f32 %v5534, 1.442695
    %v5706 = vpow.pop %v5705
    %v5707 = vmul.f32 %v5535, 1.442695
    %v5708 = vpow.pop %v5707
    %v5709 = vmul.f32 %v5536, 1.442695
    %v5710 = vpow.pop %v5709
    %v5711 = vmul.f32 %v5537, 1.442695
    %v5712 = vpow.pop %v5711
    %v5713 = vmul.f32 %v5538, 1.442695
    %v5714 = vpow.pop %v5713
    %v5715 = vmul.f32 %v5539, 1.442695
    %v5716 = vpow.pop %v5715
    %v5717 = vmul.f32 %v5540, 1.442695
    %v5718 = vpow.pop %v5717
    %v5719 = vmul.f32 %v5541, 1.442695
    %v5720 = vpow.pop %v5719
    %v5721 = vmul.f32 %v5542, 1.442695
    %v5722 = vpow.pop %v5721
    %v5723 = vmul.f32 %v5543, 1.442695
    %v5724 = vpow.pop %v5723
    %v5725 = vmul.f32 %v5544, 1.442695
    %v5726 = vpow.pop %v5725
    %v5727 = vmul.f32 %v5545, 1.442695
    %v5728 = vpow.pop %v5727
    %v5729 = vmul.f32 %v5546, 1.442695
    %v5730 = vpow.pop %v5729
    %v5731 = vmul.f32 %v5547, 1.442695
    %v5732 = vpow.pop %v5731
    %v5733 = vmul.f32 %v5548, 1.442695
    %v5734 = vpow.pop %v5733
    %v5735 = vmul.f32 %v5549, 1.442695
    %v5736 = vpow.pop %v5735
    %v5737 = vmul.f32 %v5550, 1.442695
    %v5738 = vpow.pop %v5737
    %v5739 = vmul.f32 %v5551, 1.442695
    %v5740 = vpow.pop %v5739
    %v5741 = vmul.f32 %v5552, 1.442695
    %v5742 = vpow.pop %v5741
    %v5743 = vmul.f32 %v5553, 1.442695
    %v5744 = vpow.pop %v5743
    %v5745 = vmul.f32 %v5554, 1.442695
    %v5746 = vpow.pop %v5745
    %v5747 = vmul.f32 %v5555, 1.442695
    %v5748 = vpow.pop %v5747
    %v5749 = vmul.f32 %v5556, 1.442695
    %v5750 = vpow.pop %v5749
    %v5751 = vmul.f32 %v5557, 1.442695
    %v5752 = vpow.pop %v5751
    %v5753 = vmul.f32 %v5558, 1.442695
    %v5754 = vpow.pop %v5753
    %v5755 = vmul.f32 %v5559, 1.442695
    %v5756 = vpow.pop %v5755
    %v5757 = vmul.f32 %v5560, 1.442695
    %v5758 = vpow.pop %v5757
    %v5759 = vmul.f32 %v5561, 1.442695
    %v5760 = vpow.pop %v5759
    %v5761 = vmul.f32 %v5562, 1.442695
    %v5762 = vpow.pop %v5761
    %v5763 = vmul.f32 %v5563, 1.442695
    %v5764 = vpow.pop %v5763
    %v5765 = vmul.f32 %v5564, 1.442695
    %v5766 = vpow.pop %v5765
    %v5767 = vmul.f32 %v5565, 1.442695
    %v5768 = vpow.pop %v5767
    %v5769 = vmul.f32 %v5566, 1.442695
    %v5770 = vpow.pop %v5769
    %v5771 = vmul.f32 %v5567, 1.442695
    %v5772 = vpow.pop %v5771
    %v5773 = vmul.f32 %v5568, 1.442695
    %v5774 = vpow.pop %v5773
    %v5775 = vmul.f32 %v5569, 1.442695
    %v5776 = vpow.pop %v5775
    %v5777 = vmul.f32 %v5570, 1.442695
    %v5778 = vpow.pop %v5777
    %v5779 = vmul.f32 %v5571, 1.442695
    %v5780 = vpow.pop %v5779
    %v5781 = vmul.f32 %v5572, 1.442695
    %v5782 = vpow.pop %v5781
    %v5783 = vmul.f32 %v5573, 1.442695
    %v5784 = vpow.pop %v5783
    %v5785 = vmul.f32 %v5574, 1.442695
    %v5786 = vpow.pop %v5785
    %v5787 = vmul.f32 %v5575, 1.442695
    %v5788 = vpow.pop %v5787
    %v5789 = vmul.f32 %v5576, 1.442695
    %v5790 = vpow.pop %v5789
    %v5791 = vmul.f32 %v5577, 1.442695
    %v5792 = vpow.pop %v5791
    %v5793 = vmul.f32 %v5578, 1.442695
    %v5794 = vpow.pop %v5793
    %v5795 = vmul.f32 %v5579, 1.442695
    %v5796 = vpow.pop %v5795
    %v5797 = vmul.f32 %v5580, 1.442695
    %v5798 = vpow.pop %v5797
    %v5799 = vmul.f32 %v5581, 1.442695
    %v5800 = vpow.pop %v5799
    %v5801 = vmul.f32 %v5582, 1.442695
    %v5802 = vpow.pop %v5801
    %v5803 = vmul.f32 %v5583, 1.442695
    %v5804 = vpow.pop %v5803
    %v5805 = vmul.f32 %v5584, 1.442695
    %v5806 = vpow.pop %v5805
    %v5807 = vmul.f32 %v5585, 1.442695
    %v5808 = vpow.pop %v5807
    %v5809 = vmul.f32 %v5586, 1.442695
    %v5810 = vpow.pop %v5809
    %v5811 = vmul.f32 %v5587, 1.442695
    %v5812 = vpow.pop %v5811
    %v5813 = vmul.f32 %v5588, 1.442695
    %v5814 = vpow.pop %v5813
    %v5815 = vmul.f32 %v5589, 1.442695
    %v5816 = vpow.pop %v5815
    %v5817 = vmul.f32 %v5590, 1.442695
    %v5818 = vpow.pop %v5817
    %v5819 = vmul.f32 %v5591, 1.442695
    %v5820 = vpow.pop %v5819
    %v5821 = vmul.f32 %v5592, 1.442695
    %v5822 = vpow.pop %v5821
    %v5823 = vmul.f32 %v5593, 1.442695
    %v5824 = vpow.pop %v5823
    %v5825 = vmul.f32 %v5594, 1.442695
    %v5826 = vpow.pop %v5825
    %v5827 = vmul.f32 %v5595, 1.442695
    %v5828 = vpow.pop %v5827
    %v5829 = vmul.f32 %v5596, 1.442695
    %v5830 = vpow.pop %v5829
    %v5831 = vmul.f32 %v5597, 1.442695
    %v5832 = vpow.pop %v5831
    %v5833 = vmul.f32 %v5598, 1.442695
    %v5834 = vpow.pop %v5833
    %v5835 = vmul.f32 %v5599, 1.442695
    %v5836 = vpow.pop %v5835
    %v5837 = vmul.f32 %v5600, 1.442695
    %v5838 = vpow.pop %v5837
    %v5839 = vmul.f32 %v5601, 1.442695
    %v5840 = vpow.pop %v5839
    %v5841 = vmul.f32 %v5602, 1.442695
    %v5842 = vpow.pop %v5841
    %v5843 = vmul.f32 %v5603, 1.442695
    %v5844 = vpow.pop %v5843
    %v5845 = vmul.f32 %v5604, 1.442695
    %v5846 = vpow.pop %v5845
    %v5847 = vmul.f32 %v5605, 1.442695
    %v5848 = vpow.pop %v5847
    %v5849 = vmul.f32 %v5606, 1.442695
    %v5850 = vpow.pop %v5849
    %v5851 = vmul.f32 %v5607, 1.442695
    %v5852 = vpow.pop %v5851
    %v5853 = vmul.f32 %v5608, 1.442695
    %v5854 = vpow.pop %v5853
    %v5855 = vmul.f32 %v5609, 1.442695
    %v5856 = vpow.pop %v5855
    %v5857 = vmul.f32 %v5610, 1.442695
    %v5858 = vpow.pop %v5857
    %v5859 = vmul.f32 %v5611, 1.442695
    %v5860 = vpow.pop %v5859
    %v5861 = vmul.f32 %v5612, 1.442695
    %v5862 = vpow.pop %v5861
    %v5863 = vmul.f32 %v5613, 1.442695
    %v5864 = vpow.pop %v5863
    %v5865 = vmul.f32 %v5614, 1.442695
    %v5866 = vpow.pop %v5865
    %v5867 = vmul.f32 %v5615, 1.442695
    %v5868 = vpow.pop %v5867
    %v5869 = vmul.f32 %v5616, 1.442695
    %v5870 = vpow.pop %v5869
    %v5871 = vmul.f32 %v5617, 1.442695
    %v5872 = vpow.pop %v5871
    %v5873 = vmul.f32 %v5618, 1.442695
    %v5874 = vpow.pop %v5873
    %v5875 = vadd.f32 %v5620, %v5622
    %v5876 = vadd.f32 %v5875, %v5624
    %v5877 = vadd.f32 %v5876, %v5626
    %5878 = vadd.xlane.f32.xlu0 %v5877
    %v5879 = vpop.xlane.xlu0 %5878
    %v5880 = vadd.f32 %v5628, %v5630
    %v5881 = vadd.f32 %v5880, %v5632
    %v5882 = vadd.f32 %v5881, %v5634
    %5883 = vadd.xlane.f32.xlu0 %v5882
    %v5884 = vpop.xlane.xlu0 %5883
    %v5885 = vadd.f32 %v5636, %v5638
    %v5886 = vadd.f32 %v5885, %v5640
    %v5887 = vadd.f32 %v5886, %v5642
    %5888 = vadd.xlane.f32.xlu0 %v5887
    %v5889 = vpop.xlane.xlu0 %5888
    %v5890 = vadd.f32 %v5644, %v5646
    %v5891 = vadd.f32 %v5890, %v5648
    %v5892 = vadd.f32 %v5891, %v5650
    %5893 = vadd.xlane.f32.xlu0 %v5892
    %v5894 = vpop.xlane.xlu0 %5893
    %v5895 = vadd.f32 %v5652, %v5654
    %v5896 = vadd.f32 %v5895, %v5656
    %v5897 = vadd.f32 %v5896, %v5658
    %5898 = vadd.xlane.f32.xlu0 %v5897
    %v5899 = vpop.xlane.xlu0 %5898
    %v5900 = vadd.f32 %v5660, %v5662
    %v5901 = vadd.f32 %v5900, %v5664
    %v5902 = vadd.f32 %v5901, %v5666
    %5903 = vadd.xlane.f32.xlu0 %v5902
    %v5904 = vpop.xlane.xlu0 %5903
    %v5905 = vadd.f32 %v5668, %v5670
    %v5906 = vadd.f32 %v5905, %v5672
    %v5907 = vadd.f32 %v5906, %v5674
    %5908 = vadd.xlane.f32.xlu0 %v5907
    %v5909 = vpop.xlane.xlu0 %5908
    %v5910 = vadd.f32 %v5676, %v5678
    %v5911 = vadd.f32 %v5910, %v5680
    %v5912 = vadd.f32 %v5911, %v5682
    %5913 = vadd.xlane.f32.xlu0 %v5912
    %v5914 = vpop.xlane.xlu0 %5913
    %v5915 = vadd.f32 %v5684, %v5686
    %v5916 = vadd.f32 %v5915, %v5688
    %v5917 = vadd.f32 %v5916, %v5690
    %5918 = vadd.xlane.f32.xlu0 %v5917
    %v5919 = vpop.xlane.xlu0 %5918
    %v5920 = vadd.f32 %v5692, %v5694
    %v5921 = vadd.f32 %v5920, %v5696
    %v5922 = vadd.f32 %v5921, %v5698
    %5923 = vadd.xlane.f32.xlu0 %v5922
    %v5924 = vpop.xlane.xlu0 %5923
    %v5925 = vadd.f32 %v5700, %v5702
    %v5926 = vadd.f32 %v5925, %v5704
    %v5927 = vadd.f32 %v5926, %v5706
    %5928 = vadd.xlane.f32.xlu0 %v5927
    %v5929 = vpop.xlane.xlu0 %5928
    %v5930 = vadd.f32 %v5708, %v5710
    %v5931 = vadd.f32 %v5930, %v5712
    %v5932 = vadd.f32 %v5931, %v5714
    %5933 = vadd.xlane.f32.xlu0 %v5932
    %v5934 = vpop.xlane.xlu0 %5933
    %v5935 = vadd.f32 %v5716, %v5718
    %v5936 = vadd.f32 %v5935, %v5720
    %v5937 = vadd.f32 %v5936, %v5722
    %5938 = vadd.xlane.f32.xlu0 %v5937
    %v5939 = vpop.xlane.xlu0 %5938
    %v5940 = vadd.f32 %v5724, %v5726
    %v5941 = vadd.f32 %v5940, %v5728
    %v5942 = vadd.f32 %v5941, %v5730
    %5943 = vadd.xlane.f32.xlu0 %v5942
    %v5944 = vpop.xlane.xlu0 %5943
    %v5945 = vadd.f32 %v5732, %v5734
    %v5946 = vadd.f32 %v5945, %v5736
    %v5947 = vadd.f32 %v5946, %v5738
    %5948 = vadd.xlane.f32.xlu0 %v5947
    %v5949 = vpop.xlane.xlu0 %5948
    %v5950 = vadd.f32 %v5740, %v5742
    %v5951 = vadd.f32 %v5950, %v5744
    %v5952 = vadd.f32 %v5951, %v5746
    %5953 = vadd.xlane.f32.xlu0 %v5952
    %v5954 = vpop.xlane.xlu0 %5953
    %v5955 = vadd.f32 %v5748, %v5750
    %v5956 = vadd.f32 %v5955, %v5752
    %v5957 = vadd.f32 %v5956, %v5754
    %5958 = vadd.xlane.f32.xlu0 %v5957
    %v5959 = vpop.xlane.xlu0 %5958
    %v5960 = vadd.f32 %v5756, %v5758
    %v5961 = vadd.f32 %v5960, %v5760
    %v5962 = vadd.f32 %v5961, %v5762
    %5963 = vadd.xlane.f32.xlu0 %v5962
    %v5964 = vpop.xlane.xlu0 %5963
    %v5965 = vadd.f32 %v5764, %v5766
    %v5966 = vadd.f32 %v5965, %v5768
    %v5967 = vadd.f32 %v5966, %v5770
    %5968 = vadd.xlane.f32.xlu0 %v5967
    %v5969 = vpop.xlane.xlu0 %5968
    %v5970 = vadd.f32 %v5772, %v5774
    %v5971 = vadd.f32 %v5970, %v5776
    %v5972 = vadd.f32 %v5971, %v5778
    %5973 = vadd.xlane.f32.xlu0 %v5972
    %v5974 = vpop.xlane.xlu0 %5973
    %v5975 = vadd.f32 %v5780, %v5782
    %v5976 = vadd.f32 %v5975, %v5784
    %v5977 = vadd.f32 %v5976, %v5786
    %5978 = vadd.xlane.f32.xlu0 %v5977
    %v5979 = vpop.xlane.xlu0 %5978
    %v5980 = vadd.f32 %v5788, %v5790
    %v5981 = vadd.f32 %v5980, %v5792
    %v5982 = vadd.f32 %v5981, %v5794
    %5983 = vadd.xlane.f32.xlu0 %v5982
    %v5984 = vpop.xlane.xlu0 %5983
    %v5985 = vadd.f32 %v5796, %v5798
    %v5986 = vadd.f32 %v5985, %v5800
    %v5987 = vadd.f32 %v5986, %v5802
    %5988 = vadd.xlane.f32.xlu0 %v5987
    %v5989 = vpop.xlane.xlu0 %5988
    %v5990 = vadd.f32 %v5804, %v5806
    %v5991 = vadd.f32 %v5990, %v5808
    %v5992 = vadd.f32 %v5991, %v5810
    %5993 = vadd.xlane.f32.xlu0 %v5992
    %v5994 = vpop.xlane.xlu0 %5993
    %v5995 = vadd.f32 %v5812, %v5814
    %v5996 = vadd.f32 %v5995, %v5816
    %v5997 = vadd.f32 %v5996, %v5818
    %5998 = vadd.xlane.f32.xlu0 %v5997
    %v5999 = vpop.xlane.xlu0 %5998
    %v6000 = vadd.f32 %v5820, %v5822
    %v6001 = vadd.f32 %v6000, %v5824
    %v6002 = vadd.f32 %v6001, %v5826
    %6003 = vadd.xlane.f32.xlu0 %v6002
    %v6004 = vpop.xlane.xlu0 %6003
    %v6005 = vadd.f32 %v5828, %v5830
    %v6006 = vadd.f32 %v6005, %v5832
    %v6007 = vadd.f32 %v6006, %v5834
    %6008 = vadd.xlane.f32.xlu0 %v6007
    %v6009 = vpop.xlane.xlu0 %6008
    %v6010 = vadd.f32 %v5836, %v5838
    %v6011 = vadd.f32 %v6010, %v5840
    %v6012 = vadd.f32 %v6011, %v5842
    %6013 = vadd.xlane.f32.xlu0 %v6012
    %v6014 = vpop.xlane.xlu0 %6013
    %v6015 = vadd.f32 %v5844, %v5846
    %v6016 = vadd.f32 %v6015, %v5848
    %v6017 = vadd.f32 %v6016, %v5850
    %6018 = vadd.xlane.f32.xlu0 %v6017
    %v6019 = vpop.xlane.xlu0 %6018
    %v6020 = vadd.f32 %v5852, %v5854
    %v6021 = vadd.f32 %v6020, %v5856
    %v6022 = vadd.f32 %v6021, %v5858
    %6023 = vadd.xlane.f32.xlu0 %v6022
    %v6024 = vpop.xlane.xlu0 %6023
    %v6025 = vadd.f32 %v5860, %v5862
    %v6026 = vadd.f32 %v6025, %v5864
    %v6027 = vadd.f32 %v6026, %v5866
    %6028 = vadd.xlane.f32.xlu0 %v6027
    %v6029 = vpop.xlane.xlu0 %6028
    %v6030 = vadd.f32 %v5868, %v5870
    %v6031 = vadd.f32 %v6030, %v5872
    %v6032 = vadd.f32 %v6031, %v5874
    %6033 = vadd.xlane.f32.xlu0 %v6032
    %v6034 = vpop.xlane.xlu0 %6033
    %v6035 = vpack.c.bf16 %v5628, %v5620
    %v6036 = vpack.c.bf16 %v5630, %v5622
    %v6037 = vpack.c.bf16 %v5632, %v5624
    %v6038 = vpack.c.bf16 %v5634, %v5626
    %v6039 = vpack.c.bf16 %v5644, %v5636
    %v6040 = vpack.c.bf16 %v5646, %v5638
    %v6041 = vpack.c.bf16 %v5648, %v5640
    %v6042 = vpack.c.bf16 %v5650, %v5642
    %v6043 = vpack.c.bf16 %v5660, %v5652
    %v6044 = vpack.c.bf16 %v5662, %v5654
    %v6045 = vpack.c.bf16 %v5664, %v5656
    %v6046 = vpack.c.bf16 %v5666, %v5658
    %v6047 = vpack.c.bf16 %v5676, %v5668
    %v6048 = vpack.c.bf16 %v5678, %v5670
    %v6049 = vpack.c.bf16 %v5680, %v5672
    %v6050 = vpack.c.bf16 %v5682, %v5674
    %v6051 = vpack.c.bf16 %v5692, %v5684
    %v6052 = vpack.c.bf16 %v5694, %v5686
    %v6053 = vpack.c.bf16 %v5696, %v5688
    %v6054 = vpack.c.bf16 %v5698, %v5690
    %v6055 = vpack.c.bf16 %v5708, %v5700
    %v6056 = vpack.c.bf16 %v5710, %v5702
    %v6057 = vpack.c.bf16 %v5712, %v5704
    %v6058 = vpack.c.bf16 %v5714, %v5706
    %v6059 = vpack.c.bf16 %v5724, %v5716
    %v6060 = vpack.c.bf16 %v5726, %v5718
    %v6061 = vpack.c.bf16 %v5728, %v5720
    %v6062 = vpack.c.bf16 %v5730, %v5722
    %v6063 = vpack.c.bf16 %v5740, %v5732
    %v6064 = vpack.c.bf16 %v5742, %v5734
    %v6065 = vpack.c.bf16 %v5744, %v5736
    %v6066 = vpack.c.bf16 %v5746, %v5738
    %v6067 = vpack.c.bf16 %v5756, %v5748
    %v6068 = vpack.c.bf16 %v5758, %v5750
    %v6069 = vpack.c.bf16 %v5760, %v5752
    %v6070 = vpack.c.bf16 %v5762, %v5754
    %v6071 = vpack.c.bf16 %v5772, %v5764
    %v6072 = vpack.c.bf16 %v5774, %v5766
    %v6073 = vpack.c.bf16 %v5776, %v5768
    %v6074 = vpack.c.bf16 %v5778, %v5770
    %v6075 = vpack.c.bf16 %v5788, %v5780
    %v6076 = vpack.c.bf16 %v5790, %v5782
    %v6077 = vpack.c.bf16 %v5792, %v5784
    %v6078 = vpack.c.bf16 %v5794, %v5786
    %v6079 = vpack.c.bf16 %v5804, %v5796
    %v6080 = vpack.c.bf16 %v5806, %v5798
    %v6081 = vpack.c.bf16 %v5808, %v5800
    %v6082 = vpack.c.bf16 %v5810, %v5802
    %v6083 = vpack.c.bf16 %v5820, %v5812
    %v6084 = vpack.c.bf16 %v5822, %v5814
    %v6085 = vpack.c.bf16 %v5824, %v5816
    %v6086 = vpack.c.bf16 %v5826, %v5818
    %v6087 = vpack.c.bf16 %v5836, %v5828
    %v6088 = vpack.c.bf16 %v5838, %v5830
    %v6089 = vpack.c.bf16 %v5840, %v5832
    %v6090 = vpack.c.bf16 %v5842, %v5834
    %v6091 = vpack.c.bf16 %v5852, %v5844
    %v6092 = vpack.c.bf16 %v5854, %v5846
    %v6093 = vpack.c.bf16 %v5856, %v5848
    %v6094 = vpack.c.bf16 %v5858, %v5850
    %v6095 = vpack.c.bf16 %v5868, %v5860
    %v6096 = vpack.c.bf16 %v5870, %v5862
    %v6097 = vpack.c.bf16 %v5872, %v5864
    %v6098 = vpack.c.bf16 %v5874, %v5866
    %6099 = vrot.lane.b32.xlu0 %v1175, 112
    %v6100 = vpop.permute.xlu0 %6099
    %6101 = vrot.lane.b32.xlu0 %v1176, 112
    %v6102 = vpop.permute.xlu0 %6101
    %6103 = vrot.lane.b32.xlu0 %v1177, 112
    %v6104 = vpop.permute.xlu0 %6103
    %6105 = vrot.lane.b32.xlu0 %v1178, 112
    %v6106 = vpop.permute.xlu0 %6105
    %6107 = vrot.lane.b32.xlu0 %v1179, 112
    %v6108 = vpop.permute.xlu0 %6107
    %6109 = vrot.lane.b32.xlu0 %v1180, 112
    %v6110 = vpop.permute.xlu0 %6109
    %6111 = vrot.lane.b32.xlu0 %v1181, 112
    %v6112 = vpop.permute.xlu0 %6111
    %6113 = vrot.lane.b32.xlu0 %v1182, 112
    %v6114 = vpop.permute.xlu0 %6113
    %6115 = vrot.lane.b32.xlu0 %v1183, 112
    %v6116 = vpop.permute.xlu0 %6115
    %6117 = vrot.lane.b32.xlu0 %v1184, 112
    %v6118 = vpop.permute.xlu0 %6117
    %6119 = vrot.lane.b32.xlu0 %v1185, 112
    %v6120 = vpop.permute.xlu0 %6119
    %6121 = vrot.lane.b32.xlu0 %v1186, 112
    %v6122 = vpop.permute.xlu0 %6121
    %6123 = vrot.lane.b32.xlu0 %v1187, 112
    %v6124 = vpop.permute.xlu0 %6123
    %6125 = vrot.lane.b32.xlu0 %v1188, 112
    %v6126 = vpop.permute.xlu0 %6125
    %6127 = vrot.lane.b32.xlu0 %v1189, 112
    %v6128 = vpop.permute.xlu0 %6127
    %6129 = vrot.lane.b32.xlu0 %v1190, 112
    %v6130 = vpop.permute.xlu0 %6129
    %6131 = vrot.lane.b32.xlu0 %v1191, 112
    %v6132 = vpop.permute.xlu0 %6131
    %6133 = vrot.lane.b32.xlu0 %v1192, 112
    %v6134 = vpop.permute.xlu0 %6133
    %6135 = vrot.lane.b32.xlu0 %v1193, 112
    %v6136 = vpop.permute.xlu0 %6135
    %6137 = vrot.lane.b32.xlu0 %v1194, 112
    %v6138 = vpop.permute.xlu0 %6137
    %6139 = vrot.lane.b32.xlu0 %v1195, 112
    %v6140 = vpop.permute.xlu0 %6139
    %6141 = vrot.lane.b32.xlu0 %v1196, 112
    %v6142 = vpop.permute.xlu0 %6141
    %6143 = vrot.lane.b32.xlu0 %v1197, 112
    %v6144 = vpop.permute.xlu0 %6143
    %6145 = vrot.lane.b32.xlu0 %v1198, 112
    %v6146 = vpop.permute.xlu0 %6145
    %6147 = vrot.lane.b32.xlu0 %v1199, 112
    %v6148 = vpop.permute.xlu0 %6147
    %6149 = vrot.lane.b32.xlu0 %v1200, 112
    %v6150 = vpop.permute.xlu0 %6149
    %6151 = vrot.lane.b32.xlu0 %v1201, 112
    %v6152 = vpop.permute.xlu0 %6151
    %6153 = vrot.lane.b32.xlu0 %v1202, 112
    %v6154 = vpop.permute.xlu0 %6153
    %6155 = vrot.lane.b32.xlu0 %v1203, 112
    %v6156 = vpop.permute.xlu0 %6155
    %6157 = vrot.lane.b32.xlu0 %v1204, 112
    %v6158 = vpop.permute.xlu0 %6157
    %6159 = vrot.lane.b32.xlu0 %v1205, 112
    %v6160 = vpop.permute.xlu0 %6159
    %6161 = vrot.lane.b32.xlu0 %v1206, 112
    %v6162 = vpop.permute.xlu0 %6161
    %6195 = vmatprep.subr.bf16.mxu0 0
    %6196 = vmatpush1.bf16.msra.mxu0 %v6100
    %6197 = vmatprep.subr.bf16.mxu0 0
    %6198 = vmatpush1.bf16.msra.mxu0 %v6102
    %6199 = vmatprep.subr.bf16.mxu0 0
    %6200 = vmatpush1.bf16.msra.mxu0 %v6104
    %6201 = vmatprep.subr.bf16.mxu0 0
    %6202 = vmatpush1.bf16.msra.mxu0 %v6106
    %6203 = vmatprep.subr.bf16.mxu0 0
    %6204 = vmatpush1.bf16.msra.mxu0 %v6108
    %6205 = vmatprep.subr.bf16.mxu0 0
    %6206 = vmatpush1.bf16.msra.mxu0 %v6110
    %6207 = vmatprep.subr.bf16.mxu0 0
    %6208 = vmatpush1.bf16.msra.mxu0 %v6112
    %6209 = vmatprep.subr.bf16.mxu0 0
    %6210 = vmatpush1.bf16.msra.mxu0 %v6114
    %6211 = vmatprep.subr.bf16.mxu0 0
    %6212 = vmatpush1.bf16.msra.mxu0 %v6116
    %6213 = vmatprep.subr.bf16.mxu0 0
    %6214 = vmatpush1.bf16.msra.mxu0 %v6118
    %6215 = vmatprep.subr.bf16.mxu0 0
    %6216 = vmatpush1.bf16.msra.mxu0 %v6120
    %6217 = vmatprep.subr.bf16.mxu0 0
    %6218 = vmatpush1.bf16.msra.mxu0 %v6122
    %6219 = vmatprep.subr.bf16.mxu0 0
    %6220 = vmatpush1.bf16.msra.mxu0 %v6124
    %6221 = vmatprep.subr.bf16.mxu0 0
    %6222 = vmatpush1.bf16.msra.mxu0 %v6126
    %6223 = vmatprep.subr.bf16.mxu0 0
    %6224 = vmatpush1.bf16.msra.mxu0 %v6128
    %6225 = vmatprep.subr.bf16.mxu0 0
    %6226 = vmatpush1.bf16.msra.mxu0 %v6130
    %6227 = vmatprep.mubr.bf16.mxu0 %v6036
    %6228 = vmatmul.mubr.bf16.gmra.mrb[0].mxu0 %v6035
    %v6229 = vpop.f32.mrb[0].mxu0
    %v6230 = vadd.f32 0.0, %v6229
    %v6231 = vpop.f32.mrb[0].mxu0
    %v6232 = vpop.f32.mrb[0].mxu0
    %v6233 = vadd.f32 0.0, %v6232
    %v6234 = vpop.f32.mrb[0].mxu0
    %6235 = vmatprep.mubr.bf16.mxu0 %v6040
    %6236 = vmatmul.mubr.bf16.gmra.mrb[0].mxu0 %v6039
    %v6237 = vpop.f32.mrb[0].mxu0
    %v6238 = vadd.f32 0.0, %v6237
    %v6239 = vpop.f32.mrb[0].mxu0
    %v6240 = vpop.f32.mrb[0].mxu0
    %v6241 = vadd.f32 0.0, %v6240
    %v6242 = vpop.f32.mrb[0].mxu0
    %6243 = vmatprep.mubr.bf16.mxu0 %v6044
    %6244 = vmatmul.mubr.bf16.gmra.mrb[0].mxu0 %v6043
    %v6245 = vpop.f32.mrb[0].mxu0
    %v6246 = vadd.f32 0.0, %v6245
    %v6247 = vpop.f32.mrb[0].mxu0
    %v6248 = vpop.f32.mrb[0].mxu0
    %v6249 = vadd.f32 0.0, %v6248
    %v6250 = vpop.f32.mrb[0].mxu0
    %6251 = vmatprep.mubr.bf16.mxu0 %v6048
    %6252 = vmatmul.mubr.bf16.gmra.mrb[0].mxu0 %v6047
    %v6253 = vpop.f32.mrb[0].mxu0
    %v6254 = vadd.f32 0.0, %v6253
    %v6255 = vpop.f32.mrb[0].mxu0
    %v6256 = vpop.f32.mrb[0].mxu0
    %v6257 = vadd.f32 0.0, %v6256
    %v6258 = vpop.f32.mrb[0].mxu0
    %6259 = vmatprep.mubr.bf16.mxu0 %v6052
    %6260 = vmatmul.mubr.bf16.gmra.mrb[0].mxu0 %v6051
    %v6261 = vpop.f32.mrb[0].mxu0
    %v6262 = vadd.f32 0.0, %v6261
    %v6263 = vpop.f32.mrb[0].mxu0
    %v6264 = vpop.f32.mrb[0].mxu0
    %v6265 = vadd.f32 0.0, %v6264
    %v6266 = vpop.f32.mrb[0].mxu0
    %6267 = vmatprep.mubr.bf16.mxu0 %v6056
    %6268 = vmatmul.mubr.bf16.gmra.mrb[0].mxu0 %v6055
    %v6269 = vpop.f32.mrb[0].mxu0
    %v6270 = vadd.f32 0.0, %v6269
    %v6271 = vpop.f32.mrb[0].mxu0
    %v6272 = vpop.f32.mrb[0].mxu0
    %v6273 = vadd.f32 0.0, %v6272
    %v6274 = vpop.f32.mrb[0].mxu0
    %6275 = vmatprep.mubr.bf16.mxu0 %v6060
    %6276 = vmatmul.mubr.bf16.gmra.mrb[0].mxu0 %v6059
    %v6277 = vpop.f32.mrb[0].mxu0
    %v6278 = vadd.f32 0.0, %v6277
    %v6279 = vpop.f32.mrb[0].mxu0
    %v6280 = vpop.f32.mrb[0].mxu0
    %v6281 = vadd.f32 0.0, %v6280
    %v6282 = vpop.f32.mrb[0].mxu0
    %6283 = vmatprep.mubr.bf16.mxu0 %v6064
    %6284 = vmatmul.mubr.bf16.gmra.mrb[0].mxu0 %v6063
    %v6285 = vpop.f32.mrb[0].mxu0
    %v6286 = vadd.f32 0.0, %v6285
    %v6287 = vpop.f32.mrb[0].mxu0
    %v6288 = vpop.f32.mrb[0].mxu0
    %v6289 = vadd.f32 0.0, %v6288
    %v6290 = vpop.f32.mrb[0].mxu0
    %6291 = vmatprep.mubr.bf16.mxu0 %v6068
    %6292 = vmatmul.mubr.bf16.gmra.mrb[0].mxu0 %v6067
    %v6293 = vpop.f32.mrb[0].mxu0
    %v6294 = vadd.f32 0.0, %v6293
    %v6295 = vpop.f32.mrb[0].mxu0
    %v6296 = vpop.f32.mrb[0].mxu0
    %v6297 = vadd.f32 0.0, %v6296
    %v6298 = vpop.f32.mrb[0].mxu0
    %6299 = vmatprep.mubr.bf16.mxu0 %v6072
    %6300 = vmatmul.mubr.bf16.gmra.mrb[0].mxu0 %v6071
    %v6301 = vpop.f32.mrb[0].mxu0
    %v6302 = vadd.f32 0.0, %v6301
    %v6303 = vpop.f32.mrb[0].mxu0
    %v6304 = vpop.f32.mrb[0].mxu0
    %v6305 = vadd.f32 0.0, %v6304
    %v6306 = vpop.f32.mrb[0].mxu0
    %6307 = vmatprep.mubr.bf16.mxu0 %v6076
    %6308 = vmatmul.mubr.bf16.gmra.mrb[0].mxu0 %v6075
    %v6309 = vpop.f32.mrb[0].mxu0
    %v6310 = vadd.f32 0.0, %v6309
    %v6311 = vpop.f32.mrb[0].mxu0
    %v6312 = vpop.f32.mrb[0].mxu0
    %v6313 = vadd.f32 0.0, %v6312
    %v6314 = vpop.f32.mrb[0].mxu0
    %6315 = vmatprep.mubr.bf16.mxu0 %v6080
    %6316 = vmatmul.mubr.bf16.gmra.mrb[0].mxu0 %v6079
    %v6317 = vpop.f32.mrb[0].mxu0
    %v6318 = vadd.f32 0.0, %v6317
    %v6319 = vpop.f32.mrb[0].mxu0
    %v6320 = vpop.f32.mrb[0].mxu0
    %v6321 = vadd.f32 0.0, %v6320
    %v6322 = vpop.f32.mrb[0].mxu0
    %6323 = vmatprep.mubr.bf16.mxu0 %v6084
    %6324 = vmatmul.mubr.bf16.gmra.mrb[0].mxu0 %v6083
    %v6325 = vpop.f32.mrb[0].mxu0
    %v6326 = vadd.f32 0.0, %v6325
    %v6327 = vpop.f32.mrb[0].mxu0
    %v6328 = vpop.f32.mrb[0].mxu0
    %v6329 = vadd.f32 0.0, %v6328
    %v6330 = vpop.f32.mrb[0].mxu0
    %6331 = vmatprep.mubr.bf16.mxu0 %v6088
    %6332 = vmatmul.mubr.bf16.gmra.mrb[0].mxu0 %v6087
    %v6333 = vpop.f32.mrb[0].mxu0
    %v6334 = vadd.f32 0.0, %v6333
    %v6335 = vpop.f32.mrb[0].mxu0
    %v6336 = vpop.f32.mrb[0].mxu0
    %v6337 = vadd.f32 0.0, %v6336
    %v6338 = vpop.f32.mrb[0].mxu0
    %6339 = vmatprep.mubr.bf16.mxu0 %v6092
    %6340 = vmatmul.mubr.bf16.gmra.mrb[0].mxu0 %v6091
    %v6341 = vpop.f32.mrb[0].mxu0
    %v6342 = vadd.f32 0.0, %v6341
    %v6343 = vpop.f32.mrb[0].mxu0
    %v6344 = vpop.f32.mrb[0].mxu0
    %v6345 = vadd.f32 0.0, %v6344
    %v6346 = vpop.f32.mrb[0].mxu0
    %6347 = vmatprep.mubr.bf16.mxu0 %v6096
    %6348 = vmatmul.mubr.bf16.gmra.mrb[0].mxu0 %v6095
    %v6349 = vpop.f32.mrb[0].mxu0
    %v6350 = vadd.f32 0.0, %v6349
    %v6351 = vpop.f32.mrb[0].mxu0
    %v6352 = vpop.f32.mrb[0].mxu0
    %v6353 = vadd.f32 0.0, %v6352
    %v6354 = vpop.f32.mrb[0].mxu0
    %6355 = vdwg.mxu0
    %6356 = vmatprep.subr.bf16.mxu0 0
    %6357 = vmatpush1.bf16.msra.mxu0 %v6132
    %6358 = vmatprep.subr.bf16.mxu0 0
    %6359 = vmatpush1.bf16.msra.mxu0 %v6134
    %6360 = vmatprep.subr.bf16.mxu0 0
    %6361 = vmatpush1.bf16.msra.mxu0 %v6136
    %6362 = vmatprep.subr.bf16.mxu0 0
    %6363 = vmatpush1.bf16.msra.mxu0 %v6138
    %6364 = vmatprep.subr.bf16.mxu0 0
    %6365 = vmatpush1.bf16.msra.mxu0 %v6140
    %6366 = vmatprep.subr.bf16.mxu0 0
    %6367 = vmatpush1.bf16.msra.mxu0 %v6142
    %6368 = vmatprep.subr.bf16.mxu0 0
    %6369 = vmatpush1.bf16.msra.mxu0 %v6144
    %6370 = vmatprep.subr.bf16.mxu0 0
    %6371 = vmatpush1.bf16.msra.mxu0 %v6146
    %6372 = vmatprep.subr.bf16.mxu0 0
    %6373 = vmatpush1.bf16.msra.mxu0 %v6148
    %6374 = vmatprep.subr.bf16.mxu0 0
    %6375 = vmatpush1.bf16.msra.mxu0 %v6150
    %6376 = vmatprep.subr.bf16.mxu0 0
    %6377 = vmatpush1.bf16.msra.mxu0 %v6152
    %6378 = vmatprep.subr.bf16.mxu0 0
    %6379 = vmatpush1.bf16.msra.mxu0 %v6154
    %6380 = vmatprep.subr.bf16.mxu0 0
    %6381 = vmatpush1.bf16.msra.mxu0 %v6156
    %6382 = vmatprep.subr.bf16.mxu0 0
    %6383 = vmatpush1.bf16.msra.mxu0 %v6158
    %6384 = vmatprep.subr.bf16.mxu0 0
    %6385 = vmatpush1.bf16.msra.mxu0 %v6160
    %6386 = vmatprep.subr.bf16.mxu0 0
    %6387 = vmatpush1.bf16.msra.mxu0 %v6162
    %6388 = vmatprep.mubr.bf16.mxu0 %v6038
    %6389 = vmatmul.mubr.bf16.gmra.mrb[0].mxu0 %v6037
    %v6390 = vpop.f32.mrb[0].mxu0
    %v6391 = vadd.f32 %v6230, %v6390
    %v6392 = vpop.f32.mrb[0].mxu0
    %v6393 = vpop.f32.mrb[0].mxu0
    %v6394 = vadd.f32 %v6233, %v6393
    %v6395 = vpop.f32.mrb[0].mxu0
    %6396 = vmatprep.mubr.bf16.mxu0 %v6042
    %6397 = vmatmul.mubr.bf16.gmra.mrb[0].mxu0 %v6041
    %v6398 = vpop.f32.mrb[0].mxu0
    %v6399 = vadd.f32 %v6238, %v6398
    %v6400 = vpop.f32.mrb[0].mxu0
    %v6401 = vpop.f32.mrb[0].mxu0
    %v6402 = vadd.f32 %v6241, %v6401
    %v6403 = vpop.f32.mrb[0].mxu0
    %6404 = vmatprep.mubr.bf16.mxu0 %v6046
    %6405 = vmatmul.mubr.bf16.gmra.mrb[0].mxu0 %v6045
    %v6406 = vpop.f32.mrb[0].mxu0
    %v6407 = vadd.f32 %v6246, %v6406
    %v6408 = vpop.f32.mrb[0].mxu0
    %v6409 = vpop.f32.mrb[0].mxu0
    %v6410 = vadd.f32 %v6249, %v6409
    %v6411 = vpop.f32.mrb[0].mxu0
    %6412 = vmatprep.mubr.bf16.mxu0 %v6050
    %6413 = vmatmul.mubr.bf16.gmra.mrb[0].mxu0 %v6049
    %v6414 = vpop.f32.mrb[0].mxu0
    %v6415 = vadd.f32 %v6254, %v6414
    %v6416 = vpop.f32.mrb[0].mxu0
    %v6417 = vpop.f32.mrb[0].mxu0
    %v6418 = vadd.f32 %v6257, %v6417
    %v6419 = vpop.f32.mrb[0].mxu0
    %6420 = vmatprep.mubr.bf16.mxu0 %v6054
    %6421 = vmatmul.mubr.bf16.gmra.mrb[0].mxu0 %v6053
    %v6422 = vpop.f32.mrb[0].mxu0
    %v6423 = vadd.f32 %v6262, %v6422
    %v6424 = vpop.f32.mrb[0].mxu0
    %v6425 = vpop.f32.mrb[0].mxu0
    %v6426 = vadd.f32 %v6265, %v6425
    %v6427 = vpop.f32.mrb[0].mxu0
    %6428 = vmatprep.mubr.bf16.mxu0 %v6058
    %6429 = vmatmul.mubr.bf16.gmra.mrb[0].mxu0 %v6057
    %v6430 = vpop.f32.mrb[0].mxu0
    %v6431 = vadd.f32 %v6270, %v6430
    %v6432 = vpop.f32.mrb[0].mxu0
    %v6433 = vpop.f32.mrb[0].mxu0
    %v6434 = vadd.f32 %v6273, %v6433
    %v6435 = vpop.f32.mrb[0].mxu0
    %6436 = vmatprep.mubr.bf16.mxu0 %v6062
    %6437 = vmatmul.mubr.bf16.gmra.mrb[0].mxu0 %v6061
    %v6438 = vpop.f32.mrb[0].mxu0
    %v6439 = vadd.f32 %v6278, %v6438
    %v6440 = vpop.f32.mrb[0].mxu0
    %v6441 = vpop.f32.mrb[0].mxu0
    %v6442 = vadd.f32 %v6281, %v6441
    %v6443 = vpop.f32.mrb[0].mxu0
    %6444 = vmatprep.mubr.bf16.mxu0 %v6066
    %6445 = vmatmul.mubr.bf16.gmra.mrb[0].mxu0 %v6065
    %v6446 = vpop.f32.mrb[0].mxu0
    %v6447 = vadd.f32 %v6286, %v6446
    %v6448 = vpop.f32.mrb[0].mxu0
    %v6449 = vpop.f32.mrb[0].mxu0
    %v6450 = vadd.f32 %v6289, %v6449
    %v6451 = vpop.f32.mrb[0].mxu0
    %6452 = vmatprep.mubr.bf16.mxu0 %v6070
    %6453 = vmatmul.mubr.bf16.gmra.mrb[0].mxu0 %v6069
    %v6454 = vpop.f32.mrb[0].mxu0
    %v6455 = vadd.f32 %v6294, %v6454
    %v6456 = vpop.f32.mrb[0].mxu0
    %v6457 = vpop.f32.mrb[0].mxu0
    %v6458 = vadd.f32 %v6297, %v6457
    %v6459 = vpop.f32.mrb[0].mxu0
    %6460 = vmatprep.mubr.bf16.mxu0 %v6074
    %6461 = vmatmul.mubr.bf16.gmra.mrb[0].mxu0 %v6073
    %v6462 = vpop.f32.mrb[0].mxu0
    %v6463 = vadd.f32 %v6302, %v6462
    %v6464 = vpop.f32.mrb[0].mxu0
    %v6465 = vpop.f32.mrb[0].mxu0
    %v6466 = vadd.f32 %v6305, %v6465
    %v6467 = vpop.f32.mrb[0].mxu0
    %6468 = vmatprep.mubr.bf16.mxu0 %v6078
    %6469 = vmatmul.mubr.bf16.gmra.mrb[0].mxu0 %v6077
    %v6470 = vpop.f32.mrb[0].mxu0
    %v6471 = vadd.f32 %v6310, %v6470
    %v6472 = vpop.f32.mrb[0].mxu0
    %v6473 = vpop.f32.mrb[0].mxu0
    %v6474 = vadd.f32 %v6313, %v6473
    %v6475 = vpop.f32.mrb[0].mxu0
    %6476 = vmatprep.mubr.bf16.mxu0 %v6082
    %6477 = vmatmul.mubr.bf16.gmra.mrb[0].mxu0 %v6081
    %v6478 = vpop.f32.mrb[0].mxu0
    %v6479 = vadd.f32 %v6318, %v6478
    %v6480 = vpop.f32.mrb[0].mxu0
    %v6481 = vpop.f32.mrb[0].mxu0
    %v6482 = vadd.f32 %v6321, %v6481
    %v6483 = vpop.f32.mrb[0].mxu0
    %6484 = vmatprep.mubr.bf16.mxu0 %v6086
    %6485 = vmatmul.mubr.bf16.gmra.mrb[0].mxu0 %v6085
    %v6486 = vpop.f32.mrb[0].mxu0
    %v6487 = vadd.f32 %v6326, %v6486
    %v6488 = vpop.f32.mrb[0].mxu0
    %v6489 = vpop.f32.mrb[0].mxu0
    %v6490 = vadd.f32 %v6329, %v6489
    %v6491 = vpop.f32.mrb[0].mxu0
    %6492 = vmatprep.mubr.bf16.mxu0 %v6090
    %6493 = vmatmul.mubr.bf16.gmra.mrb[0].mxu0 %v6089
    %v6494 = vpop.f32.mrb[0].mxu0
    %v6495 = vadd.f32 %v6334, %v6494
    %v6496 = vpop.f32.mrb[0].mxu0
    %v6497 = vpop.f32.mrb[0].mxu0
    %v6498 = vadd.f32 %v6337, %v6497
    %v6499 = vpop.f32.mrb[0].mxu0
    %6500 = vmatprep.mubr.bf16.mxu0 %v6094
    %6501 = vmatmul.mubr.bf16.gmra.mrb[0].mxu0 %v6093
    %v6502 = vpop.f32.mrb[0].mxu0
    %v6503 = vadd.f32 %v6342, %v6502
    %v6504 = vpop.f32.mrb[0].mxu0
    %v6505 = vpop.f32.mrb[0].mxu0
    %v6506 = vadd.f32 %v6345, %v6505
    %v6507 = vpop.f32.mrb[0].mxu0
    %6508 = vmatprep.mubr.bf16.mxu0 %v6098
    %6509 = vmatmul.mubr.bf16.gmra.mrb[0].mxu0 %v6097
    %v6510 = vpop.f32.mrb[0].mxu0
    %v6511 = vadd.f32 %v6350, %v6510
    %v6512 = vpop.f32.mrb[0].mxu0
    %v6513 = vpop.f32.mrb[0].mxu0
    %v6514 = vadd.f32 %v6353, %v6513
    %v6515 = vpop.f32.mrb[0].mxu0
    %6516 = vdwg.mxu0
    %v6517 = vrcp.pop %v5879
    %v6518 = vrcp.pop %v5884
    %v6519 = vrcp.pop %v5889
    %v6520 = vrcp.pop %v5894
    %v6521 = vrcp.pop %v5899
    %v6522 = vrcp.pop %v5904
    %v6523 = vrcp.pop %v5909
    %v6524 = vrcp.pop %v5914
    %v6525 = vrcp.pop %v5919
    %v6526 = vrcp.pop %v5924
    %v6527 = vrcp.pop %v5929
    %v6528 = vrcp.pop %v5934
    %v6529 = vrcp.pop %v5939
    %v6530 = vrcp.pop %v5944
    %v6531 = vrcp.pop %v5949
    %v6532 = vrcp.pop %v5954
    %v6533 = vrcp.pop %v5959
    %v6534 = vrcp.pop %v5964
    %v6535 = vrcp.pop %v5969
    %v6536 = vrcp.pop %v5974
    %v6537 = vrcp.pop %v5979
    %v6538 = vrcp.pop %v5984
    %v6539 = vrcp.pop %v5989
    %v6540 = vrcp.pop %v5994
    %v6541 = vrcp.pop %v5999
    %v6542 = vrcp.pop %v6004
    %v6543 = vrcp.pop %v6009
    %v6544 = vrcp.pop %v6014
    %v6545 = vrcp.pop %v6019
    %v6546 = vrcp.pop %v6024
    %v6547 = vrcp.pop %v6029
    %v6548 = vrcp.pop %v6034
    %v6549 = vmul.f32 %v6391, %v6517
    %v6550 = vmul.f32 %v6394, %v6518
    %v6551 = vmul.f32 %v6399, %v6519
    %v6552 = vmul.f32 %v6402, %v6520
    %v6553 = vmul.f32 %v6407, %v6521
    %v6554 = vmul.f32 %v6410, %v6522
    %v6555 = vmul.f32 %v6415, %v6523
    %v6556 = vmul.f32 %v6418, %v6524
    %v6557 = vmul.f32 %v6423, %v6525
    %v6558 = vmul.f32 %v6426, %v6526
    %v6559 = vmul.f32 %v6431, %v6527
    %v6560 = vmul.f32 %v6434, %v6528
    %v6561 = vmul.f32 %v6439, %v6529
    %v6562 = vmul.f32 %v6442, %v6530
    %v6563 = vmul.f32 %v6447, %v6531
    %v6564 = vmul.f32 %v6450, %v6532
    %v6565 = vmul.f32 %v6455, %v6533
    %v6566 = vmul.f32 %v6458, %v6534
    %v6567 = vmul.f32 %v6463, %v6535
    %v6568 = vmul.f32 %v6466, %v6536
    %v6569 = vmul.f32 %v6471, %v6537
    %v6570 = vmul.f32 %v6474, %v6538
    %v6571 = vmul.f32 %v6479, %v6539
    %v6572 = vmul.f32 %v6482, %v6540
    %v6573 = vmul.f32 %v6487, %v6541
    %v6574 = vmul.f32 %v6490, %v6542
    %v6575 = vmul.f32 %v6495, %v6543
    %v6576 = vmul.f32 %v6498, %v6544
    %v6577 = vmul.f32 %v6503, %v6545
    %v6578 = vmul.f32 %v6506, %v6546
    %v6579 = vmul.f32 %v6511, %v6547
    %v6580 = vmul.f32 %v6514, %v6548
    %v6581 = vpack.c.bf16 %v1226, %v1226
    %v6582 = vpack.c.bf16 %v1258, %v1258
    %v6583 = vpack.c.bf16 %v1290, %v1290
    %v6584 = vpack.c.bf16 %v1322, %v1322
    %6585 = vrot.lane.b32.xlu0 %v1159, 104
    %v6586 = vpop.permute.xlu0 %6585
    %6587 = vrot.lane.b32.xlu0 %v1160, 104
    %v6588 = vpop.permute.xlu0 %6587
    %6589 = vrot.lane.b32.xlu0 %v1161, 104
    %v6590 = vpop.permute.xlu0 %6589
    %6591 = vrot.lane.b32.xlu0 %v1162, 104
    %v6592 = vpop.permute.xlu0 %6591
    %6593 = vrot.lane.b32.xlu0 %v1163, 104
    %v6594 = vpop.permute.xlu0 %6593
    %6595 = vrot.lane.b32.xlu0 %v1164, 104
    %v6596 = vpop.permute.xlu0 %6595
    %6597 = vrot.lane.b32.xlu0 %v1165, 104
    %v6598 = vpop.permute.xlu0 %6597
    %6599 = vrot.lane.b32.xlu0 %v1166, 104
    %v6600 = vpop.permute.xlu0 %6599
    %6601 = vrot.lane.b32.xlu0 %v1167, 104
    %v6602 = vpop.permute.xlu0 %6601
    %6603 = vrot.lane.b32.xlu0 %v1168, 104
    %v6604 = vpop.permute.xlu0 %6603
    %6605 = vrot.lane.b32.xlu0 %v1169, 104
    %v6606 = vpop.permute.xlu0 %6605
    %6607 = vrot.lane.b32.xlu0 %v1170, 104
    %v6608 = vpop.permute.xlu0 %6607
    %6609 = vrot.lane.b32.xlu0 %v1171, 104
    %v6610 = vpop.permute.xlu0 %6609
    %6611 = vrot.lane.b32.xlu0 %v1172, 104
    %v6612 = vpop.permute.xlu0 %6611
    %6613 = vrot.lane.b32.xlu0 %v1173, 104
    %v6614 = vpop.permute.xlu0 %6613
    %6615 = vrot.lane.b32.xlu0 %v1174, 104
    %v6616 = vpop.permute.xlu0 %6615
    %v6618 = vsel %vm1467, %v6586, 0
    %v6621 = vsel %vm1467, %v6588, 0
    %v6624 = vsel %vm1467, %v6590, 0
    %v6627 = vsel %vm1467, %v6592, 0
    %v6630 = vsel %vm1467, %v6594, 0
    %v6633 = vsel %vm1467, %v6596, 0
    %v6636 = vsel %vm1467, %v6598, 0
    %v6639 = vsel %vm1467, %v6600, 0
    %v6642 = vsel %vm1467, %v6602, 0
    %v6645 = vsel %vm1467, %v6604, 0
    %v6648 = vsel %vm1467, %v6606, 0
    %v6651 = vsel %vm1467, %v6608, 0
    %v6654 = vsel %vm1467, %v6610, 0
    %v6657 = vsel %vm1467, %v6612, 0
    %v6660 = vsel %vm1467, %v6614, 0
    %v6663 = vsel %vm1467, %v6616, 0
    %v6666 = vsel %vm1516, %v6581, 0
    %v6669 = vsel %vm1516, %v6582, 0
    %v6672 = vsel %vm1516, %v6583, 0
    %v6675 = vsel %vm1516, %v6584, 0
    %6677 = vmatprep.subr.bf16.mxu0 %v6669
    %6678 = vmatpush1.bf16.msra.mxu0 %v6666
    %6679 = vmatprep.subr.bf16.mxu0 0
    %6680 = vmatpush1.bf16.msra.mxu0 0
    %6681 = vmatprep.subr.bf16.mxu0 0
    %6682 = vmatpush1.bf16.msra.mxu0 0
    %6683 = vmatprep.subr.bf16.mxu0 0
    %6684 = vmatpush1.bf16.msra.mxu0 0
    %6685 = vmatprep.subr.bf16.mxu0 0
    %6686 = vmatpush1.bf16.msra.mxu0 0
    %6687 = vmatprep.subr.bf16.mxu0 0
    %6688 = vmatpush1.bf16.msra.mxu0 0
    %6689 = vmatprep.subr.bf16.mxu0 0
    %6690 = vmatpush1.bf16.msra.mxu0 0
    %6691 = vmatprep.subr.bf16.mxu0 0
    %6692 = vmatpush1.bf16.msra.mxu0 0
    %6693 = vmatprep.subr.bf16.mxu0 0
    %6694 = vmatpush1.bf16.msra.mxu0 0
    %6695 = vmatprep.subr.bf16.mxu0 0
    %6696 = vmatpush1.bf16.msra.mxu0 0
    %6697 = vmatprep.subr.bf16.mxu0 0
    %6698 = vmatpush1.bf16.msra.mxu0 0
    %6699 = vmatprep.subr.bf16.mxu0 0
    %6700 = vmatpush1.bf16.msra.mxu0 0
    %6701 = vmatprep.subr.bf16.mxu0 0
    %6702 = vmatpush1.bf16.msra.mxu0 0
    %6703 = vmatprep.subr.bf16.mxu0 0
    %6704 = vmatpush1.bf16.msra.mxu0 0
    %6705 = vmatprep.subr.bf16.mxu0 0
    %6706 = vmatpush1.bf16.msra.mxu0 0
    %6707 = vmatprep.subr.bf16.mxu0 0
    %6708 = vmatpush1.bf16.msra.mxu0 0
    %6709 = vmatprep.mubr.bf16.mxu0 0
    %6710 = vmatmul.mubr.bf16.gmra.mrb[0].mxu0 %v6618
    %v6711 = vpop.f32.mrb[0].mxu0
    %v6712 = vadd.f32 %v1335, %v6711
    %v6713 = vpop.f32.mrb[0].mxu0
    %v6714 = vadd.f32 %v1336, %v6713
    %v6715 = vpop.f32.mrb[0].mxu0
    %v6716 = vadd.f32 %v1339, %v6715
    %v6717 = vpop.f32.mrb[0].mxu0
    %v6718 = vadd.f32 %v1340, %v6717
    %6719 = vmatprep.mubr.bf16.mxu0 0
    %6720 = vmatmul.mubr.bf16.gmra.mrb[0].mxu0 %v6621
    %v6721 = vpop.f32.mrb[0].mxu0
    %v6722 = vadd.f32 %v1343, %v6721
    %v6723 = vpop.f32.mrb[0].mxu0
    %v6724 = vadd.f32 %v1344, %v6723
    %v6725 = vpop.f32.mrb[0].mxu0
    %v6726 = vadd.f32 %v1347, %v6725
    %v6727 = vpop.f32.mrb[0].mxu0
    %v6728 = vadd.f32 %v1348, %v6727
    %6729 = vmatprep.mubr.bf16.mxu0 0
    %6730 = vmatmul.mubr.bf16.gmra.mrb[0].mxu0 %v6624
    %v6731 = vpop.f32.mrb[0].mxu0
    %v6732 = vadd.f32 %v1351, %v6731
    %v6733 = vpop.f32.mrb[0].mxu0
    %v6734 = vadd.f32 %v1352, %v6733
    %v6735 = vpop.f32.mrb[0].mxu0
    %v6736 = vadd.f32 %v1355, %v6735
    %v6737 = vpop.f32.mrb[0].mxu0
    %v6738 = vadd.f32 %v1356, %v6737
    %6739 = vmatprep.mubr.bf16.mxu0 0
    %6740 = vmatmul.mubr.bf16.gmra.mrb[0].mxu0 %v6627
    %v6741 = vpop.f32.mrb[0].mxu0
    %v6742 = vadd.f32 %v1359, %v6741
    %v6743 = vpop.f32.mrb[0].mxu0
    %v6744 = vadd.f32 %v1360, %v6743
    %v6745 = vpop.f32.mrb[0].mxu0
    %v6746 = vadd.f32 %v1363, %v6745
    %v6747 = vpop.f32.mrb[0].mxu0
    %v6748 = vadd.f32 %v1364, %v6747
    %6749 = vmatprep.mubr.bf16.mxu0 0
    %6750 = vmatmul.mubr.bf16.gmra.mrb[0].mxu0 %v6630
    %v6751 = vpop.f32.mrb[0].mxu0
    %v6752 = vadd.f32 %v1367, %v6751
    %v6753 = vpop.f32.mrb[0].mxu0
    %v6754 = vadd.f32 %v1368, %v6753
    %v6755 = vpop.f32.mrb[0].mxu0
    %v6756 = vadd.f32 %v1371, %v6755
    %v6757 = vpop.f32.mrb[0].mxu0
    %v6758 = vadd.f32 %v1372, %v6757
    %6759 = vmatprep.mubr.bf16.mxu0 0
    %6760 = vmatmul.mubr.bf16.gmra.mrb[0].mxu0 %v6633
    %v6761 = vpop.f32.mrb[0].mxu0
    %v6762 = vadd.f32 %v1375, %v6761
    %v6763 = vpop.f32.mrb[0].mxu0
    %v6764 = vadd.f32 %v1376, %v6763
    %v6765 = vpop.f32.mrb[0].mxu0
    %v6766 = vadd.f32 %v1379, %v6765
    %v6767 = vpop.f32.mrb[0].mxu0
    %v6768 = vadd.f32 %v1380, %v6767
    %6769 = vmatprep.mubr.bf16.mxu0 0
    %6770 = vmatmul.mubr.bf16.gmra.mrb[0].mxu0 %v6636
    %v6771 = vpop.f32.mrb[0].mxu0
    %v6772 = vadd.f32 %v1383, %v6771
    %v6773 = vpop.f32.mrb[0].mxu0
    %v6774 = vadd.f32 %v1384, %v6773
    %v6775 = vpop.f32.mrb[0].mxu0
    %v6776 = vadd.f32 %v1387, %v6775
    %v6777 = vpop.f32.mrb[0].mxu0
    %v6778 = vadd.f32 %v1388, %v6777
    %6779 = vmatprep.mubr.bf16.mxu0 0
    %6780 = vmatmul.mubr.bf16.gmra.mrb[0].mxu0 %v6639
    %v6781 = vpop.f32.mrb[0].mxu0
    %v6782 = vadd.f32 %v1391, %v6781
    %v6783 = vpop.f32.mrb[0].mxu0
    %v6784 = vadd.f32 %v1392, %v6783
    %v6785 = vpop.f32.mrb[0].mxu0
    %v6786 = vadd.f32 %v1395, %v6785
    %v6787 = vpop.f32.mrb[0].mxu0
    %v6788 = vadd.f32 %v1396, %v6787
    %6789 = vmatprep.mubr.bf16.mxu0 0
    %6790 = vmatmul.mubr.bf16.gmra.mrb[0].mxu0 %v6642
    %v6791 = vpop.f32.mrb[0].mxu0
    %v6792 = vadd.f32 %v1399, %v6791
    %v6793 = vpop.f32.mrb[0].mxu0
    %v6794 = vadd.f32 %v1400, %v6793
    %v6795 = vpop.f32.mrb[0].mxu0
    %v6796 = vadd.f32 %v1403, %v6795
    %v6797 = vpop.f32.mrb[0].mxu0
    %v6798 = vadd.f32 %v1404, %v6797
    %6799 = vmatprep.mubr.bf16.mxu0 0
    %6800 = vmatmul.mubr.bf16.gmra.mrb[0].mxu0 %v6645
    %v6801 = vpop.f32.mrb[0].mxu0
    %v6802 = vadd.f32 %v1407, %v6801
    %v6803 = vpop.f32.mrb[0].mxu0
    %v6804 = vadd.f32 %v1408, %v6803
    %v6805 = vpop.f32.mrb[0].mxu0
    %v6806 = vadd.f32 %v1411, %v6805
    %v6807 = vpop.f32.mrb[0].mxu0
    %v6808 = vadd.f32 %v1412, %v6807
    %6809 = vmatprep.mubr.bf16.mxu0 0
    %6810 = vmatmul.mubr.bf16.gmra.mrb[0].mxu0 %v6648
    %v6811 = vpop.f32.mrb[0].mxu0
    %v6812 = vadd.f32 %v1415, %v6811
    %v6813 = vpop.f32.mrb[0].mxu0
    %v6814 = vadd.f32 %v1416, %v6813
    %v6815 = vpop.f32.mrb[0].mxu0
    %v6816 = vadd.f32 %v1419, %v6815
    %v6817 = vpop.f32.mrb[0].mxu0
    %v6818 = vadd.f32 %v1420, %v6817
    %6819 = vmatprep.mubr.bf16.mxu0 0
    %6820 = vmatmul.mubr.bf16.gmra.mrb[0].mxu0 %v6651
    %v6821 = vpop.f32.mrb[0].mxu0
    %v6822 = vadd.f32 %v1423, %v6821
    %v6823 = vpop.f32.mrb[0].mxu0
    %v6824 = vadd.f32 %v1424, %v6823
    %v6825 = vpop.f32.mrb[0].mxu0
    %v6826 = vadd.f32 %v1427, %v6825
    %v6827 = vpop.f32.mrb[0].mxu0
    %v6828 = vadd.f32 %v1428, %v6827
    %6829 = vmatprep.mubr.bf16.mxu0 0
    %6830 = vmatmul.mubr.bf16.gmra.mrb[0].mxu0 %v6654
    %v6831 = vpop.f32.mrb[0].mxu0
    %v6832 = vadd.f32 %v1431, %v6831
    %v6833 = vpop.f32.mrb[0].mxu0
    %v6834 = vadd.f32 %v1432, %v6833
    %v6835 = vpop.f32.mrb[0].mxu0
    %v6836 = vadd.f32 %v1435, %v6835
    %v6837 = vpop.f32.mrb[0].mxu0
    %v6838 = vadd.f32 %v1436, %v6837
    %6839 = vmatprep.mubr.bf16.mxu0 0
    %6840 = vmatmul.mubr.bf16.gmra.mrb[0].mxu0 %v6657
    %v6841 = vpop.f32.mrb[0].mxu0
    %v6842 = vadd.f32 %v1439, %v6841
    %v6843 = vpop.f32.mrb[0].mxu0
    %v6844 = vadd.f32 %v1440, %v6843
    %v6845 = vpop.f32.mrb[0].mxu0
    %v6846 = vadd.f32 %v1443, %v6845
    %v6847 = vpop.f32.mrb[0].mxu0
    %v6848 = vadd.f32 %v1444, %v6847
    %6849 = vmatprep.mubr.bf16.mxu0 0
    %6850 = vmatmul.mubr.bf16.gmra.mrb[0].mxu0 %v6660
    %v6851 = vpop.f32.mrb[0].mxu0
    %v6852 = vadd.f32 %v1447, %v6851
    %v6853 = vpop.f32.mrb[0].mxu0
    %v6854 = vadd.f32 %v1448, %v6853
    %v6855 = vpop.f32.mrb[0].mxu0
    %v6856 = vadd.f32 %v1451, %v6855
    %v6857 = vpop.f32.mrb[0].mxu0
    %v6858 = vadd.f32 %v1452, %v6857
    %6859 = vmatprep.mubr.bf16.mxu0 0
    %6860 = vmatmul.mubr.bf16.gmra.mrb[0].mxu0 %v6663
    %v6861 = vpop.f32.mrb[0].mxu0
    %v6862 = vadd.f32 %v1455, %v6861
    %v6863 = vpop.f32.mrb[0].mxu0
    %v6864 = vadd.f32 %v1456, %v6863
    %v6865 = vpop.f32.mrb[0].mxu0
    %v6866 = vadd.f32 %v1459, %v6865
    %v6867 = vpop.f32.mrb[0].mxu0
    %v6868 = vadd.f32 %v1460, %v6867
    %6869 = vdwg.mxu0
    %6870 = vmatprep.subr.bf16.mxu0 %v6675
    %6871 = vmatpush1.bf16.msra.mxu0 %v6672
    %6872 = vmatprep.subr.bf16.mxu0 0
    %6873 = vmatpush1.bf16.msra.mxu0 0
    %6874 = vmatprep.subr.bf16.mxu0 0
    %6875 = vmatpush1.bf16.msra.mxu0 0
    %6876 = vmatprep.subr.bf16.mxu0 0
    %6877 = vmatpush1.bf16.msra.mxu0 0
    %6878 = vmatprep.subr.bf16.mxu0 0
    %6879 = vmatpush1.bf16.msra.mxu0 0
    %6880 = vmatprep.subr.bf16.mxu0 0
    %6881 = vmatpush1.bf16.msra.mxu0 0
    %6882 = vmatprep.subr.bf16.mxu0 0
    %6883 = vmatpush1.bf16.msra.mxu0 0
    %6884 = vmatprep.subr.bf16.mxu0 0
    %6885 = vmatpush1.bf16.msra.mxu0 0
    %6886 = vmatprep.subr.bf16.mxu0 0
    %6887 = vmatpush1.bf16.msra.mxu0 0
    %6888 = vmatprep.subr.bf16.mxu0 0
    %6889 = vmatpush1.bf16.msra.mxu0 0
    %6890 = vmatprep.subr.bf16.mxu0 0
    %6891 = vmatpush1.bf16.msra.mxu0 0
    %6892 = vmatprep.subr.bf16.mxu0 0
    %6893 = vmatpush1.bf16.msra.mxu0 0
    %6894 = vmatprep.subr.bf16.mxu0 0
    %6895 = vmatpush1.bf16.msra.mxu0 0
    %6896 = vmatprep.subr.bf16.mxu0 0
    %6897 = vmatpush1.bf16.msra.mxu0 0
    %6898 = vmatprep.subr.bf16.mxu0 0
    %6899 = vmatpush1.bf16.msra.mxu0 0
    %6900 = vmatprep.subr.bf16.mxu0 0
    %6901 = vmatpush1.bf16.msra.mxu0 0
    %6902 = vmatprep.mubr.bf16.mxu0 0
    %6903 = vmatmul.mubr.bf16.gmra.mrb[0].mxu0 %v6618
    %v6904 = vpop.f32.mrb[0].mxu0
    %v6905 = vadd.f32 %v1337, %v6904
    %v6906 = vpop.f32.mrb[0].mxu0
    %v6907 = vadd.f32 %v1338, %v6906
    %v6908 = vpop.f32.mrb[0].mxu0
    %v6909 = vadd.f32 %v1341, %v6908
    %v6910 = vpop.f32.mrb[0].mxu0
    %v6911 = vadd.f32 %v1342, %v6910
    %6912 = vmatprep.mubr.bf16.mxu0 0
    %6913 = vmatmul.mubr.bf16.gmra.mrb[0].mxu0 %v6621
    %v6914 = vpop.f32.mrb[0].mxu0
    %v6915 = vadd.f32 %v1345, %v6914
    %v6916 = vpop.f32.mrb[0].mxu0
    %v6917 = vadd.f32 %v1346, %v6916
    %v6918 = vpop.f32.mrb[0].mxu0
    %v6919 = vadd.f32 %v1349, %v6918
    %v6920 = vpop.f32.mrb[0].mxu0
    %v6921 = vadd.f32 %v1350, %v6920
    %6922 = vmatprep.mubr.bf16.mxu0 0
    %6923 = vmatmul.mubr.bf16.gmra.mrb[0].mxu0 %v6624
    %v6924 = vpop.f32.mrb[0].mxu0
    %v6925 = vadd.f32 %v1353, %v6924
    %v6926 = vpop.f32.mrb[0].mxu0
    %v6927 = vadd.f32 %v1354, %v6926
    %v6928 = vpop.f32.mrb[0].mxu0
    %v6929 = vadd.f32 %v1357, %v6928
    %v6930 = vpop.f32.mrb[0].mxu0
    %v6931 = vadd.f32 %v1358, %v6930
    %6932 = vmatprep.mubr.bf16.mxu0 0
    %6933 = vmatmul.mubr.bf16.gmra.mrb[0].mxu0 %v6627
    %v6934 = vpop.f32.mrb[0].mxu0
    %v6935 = vadd.f32 %v1361, %v6934
    %v6936 = vpop.f32.mrb[0].mxu0
    %v6937 = vadd.f32 %v1362, %v6936
    %v6938 = vpop.f32.mrb[0].mxu0
    %v6939 = vadd.f32 %v1365, %v6938
    %v6940 = vpop.f32.mrb[0].mxu0
    %v6941 = vadd.f32 %v1366, %v6940
    %6942 = vmatprep.mubr.bf16.mxu0 0
    %6943 = vmatmul.mubr.bf16.gmra.mrb[0].mxu0 %v6630
    %v6944 = vpop.f32.mrb[0].mxu0
    %v6945 = vadd.f32 %v1369, %v6944
    %v6946 = vpop.f32.mrb[0].mxu0
    %v6947 = vadd.f32 %v1370, %v6946
    %v6948 = vpop.f32.mrb[0].mxu0
    %v6949 = vadd.f32 %v1373, %v6948
    %v6950 = vpop.f32.mrb[0].mxu0
    %v6951 = vadd.f32 %v1374, %v6950
    %6952 = vmatprep.mubr.bf16.mxu0 0
    %6953 = vmatmul.mubr.bf16.gmra.mrb[0].mxu0 %v6633
    %v6954 = vpop.f32.mrb[0].mxu0
    %v6955 = vadd.f32 %v1377, %v6954
    %v6956 = vpop.f32.mrb[0].mxu0
    %v6957 = vadd.f32 %v1378, %v6956
    %v6958 = vpop.f32.mrb[0].mxu0
    %v6959 = vadd.f32 %v1381, %v6958
    %v6960 = vpop.f32.mrb[0].mxu0
    %v6961 = vadd.f32 %v1382, %v6960
    %6962 = vmatprep.mubr.bf16.mxu0 0
    %6963 = vmatmul.mubr.bf16.gmra.mrb[0].mxu0 %v6636
    %v6964 = vpop.f32.mrb[0].mxu0
    %v6965 = vadd.f32 %v1385, %v6964
    %v6966 = vpop.f32.mrb[0].mxu0
    %v6967 = vadd.f32 %v1386, %v6966
    %v6968 = vpop.f32.mrb[0].mxu0
    %v6969 = vadd.f32 %v1389, %v6968
    %v6970 = vpop.f32.mrb[0].mxu0
    %v6971 = vadd.f32 %v1390, %v6970
    %6972 = vmatprep.mubr.bf16.mxu0 0
    %6973 = vmatmul.mubr.bf16.gmra.mrb[0].mxu0 %v6639
    %v6974 = vpop.f32.mrb[0].mxu0
    %v6975 = vadd.f32 %v1393, %v6974
    %v6976 = vpop.f32.mrb[0].mxu0
    %v6977 = vadd.f32 %v1394, %v6976
    %v6978 = vpop.f32.mrb[0].mxu0
    %v6979 = vadd.f32 %v1397, %v6978
    %v6980 = vpop.f32.mrb[0].mxu0
    %v6981 = vadd.f32 %v1398, %v6980
    %6982 = vmatprep.mubr.bf16.mxu0 0
    %6983 = vmatmul.mubr.bf16.gmra.mrb[0].mxu0 %v6642
    %v6984 = vpop.f32.mrb[0].mxu0
    %v6985 = vadd.f32 %v1401, %v6984
    %v6986 = vpop.f32.mrb[0].mxu0
    %v6987 = vadd.f32 %v1402, %v6986
    %v6988 = vpop.f32.mrb[0].mxu0
    %v6989 = vadd.f32 %v1405, %v6988
    %v6990 = vpop.f32.mrb[0].mxu0
    %v6991 = vadd.f32 %v1406, %v6990
    %6992 = vmatprep.mubr.bf16.mxu0 0
    %6993 = vmatmul.mubr.bf16.gmra.mrb[0].mxu0 %v6645
    %v6994 = vpop.f32.mrb[0].mxu0
    %v6995 = vadd.f32 %v1409, %v6994
    %v6996 = vpop.f32.mrb[0].mxu0
    %v6997 = vadd.f32 %v1410, %v6996
    %v6998 = vpop.f32.mrb[0].mxu0
    %v6999 = vadd.f32 %v1413, %v6998
    %v7000 = vpop.f32.mrb[0].mxu0
    %v7001 = vadd.f32 %v1414, %v7000
    %7002 = vmatprep.mubr.bf16.mxu0 0
    %7003 = vmatmul.mubr.bf16.gmra.mrb[0].mxu0 %v6648
    %v7004 = vpop.f32.mrb[0].mxu0
    %v7005 = vadd.f32 %v1417, %v7004
    %v7006 = vpop.f32.mrb[0].mxu0
    %v7007 = vadd.f32 %v1418, %v7006
    %v7008 = vpop.f32.mrb[0].mxu0
    %v7009 = vadd.f32 %v1421, %v7008
    %v7010 = vpop.f32.mrb[0].mxu0
    %v7011 = vadd.f32 %v1422, %v7010
    %7012 = vmatprep.mubr.bf16.mxu0 0
    %7013 = vmatmul.mubr.bf16.gmra.mrb[0].mxu0 %v6651
    %v7014 = vpop.f32.mrb[0].mxu0
    %v7015 = vadd.f32 %v1425, %v7014
    %v7016 = vpop.f32.mrb[0].mxu0
    %v7017 = vadd.f32 %v1426, %v7016
    %v7018 = vpop.f32.mrb[0].mxu0
    %v7019 = vadd.f32 %v1429, %v7018
    %v7020 = vpop.f32.mrb[0].mxu0
    %v7021 = vadd.f32 %v1430, %v7020
    %7022 = vmatprep.mubr.bf16.mxu0 0
    %7023 = vmatmul.mubr.bf16.gmra.mrb[0].mxu0 %v6654
    %v7024 = vpop.f32.mrb[0].mxu0
    %v7025 = vadd.f32 %v1433, %v7024
    %v7026 = vpop.f32.mrb[0].mxu0
    %v7027 = vadd.f32 %v1434, %v7026
    %v7028 = vpop.f32.mrb[0].mxu0
    %v7029 = vadd.f32 %v1437, %v7028
    %v7030 = vpop.f32.mrb[0].mxu0
    %v7031 = vadd.f32 %v1438, %v7030
    %7032 = vmatprep.mubr.bf16.mxu0 0
    %7033 = vmatmul.mubr.bf16.gmra.mrb[0].mxu0 %v6657
    %v7034 = vpop.f32.mrb[0].mxu0
    %v7035 = vadd.f32 %v1441, %v7034
    %v7036 = vpop.f32.mrb[0].mxu0
    %v7037 = vadd.f32 %v1442, %v7036
    %v7038 = vpop.f32.mrb[0].mxu0
    %v7039 = vadd.f32 %v1445, %v7038
    %v7040 = vpop.f32.mrb[0].mxu0
    %v7041 = vadd.f32 %v1446, %v7040
    %7042 = vmatprep.mubr.bf16.mxu0 0
    %7043 = vmatmul.mubr.bf16.gmra.mrb[0].mxu0 %v6660
    %v7044 = vpop.f32.mrb[0].mxu0
    %v7045 = vadd.f32 %v1449, %v7044
    %v7046 = vpop.f32.mrb[0].mxu0
    %v7047 = vadd.f32 %v1450, %v7046
    %v7048 = vpop.f32.mrb[0].mxu0
    %v7049 = vadd.f32 %v1453, %v7048
    %v7050 = vpop.f32.mrb[0].mxu0
    %v7051 = vadd.f32 %v1454, %v7050
    %7052 = vmatprep.mubr.bf16.mxu0 0
    %7053 = vmatmul.mubr.bf16.gmra.mrb[0].mxu0 %v6663
    %v7054 = vpop.f32.mrb[0].mxu0
    %v7055 = vadd.f32 %v1457, %v7054
    %v7056 = vpop.f32.mrb[0].mxu0
    %v7057 = vadd.f32 %v1458, %v7056
    %v7058 = vpop.f32.mrb[0].mxu0
    %v7059 = vadd.f32 %v1461, %v7058
    %v7060 = vpop.f32.mrb[0].mxu0
    %v7061 = vadd.f32 %v1462, %v7060
    %7062 = vdwg.mxu0
    %v7063 = vmax.f32 %v6712, %v6714
    %v7064 = vmax.f32 %v7063, %v6905
    %v7065 = vmax.f32 %v7064, %v6907
    %7066 = vmax.xlane.f32.xlu0 %v7065
    %v7067 = vpop.xlane.xlu0 %7066
    %v7068 = vmax.f32 %v6716, %v6718
    %v7069 = vmax.f32 %v7068, %v6909
    %v7070 = vmax.f32 %v7069, %v6911
    %7071 = vmax.xlane.f32.xlu0 %v7070
    %v7072 = vpop.xlane.xlu0 %7071
    %v7073 = vmax.f32 %v6722, %v6724
    %v7074 = vmax.f32 %v7073, %v6915
    %v7075 = vmax.f32 %v7074, %v6917
    %7076 = vmax.xlane.f32.xlu0 %v7075
    %v7077 = vpop.xlane.xlu0 %7076
    %v7078 = vmax.f32 %v6726, %v6728
    %v7079 = vmax.f32 %v7078, %v6919
    %v7080 = vmax.f32 %v7079, %v6921
    %7081 = vmax.xlane.f32.xlu0 %v7080
    %v7082 = vpop.xlane.xlu0 %7081
    %v7083 = vmax.f32 %v6732, %v6734
    %v7084 = vmax.f32 %v7083, %v6925
    %v7085 = vmax.f32 %v7084, %v6927
    %7086 = vmax.xlane.f32.xlu0 %v7085
    %v7087 = vpop.xlane.xlu0 %7086
    %v7088 = vmax.f32 %v6736, %v6738
    %v7089 = vmax.f32 %v7088, %v6929
    %v7090 = vmax.f32 %v7089, %v6931
    %7091 = vmax.xlane.f32.xlu0 %v7090
    %v7092 = vpop.xlane.xlu0 %7091
    %v7093 = vmax.f32 %v6742, %v6744
    %v7094 = vmax.f32 %v7093, %v6935
    %v7095 = vmax.f32 %v7094, %v6937
    %7096 = vmax.xlane.f32.xlu0 %v7095
    %v7097 = vpop.xlane.xlu0 %7096
    %v7098 = vmax.f32 %v6746, %v6748
    %v7099 = vmax.f32 %v7098, %v6939
    %v7100 = vmax.f32 %v7099, %v6941
    %7101 = vmax.xlane.f32.xlu0 %v7100
    %v7102 = vpop.xlane.xlu0 %7101
    %v7103 = vmax.f32 %v6752, %v6754
    %v7104 = vmax.f32 %v7103, %v6945
    %v7105 = vmax.f32 %v7104, %v6947
    %7106 = vmax.xlane.f32.xlu0 %v7105
    %v7107 = vpop.xlane.xlu0 %7106
    %v7108 = vmax.f32 %v6756, %v6758
    %v7109 = vmax.f32 %v7108, %v6949
    %v7110 = vmax.f32 %v7109, %v6951
    %7111 = vmax.xlane.f32.xlu0 %v7110
    %v7112 = vpop.xlane.xlu0 %7111
    %v7113 = vmax.f32 %v6762, %v6764
    %v7114 = vmax.f32 %v7113, %v6955
    %v7115 = vmax.f32 %v7114, %v6957
    %7116 = vmax.xlane.f32.xlu0 %v7115
    %v7117 = vpop.xlane.xlu0 %7116
    %v7118 = vmax.f32 %v6766, %v6768
    %v7119 = vmax.f32 %v7118, %v6959
    %v7120 = vmax.f32 %v7119, %v6961
    %7121 = vmax.xlane.f32.xlu0 %v7120
    %v7122 = vpop.xlane.xlu0 %7121
    %v7123 = vmax.f32 %v6772, %v6774
    %v7124 = vmax.f32 %v7123, %v6965
    %v7125 = vmax.f32 %v7124, %v6967
    %7126 = vmax.xlane.f32.xlu0 %v7125
    %v7127 = vpop.xlane.xlu0 %7126
    %v7128 = vmax.f32 %v6776, %v6778
    %v7129 = vmax.f32 %v7128, %v6969
    %v7130 = vmax.f32 %v7129, %v6971
    %7131 = vmax.xlane.f32.xlu0 %v7130
    %v7132 = vpop.xlane.xlu0 %7131
    %v7133 = vmax.f32 %v6782, %v6784
    %v7134 = vmax.f32 %v7133, %v6975
    %v7135 = vmax.f32 %v7134, %v6977
    %7136 = vmax.xlane.f32.xlu0 %v7135
    %v7137 = vpop.xlane.xlu0 %7136
    %v7138 = vmax.f32 %v6786, %v6788
    %v7139 = vmax.f32 %v7138, %v6979
    %v7140 = vmax.f32 %v7139, %v6981
    %7141 = vmax.xlane.f32.xlu0 %v7140
    %v7142 = vpop.xlane.xlu0 %7141
    %v7143 = vmax.f32 %v6792, %v6794
    %v7144 = vmax.f32 %v7143, %v6985
    %v7145 = vmax.f32 %v7144, %v6987
    %7146 = vmax.xlane.f32.xlu0 %v7145
    %v7147 = vpop.xlane.xlu0 %7146
    %v7148 = vmax.f32 %v6796, %v6798
    %v7149 = vmax.f32 %v7148, %v6989
    %v7150 = vmax.f32 %v7149, %v6991
    %7151 = vmax.xlane.f32.xlu0 %v7150
    %v7152 = vpop.xlane.xlu0 %7151
    %v7153 = vmax.f32 %v6802, %v6804
    %v7154 = vmax.f32 %v7153, %v6995
    %v7155 = vmax.f32 %v7154, %v6997
    %7156 = vmax.xlane.f32.xlu0 %v7155
    %v7157 = vpop.xlane.xlu0 %7156
    %v7158 = vmax.f32 %v6806, %v6808
    %v7159 = vmax.f32 %v7158, %v6999
    %v7160 = vmax.f32 %v7159, %v7001
    %7161 = vmax.xlane.f32.xlu0 %v7160
    %v7162 = vpop.xlane.xlu0 %7161
    %v7163 = vmax.f32 %v6812, %v6814
    %v7164 = vmax.f32 %v7163, %v7005
    %v7165 = vmax.f32 %v7164, %v7007
    %7166 = vmax.xlane.f32.xlu0 %v7165
    %v7167 = vpop.xlane.xlu0 %7166
    %v7168 = vmax.f32 %v6816, %v6818
    %v7169 = vmax.f32 %v7168, %v7009
    %v7170 = vmax.f32 %v7169, %v7011
    %7171 = vmax.xlane.f32.xlu0 %v7170
    %v7172 = vpop.xlane.xlu0 %7171
    %v7173 = vmax.f32 %v6822, %v6824
    %v7174 = vmax.f32 %v7173, %v7015
    %v7175 = vmax.f32 %v7174, %v7017
    %7176 = vmax.xlane.f32.xlu0 %v7175
    %v7177 = vpop.xlane.xlu0 %7176
    %v7178 = vmax.f32 %v6826, %v6828
    %v7179 = vmax.f32 %v7178, %v7019
    %v7180 = vmax.f32 %v7179, %v7021
    %7181 = vmax.xlane.f32.xlu0 %v7180
    %v7182 = vpop.xlane.xlu0 %7181
    %v7183 = vmax.f32 %v6832, %v6834
    %v7184 = vmax.f32 %v7183, %v7025
    %v7185 = vmax.f32 %v7184, %v7027
    %7186 = vmax.xlane.f32.xlu0 %v7185
    %v7187 = vpop.xlane.xlu0 %7186
    %v7188 = vmax.f32 %v6836, %v6838
    %v7189 = vmax.f32 %v7188, %v7029
    %v7190 = vmax.f32 %v7189, %v7031
    %7191 = vmax.xlane.f32.xlu0 %v7190
    %v7192 = vpop.xlane.xlu0 %7191
    %v7193 = vmax.f32 %v6842, %v6844
    %v7194 = vmax.f32 %v7193, %v7035
    %v7195 = vmax.f32 %v7194, %v7037
    %7196 = vmax.xlane.f32.xlu0 %v7195
    %v7197 = vpop.xlane.xlu0 %7196
    %v7198 = vmax.f32 %v6846, %v6848
    %v7199 = vmax.f32 %v7198, %v7039
    %v7200 = vmax.f32 %v7199, %v7041
    %7201 = vmax.xlane.f32.xlu0 %v7200
    %v7202 = vpop.xlane.xlu0 %7201
    %v7203 = vmax.f32 %v6852, %v6854
    %v7204 = vmax.f32 %v7203, %v7045
    %v7205 = vmax.f32 %v7204, %v7047
    %7206 = vmax.xlane.f32.xlu0 %v7205
    %v7207 = vpop.xlane.xlu0 %7206
    %v7208 = vmax.f32 %v6856, %v6858
    %v7209 = vmax.f32 %v7208, %v7049
    %v7210 = vmax.f32 %v7209, %v7051
    %7211 = vmax.xlane.f32.xlu0 %v7210
    %v7212 = vpop.xlane.xlu0 %7211
    %v7213 = vmax.f32 %v6862, %v6864
    %v7214 = vmax.f32 %v7213, %v7055
    %v7215 = vmax.f32 %v7214, %v7057
    %7216 = vmax.xlane.f32.xlu0 %v7215
    %v7217 = vpop.xlane.xlu0 %7216
    %v7218 = vmax.f32 %v6866, %v6868
    %v7219 = vmax.f32 %v7218, %v7059
    %v7220 = vmax.f32 %v7219, %v7061
    %7221 = vmax.xlane.f32.xlu0 %v7220
    %v7222 = vpop.xlane.xlu0 %7221
    %v7223 = vsub.f32 %v6712, %v7067
    %v7224 = vsub.f32 %v6714, %v7067
    %v7225 = vsub.f32 %v6905, %v7067
    %v7226 = vsub.f32 %v6907, %v7067
    %v7227 = vsub.f32 %v6716, %v7072
    %v7228 = vsub.f32 %v6718, %v7072
    %v7229 = vsub.f32 %v6909, %v7072
    %v7230 = vsub.f32 %v6911, %v7072
    %v7231 = vsub.f32 %v6722, %v7077
    %v7232 = vsub.f32 %v6724, %v7077
    %v7233 = vsub.f32 %v6915, %v7077
    %v7234 = vsub.f32 %v6917, %v7077
    %v7235 = vsub.f32 %v6726, %v7082
    %v7236 = vsub.f32 %v6728, %v7082
    %v7237 = vsub.f32 %v6919, %v7082
    %v7238 = vsub.f32 %v6921, %v7082
    %v7239 = vsub.f32 %v6732, %v7087
    %v7240 = vsub.f32 %v6734, %v7087
    %v7241 = vsub.f32 %v6925, %v7087
    %v7242 = vsub.f32 %v6927, %v7087
    %v7243 = vsub.f32 %v6736, %v7092
    %v7244 = vsub.f32 %v6738, %v7092
    %v7245 = vsub.f32 %v6929, %v7092
    %v7246 = vsub.f32 %v6931, %v7092
    %v7247 = vsub.f32 %v6742, %v7097
    %v7248 = vsub.f32 %v6744, %v7097
    %v7249 = vsub.f32 %v6935, %v7097
    %v7250 = vsub.f32 %v6937, %v7097
    %v7251 = vsub.f32 %v6746, %v7102
    %v7252 = vsub.f32 %v6748, %v7102
    %v7253 = vsub.f32 %v6939, %v7102
    %v7254 = vsub.f32 %v6941, %v7102
    %v7255 = vsub.f32 %v6752, %v7107
    %v7256 = vsub.f32 %v6754, %v7107
    %v7257 = vsub.f32 %v6945, %v7107
    %v7258 = vsub.f32 %v6947, %v7107
    %v7259 = vsub.f32 %v6756, %v7112
    %v7260 = vsub.f32 %v6758, %v7112
    %v7261 = vsub.f32 %v6949, %v7112
    %v7262 = vsub.f32 %v6951, %v7112
    %v7263 = vsub.f32 %v6762, %v7117
    %v7264 = vsub.f32 %v6764, %v7117
    %v7265 = vsub.f32 %v6955, %v7117
    %v7266 = vsub.f32 %v6957, %v7117
    %v7267 = vsub.f32 %v6766, %v7122
    %v7268 = vsub.f32 %v6768, %v7122
    %v7269 = vsub.f32 %v6959, %v7122
    %v7270 = vsub.f32 %v6961, %v7122
    %v7271 = vsub.f32 %v6772, %v7127
    %v7272 = vsub.f32 %v6774, %v7127
    %v7273 = vsub.f32 %v6965, %v7127
    %v7274 = vsub.f32 %v6967, %v7127
    %v7275 = vsub.f32 %v6776, %v7132
    %v7276 = vsub.f32 %v6778, %v7132
    %v7277 = vsub.f32 %v6969, %v7132
    %v7278 = vsub.f32 %v6971, %v7132
    %v7279 = vsub.f32 %v6782, %v7137
    %v7280 = vsub.f32 %v6784, %v7137
    %v7281 = vsub.f32 %v6975, %v7137
    %v7282 = vsub.f32 %v6977, %v7137
    %v7283 = vsub.f32 %v6786, %v7142
    %v7284 = vsub.f32 %v6788, %v7142
    %v7285 = vsub.f32 %v6979, %v7142
    %v7286 = vsub.f32 %v6981, %v7142
    %v7287 = vsub.f32 %v6792, %v7147
    %v7288 = vsub.f32 %v6794, %v7147
    %v7289 = vsub.f32 %v6985, %v7147
    %v7290 = vsub.f32 %v6987, %v7147
    %v7291 = vsub.f32 %v6796, %v7152
    %v7292 = vsub.f32 %v6798, %v7152
    %v7293 = vsub.f32 %v6989, %v7152
    %v7294 = vsub.f32 %v6991, %v7152
    %v7295 = vsub.f32 %v6802, %v7157
    %v7296 = vsub.f32 %v6804, %v7157
    %v7297 = vsub.f32 %v6995, %v7157
    %v7298 = vsub.f32 %v6997, %v7157
    %v7299 = vsub.f32 %v6806, %v7162
    %v7300 = vsub.f32 %v6808, %v7162
    %v7301 = vsub.f32 %v6999, %v7162
    %v7302 = vsub.f32 %v7001, %v7162
    %v7303 = vsub.f32 %v6812, %v7167
    %v7304 = vsub.f32 %v6814, %v7167
    %v7305 = vsub.f32 %v7005, %v7167
    %v7306 = vsub.f32 %v7007, %v7167
    %v7307 = vsub.f32 %v6816, %v7172
    %v7308 = vsub.f32 %v6818, %v7172
    %v7309 = vsub.f32 %v7009, %v7172
    %v7310 = vsub.f32 %v7011, %v7172
    %v7311 = vsub.f32 %v6822, %v7177
    %v7312 = vsub.f32 %v6824, %v7177
    %v7313 = vsub.f32 %v7015, %v7177
    %v7314 = vsub.f32 %v7017, %v7177
    %v7315 = vsub.f32 %v6826, %v7182
    %v7316 = vsub.f32 %v6828, %v7182
    %v7317 = vsub.f32 %v7019, %v7182
    %v7318 = vsub.f32 %v7021, %v7182
    %v7319 = vsub.f32 %v6832, %v7187
    %v7320 = vsub.f32 %v6834, %v7187
    %v7321 = vsub.f32 %v7025, %v7187
    %v7322 = vsub.f32 %v7027, %v7187
    %v7323 = vsub.f32 %v6836, %v7192
    %v7324 = vsub.f32 %v6838, %v7192
    %v7325 = vsub.f32 %v7029, %v7192
    %v7326 = vsub.f32 %v7031, %v7192
    %v7327 = vsub.f32 %v6842, %v7197
    %v7328 = vsub.f32 %v6844, %v7197
    %v7329 = vsub.f32 %v7035, %v7197
    %v7330 = vsub.f32 %v7037, %v7197
    %v7331 = vsub.f32 %v6846, %v7202
    %v7332 = vsub.f32 %v6848, %v7202
    %v7333 = vsub.f32 %v7039, %v7202
    %v7334 = vsub.f32 %v7041, %v7202
    %v7335 = vsub.f32 %v6852, %v7207
    %v7336 = vsub.f32 %v6854, %v7207
    %v7337 = vsub.f32 %v7045, %v7207
    %v7338 = vsub.f32 %v7047, %v7207
    %v7339 = vsub.f32 %v6856, %v7212
    %v7340 = vsub.f32 %v6858, %v7212
    %v7341 = vsub.f32 %v7049, %v7212
    %v7342 = vsub.f32 %v7051, %v7212
    %v7343 = vsub.f32 %v6862, %v7217
    %v7344 = vsub.f32 %v6864, %v7217
    %v7345 = vsub.f32 %v7055, %v7217
    %v7346 = vsub.f32 %v7057, %v7217
    %v7347 = vsub.f32 %v6866, %v7222
    %v7348 = vsub.f32 %v6868, %v7222
    %v7349 = vsub.f32 %v7059, %v7222
    %v7350 = vsub.f32 %v7061, %v7222
    %v7351 = vmul.f32 %v7223, 1.442695
    %v7352 = vpow.pop %v7351
    %v7353 = vmul.f32 %v7224, 1.442695
    %v7354 = vpow.pop %v7353
    %v7355 = vmul.f32 %v7225, 1.442695
    %v7356 = vpow.pop %v7355
    %v7357 = vmul.f32 %v7226, 1.442695
    %v7358 = vpow.pop %v7357
    %v7359 = vmul.f32 %v7227, 1.442695
    %v7360 = vpow.pop %v7359
    %v7361 = vmul.f32 %v7228, 1.442695
    %v7362 = vpow.pop %v7361
    %v7363 = vmul.f32 %v7229, 1.442695
    %v7364 = vpow.pop %v7363
    %v7365 = vmul.f32 %v7230, 1.442695
    %v7366 = vpow.pop %v7365
    %v7367 = vmul.f32 %v7231, 1.442695
    %v7368 = vpow.pop %v7367
    %v7369 = vmul.f32 %v7232, 1.442695
    %v7370 = vpow.pop %v7369
    %v7371 = vmul.f32 %v7233, 1.442695
    %v7372 = vpow.pop %v7371
    %v7373 = vmul.f32 %v7234, 1.442695
    %v7374 = vpow.pop %v7373
    %v7375 = vmul.f32 %v7235, 1.442695
    %v7376 = vpow.pop %v7375
    %v7377 = vmul.f32 %v7236, 1.442695
    %v7378 = vpow.pop %v7377
    %v7379 = vmul.f32 %v7237, 1.442695
    %v7380 = vpow.pop %v7379
    %v7381 = vmul.f32 %v7238, 1.442695
    %v7382 = vpow.pop %v7381
    %v7383 = vmul.f32 %v7239, 1.442695
    %v7384 = vpow.pop %v7383
    %v7385 = vmul.f32 %v7240, 1.442695
    %v7386 = vpow.pop %v7385
    %v7387 = vmul.f32 %v7241, 1.442695
    %v7388 = vpow.pop %v7387
    %v7389 = vmul.f32 %v7242, 1.442695
    %v7390 = vpow.pop %v7389
    %v7391 = vmul.f32 %v7243, 1.442695
    %v7392 = vpow.pop %v7391
    %v7393 = vmul.f32 %v7244, 1.442695
    %v7394 = vpow.pop %v7393
    %v7395 = vmul.f32 %v7245, 1.442695
    %v7396 = vpow.pop %v7395
    %v7397 = vmul.f32 %v7246, 1.442695
    %v7398 = vpow.pop %v7397
    %v7399 = vmul.f32 %v7247, 1.442695
    %v7400 = vpow.pop %v7399
    %v7401 = vmul.f32 %v7248, 1.442695
    %v7402 = vpow.pop %v7401
    %v7403 = vmul.f32 %v7249, 1.442695
    %v7404 = vpow.pop %v7403
    %v7405 = vmul.f32 %v7250, 1.442695
    %v7406 = vpow.pop %v7405
    %v7407 = vmul.f32 %v7251, 1.442695
    %v7408 = vpow.pop %v7407
    %v7409 = vmul.f32 %v7252, 1.442695
    %v7410 = vpow.pop %v7409
    %v7411 = vmul.f32 %v7253, 1.442695
    %v7412 = vpow.pop %v7411
    %v7413 = vmul.f32 %v7254, 1.442695
    %v7414 = vpow.pop %v7413
    %v7415 = vmul.f32 %v7255, 1.442695
    %v7416 = vpow.pop %v7415
    %v7417 = vmul.f32 %v7256, 1.442695
    %v7418 = vpow.pop %v7417
    %v7419 = vmul.f32 %v7257, 1.442695
    %v7420 = vpow.pop %v7419
    %v7421 = vmul.f32 %v7258, 1.442695
    %v7422 = vpow.pop %v7421
    %v7423 = vmul.f32 %v7259, 1.442695
    %v7424 = vpow.pop %v7423
    %v7425 = vmul.f32 %v7260, 1.442695
    %v7426 = vpow.pop %v7425
    %v7427 = vmul.f32 %v7261, 1.442695
    %v7428 = vpow.pop %v7427
    %v7429 = vmul.f32 %v7262, 1.442695
    %v7430 = vpow.pop %v7429
    %v7431 = vmul.f32 %v7263, 1.442695
    %v7432 = vpow.pop %v7431
    %v7433 = vmul.f32 %v7264, 1.442695
    %v7434 = vpow.pop %v7433
    %v7435 = vmul.f32 %v7265, 1.442695
    %v7436 = vpow.pop %v7435
    %v7437 = vmul.f32 %v7266, 1.442695
    %v7438 = vpow.pop %v7437
    %v7439 = vmul.f32 %v7267, 1.442695
    %v7440 = vpow.pop %v7439
    %v7441 = vmul.f32 %v7268, 1.442695
    %v7442 = vpow.pop %v7441
    %v7443 = vmul.f32 %v7269, 1.442695
    %v7444 = vpow.pop %v7443
    %v7445 = vmul.f32 %v7270, 1.442695
    %v7446 = vpow.pop %v7445
    %v7447 = vmul.f32 %v7271, 1.442695
    %v7448 = vpow.pop %v7447
    %v7449 = vmul.f32 %v7272, 1.442695
    %v7450 = vpow.pop %v7449
    %v7451 = vmul.f32 %v7273, 1.442695
    %v7452 = vpow.pop %v7451
    %v7453 = vmul.f32 %v7274, 1.442695
    %v7454 = vpow.pop %v7453
    %v7455 = vmul.f32 %v7275, 1.442695
    %v7456 = vpow.pop %v7455
    %v7457 = vmul.f32 %v7276, 1.442695
    %v7458 = vpow.pop %v7457
    %v7459 = vmul.f32 %v7277, 1.442695
    %v7460 = vpow.pop %v7459
    %v7461 = vmul.f32 %v7278, 1.442695
    %v7462 = vpow.pop %v7461
    %v7463 = vmul.f32 %v7279, 1.442695
    %v7464 = vpow.pop %v7463
    %v7465 = vmul.f32 %v7280, 1.442695
    %v7466 = vpow.pop %v7465
    %v7467 = vmul.f32 %v7281, 1.442695
    %v7468 = vpow.pop %v7467
    %v7469 = vmul.f32 %v7282, 1.442695
    %v7470 = vpow.pop %v7469
    %v7471 = vmul.f32 %v7283, 1.442695
    %v7472 = vpow.pop %v7471
    %v7473 = vmul.f32 %v7284, 1.442695
    %v7474 = vpow.pop %v7473
    %v7475 = vmul.f32 %v7285, 1.442695
    %v7476 = vpow.pop %v7475
    %v7477 = vmul.f32 %v7286, 1.442695
    %v7478 = vpow.pop %v7477
    %v7479 = vmul.f32 %v7287, 1.442695
    %v7480 = vpow.pop %v7479
    %v7481 = vmul.f32 %v7288, 1.442695
    %v7482 = vpow.pop %v7481
    %v7483 = vmul.f32 %v7289, 1.442695
    %v7484 = vpow.pop %v7483
    %v7485 = vmul.f32 %v7290, 1.442695
    %v7486 = vpow.pop %v7485
    %v7487 = vmul.f32 %v7291, 1.442695
    %v7488 = vpow.pop %v7487
    %v7489 = vmul.f32 %v7292, 1.442695
    %v7490 = vpow.pop %v7489
    %v7491 = vmul.f32 %v7293, 1.442695
    %v7492 = vpow.pop %v7491
    %v7493 = vmul.f32 %v7294, 1.442695
    %v7494 = vpow.pop %v7493
    %v7495 = vmul.f32 %v7295, 1.442695
    %v7496 = vpow.pop %v7495
    %v7497 = vmul.f32 %v7296, 1.442695
    %v7498 = vpow.pop %v7497
    %v7499 = vmul.f32 %v7297, 1.442695
    %v7500 = vpow.pop %v7499
    %v7501 = vmul.f32 %v7298, 1.442695
    %v7502 = vpow.pop %v7501
    %v7503 = vmul.f32 %v7299, 1.442695
    %v7504 = vpow.pop %v7503
    %v7505 = vmul.f32 %v7300, 1.442695
    %v7506 = vpow.pop %v7505
    %v7507 = vmul.f32 %v7301, 1.442695
    %v7508 = vpow.pop %v7507
    %v7509 = vmul.f32 %v7302, 1.442695
    %v7510 = vpow.pop %v7509
    %v7511 = vmul.f32 %v7303, 1.442695
    %v7512 = vpow.pop %v7511
    %v7513 = vmul.f32 %v7304, 1.442695
    %v7514 = vpow.pop %v7513
    %v7515 = vmul.f32 %v7305, 1.442695
    %v7516 = vpow.pop %v7515
    %v7517 = vmul.f32 %v7306, 1.442695
    %v7518 = vpow.pop %v7517
    %v7519 = vmul.f32 %v7307, 1.442695
    %v7520 = vpow.pop %v7519
    %v7521 = vmul.f32 %v7308, 1.442695
    %v7522 = vpow.pop %v7521
    %v7523 = vmul.f32 %v7309, 1.442695
    %v7524 = vpow.pop %v7523
    %v7525 = vmul.f32 %v7310, 1.442695
    %v7526 = vpow.pop %v7525
    %v7527 = vmul.f32 %v7311, 1.442695
    %v7528 = vpow.pop %v7527
    %v7529 = vmul.f32 %v7312, 1.442695
    %v7530 = vpow.pop %v7529
    %v7531 = vmul.f32 %v7313, 1.442695
    %v7532 = vpow.pop %v7531
    %v7533 = vmul.f32 %v7314, 1.442695
    %v7534 = vpow.pop %v7533
    %v7535 = vmul.f32 %v7315, 1.442695
    %v7536 = vpow.pop %v7535
    %v7537 = vmul.f32 %v7316, 1.442695
    %v7538 = vpow.pop %v7537
    %v7539 = vmul.f32 %v7317, 1.442695
    %v7540 = vpow.pop %v7539
    %v7541 = vmul.f32 %v7318, 1.442695
    %v7542 = vpow.pop %v7541
    %v7543 = vmul.f32 %v7319, 1.442695
    %v7544 = vpow.pop %v7543
    %v7545 = vmul.f32 %v7320, 1.442695
    %v7546 = vpow.pop %v7545
    %v7547 = vmul.f32 %v7321, 1.442695
    %v7548 = vpow.pop %v7547
    %v7549 = vmul.f32 %v7322, 1.442695
    %v7550 = vpow.pop %v7549
    %v7551 = vmul.f32 %v7323, 1.442695
    %v7552 = vpow.pop %v7551
    %v7553 = vmul.f32 %v7324, 1.442695
    %v7554 = vpow.pop %v7553
    %v7555 = vmul.f32 %v7325, 1.442695
    %v7556 = vpow.pop %v7555
    %v7557 = vmul.f32 %v7326, 1.442695
    %v7558 = vpow.pop %v7557
    %v7559 = vmul.f32 %v7327, 1.442695
    %v7560 = vpow.pop %v7559
    %v7561 = vmul.f32 %v7328, 1.442695
    %v7562 = vpow.pop %v7561
    %v7563 = vmul.f32 %v7329, 1.442695
    %v7564 = vpow.pop %v7563
    %v7565 = vmul.f32 %v7330, 1.442695
    %v7566 = vpow.pop %v7565
    %v7567 = vmul.f32 %v7331, 1.442695
    %v7568 = vpow.pop %v7567
    %v7569 = vmul.f32 %v7332, 1.442695
    %v7570 = vpow.pop %v7569
    %v7571 = vmul.f32 %v7333, 1.442695
    %v7572 = vpow.pop %v7571
    %v7573 = vmul.f32 %v7334, 1.442695
    %v7574 = vpow.pop %v7573
    %v7575 = vmul.f32 %v7335, 1.442695
    %v7576 = vpow.pop %v7575
    %v7577 = vmul.f32 %v7336, 1.442695
    %v7578 = vpow.pop %v7577
    %v7579 = vmul.f32 %v7337, 1.442695
    %v7580 = vpow.pop %v7579
    %v7581 = vmul.f32 %v7338, 1.442695
    %v7582 = vpow.pop %v7581
    %v7583 = vmul.f32 %v7339, 1.442695
    %v7584 = vpow.pop %v7583
    %v7585 = vmul.f32 %v7340, 1.442695
    %v7586 = vpow.pop %v7585
    %v7587 = vmul.f32 %v7341, 1.442695
    %v7588 = vpow.pop %v7587
    %v7589 = vmul.f32 %v7342, 1.442695
    %v7590 = vpow.pop %v7589
    %v7591 = vmul.f32 %v7343, 1.442695
    %v7592 = vpow.pop %v7591
    %v7593 = vmul.f32 %v7344, 1.442695
    %v7594 = vpow.pop %v7593
    %v7595 = vmul.f32 %v7345, 1.442695
    %v7596 = vpow.pop %v7595
    %v7597 = vmul.f32 %v7346, 1.442695
    %v7598 = vpow.pop %v7597
    %v7599 = vmul.f32 %v7347, 1.442695
    %v7600 = vpow.pop %v7599
    %v7601 = vmul.f32 %v7348, 1.442695
    %v7602 = vpow.pop %v7601
    %v7603 = vmul.f32 %v7349, 1.442695
    %v7604 = vpow.pop %v7603
    %v7605 = vmul.f32 %v7350, 1.442695
    %v7606 = vpow.pop %v7605
    %v7607 = vadd.f32 %v7352, %v7354
    %v7608 = vadd.f32 %v7607, %v7356
    %v7609 = vadd.f32 %v7608, %v7358
    %7610 = vadd.xlane.f32.xlu0 %v7609
    %v7611 = vpop.xlane.xlu0 %7610
    %v7612 = vadd.f32 %v7360, %v7362
    %v7613 = vadd.f32 %v7612, %v7364
    %v7614 = vadd.f32 %v7613, %v7366
    %7615 = vadd.xlane.f32.xlu0 %v7614
    %v7616 = vpop.xlane.xlu0 %7615
    %v7617 = vadd.f32 %v7368, %v7370
    %v7618 = vadd.f32 %v7617, %v7372
    %v7619 = vadd.f32 %v7618, %v7374
    %7620 = vadd.xlane.f32.xlu0 %v7619
    %v7621 = vpop.xlane.xlu0 %7620
    %v7622 = vadd.f32 %v7376, %v7378
    %v7623 = vadd.f32 %v7622, %v7380
    %v7624 = vadd.f32 %v7623, %v7382
    %7625 = vadd.xlane.f32.xlu0 %v7624
    %v7626 = vpop.xlane.xlu0 %7625
    %v7627 = vadd.f32 %v7384, %v7386
    %v7628 = vadd.f32 %v7627, %v7388
    %v7629 = vadd.f32 %v7628, %v7390
    %7630 = vadd.xlane.f32.xlu0 %v7629
    %v7631 = vpop.xlane.xlu0 %7630
    %v7632 = vadd.f32 %v7392, %v7394
    %v7633 = vadd.f32 %v7632, %v7396
    %v7634 = vadd.f32 %v7633, %v7398
    %7635 = vadd.xlane.f32.xlu0 %v7634
    %v7636 = vpop.xlane.xlu0 %7635
    %v7637 = vadd.f32 %v7400, %v7402
    %v7638 = vadd.f32 %v7637, %v7404
    %v7639 = vadd.f32 %v7638, %v7406
    %7640 = vadd.xlane.f32.xlu0 %v7639
    %v7641 = vpop.xlane.xlu0 %7640
    %v7642 = vadd.f32 %v7408, %v7410
    %v7643 = vadd.f32 %v7642, %v7412
    %v7644 = vadd.f32 %v7643, %v7414
    %7645 = vadd.xlane.f32.xlu0 %v7644
    %v7646 = vpop.xlane.xlu0 %7645
    %v7647 = vadd.f32 %v7416, %v7418
    %v7648 = vadd.f32 %v7647, %v7420
    %v7649 = vadd.f32 %v7648, %v7422
    %7650 = vadd.xlane.f32.xlu0 %v7649
    %v7651 = vpop.xlane.xlu0 %7650
    %v7652 = vadd.f32 %v7424, %v7426
    %v7653 = vadd.f32 %v7652, %v7428
    %v7654 = vadd.f32 %v7653, %v7430
    %7655 = vadd.xlane.f32.xlu0 %v7654
    %v7656 = vpop.xlane.xlu0 %7655
    %v7657 = vadd.f32 %v7432, %v7434
    %v7658 = vadd.f32 %v7657, %v7436
    %v7659 = vadd.f32 %v7658, %v7438
    %7660 = vadd.xlane.f32.xlu0 %v7659
    %v7661 = vpop.xlane.xlu0 %7660
    %v7662 = vadd.f32 %v7440, %v7442
    %v7663 = vadd.f32 %v7662, %v7444
    %v7664 = vadd.f32 %v7663, %v7446
    %7665 = vadd.xlane.f32.xlu0 %v7664
    %v7666 = vpop.xlane.xlu0 %7665
    %v7667 = vadd.f32 %v7448, %v7450
    %v7668 = vadd.f32 %v7667, %v7452
    %v7669 = vadd.f32 %v7668, %v7454
    %7670 = vadd.xlane.f32.xlu0 %v7669
    %v7671 = vpop.xlane.xlu0 %7670
    %v7672 = vadd.f32 %v7456, %v7458
    %v7673 = vadd.f32 %v7672, %v7460
    %v7674 = vadd.f32 %v7673, %v7462
    %7675 = vadd.xlane.f32.xlu0 %v7674
    %v7676 = vpop.xlane.xlu0 %7675
    %v7677 = vadd.f32 %v7464, %v7466
    %v7678 = vadd.f32 %v7677, %v7468
    %v7679 = vadd.f32 %v7678, %v7470
    %7680 = vadd.xlane.f32.xlu0 %v7679
    %v7681 = vpop.xlane.xlu0 %7680
    %v7682 = vadd.f32 %v7472, %v7474
    %v7683 = vadd.f32 %v7682, %v7476
    %v7684 = vadd.f32 %v7683, %v7478
    %7685 = vadd.xlane.f32.xlu0 %v7684
    %v7686 = vpop.xlane.xlu0 %7685
    %v7687 = vadd.f32 %v7480, %v7482
    %v7688 = vadd.f32 %v7687, %v7484
    %v7689 = vadd.f32 %v7688, %v7486
    %7690 = vadd.xlane.f32.xlu0 %v7689
    %v7691 = vpop.xlane.xlu0 %7690
    %v7692 = vadd.f32 %v7488, %v7490
    %v7693 = vadd.f32 %v7692, %v7492
    %v7694 = vadd.f32 %v7693, %v7494
    %7695 = vadd.xlane.f32.xlu0 %v7694
    %v7696 = vpop.xlane.xlu0 %7695
    %v7697 = vadd.f32 %v7496, %v7498
    %v7698 = vadd.f32 %v7697, %v7500
    %v7699 = vadd.f32 %v7698, %v7502
    %7700 = vadd.xlane.f32.xlu0 %v7699
    %v7701 = vpop.xlane.xlu0 %7700
    %v7702 = vadd.f32 %v7504, %v7506
    %v7703 = vadd.f32 %v7702, %v7508
    %v7704 = vadd.f32 %v7703, %v7510
    %7705 = vadd.xlane.f32.xlu0 %v7704
    %v7706 = vpop.xlane.xlu0 %7705
    %v7707 = vadd.f32 %v7512, %v7514
    %v7708 = vadd.f32 %v7707, %v7516
    %v7709 = vadd.f32 %v7708, %v7518
    %7710 = vadd.xlane.f32.xlu0 %v7709
    %v7711 = vpop.xlane.xlu0 %7710
    %v7712 = vadd.f32 %v7520, %v7522
    %v7713 = vadd.f32 %v7712, %v7524
    %v7714 = vadd.f32 %v7713, %v7526
    %7715 = vadd.xlane.f32.xlu0 %v7714
    %v7716 = vpop.xlane.xlu0 %7715
    %v7717 = vadd.f32 %v7528, %v7530
    %v7718 = vadd.f32 %v7717, %v7532
    %v7719 = vadd.f32 %v7718, %v7534
    %7720 = vadd.xlane.f32.xlu0 %v7719
    %v7721 = vpop.xlane.xlu0 %7720
    %v7722 = vadd.f32 %v7536, %v7538
    %v7723 = vadd.f32 %v7722, %v7540
    %v7724 = vadd.f32 %v7723, %v7542
    %7725 = vadd.xlane.f32.xlu0 %v7724
    %v7726 = vpop.xlane.xlu0 %7725
    %v7727 = vadd.f32 %v7544, %v7546
    %v7728 = vadd.f32 %v7727, %v7548
    %v7729 = vadd.f32 %v7728, %v7550
    %7730 = vadd.xlane.f32.xlu0 %v7729
    %v7731 = vpop.xlane.xlu0 %7730
    %v7732 = vadd.f32 %v7552, %v7554
    %v7733 = vadd.f32 %v7732, %v7556
    %v7734 = vadd.f32 %v7733, %v7558
    %7735 = vadd.xlane.f32.xlu0 %v7734
    %v7736 = vpop.xlane.xlu0 %7735
    %v7737 = vadd.f32 %v7560, %v7562
    %v7738 = vadd.f32 %v7737, %v7564
    %v7739 = vadd.f32 %v7738, %v7566
    %7740 = vadd.xlane.f32.xlu0 %v7739
    %v7741 = vpop.xlane.xlu0 %7740
    %v7742 = vadd.f32 %v7568, %v7570
    %v7743 = vadd.f32 %v7742, %v7572
    %v7744 = vadd.f32 %v7743, %v7574
    %7745 = vadd.xlane.f32.xlu0 %v7744
    %v7746 = vpop.xlane.xlu0 %7745
    %v7747 = vadd.f32 %v7576, %v7578
    %v7748 = vadd.f32 %v7747, %v7580
    %v7749 = vadd.f32 %v7748, %v7582
    %7750 = vadd.xlane.f32.xlu0 %v7749
    %v7751 = vpop.xlane.xlu0 %7750
    %v7752 = vadd.f32 %v7584, %v7586
    %v7753 = vadd.f32 %v7752, %v7588
    %v7754 = vadd.f32 %v7753, %v7590
    %7755 = vadd.xlane.f32.xlu0 %v7754
    %v7756 = vpop.xlane.xlu0 %7755
    %v7757 = vadd.f32 %v7592, %v7594
    %v7758 = vadd.f32 %v7757, %v7596
    %v7759 = vadd.f32 %v7758, %v7598
    %7760 = vadd.xlane.f32.xlu0 %v7759
    %v7761 = vpop.xlane.xlu0 %7760
    %v7762 = vadd.f32 %v7600, %v7602
    %v7763 = vadd.f32 %v7762, %v7604
    %v7764 = vadd.f32 %v7763, %v7606
    %7765 = vadd.xlane.f32.xlu0 %v7764
    %v7766 = vpop.xlane.xlu0 %7765
    %v7767 = vpack.c.bf16 %v7360, %v7352
    %v7768 = vpack.c.bf16 %v7362, %v7354
    %v7769 = vpack.c.bf16 %v7364, %v7356
    %v7770 = vpack.c.bf16 %v7366, %v7358
    %v7771 = vpack.c.bf16 %v7376, %v7368
    %v7772 = vpack.c.bf16 %v7378, %v7370
    %v7773 = vpack.c.bf16 %v7380, %v7372
    %v7774 = vpack.c.bf16 %v7382, %v7374
    %v7775 = vpack.c.bf16 %v7392, %v7384
    %v7776 = vpack.c.bf16 %v7394, %v7386
    %v7777 = vpack.c.bf16 %v7396, %v7388
    %v7778 = vpack.c.bf16 %v7398, %v7390
    %v7779 = vpack.c.bf16 %v7408, %v7400
    %v7780 = vpack.c.bf16 %v7410, %v7402
    %v7781 = vpack.c.bf16 %v7412, %v7404
    %v7782 = vpack.c.bf16 %v7414, %v7406
    %v7783 = vpack.c.bf16 %v7424, %v7416
    %v7784 = vpack.c.bf16 %v7426, %v7418
    %v7785 = vpack.c.bf16 %v7428, %v7420
    %v7786 = vpack.c.bf16 %v7430, %v7422
    %v7787 = vpack.c.bf16 %v7440, %v7432
    %v7788 = vpack.c.bf16 %v7442, %v7434
    %v7789 = vpack.c.bf16 %v7444, %v7436
    %v7790 = vpack.c.bf16 %v7446, %v7438
    %v7791 = vpack.c.bf16 %v7456, %v7448
    %v7792 = vpack.c.bf16 %v7458, %v7450
    %v7793 = vpack.c.bf16 %v7460, %v7452
    %v7794 = vpack.c.bf16 %v7462, %v7454
    %v7795 = vpack.c.bf16 %v7472, %v7464
    %v7796 = vpack.c.bf16 %v7474, %v7466
    %v7797 = vpack.c.bf16 %v7476, %v7468
    %v7798 = vpack.c.bf16 %v7478, %v7470
    %v7799 = vpack.c.bf16 %v7488, %v7480
    %v7800 = vpack.c.bf16 %v7490, %v7482
    %v7801 = vpack.c.bf16 %v7492, %v7484
    %v7802 = vpack.c.bf16 %v7494, %v7486
    %v7803 = vpack.c.bf16 %v7504, %v7496
    %v7804 = vpack.c.bf16 %v7506, %v7498
    %v7805 = vpack.c.bf16 %v7508, %v7500
    %v7806 = vpack.c.bf16 %v7510, %v7502
    %v7807 = vpack.c.bf16 %v7520, %v7512
    %v7808 = vpack.c.bf16 %v7522, %v7514
    %v7809 = vpack.c.bf16 %v7524, %v7516
    %v7810 = vpack.c.bf16 %v7526, %v7518
    %v7811 = vpack.c.bf16 %v7536, %v7528
    %v7812 = vpack.c.bf16 %v7538, %v7530
    %v7813 = vpack.c.bf16 %v7540, %v7532
    %v7814 = vpack.c.bf16 %v7542, %v7534
    %v7815 = vpack.c.bf16 %v7552, %v7544
    %v7816 = vpack.c.bf16 %v7554, %v7546
    %v7817 = vpack.c.bf16 %v7556, %v7548
    %v7818 = vpack.c.bf16 %v7558, %v7550
    %v7819 = vpack.c.bf16 %v7568, %v7560
    %v7820 = vpack.c.bf16 %v7570, %v7562
    %v7821 = vpack.c.bf16 %v7572, %v7564
    %v7822 = vpack.c.bf16 %v7574, %v7566
    %v7823 = vpack.c.bf16 %v7584, %v7576
    %v7824 = vpack.c.bf16 %v7586, %v7578
    %v7825 = vpack.c.bf16 %v7588, %v7580
    %v7826 = vpack.c.bf16 %v7590, %v7582
    %v7827 = vpack.c.bf16 %v7600, %v7592
    %v7828 = vpack.c.bf16 %v7602, %v7594
    %v7829 = vpack.c.bf16 %v7604, %v7596
    %v7830 = vpack.c.bf16 %v7606, %v7598
    %7831 = vrot.lane.b32.xlu0 %v1175, 104
    %v7832 = vpop.permute.xlu0 %7831
    %7833 = vrot.lane.b32.xlu0 %v1176, 104
    %v7834 = vpop.permute.xlu0 %7833
    %7835 = vrot.lane.b32.xlu0 %v1177, 104
    %v7836 = vpop.permute.xlu0 %7835
    %7837 = vrot.lane.b32.xlu0 %v1178, 104
    %v7838 = vpop.permute.xlu0 %7837
    %7839 = vrot.lane.b32.xlu0 %v1179, 104
    %v7840 = vpop.permute.xlu0 %7839
    %7841 = vrot.lane.b32.xlu0 %v1180, 104
    %v7842 = vpop.permute.xlu0 %7841
    %7843 = vrot.lane.b32.xlu0 %v1181, 104
    %v7844 = vpop.permute.xlu0 %7843
    %7845 = vrot.lane.b32.xlu0 %v1182, 104
    %v7846 = vpop.permute.xlu0 %7845
    %7847 = vrot.lane.b32.xlu0 %v1183, 104
    %v7848 = vpop.permute.xlu0 %7847
    %7849 = vrot.lane.b32.xlu0 %v1184, 104
    %v7850 = vpop.permute.xlu0 %7849
    %7851 = vrot.lane.b32.xlu0 %v1185, 104
    %v7852 = vpop.permute.xlu0 %7851
    %7853 = vrot.lane.b32.xlu0 %v1186, 104
    %v7854 = vpop.permute.xlu0 %7853
    %7855 = vrot.lane.b32.xlu0 %v1187, 104
    %v7856 = vpop.permute.xlu0 %7855
    %7857 = vrot.lane.b32.xlu0 %v1188, 104
    %v7858 = vpop.permute.xlu0 %7857
    %7859 = vrot.lane.b32.xlu0 %v1189, 104
    %v7860 = vpop.permute.xlu0 %7859
    %7861 = vrot.lane.b32.xlu0 %v1190, 104
    %v7862 = vpop.permute.xlu0 %7861
    %7863 = vrot.lane.b32.xlu0 %v1191, 104
    %v7864 = vpop.permute.xlu0 %7863
    %7865 = vrot.lane.b32.xlu0 %v1192, 104
    %v7866 = vpop.permute.xlu0 %7865
    %7867 = vrot.lane.b32.xlu0 %v1193, 104
    %v7868 = vpop.permute.xlu0 %7867
    %7869 = vrot.lane.b32.xlu0 %v1194, 104
    %v7870 = vpop.permute.xlu0 %7869
    %7871 = vrot.lane.b32.xlu0 %v1195, 104
    %v7872 = vpop.permute.xlu0 %7871
    %7873 = vrot.lane.b32.xlu0 %v1196, 104
    %v7874 = vpop.permute.xlu0 %7873
    %7875 = vrot.lane.b32.xlu0 %v1197, 104
    %v7876 = vpop.permute.xlu0 %7875
    %7877 = vrot.lane.b32.xlu0 %v1198, 104
    %v7878 = vpop.permute.xlu0 %7877
    %7879 = vrot.lane.b32.xlu0 %v1199, 104
    %v7880 = vpop.permute.xlu0 %7879
    %7881 = vrot.lane.b32.xlu0 %v1200, 104
    %v7882 = vpop.permute.xlu0 %7881
    %7883 = vrot.lane.b32.xlu0 %v1201, 104
    %v7884 = vpop.permute.xlu0 %7883
    %7885 = vrot.lane.b32.xlu0 %v1202, 104
    %v7886 = vpop.permute.xlu0 %7885
    %7887 = vrot.lane.b32.xlu0 %v1203, 104
    %v7888 = vpop.permute.xlu0 %7887
    %7889 = vrot.lane.b32.xlu0 %v1204, 104
    %v7890 = vpop.permute.xlu0 %7889
    %7891 = vrot.lane.b32.xlu0 %v1205, 104
    %v7892 = vpop.permute.xlu0 %7891
    %7893 = vrot.lane.b32.xlu0 %v1206, 104
    %v7894 = vpop.permute.xlu0 %7893
    %7927 = vmatprep.subr.bf16.mxu0 0
    %7928 = vmatpush1.bf16.msra.mxu0 %v7832
    %7929 = vmatprep.subr.bf16.mxu0 0
    %7930 = vmatpush1.bf16.msra.mxu0 %v7834
    %7931 = vmatprep.subr.bf16.mxu0 0
    %7932 = vmatpush1.bf16.msra.mxu0 %v7836
    %7933 = vmatprep.subr.bf16.mxu0 0
    %7934 = vmatpush1.bf16.msra.mxu0 %v7838
    %7935 = vmatprep.subr.bf16.mxu0 0
    %7936 = vmatpush1.bf16.msra.mxu0 %v7840
    %7937 = vmatprep.subr.bf16.mxu0 0
    %7938 = vmatpush1.bf16.msra.mxu0 %v7842
    %7939 = vmatprep.subr.bf16.mxu0 0
    %7940 = vmatpush1.bf16.msra.mxu0 %v7844
    %7941 = vmatprep.subr.bf16.mxu0 0
    %7942 = vmatpush1.bf16.msra.mxu0 %v7846
    %7943 = vmatprep.subr.bf16.mxu0 0
    %7944 = vmatpush1.bf16.msra.mxu0 %v7848
    %7945 = vmatprep.subr.bf16.mxu0 0
    %7946 = vmatpush1.bf16.msra.mxu0 %v7850
    %7947 = vmatprep.subr.bf16.mxu0 0
    %7948 = vmatpush1.bf16.msra.mxu0 %v7852
    %7949 = vmatprep.subr.bf16.mxu0 0
    %7950 = vmatpush1.bf16.msra.mxu0 %v7854
    %7951 = vmatprep.subr.bf16.mxu0 0
    %7952 = vmatpush1.bf16.msra.mxu0 %v7856
    %7953 = vmatprep.subr.bf16.mxu0 0
    %7954 = vmatpush1.bf16.msra.mxu0 %v7858
    %7955 = vmatprep.subr.bf16.mxu0 0
    %7956 = vmatpush1.bf16.msra.mxu0 %v7860
    %7957 = vmatprep.subr.bf16.mxu0 0
    %7958 = vmatpush1.bf16.msra.mxu0 %v7862
    %7959 = vmatprep.mubr.bf16.mxu0 %v7768
    %7960 = vmatmul.mubr.bf16.gmra.mrb[0].mxu0 %v7767
    %v7961 = vpop.f32.mrb[0].mxu0
    %v7962 = vadd.f32 0.0, %v7961
    %v7963 = vpop.f32.mrb[0].mxu0
    %v7964 = vpop.f32.mrb[0].mxu0
    %v7965 = vadd.f32 0.0, %v7964
    %v7966 = vpop.f32.mrb[0].mxu0
    %7967 = vmatprep.mubr.bf16.mxu0 %v7772
    %7968 = vmatmul.mubr.bf16.gmra.mrb[0].mxu0 %v7771
    %v7969 = vpop.f32.mrb[0].mxu0
    %v7970 = vadd.f32 0.0, %v7969
    %v7971 = vpop.f32.mrb[0].mxu0
    %v7972 = vpop.f32.mrb[0].mxu0
    %v7973 = vadd.f32 0.0, %v7972
    %v7974 = vpop.f32.mrb[0].mxu0
    %7975 = vmatprep.mubr.bf16.mxu0 %v7776
    %7976 = vmatmul.mubr.bf16.gmra.mrb[0].mxu0 %v7775
    %v7977 = vpop.f32.mrb[0].mxu0
    %v7978 = vadd.f32 0.0, %v7977
    %v7979 = vpop.f32.mrb[0].mxu0
    %v7980 = vpop.f32.mrb[0].mxu0
    %v7981 = vadd.f32 0.0, %v7980
    %v7982 = vpop.f32.mrb[0].mxu0
    %7983 = vmatprep.mubr.bf16.mxu0 %v7780
    %7984 = vmatmul.mubr.bf16.gmra.mrb[0].mxu0 %v7779
    %v7985 = vpop.f32.mrb[0].mxu0
    %v7986 = vadd.f32 0.0, %v7985
    %v7987 = vpop.f32.mrb[0].mxu0
    %v7988 = vpop.f32.mrb[0].mxu0
    %v7989 = vadd.f32 0.0, %v7988
    %v7990 = vpop.f32.mrb[0].mxu0
    %7991 = vmatprep.mubr.bf16.mxu0 %v7784
    %7992 = vmatmul.mubr.bf16.gmra.mrb[0].mxu0 %v7783
    %v7993 = vpop.f32.mrb[0].mxu0
    %v7994 = vadd.f32 0.0, %v7993
    %v7995 = vpop.f32.mrb[0].mxu0
    %v7996 = vpop.f32.mrb[0].mxu0
    %v7997 = vadd.f32 0.0, %v7996
    %v7998 = vpop.f32.mrb[0].mxu0
    %7999 = vmatprep.mubr.bf16.mxu0 %v7788
    %8000 = vmatmul.mubr.bf16.gmra.mrb[0].mxu0 %v7787
    %v8001 = vpop.f32.mrb[0].mxu0
    %v8002 = vadd.f32 0.0, %v8001
    %v8003 = vpop.f32.mrb[0].mxu0
    %v8004 = vpop.f32.mrb[0].mxu0
    %v8005 = vadd.f32 0.0, %v8004
    %v8006 = vpop.f32.mrb[0].mxu0
    %8007 = vmatprep.mubr.bf16.mxu0 %v7792
    %8008 = vmatmul.mubr.bf16.gmra.mrb[0].mxu0 %v7791
    %v8009 = vpop.f32.mrb[0].mxu0
    %v8010 = vadd.f32 0.0, %v8009
    %v8011 = vpop.f32.mrb[0].mxu0
    %v8012 = vpop.f32.mrb[0].mxu0
    %v8013 = vadd.f32 0.0, %v8012
    %v8014 = vpop.f32.mrb[0].mxu0
    %8015 = vmatprep.mubr.bf16.mxu0 %v7796
    %8016 = vmatmul.mubr.bf16.gmra.mrb[0].mxu0 %v7795
    %v8017 = vpop.f32.mrb[0].mxu0
    %v8018 = vadd.f32 0.0, %v8017
    %v8019 = vpop.f32.mrb[0].mxu0
    %v8020 = vpop.f32.mrb[0].mxu0
    %v8021 = vadd.f32 0.0, %v8020
    %v8022 = vpop.f32.mrb[0].mxu0
    %8023 = vmatprep.mubr.bf16.mxu0 %v7800
    %8024 = vmatmul.mubr.bf16.gmra.mrb[0].mxu0 %v7799
    %v8025 = vpop.f32.mrb[0].mxu0
    %v8026 = vadd.f32 0.0, %v8025
    %v8027 = vpop.f32.mrb[0].mxu0
    %v8028 = vpop.f32.mrb[0].mxu0
    %v8029 = vadd.f32 0.0, %v8028
    %v8030 = vpop.f32.mrb[0].mxu0
    %8031 = vmatprep.mubr.bf16.mxu0 %v7804
    %8032 = vmatmul.mubr.bf16.gmra.mrb[0].mxu0 %v7803
    %v8033 = vpop.f32.mrb[0].mxu0
    %v8034 = vadd.f32 0.0, %v8033
    %v8035 = vpop.f32.mrb[0].mxu0
    %v8036 = vpop.f32.mrb[0].mxu0
    %v8037 = vadd.f32 0.0, %v8036
    %v8038 = vpop.f32.mrb[0].mxu0
    %8039 = vmatprep.mubr.bf16.mxu0 %v7808
    %8040 = vmatmul.mubr.bf16.gmra.mrb[0].mxu0 %v7807
    %v8041 = vpop.f32.mrb[0].mxu0
    %v8042 = vadd.f32 0.0, %v8041
    %v8043 = vpop.f32.mrb[0].mxu0
    %v8044 = vpop.f32.mrb[0].mxu0
    %v8045 = vadd.f32 0.0, %v8044
    %v8046 = vpop.f32.mrb[0].mxu0
    %8047 = vmatprep.mubr.bf16.mxu0 %v7812
    %8048 = vmatmul.mubr.bf16.gmra.mrb[0].mxu0 %v7811
    %v8049 = vpop.f32.mrb[0].mxu0
    %v8050 = vadd.f32 0.0, %v8049
    %v8051 = vpop.f32.mrb[0].mxu0
    %v8052 = vpop.f32.mrb[0].mxu0
    %v8053 = vadd.f32 0.0, %v8052
    %v8054 = vpop.f32.mrb[0].mxu0
    %8055 = vmatprep.mubr.bf16.mxu0 %v7816
    %8056 = vmatmul.mubr.bf16.gmra.mrb[0].mxu0 %v7815
    %v8057 = vpop.f32.mrb[0].mxu0
    %v8058 = vadd.f32 0.0, %v8057
    %v8059 = vpop.f32.mrb[0].mxu0
    %v8060 = vpop.f32.mrb[0].mxu0
    %v8061 = vadd.f32 0.0, %v8060
    %v8062 = vpop.f32.mrb[0].mxu0
    %8063 = vmatprep.mubr.bf16.mxu0 %v7820
    %8064 = vmatmul.mubr.bf16.gmra.mrb[0].mxu0 %v7819
    %v8065 = vpop.f32.mrb[0].mxu0
    %v8066 = vadd.f32 0.0, %v8065
    %v8067 = vpop.f32.mrb[0].mxu0
    %v8068 = vpop.f32.mrb[0].mxu0
    %v8069 = vadd.f32 0.0, %v8068
    %v8070 = vpop.f32.mrb[0].mxu0
    %8071 = vmatprep.mubr.bf16.mxu0 %v7824
    %8072 = vmatmul.mubr.bf16.gmra.mrb[0].mxu0 %v7823
    %v8073 = vpop.f32.mrb[0].mxu0
    %v8074 = vadd.f32 0.0, %v8073
    %v8075 = vpop.f32.mrb[0].mxu0
    %v8076 = vpop.f32.mrb[0].mxu0
    %v8077 = vadd.f32 0.0, %v8076
    %v8078 = vpop.f32.mrb[0].mxu0
    %8079 = vmatprep.mubr.bf16.mxu0 %v7828
    %8080 = vmatmul.mubr.bf16.gmra.mrb[0].mxu0 %v7827
    %v8081 = vpop.f32.mrb[0].mxu0
    %v8082 = vadd.f32 0.0, %v8081
    %v8083 = vpop.f32.mrb[0].mxu0
    %v8084 = vpop.f32.mrb[0].mxu0
    %v8085 = vadd.f32 0.0, %v8084
    %v8086 = vpop.f32.mrb[0].mxu0
    %8087 = vdwg.mxu0
    %8088 = vmatprep.subr.bf16.mxu0 0
    %8089 = vmatpush1.bf16.msra.mxu0 %v7864
    %8090 = vmatprep.subr.bf16.mxu0 0
    %8091 = vmatpush1.bf16.msra.mxu0 %v7866
    %8092 = vmatprep.subr.bf16.mxu0 0
    %8093 = vmatpush1.bf16.msra.mxu0 %v7868
    %8094 = vmatprep.subr.bf16.mxu0 0
    %8095 = vmatpush1.bf16.msra.mxu0 %v7870
    %8096 = vmatprep.subr.bf16.mxu0 0
    %8097 = vmatpush1.bf16.msra.mxu0 %v7872
    %8098 = vmatprep.subr.bf16.mxu0 0
    %8099 = vmatpush1.bf16.msra.mxu0 %v7874
    %8100 = vmatprep.subr.bf16.mxu0 0
    %8101 = vmatpush1.bf16.msra.mxu0 %v7876
    %8102 = vmatprep.subr.bf16.mxu0 0
    %8103 = vmatpush1.bf16.msra.mxu0 %v7878
    %8104 = vmatprep.subr.bf16.mxu0 0
    %8105 = vmatpush1.bf16.msra.mxu0 %v7880
    %8106 = vmatprep.subr.bf16.mxu0 0
    %8107 = vmatpush1.bf16.msra.mxu0 %v7882
    %8108 = vmatprep.subr.bf16.mxu0 0
    %8109 = vmatpush1.bf16.msra.mxu0 %v7884
    %8110 = vmatprep.subr.bf16.mxu0 0
    %8111 = vmatpush1.bf16.msra.mxu0 %v7886
    %8112 = vmatprep.subr.bf16.mxu0 0
    %8113 = vmatpush1.bf16.msra.mxu0 %v7888
    %8114 = vmatprep.subr.bf16.mxu0 0
    %8115 = vmatpush1.bf16.msra.mxu0 %v7890
    %8116 = vmatprep.subr.bf16.mxu0 0
    %8117 = vmatpush1.bf16.msra.mxu0 %v7892
    %8118 = vmatprep.subr.bf16.mxu0 0
    %8119 = vmatpush1.bf16.msra.mxu0 %v7894
    %8120 = vmatprep.mubr.bf16.mxu0 %v7770
    %8121 = vmatmul.mubr.bf16.gmra.mrb[0].mxu0 %v7769
    %v8122 = vpop.f32.mrb[0].mxu0
    %v8123 = vadd.f32 %v7962, %v8122
    %v8124 = vpop.f32.mrb[0].mxu0
    %v8125 = vpop.f32.mrb[0].mxu0
    %v8126 = vadd.f32 %v7965, %v8125
    %v8127 = vpop.f32.mrb[0].mxu0
    %8128 = vmatprep.mubr.bf16.mxu0 %v7774
    %8129 = vmatmul.mubr.bf16.gmra.mrb[0].mxu0 %v7773
    %v8130 = vpop.f32.mrb[0].mxu0
    %v8131 = vadd.f32 %v7970, %v8130
    %v8132 = vpop.f32.mrb[0].mxu0
    %v8133 = vpop.f32.mrb[0].mxu0
    %v8134 = vadd.f32 %v7973, %v8133
    %v8135 = vpop.f32.mrb[0].mxu0
    %8136 = vmatprep.mubr.bf16.mxu0 %v7778
    %8137 = vmatmul.mubr.bf16.gmra.mrb[0].mxu0 %v7777
    %v8138 = vpop.f32.mrb[0].mxu0
    %v8139 = vadd.f32 %v7978, %v8138
    %v8140 = vpop.f32.mrb[0].mxu0
    %v8141 = vpop.f32.mrb[0].mxu0
    %v8142 = vadd.f32 %v7981, %v8141
    %v8143 = vpop.f32.mrb[0].mxu0
    %8144 = vmatprep.mubr.bf16.mxu0 %v7782
    %8145 = vmatmul.mubr.bf16.gmra.mrb[0].mxu0 %v7781
    %v8146 = vpop.f32.mrb[0].mxu0
    %v8147 = vadd.f32 %v7986, %v8146
    %v8148 = vpop.f32.mrb[0].mxu0
    %v8149 = vpop.f32.mrb[0].mxu0
    %v8150 = vadd.f32 %v7989, %v8149
    %v8151 = vpop.f32.mrb[0].mxu0
    %8152 = vmatprep.mubr.bf16.mxu0 %v7786
    %8153 = vmatmul.mubr.bf16.gmra.mrb[0].mxu0 %v7785
    %v8154 = vpop.f32.mrb[0].mxu0
    %v8155 = vadd.f32 %v7994, %v8154
    %v8156 = vpop.f32.mrb[0].mxu0
    %v8157 = vpop.f32.mrb[0].mxu0
    %v8158 = vadd.f32 %v7997, %v8157
    %v8159 = vpop.f32.mrb[0].mxu0
    %8160 = vmatprep.mubr.bf16.mxu0 %v7790
    %8161 = vmatmul.mubr.bf16.gmra.mrb[0].mxu0 %v7789
    %v8162 = vpop.f32.mrb[0].mxu0
    %v8163 = vadd.f32 %v8002, %v8162
    %v8164 = vpop.f32.mrb[0].mxu0
    %v8165 = vpop.f32.mrb[0].mxu0
    %v8166 = vadd.f32 %v8005, %v8165
    %v8167 = vpop.f32.mrb[0].mxu0
    %8168 = vmatprep.mubr.bf16.mxu0 %v7794
    %8169 = vmatmul.mubr.bf16.gmra.mrb[0].mxu0 %v7793
    %v8170 = vpop.f32.mrb[0].mxu0
    %v8171 = vadd.f32 %v8010, %v8170
    %v8172 = vpop.f32.mrb[0].mxu0
    %v8173 = vpop.f32.mrb[0].mxu0
    %v8174 = vadd.f32 %v8013, %v8173
    %v8175 = vpop.f32.mrb[0].mxu0
    %8176 = vmatprep.mubr.bf16.mxu0 %v7798
    %8177 = vmatmul.mubr.bf16.gmra.mrb[0].mxu0 %v7797
    %v8178 = vpop.f32.mrb[0].mxu0
    %v8179 = vadd.f32 %v8018, %v8178
    %v8180 = vpop.f32.mrb[0].mxu0
    %v8181 = vpop.f32.mrb[0].mxu0
    %v8182 = vadd.f32 %v8021, %v8181
    %v8183 = vpop.f32.mrb[0].mxu0
    %8184 = vmatprep.mubr.bf16.mxu0 %v7802
    %8185 = vmatmul.mubr.bf16.gmra.mrb[0].mxu0 %v7801
    %v8186 = vpop.f32.mrb[0].mxu0
    %v8187 = vadd.f32 %v8026, %v8186
    %v8188 = vpop.f32.mrb[0].mxu0
    %v8189 = vpop.f32.mrb[0].mxu0
    %v8190 = vadd.f32 %v8029, %v8189
    %v8191 = vpop.f32.mrb[0].mxu0
    %8192 = vmatprep.mubr.bf16.mxu0 %v7806
    %8193 = vmatmul.mubr.bf16.gmra.mrb[0].mxu0 %v7805
    %v8194 = vpop.f32.mrb[0].mxu0
    %v8195 = vadd.f32 %v8034, %v8194
    %v8196 = vpop.f32.mrb[0].mxu0
    %v8197 = vpop.f32.mrb[0].mxu0
    %v8198 = vadd.f32 %v8037, %v8197
    %v8199 = vpop.f32.mrb[0].mxu0
    %8200 = vmatprep.mubr.bf16.mxu0 %v7810
    %8201 = vmatmul.mubr.bf16.gmra.mrb[0].mxu0 %v7809
    %v8202 = vpop.f32.mrb[0].mxu0
    %v8203 = vadd.f32 %v8042, %v8202
    %v8204 = vpop.f32.mrb[0].mxu0
    %v8205 = vpop.f32.mrb[0].mxu0
    %v8206 = vadd.f32 %v8045, %v8205
    %v8207 = vpop.f32.mrb[0].mxu0
    %8208 = vmatprep.mubr.bf16.mxu0 %v7814
    %8209 = vmatmul.mubr.bf16.gmra.mrb[0].mxu0 %v7813
    %v8210 = vpop.f32.mrb[0].mxu0
    %v8211 = vadd.f32 %v8050, %v8210
    %v8212 = vpop.f32.mrb[0].mxu0
    %v8213 = vpop.f32.mrb[0].mxu0
    %v8214 = vadd.f32 %v8053, %v8213
    %v8215 = vpop.f32.mrb[0].mxu0
    %8216 = vmatprep.mubr.bf16.mxu0 %v7818
    %8217 = vmatmul.mubr.bf16.gmra.mrb[0].mxu0 %v7817
    %v8218 = vpop.f32.mrb[0].mxu0
    %v8219 = vadd.f32 %v8058, %v8218
    %v8220 = vpop.f32.mrb[0].mxu0
    %v8221 = vpop.f32.mrb[0].mxu0
    %v8222 = vadd.f32 %v8061, %v8221
    %v8223 = vpop.f32.mrb[0].mxu0
    %8224 = vmatprep.mubr.bf16.mxu0 %v7822
    %8225 = vmatmul.mubr.bf16.gmra.mrb[0].mxu0 %v7821
    %v8226 = vpop.f32.mrb[0].mxu0
    %v8227 = vadd.f32 %v8066, %v8226
    %v8228 = vpop.f32.mrb[0].mxu0
    %v8229 = vpop.f32.mrb[0].mxu0
    %v8230 = vadd.f32 %v8069, %v8229
    %v8231 = vpop.f32.mrb[0].mxu0
    %8232 = vmatprep.mubr.bf16.mxu0 %v7826
    %8233 = vmatmul.mubr.bf16.gmra.mrb[0].mxu0 %v7825
    %v8234 = vpop.f32.mrb[0].mxu0
    %v8235 = vadd.f32 %v8074, %v8234
    %v8236 = vpop.f32.mrb[0].mxu0
    %v8237 = vpop.f32.mrb[0].mxu0
    %v8238 = vadd.f32 %v8077, %v8237
    %v8239 = vpop.f32.mrb[0].mxu0
    %8240 = vmatprep.mubr.bf16.mxu0 %v7830
    %8241 = vmatmul.mubr.bf16.gmra.mrb[0].mxu0 %v7829
    %v8242 = vpop.f32.mrb[0].mxu0
    %v8243 = vadd.f32 %v8082, %v8242
    %v8244 = vpop.f32.mrb[0].mxu0
    %v8245 = vpop.f32.mrb[0].mxu0
    %v8246 = vadd.f32 %v8085, %v8245
    %v8247 = vpop.f32.mrb[0].mxu0
    %8248 = vdwg.mxu0
    %v8249 = vrcp.pop %v7611
    %v8250 = vrcp.pop %v7616
    %v8251 = vrcp.pop %v7621
    %v8252 = vrcp.pop %v7626
    %v8253 = vrcp.pop %v7631
    %v8254 = vrcp.pop %v7636
    %v8255 = vrcp.pop %v7641
    %v8256 = vrcp.pop %v7646
    %v8257 = vrcp.pop %v7651
    %v8258 = vrcp.pop %v7656
    %v8259 = vrcp.pop %v7661
    %v8260 = vrcp.pop %v7666
    %v8261 = vrcp.pop %v7671
    %v8262 = vrcp.pop %v7676
    %v8263 = vrcp.pop %v7681
    %v8264 = vrcp.pop %v7686
    %v8265 = vrcp.pop %v7691
    %v8266 = vrcp.pop %v7696
    %v8267 = vrcp.pop %v7701
    %v8268 = vrcp.pop %v7706
    %v8269 = vrcp.pop %v7711
    %v8270 = vrcp.pop %v7716
    %v8271 = vrcp.pop %v7721
    %v8272 = vrcp.pop %v7726
    %v8273 = vrcp.pop %v7731
    %v8274 = vrcp.pop %v7736
    %v8275 = vrcp.pop %v7741
    %v8276 = vrcp.pop %v7746
    %v8277 = vrcp.pop %v7751
    %v8278 = vrcp.pop %v7756
    %v8279 = vrcp.pop %v7761
    %v8280 = vrcp.pop %v7766
    %v8281 = vmul.f32 %v8123, %v8249
    %v8282 = vmul.f32 %v8126, %v8250
    %v8283 = vmul.f32 %v8131, %v8251
    %v8284 = vmul.f32 %v8134, %v8252
    %v8285 = vmul.f32 %v8139, %v8253
    %v8286 = vmul.f32 %v8142, %v8254
    %v8287 = vmul.f32 %v8147, %v8255
    %v8288 = vmul.f32 %v8150, %v8256
    %v8289 = vmul.f32 %v8155, %v8257
    %v8290 = vmul.f32 %v8158, %v8258
    %v8291 = vmul.f32 %v8163, %v8259
    %v8292 = vmul.f32 %v8166, %v8260
    %v8293 = vmul.f32 %v8171, %v8261
    %v8294 = vmul.f32 %v8174, %v8262
    %v8295 = vmul.f32 %v8179, %v8263
    %v8296 = vmul.f32 %v8182, %v8264
    %v8297 = vmul.f32 %v8187, %v8265
    %v8298 = vmul.f32 %v8190, %v8266
    %v8299 = vmul.f32 %v8195, %v8267
    %v8300 = vmul.f32 %v8198, %v8268
    %v8301 = vmul.f32 %v8203, %v8269
    %v8302 = vmul.f32 %v8206, %v8270
    %v8303 = vmul.f32 %v8211, %v8271
    %v8304 = vmul.f32 %v8214, %v8272
    %v8305 = vmul.f32 %v8219, %v8273
    %v8306 = vmul.f32 %v8222, %v8274
    %v8307 = vmul.f32 %v8227, %v8275
    %v8308 = vmul.f32 %v8230, %v8276
    %v8309 = vmul.f32 %v8235, %v8277
    %v8310 = vmul.f32 %v8238, %v8278
    %v8311 = vmul.f32 %v8243, %v8279
    %v8312 = vmul.f32 %v8246, %v8280
    %8345 = vrot.lane.b32.xlu0 %v4817, 8
    %v8346 = vpop.permute.xlu0 %8345
    %8347 = vrot.lane.b32.xlu0 %v4818, 8
    %v8348 = vpop.permute.xlu0 %8347
    %8349 = vrot.lane.b32.xlu0 %v4819, 8
    %v8350 = vpop.permute.xlu0 %8349
    %8351 = vrot.lane.b32.xlu0 %v4820, 8
    %v8352 = vpop.permute.xlu0 %8351
    %8353 = vrot.lane.b32.xlu0 %v4821, 8
    %v8354 = vpop.permute.xlu0 %8353
    %8355 = vrot.lane.b32.xlu0 %v4822, 8
    %v8356 = vpop.permute.xlu0 %8355
    %8357 = vrot.lane.b32.xlu0 %v4823, 8
    %v8358 = vpop.permute.xlu0 %8357
    %8359 = vrot.lane.b32.xlu0 %v4824, 8
    %v8360 = vpop.permute.xlu0 %8359
    %8361 = vrot.lane.b32.xlu0 %v4825, 8
    %v8362 = vpop.permute.xlu0 %8361
    %8363 = vrot.lane.b32.xlu0 %v4826, 8
    %v8364 = vpop.permute.xlu0 %8363
    %8365 = vrot.lane.b32.xlu0 %v4827, 8
    %v8366 = vpop.permute.xlu0 %8365
    %8367 = vrot.lane.b32.xlu0 %v4828, 8
    %v8368 = vpop.permute.xlu0 %8367
    %8369 = vrot.lane.b32.xlu0 %v4829, 8
    %v8370 = vpop.permute.xlu0 %8369
    %8371 = vrot.lane.b32.xlu0 %v4830, 8
    %v8372 = vpop.permute.xlu0 %8371
    %8373 = vrot.lane.b32.xlu0 %v4831, 8
    %v8374 = vpop.permute.xlu0 %8373
    %8375 = vrot.lane.b32.xlu0 %v4832, 8
    %v8376 = vpop.permute.xlu0 %8375
    %8377 = vrot.lane.b32.xlu0 %v4833, 8
    %v8378 = vpop.permute.xlu0 %8377
    %8379 = vrot.lane.b32.xlu0 %v4834, 8
    %v8380 = vpop.permute.xlu0 %8379
    %8381 = vrot.lane.b32.xlu0 %v4835, 8
    %v8382 = vpop.permute.xlu0 %8381
    %8383 = vrot.lane.b32.xlu0 %v4836, 8
    %v8384 = vpop.permute.xlu0 %8383
    %8385 = vrot.lane.b32.xlu0 %v4837, 8
    %v8386 = vpop.permute.xlu0 %8385
    %8387 = vrot.lane.b32.xlu0 %v4838, 8
    %v8388 = vpop.permute.xlu0 %8387
    %8389 = vrot.lane.b32.xlu0 %v4839, 8
    %v8390 = vpop.permute.xlu0 %8389
    %8391 = vrot.lane.b32.xlu0 %v4840, 8
    %v8392 = vpop.permute.xlu0 %8391
    %8393 = vrot.lane.b32.xlu0 %v4841, 8
    %v8394 = vpop.permute.xlu0 %8393
    %8395 = vrot.lane.b32.xlu0 %v4842, 8
    %v8396 = vpop.permute.xlu0 %8395
    %8397 = vrot.lane.b32.xlu0 %v4843, 8
    %v8398 = vpop.permute.xlu0 %8397
    %8399 = vrot.lane.b32.xlu0 %v4844, 8
    %v8400 = vpop.permute.xlu0 %8399
    %8401 = vrot.lane.b32.xlu0 %v4845, 8
    %v8402 = vpop.permute.xlu0 %8401
    %8403 = vrot.lane.b32.xlu0 %v4846, 8
    %v8404 = vpop.permute.xlu0 %8403
    %8405 = vrot.lane.b32.xlu0 %v4847, 8
    %v8406 = vpop.permute.xlu0 %8405
    %8407 = vrot.lane.b32.xlu0 %v4848, 8
    %v8408 = vpop.permute.xlu0 %8407
    %8473 = vrot.lane.b32.xlu0 %v6549, 16
    %v8474 = vpop.permute.xlu0 %8473
    %8475 = vrot.lane.b32.xlu0 %v6550, 16
    %v8476 = vpop.permute.xlu0 %8475
    %8477 = vrot.lane.b32.xlu0 %v6551, 16
    %v8478 = vpop.permute.xlu0 %8477
    %8479 = vrot.lane.b32.xlu0 %v6552, 16
    %v8480 = vpop.permute.xlu0 %8479
    %8481 = vrot.lane.b32.xlu0 %v6553, 16
    %v8482 = vpop.permute.xlu0 %8481
    %8483 = vrot.lane.b32.xlu0 %v6554, 16
    %v8484 = vpop.permute.xlu0 %8483
    %8485 = vrot.lane.b32.xlu0 %v6555, 16
    %v8486 = vpop.permute.xlu0 %8485
    %8487 = vrot.lane.b32.xlu0 %v6556, 16
    %v8488 = vpop.permute.xlu0 %8487
    %8489 = vrot.lane.b32.xlu0 %v6557, 16
    %v8490 = vpop.permute.xlu0 %8489
    %8491 = vrot.lane.b32.xlu0 %v6558, 16
    %v8492 = vpop.permute.xlu0 %8491
    %8493 = vrot.lane.b32.xlu0 %v6559, 16
    %v8494 = vpop.permute.xlu0 %8493
    %8495 = vrot.lane.b32.xlu0 %v6560, 16
    %v8496 = vpop.permute.xlu0 %8495
    %8497 = vrot.lane.b32.xlu0 %v6561, 16
    %v8498 = vpop.permute.xlu0 %8497
    %8499 = vrot.lane.b32.xlu0 %v6562, 16
    %v8500 = vpop.permute.xlu0 %8499
    %8501 = vrot.lane.b32.xlu0 %v6563, 16
    %v8502 = vpop.permute.xlu0 %8501
    %8503 = vrot.lane.b32.xlu0 %v6564, 16
    %v8504 = vpop.permute.xlu0 %8503
    %8505 = vrot.lane.b32.xlu0 %v6565, 16
    %v8506 = vpop.permute.xlu0 %8505
    %8507 = vrot.lane.b32.xlu0 %v6566, 16
    %v8508 = vpop.permute.xlu0 %8507
    %8509 = vrot.lane.b32.xlu0 %v6567, 16
    %v8510 = vpop.permute.xlu0 %8509
    %8511 = vrot.lane.b32.xlu0 %v6568, 16
    %v8512 = vpop.permute.xlu0 %8511
    %8513 = vrot.lane.b32.xlu0 %v6569, 16
    %v8514 = vpop.permute.xlu0 %8513
    %8515 = vrot.lane.b32.xlu0 %v6570, 16
    %v8516 = vpop.permute.xlu0 %8515
    %8517 = vrot.lane.b32.xlu0 %v6571, 16
    %v8518 = vpop.permute.xlu0 %8517
    %8519 = vrot.lane.b32.xlu0 %v6572, 16
    %v8520 = vpop.permute.xlu0 %8519
    %8521 = vrot.lane.b32.xlu0 %v6573, 16
    %v8522 = vpop.permute.xlu0 %8521
    %8523 = vrot.lane.b32.xlu0 %v6574, 16
    %v8524 = vpop.permute.xlu0 %8523
    %8525 = vrot.lane.b32.xlu0 %v6575, 16
    %v8526 = vpop.permute.xlu0 %8525
    %8527 = vrot.lane.b32.xlu0 %v6576, 16
    %v8528 = vpop.permute.xlu0 %8527
    %8529 = vrot.lane.b32.xlu0 %v6577, 16
    %v8530 = vpop.permute.xlu0 %8529
    %8531 = vrot.lane.b32.xlu0 %v6578, 16
    %v8532 = vpop.permute.xlu0 %8531
    %8533 = vrot.lane.b32.xlu0 %v6579, 16
    %v8534 = vpop.permute.xlu0 %8533
    %8535 = vrot.lane.b32.xlu0 %v6580, 16
    %v8536 = vpop.permute.xlu0 %8535
    %8601 = vrot.lane.b32.xlu0 %v8281, 24
    %v8602 = vpop.permute.xlu0 %8601
    %8603 = vrot.lane.b32.xlu0 %v8282, 24
    %v8604 = vpop.permute.xlu0 %8603
    %8605 = vrot.lane.b32.xlu0 %v8283, 24
    %v8606 = vpop.permute.xlu0 %8605
    %8607 = vrot.lane.b32.xlu0 %v8284, 24
    %v8608 = vpop.permute.xlu0 %8607
    %8609 = vrot.lane.b32.xlu0 %v8285, 24
    %v8610 = vpop.permute.xlu0 %8609
    %8611 = vrot.lane.b32.xlu0 %v8286, 24
    %v8612 = vpop.permute.xlu0 %8611
    %8613 = vrot.lane.b32.xlu0 %v8287, 24
    %v8614 = vpop.permute.xlu0 %8613
    %8615 = vrot.lane.b32.xlu0 %v8288, 24
    %v8616 = vpop.permute.xlu0 %8615
    %8617 = vrot.lane.b32.xlu0 %v8289, 24
    %v8618 = vpop.permute.xlu0 %8617
    %8619 = vrot.lane.b32.xlu0 %v8290, 24
    %v8620 = vpop.permute.xlu0 %8619
    %8621 = vrot.lane.b32.xlu0 %v8291, 24
    %v8622 = vpop.permute.xlu0 %8621
    %8623 = vrot.lane.b32.xlu0 %v8292, 24
    %v8624 = vpop.permute.xlu0 %8623
    %8625 = vrot.lane.b32.xlu0 %v8293, 24
    %v8626 = vpop.permute.xlu0 %8625
    %8627 = vrot.lane.b32.xlu0 %v8294, 24
    %v8628 = vpop.permute.xlu0 %8627
    %8629 = vrot.lane.b32.xlu0 %v8295, 24
    %v8630 = vpop.permute.xlu0 %8629
    %8631 = vrot.lane.b32.xlu0 %v8296, 24
    %v8632 = vpop.permute.xlu0 %8631
    %8633 = vrot.lane.b32.xlu0 %v8297, 24
    %v8634 = vpop.permute.xlu0 %8633
    %8635 = vrot.lane.b32.xlu0 %v8298, 24
    %v8636 = vpop.permute.xlu0 %8635
    %8637 = vrot.lane.b32.xlu0 %v8299, 24
    %v8638 = vpop.permute.xlu0 %8637
    %8639 = vrot.lane.b32.xlu0 %v8300, 24
    %v8640 = vpop.permute.xlu0 %8639
    %8641 = vrot.lane.b32.xlu0 %v8301, 24
    %v8642 = vpop.permute.xlu0 %8641
    %8643 = vrot.lane.b32.xlu0 %v8302, 24
    %v8644 = vpop.permute.xlu0 %8643
    %8645 = vrot.lane.b32.xlu0 %v8303, 24
    %v8646 = vpop.permute.xlu0 %8645
    %8647 = vrot.lane.b32.xlu0 %v8304, 24
    %v8648 = vpop.permute.xlu0 %8647
    %8649 = vrot.lane.b32.xlu0 %v8305, 24
    %v8650 = vpop.permute.xlu0 %8649
    %8651 = vrot.lane.b32.xlu0 %v8306, 24
    %v8652 = vpop.permute.xlu0 %8651
    %8653 = vrot.lane.b32.xlu0 %v8307, 24
    %v8654 = vpop.permute.xlu0 %8653
    %8655 = vrot.lane.b32.xlu0 %v8308, 24
    %v8656 = vpop.permute.xlu0 %8655
    %8657 = vrot.lane.b32.xlu0 %v8309, 24
    %v8658 = vpop.permute.xlu0 %8657
    %8659 = vrot.lane.b32.xlu0 %v8310, 24
    %v8660 = vpop.permute.xlu0 %8659
    %8661 = vrot.lane.b32.xlu0 %v8311, 24
    %v8662 = vpop.permute.xlu0 %8661
    %8663 = vrot.lane.b32.xlu0 %v8312, 24
    %v8664 = vpop.permute.xlu0 %8663
    %v8697 = vsel %vm1467, %v3037, %v8346
    %v8698 = vsel %vm1467, %v3038, %v8348
    %v8699 = vsel %vm1467, %v3039, %v8350
    %v8700 = vsel %vm1467, %v3040, %v8352
    %v8701 = vsel %vm1467, %v3041, %v8354
    %v8702 = vsel %vm1467, %v3042, %v8356
    %v8703 = vsel %vm1467, %v3043, %v8358
    %v8704 = vsel %vm1467, %v3044, %v8360
    %v8705 = vsel %vm1467, %v3045, %v8362
    %v8706 = vsel %vm1467, %v3046, %v8364
    %v8707 = vsel %vm1467, %v3047, %v8366
    %v8708 = vsel %vm1467, %v3048, %v8368
    %v8709 = vsel %vm1467, %v3049, %v8370
    %v8710 = vsel %vm1467, %v3050, %v8372
    %v8711 = vsel %vm1467, %v3051, %v8374
    %v8712 = vsel %vm1467, %v3052, %v8376
    %v8713 = vsel %vm1467, %v3053, %v8378
    %v8714 = vsel %vm1467, %v3054, %v8380
    %v8715 = vsel %vm1467, %v3055, %v8382
    %v8716 = vsel %vm1467, %v3056, %v8384
    %v8717 = vsel %vm1467, %v3057, %v8386
    %v8718 = vsel %vm1467, %v3058, %v8388
    %v8719 = vsel %vm1467, %v3059, %v8390
    %v8720 = vsel %vm1467, %v3060, %v8392
    %v8721 = vsel %vm1467, %v3061, %v8394
    %v8722 = vsel %vm1467, %v3062, %v8396
    %v8723 = vsel %vm1467, %v3063, %v8398
    %v8724 = vsel %vm1467, %v3064, %v8400
    %v8725 = vsel %vm1467, %v3065, %v8402
    %v8726 = vsel %vm1467, %v3066, %v8404
    %v8727 = vsel %vm1467, %v3067, %v8406
    %v8728 = vsel %vm1467, %v3068, %v8408
    %v8729 = vsel %vm469, %v8697, %v8474
    %v8730 = vsel %vm469, %v8698, %v8476
    %v8731 = vsel %vm469, %v8699, %v8478
    %v8732 = vsel %vm469, %v8700, %v8480
    %v8733 = vsel %vm469, %v8701, %v8482
    %v8734 = vsel %vm469, %v8702, %v8484
    %v8735 = vsel %vm469, %v8703, %v8486
    %v8736 = vsel %vm469, %v8704, %v8488
    %v8737 = vsel %vm469, %v8705, %v8490
    %v8738 = vsel %vm469, %v8706, %v8492
    %v8739 = vsel %vm469, %v8707, %v8494
    %v8740 = vsel %vm469, %v8708, %v8496
    %v8741 = vsel %vm469, %v8709, %v8498
    %v8742 = vsel %vm469, %v8710, %v8500
    %v8743 = vsel %vm469, %v8711, %v8502
    %v8744 = vsel %vm469, %v8712, %v8504
    %v8745 = vsel %vm469, %v8713, %v8506
    %v8746 = vsel %vm469, %v8714, %v8508
    %v8747 = vsel %vm469, %v8715, %v8510
    %v8748 = vsel %vm469, %v8716, %v8512
    %v8749 = vsel %vm469, %v8717, %v8514
    %v8750 = vsel %vm469, %v8718, %v8516
    %v8751 = vsel %vm469, %v8719, %v8518
    %v8752 = vsel %vm469, %v8720, %v8520
    %v8753 = vsel %vm469, %v8721, %v8522
    %v8754 = vsel %vm469, %v8722, %v8524
    %v8755 = vsel %vm469, %v8723, %v8526
    %v8756 = vsel %vm469, %v8724, %v8528
    %v8757 = vsel %vm469, %v8725, %v8530
    %v8758 = vsel %vm469, %v8726, %v8532
    %v8759 = vsel %vm469, %v8727, %v8534
    %v8760 = vsel %vm469, %v8728, %v8536
    %vm8761 = vcmask 195584
    %v8762 = vsel %vm8761, %v8729, %v8602
    %v8763 = vsel %vm8761, %v8730, %v8604
    %v8764 = vsel %vm8761, %v8731, %v8606
    %v8765 = vsel %vm8761, %v8732, %v8608
    %v8766 = vsel %vm8761, %v8733, %v8610
    %v8767 = vsel %vm8761, %v8734, %v8612
    %v8768 = vsel %vm8761, %v8735, %v8614
    %v8769 = vsel %vm8761, %v8736, %v8616
    %v8770 = vsel %vm8761, %v8737, %v8618
    %v8771 = vsel %vm8761, %v8738, %v8620
    %v8772 = vsel %vm8761, %v8739, %v8622
    %v8773 = vsel %vm8761, %v8740, %v8624
    %v8774 = vsel %vm8761, %v8741, %v8626
    %v8775 = vsel %vm8761, %v8742, %v8628
    %v8776 = vsel %vm8761, %v8743, %v8630
    %v8777 = vsel %vm8761, %v8744, %v8632
    %v8778 = vsel %vm8761, %v8745, %v8634
    %v8779 = vsel %vm8761, %v8746, %v8636
    %v8780 = vsel %vm8761, %v8747, %v8638
    %v8781 = vsel %vm8761, %v8748, %v8640
    %v8782 = vsel %vm8761, %v8749, %v8642
    %v8783 = vsel %vm8761, %v8750, %v8644
    %v8784 = vsel %vm8761, %v8751, %v8646
    %v8785 = vsel %vm8761, %v8752, %v8648
    %v8786 = vsel %vm8761, %v8753, %v8650
    %v8787 = vsel %vm8761, %v8754, %v8652
    %v8788 = vsel %vm8761, %v8755, %v8654
    %v8789 = vsel %vm8761, %v8756, %v8656
    %v8790 = vsel %vm8761, %v8757, %v8658
    %v8791 = vsel %vm8761, %v8758, %v8660
    %v8792 = vsel %vm8761, %v8759, %v8662
    %v8793 = vsel %vm8761, %v8760, %v8664
    %v8794 = vpack.c.bf16 %v8763, %v8762
    %v8795 = vpack.c.bf16 %v8765, %v8764
    %v8796 = vpack.c.bf16 %v8767, %v8766
    %v8797 = vpack.c.bf16 %v8769, %v8768
    %v8798 = vpack.c.bf16 %v8771, %v8770
    %v8799 = vpack.c.bf16 %v8773, %v8772
    %v8800 = vpack.c.bf16 %v8775, %v8774
    %v8801 = vpack.c.bf16 %v8777, %v8776
    %v8802 = vpack.c.bf16 %v8779, %v8778
    %v8803 = vpack.c.bf16 %v8781, %v8780
    %v8804 = vpack.c.bf16 %v8783, %v8782
    %v8805 = vpack.c.bf16 %v8785, %v8784
    %v8806 = vpack.c.bf16 %v8787, %v8786
    %v8807 = vpack.c.bf16 %v8789, %v8788
    %v8808 = vpack.c.bf16 %v8791, %v8790
    %v8809 = vpack.c.bf16 %v8793, %v8792
    %v8810 = vld [vmem:[%s9] sm:$0xf]
    %v8811 = vld [vmem:[%s9 + $0x4] sm:$0xf]
    %v8812 = vld [vmem:[%s9 + $0x8] sm:$0xf]
    %v8813 = vld [vmem:[%s9 + $0xc] sm:$0xf]
    %v8814 = vld [vmem:[%s10] sm:$0x1]
    %v8816 = vlaneseq
    %v8817 = vshrl.u32 %v8816, 7
    %v8818 = vsub.s32 0, %v8817
    %v8819 = vrot.slane %v8814, %v8818
    %v8825 = vunpack.c.l.b16 %v8810
    %v8826 = vunpack.c.l.b16 %v8811
    %v8827 = vunpack.c.l.b16 %v8812
    %v8828 = vunpack.c.l.b16 %v8813
    %v8829 = vpack.c.b16 %v8826, %v8825
    %v8830 = vpack.c.b16 %v8828, %v8827
    %v8834 = vsel %vm244, %v8794, 0
    %v8837 = vsel %vm244, %v8795, 0
    %v8840 = vsel %vm244, %v8796, 0
    %v8843 = vsel %vm244, %v8797, 0
    %v8846 = vsel %vm244, %v8798, 0
    %v8849 = vsel %vm244, %v8799, 0
    %v8852 = vsel %vm244, %v8800, 0
    %v8855 = vsel %vm244, %v8801, 0
    %v8858 = vsel %vm244, %v8802, 0
    %v8861 = vsel %vm244, %v8803, 0
    %v8864 = vsel %vm244, %v8804, 0
    %v8867 = vsel %vm244, %v8805, 0
    %v8870 = vsel %vm244, %v8806, 0
    %v8873 = vsel %vm244, %v8807, 0
    %v8876 = vsel %vm244, %v8808, 0
    %v8879 = vsel %vm244, %v8809, 0
    %8881 = vmatprep.subr.bf16.mxu0 0
    %8882 = vmatpush1.bf16.msra.mxu0 %v8829
    %8883 = vmatprep.subr.bf16.mxu0 0
    %8884 = vmatpush1.bf16.msra.mxu0 %v8830
    %8885 = vmatprep.subr.bf16.mxu0 0
    %8886 = vmatpush1.bf16.msra.mxu0 0
    %8887 = vmatprep.subr.bf16.mxu0 0
    %8888 = vmatpush1.bf16.msra.mxu0 0
    %8889 = vmatprep.subr.bf16.mxu0 0
    %8890 = vmatpush1.bf16.msra.mxu0 0
    %8891 = vmatprep.subr.bf16.mxu0 0
    %8892 = vmatpush1.bf16.msra.mxu0 0
    %8893 = vmatprep.subr.bf16.mxu0 0
    %8894 = vmatpush1.bf16.msra.mxu0 0
    %8895 = vmatprep.subr.bf16.mxu0 0
    %8896 = vmatpush1.bf16.msra.mxu0 0
    %8897 = vmatprep.subr.bf16.mxu0 0
    %8898 = vmatpush1.bf16.msra.mxu0 0
    %8899 = vmatprep.subr.bf16.mxu0 0
    %8900 = vmatpush1.bf16.msra.mxu0 0
    %8901 = vmatprep.subr.bf16.mxu0 0
    %8902 = vmatpush1.bf16.msra.mxu0 0
    %8903 = vmatprep.subr.bf16.mxu0 0
    %8904 = vmatpush1.bf16.msra.mxu0 0
    %8905 = vmatprep.subr.bf16.mxu0 0
    %8906 = vmatpush1.bf16.msra.mxu0 0
    %8907 = vmatprep.subr.bf16.mxu0 0
    %8908 = vmatpush1.bf16.msra.mxu0 0
    %8909 = vmatprep.subr.bf16.mxu0 0
    %8910 = vmatpush1.bf16.msra.mxu0 0
    %8911 = vmatprep.subr.bf16.mxu0 0
    %8912 = vmatpush1.bf16.msra.mxu0 0
    %8913 = vmatprep.mubr.bf16.mxu0 0
    %8914 = vmatmul.mubr.bf16.gmra.mrb[0].mxu0 %v8834
    %v8915 = vpop.f32.mrb[0].mxu0
    %v8916 = vadd.f32 %v8819, %v8915
    %v8917 = vpop.f32.mrb[0].mxu0
    %v8918 = vpop.f32.mrb[0].mxu0
    %v8919 = vadd.f32 %v8819, %v8918
    %v8920 = vpop.f32.mrb[0].mxu0
    %8921 = vmatprep.mubr.bf16.mxu0 0
    %8922 = vmatmul.mubr.bf16.gmra.mrb[0].mxu0 %v8837
    %v8923 = vpop.f32.mrb[0].mxu0
    %v8924 = vadd.f32 %v8819, %v8923
    %v8925 = vpop.f32.mrb[0].mxu0
    %v8926 = vpop.f32.mrb[0].mxu0
    %v8927 = vadd.f32 %v8819, %v8926
    %v8928 = vpop.f32.mrb[0].mxu0
    %8929 = vmatprep.mubr.bf16.mxu0 0
    %8930 = vmatmul.mubr.bf16.gmra.mrb[0].mxu0 %v8840
    %v8931 = vpop.f32.mrb[0].mxu0
    %v8932 = vadd.f32 %v8819, %v8931
    %v8933 = vpop.f32.mrb[0].mxu0
    %v8934 = vpop.f32.mrb[0].mxu0
    %v8935 = vadd.f32 %v8819, %v8934
    %v8936 = vpop.f32.mrb[0].mxu0
    %8937 = vmatprep.mubr.bf16.mxu0 0
    %8938 = vmatmul.mubr.bf16.gmra.mrb[0].mxu0 %v8843
    %v8939 = vpop.f32.mrb[0].mxu0
    %v8940 = vadd.f32 %v8819, %v8939
    %v8941 = vpop.f32.mrb[0].mxu0
    %v8942 = vpop.f32.mrb[0].mxu0
    %v8943 = vadd.f32 %v8819, %v8942
    %v8944 = vpop.f32.mrb[0].mxu0
    %8945 = vmatprep.mubr.bf16.mxu0 0
    %8946 = vmatmul.mubr.bf16.gmra.mrb[0].mxu0 %v8846
    %v8947 = vpop.f32.mrb[0].mxu0
    %v8948 = vadd.f32 %v8819, %v8947
    %v8949 = vpop.f32.mrb[0].mxu0
    %v8950 = vpop.f32.mrb[0].mxu0
    %v8951 = vadd.f32 %v8819, %v8950
    %v8952 = vpop.f32.mrb[0].mxu0
    %8953 = vmatprep.mubr.bf16.mxu0 0
    %8954 = vmatmul.mubr.bf16.gmra.mrb[0].mxu0 %v8849
    %v8955 = vpop.f32.mrb[0].mxu0
    %v8956 = vadd.f32 %v8819, %v8955
    %v8957 = vpop.f32.mrb[0].mxu0
    %v8958 = vpop.f32.mrb[0].mxu0
    %v8959 = vadd.f32 %v8819, %v8958
    %v8960 = vpop.f32.mrb[0].mxu0
    %8961 = vmatprep.mubr.bf16.mxu0 0
    %8962 = vmatmul.mubr.bf16.gmra.mrb[0].mxu0 %v8852
    %v8963 = vpop.f32.mrb[0].mxu0
    %v8964 = vadd.f32 %v8819, %v8963
    %v8965 = vpop.f32.mrb[0].mxu0
    %v8966 = vpop.f32.mrb[0].mxu0
    %v8967 = vadd.f32 %v8819, %v8966
    %v8968 = vpop.f32.mrb[0].mxu0
    %8969 = vmatprep.mubr.bf16.mxu0 0
    %8970 = vmatmul.mubr.bf16.gmra.mrb[0].mxu0 %v8855
    %v8971 = vpop.f32.mrb[0].mxu0
    %v8972 = vadd.f32 %v8819, %v8971
    %v8973 = vpop.f32.mrb[0].mxu0
    %v8974 = vpop.f32.mrb[0].mxu0
    %v8975 = vadd.f32 %v8819, %v8974
    %v8976 = vpop.f32.mrb[0].mxu0
    %8977 = vmatprep.mubr.bf16.mxu0 0
    %8978 = vmatmul.mubr.bf16.gmra.mrb[0].mxu0 %v8858
    %v8979 = vpop.f32.mrb[0].mxu0
    %v8980 = vadd.f32 %v8819, %v8979
    %v8981 = vpop.f32.mrb[0].mxu0
    %v8982 = vpop.f32.mrb[0].mxu0
    %v8983 = vadd.f32 %v8819, %v8982
    %v8984 = vpop.f32.mrb[0].mxu0
    %8985 = vmatprep.mubr.bf16.mxu0 0
    %8986 = vmatmul.mubr.bf16.gmra.mrb[0].mxu0 %v8861
    %v8987 = vpop.f32.mrb[0].mxu0
    %v8988 = vadd.f32 %v8819, %v8987
    %v8989 = vpop.f32.mrb[0].mxu0
    %v8990 = vpop.f32.mrb[0].mxu0
    %v8991 = vadd.f32 %v8819, %v8990
    %v8992 = vpop.f32.mrb[0].mxu0
    %8993 = vmatprep.mubr.bf16.mxu0 0
    %8994 = vmatmul.mubr.bf16.gmra.mrb[0].mxu0 %v8864
    %v8995 = vpop.f32.mrb[0].mxu0
    %v8996 = vadd.f32 %v8819, %v8995
    %v8997 = vpop.f32.mrb[0].mxu0
    %v8998 = vpop.f32.mrb[0].mxu0
    %v8999 = vadd.f32 %v8819, %v8998
    %v9000 = vpop.f32.mrb[0].mxu0
    %9001 = vmatprep.mubr.bf16.mxu0 0
    %9002 = vmatmul.mubr.bf16.gmra.mrb[0].mxu0 %v8867
    %v9003 = vpop.f32.mrb[0].mxu0
    %v9004 = vadd.f32 %v8819, %v9003
    %v9005 = vpop.f32.mrb[0].mxu0
    %v9006 = vpop.f32.mrb[0].mxu0
    %v9007 = vadd.f32 %v8819, %v9006
    %v9008 = vpop.f32.mrb[0].mxu0
    %9009 = vmatprep.mubr.bf16.mxu0 0
    %9010 = vmatmul.mubr.bf16.gmra.mrb[0].mxu0 %v8870
    %v9011 = vpop.f32.mrb[0].mxu0
    %v9012 = vadd.f32 %v8819, %v9011
    %v9013 = vpop.f32.mrb[0].mxu0
    %v9014 = vpop.f32.mrb[0].mxu0
    %v9015 = vadd.f32 %v8819, %v9014
    %v9016 = vpop.f32.mrb[0].mxu0
    %9017 = vmatprep.mubr.bf16.mxu0 0
    %9018 = vmatmul.mubr.bf16.gmra.mrb[0].mxu0 %v8873
    %v9019 = vpop.f32.mrb[0].mxu0
    %v9020 = vadd.f32 %v8819, %v9019
    %v9021 = vpop.f32.mrb[0].mxu0
    %v9022 = vpop.f32.mrb[0].mxu0
    %v9023 = vadd.f32 %v8819, %v9022
    %v9024 = vpop.f32.mrb[0].mxu0
    %9025 = vmatprep.mubr.bf16.mxu0 0
    %9026 = vmatmul.mubr.bf16.gmra.mrb[0].mxu0 %v8876
    %v9027 = vpop.f32.mrb[0].mxu0
    %v9028 = vadd.f32 %v8819, %v9027
    %v9029 = vpop.f32.mrb[0].mxu0
    %v9030 = vpop.f32.mrb[0].mxu0
    %v9031 = vadd.f32 %v8819, %v9030
    %v9032 = vpop.f32.mrb[0].mxu0
    %9033 = vmatprep.mubr.bf16.mxu0 0
    %9034 = vmatmul.mubr.bf16.gmra.mrb[0].mxu0 %v8879
    %v9035 = vpop.f32.mrb[0].mxu0
    %v9036 = vadd.f32 %v8819, %v9035
    %v9037 = vpop.f32.mrb[0].mxu0
    %v9038 = vpop.f32.mrb[0].mxu0
    %v9039 = vadd.f32 %v8819, %v9038
    %v9040 = vpop.f32.mrb[0].mxu0
    %9041 = vdwg.mxu0
    %v9042 = vadd.f32 %v77, %v8916
    %v9043 = vadd.f32 %v78, %v8919
    %v9044 = vadd.f32 %v79, %v8924
    %v9045 = vadd.f32 %v80, %v8927
    %v9046 = vadd.f32 %v81, %v8932
    %v9047 = vadd.f32 %v82, %v8935
    %v9048 = vadd.f32 %v83, %v8940
    %v9049 = vadd.f32 %v84, %v8943
    %v9050 = vadd.f32 %v85, %v8948
    %v9051 = vadd.f32 %v86, %v8951
    %v9052 = vadd.f32 %v87, %v8956
    %v9053 = vadd.f32 %v88, %v8959
    %v9054 = vadd.f32 %v89, %v8964
    %v9055 = vadd.f32 %v90, %v8967
    %v9056 = vadd.f32 %v91, %v8972
    %v9057 = vadd.f32 %v92, %v8975
    %v9058 = vadd.f32 %v93, %v8980
    %v9059 = vadd.f32 %v94, %v8983
    %v9060 = vadd.f32 %v95, %v8988
    %v9061 = vadd.f32 %v96, %v8991
    %v9062 = vadd.f32 %v97, %v8996
    %v9063 = vadd.f32 %v98, %v8999
    %v9064 = vadd.f32 %v99, %v9004
    %v9065 = vadd.f32 %v100, %v9007
    %v9066 = vadd.f32 %v101, %v9012
    %v9067 = vadd.f32 %v102, %v9015
    %v9068 = vadd.f32 %v103, %v9020
    %v9069 = vadd.f32 %v104, %v9023
    %v9070 = vadd.f32 %v105, %v9028
    %v9071 = vadd.f32 %v106, %v9031
    %v9072 = vadd.f32 %v107, %v9036
    %v9073 = vadd.f32 %v108, %v9039
    %v9074 = vsel %vm244, %v9042, 0.0
    %9075 = vadd.xlane.f32.xlu0 %v9074
    %v9076 = vpop.xlane.xlu0 %9075
    %v9077 = vsel %vm244, %v9043, 0.0
    %9078 = vadd.xlane.f32.xlu0 %v9077
    %v9079 = vpop.xlane.xlu0 %9078
    %v9080 = vsel %vm244, %v9044, 0.0
    %9081 = vadd.xlane.f32.xlu0 %v9080
    %v9082 = vpop.xlane.xlu0 %9081
    %v9083 = vsel %vm244, %v9045, 0.0
    %9084 = vadd.xlane.f32.xlu0 %v9083
    %v9085 = vpop.xlane.xlu0 %9084
    %v9086 = vsel %vm244, %v9046, 0.0
    %9087 = vadd.xlane.f32.xlu0 %v9086
    %v9088 = vpop.xlane.xlu0 %9087
    %v9089 = vsel %vm244, %v9047, 0.0
    %9090 = vadd.xlane.f32.xlu0 %v9089
    %v9091 = vpop.xlane.xlu0 %9090
    %v9092 = vsel %vm244, %v9048, 0.0
    %9093 = vadd.xlane.f32.xlu0 %v9092
    %v9094 = vpop.xlane.xlu0 %9093
    %v9095 = vsel %vm244, %v9049, 0.0
    %9096 = vadd.xlane.f32.xlu0 %v9095
    %v9097 = vpop.xlane.xlu0 %9096
    %v9098 = vsel %vm244, %v9050, 0.0
    %9099 = vadd.xlane.f32.xlu0 %v9098
    %v9100 = vpop.xlane.xlu0 %9099
    %v9101 = vsel %vm244, %v9051, 0.0
    %9102 = vadd.xlane.f32.xlu0 %v9101
    %v9103 = vpop.xlane.xlu0 %9102
    %v9104 = vsel %vm244, %v9052, 0.0
    %9105 = vadd.xlane.f32.xlu0 %v9104
    %v9106 = vpop.xlane.xlu0 %9105
    %v9107 = vsel %vm244, %v9053, 0.0
    %9108 = vadd.xlane.f32.xlu0 %v9107
    %v9109 = vpop.xlane.xlu0 %9108
    %v9110 = vsel %vm244, %v9054, 0.0
    %9111 = vadd.xlane.f32.xlu0 %v9110
    %v9112 = vpop.xlane.xlu0 %9111
    %v9113 = vsel %vm244, %v9055, 0.0
    %9114 = vadd.xlane.f32.xlu0 %v9113
    %v9115 = vpop.xlane.xlu0 %9114
    %v9116 = vsel %vm244, %v9056, 0.0
    %9117 = vadd.xlane.f32.xlu0 %v9116
    %v9118 = vpop.xlane.xlu0 %9117
    %v9119 = vsel %vm244, %v9057, 0.0
    %9120 = vadd.xlane.f32.xlu0 %v9119
    %v9121 = vpop.xlane.xlu0 %9120
    %v9122 = vsel %vm244, %v9058, 0.0
    %9123 = vadd.xlane.f32.xlu0 %v9122
    %v9124 = vpop.xlane.xlu0 %9123
    %v9125 = vsel %vm244, %v9059, 0.0
    %9126 = vadd.xlane.f32.xlu0 %v9125
    %v9127 = vpop.xlane.xlu0 %9126
    %v9128 = vsel %vm244, %v9060, 0.0
    %9129 = vadd.xlane.f32.xlu0 %v9128
    %v9130 = vpop.xlane.xlu0 %9129
    %v9131 = vsel %vm244, %v9061, 0.0
    %9132 = vadd.xlane.f32.xlu0 %v9131
    %v9133 = vpop.xlane.xlu0 %9132
    %v9134 = vsel %vm244, %v9062, 0.0
    %9135 = vadd.xlane.f32.xlu0 %v9134
    %v9136 = vpop.xlane.xlu0 %9135
    %v9137 = vsel %vm244, %v9063, 0.0
    %9138 = vadd.xlane.f32.xlu0 %v9137
    %v9139 = vpop.xlane.xlu0 %9138
    %v9140 = vsel %vm244, %v9064, 0.0
    %9141 = vadd.xlane.f32.xlu0 %v9140
    %v9142 = vpop.xlane.xlu0 %9141
    %v9143 = vsel %vm244, %v9065, 0.0
    %9144 = vadd.xlane.f32.xlu0 %v9143
    %v9145 = vpop.xlane.xlu0 %9144
    %v9146 = vsel %vm244, %v9066, 0.0
    %9147 = vadd.xlane.f32.xlu0 %v9146
    %v9148 = vpop.xlane.xlu0 %9147
    %v9149 = vsel %vm244, %v9067, 0.0
    %9150 = vadd.xlane.f32.xlu0 %v9149
    %v9151 = vpop.xlane.xlu0 %9150
    %v9152 = vsel %vm244, %v9068, 0.0
    %9153 = vadd.xlane.f32.xlu0 %v9152
    %v9154 = vpop.xlane.xlu0 %9153
    %v9155 = vsel %vm244, %v9069, 0.0
    %9156 = vadd.xlane.f32.xlu0 %v9155
    %v9157 = vpop.xlane.xlu0 %9156
    %v9158 = vsel %vm244, %v9070, 0.0
    %9159 = vadd.xlane.f32.xlu0 %v9158
    %v9160 = vpop.xlane.xlu0 %9159
    %v9161 = vsel %vm244, %v9071, 0.0
    %9162 = vadd.xlane.f32.xlu0 %v9161
    %v9163 = vpop.xlane.xlu0 %9162
    %v9164 = vsel %vm244, %v9072, 0.0
    %9165 = vadd.xlane.f32.xlu0 %v9164
    %v9166 = vpop.xlane.xlu0 %9165
    %v9167 = vsel %vm244, %v9073, 0.0
    %9168 = vadd.xlane.f32.xlu0 %v9167
    %v9169 = vpop.xlane.xlu0 %9168
    %v9170 = vrcp.pop 32.0
    %v9171 = vmul.f32 %v9076, %v9170
    %v9172 = vmul.f32 %v9079, %v9170
    %v9173 = vmul.f32 %v9082, %v9170
    %v9174 = vmul.f32 %v9085, %v9170
    %v9175 = vmul.f32 %v9088, %v9170
    %v9176 = vmul.f32 %v9091, %v9170
    %v9177 = vmul.f32 %v9094, %v9170
    %v9178 = vmul.f32 %v9097, %v9170
    %v9179 = vmul.f32 %v9100, %v9170
    %v9180 = vmul.f32 %v9103, %v9170
    %v9181 = vmul.f32 %v9106, %v9170
    %v9182 = vmul.f32 %v9109, %v9170
    %v9183 = vmul.f32 %v9112, %v9170
    %v9184 = vmul.f32 %v9115, %v9170
    %v9185 = vmul.f32 %v9118, %v9170
    %v9186 = vmul.f32 %v9121, %v9170
    %v9187 = vmul.f32 %v9124, %v9170
    %v9188 = vmul.f32 %v9127, %v9170
    %v9189 = vmul.f32 %v9130, %v9170
    %v9190 = vmul.f32 %v9133, %v9170
    %v9191 = vmul.f32 %v9136, %v9170
    %v9192 = vmul.f32 %v9139, %v9170
    %v9193 = vmul.f32 %v9142, %v9170
    %v9194 = vmul.f32 %v9145, %v9170
    %v9195 = vmul.f32 %v9148, %v9170
    %v9196 = vmul.f32 %v9151, %v9170
    %v9197 = vmul.f32 %v9154, %v9170
    %v9198 = vmul.f32 %v9157, %v9170
    %v9199 = vmul.f32 %v9160, %v9170
    %v9200 = vmul.f32 %v9163, %v9170
    %v9201 = vmul.f32 %v9166, %v9170
    %v9202 = vmul.f32 %v9169, %v9170
    %v9203 = vsub.f32 %v9042, %v9171
    %v9204 = vsub.f32 %v9043, %v9172
    %v9205 = vsub.f32 %v9044, %v9173
    %v9206 = vsub.f32 %v9045, %v9174
    %v9207 = vsub.f32 %v9046, %v9175
    %v9208 = vsub.f32 %v9047, %v9176
    %v9209 = vsub.f32 %v9048, %v9177
    %v9210 = vsub.f32 %v9049, %v9178
    %v9211 = vsub.f32 %v9050, %v9179
    %v9212 = vsub.f32 %v9051, %v9180
    %v9213 = vsub.f32 %v9052, %v9181
    %v9214 = vsub.f32 %v9053, %v9182
    %v9215 = vsub.f32 %v9054, %v9183
    %v9216 = vsub.f32 %v9055, %v9184
    %v9217 = vsub.f32 %v9056, %v9185
    %v9218 = vsub.f32 %v9057, %v9186
    %v9219 = vsub.f32 %v9058, %v9187
    %v9220 = vsub.f32 %v9059, %v9188
    %v9221 = vsub.f32 %v9060, %v9189
    %v9222 = vsub.f32 %v9061, %v9190
    %v9223 = vsub.f32 %v9062, %v9191
    %v9224 = vsub.f32 %v9063, %v9192
    %v9225 = vsub.f32 %v9064, %v9193
    %v9226 = vsub.f32 %v9065, %v9194
    %v9227 = vsub.f32 %v9066, %v9195
    %v9228 = vsub.f32 %v9067, %v9196
    %v9229 = vsub.f32 %v9068, %v9197
    %v9230 = vsub.f32 %v9069, %v9198
    %v9231 = vsub.f32 %v9070, %v9199
    %v9232 = vsub.f32 %v9071, %v9200
    %v9233 = vsub.f32 %v9072, %v9201
    %v9234 = vsub.f32 %v9073, %v9202
    %v9235 = vmul.f32 %v9203, %v9203
    %v9236 = vmul.f32 %v9204, %v9204
    %v9237 = vmul.f32 %v9205, %v9205
    %v9238 = vmul.f32 %v9206, %v9206
    %v9239 = vmul.f32 %v9207, %v9207
    %v9240 = vmul.f32 %v9208, %v9208
    %v9241 = vmul.f32 %v9209, %v9209
    %v9242 = vmul.f32 %v9210, %v9210
    %v9243 = vmul.f32 %v9211, %v9211
    %v9244 = vmul.f32 %v9212, %v9212
    %v9245 = vmul.f32 %v9213, %v9213
    %v9246 = vmul.f32 %v9214, %v9214
    %v9247 = vmul.f32 %v9215, %v9215
    %v9248 = vmul.f32 %v9216, %v9216
    %v9249 = vmul.f32 %v9217, %v9217
    %v9250 = vmul.f32 %v9218, %v9218
    %v9251 = vmul.f32 %v9219, %v9219
    %v9252 = vmul.f32 %v9220, %v9220
    %v9253 = vmul.f32 %v9221, %v9221
    %v9254 = vmul.f32 %v9222, %v9222
    %v9255 = vmul.f32 %v9223, %v9223
    %v9256 = vmul.f32 %v9224, %v9224
    %v9257 = vmul.f32 %v9225, %v9225
    %v9258 = vmul.f32 %v9226, %v9226
    %v9259 = vmul.f32 %v9227, %v9227
    %v9260 = vmul.f32 %v9228, %v9228
    %v9261 = vmul.f32 %v9229, %v9229
    %v9262 = vmul.f32 %v9230, %v9230
    %v9263 = vmul.f32 %v9231, %v9231
    %v9264 = vmul.f32 %v9232, %v9232
    %v9265 = vmul.f32 %v9233, %v9233
    %v9266 = vmul.f32 %v9234, %v9234
    %v9267 = vsel %vm244, %v9235, 0.0
    %9268 = vadd.xlane.f32.xlu0 %v9267
    %v9269 = vpop.xlane.xlu0 %9268
    %v9270 = vsel %vm244, %v9236, 0.0
    %9271 = vadd.xlane.f32.xlu0 %v9270
    %v9272 = vpop.xlane.xlu0 %9271
    %v9273 = vsel %vm244, %v9237, 0.0
    %9274 = vadd.xlane.f32.xlu0 %v9273
    %v9275 = vpop.xlane.xlu0 %9274
    %v9276 = vsel %vm244, %v9238, 0.0
    %9277 = vadd.xlane.f32.xlu0 %v9276
    %v9278 = vpop.xlane.xlu0 %9277
    %v9279 = vsel %vm244, %v9239, 0.0
    %9280 = vadd.xlane.f32.xlu0 %v9279
    %v9281 = vpop.xlane.xlu0 %9280
    %v9282 = vsel %vm244, %v9240, 0.0
    %9283 = vadd.xlane.f32.xlu0 %v9282
    %v9284 = vpop.xlane.xlu0 %9283
    %v9285 = vsel %vm244, %v9241, 0.0
    %9286 = vadd.xlane.f32.xlu0 %v9285
    %v9287 = vpop.xlane.xlu0 %9286
    %v9288 = vsel %vm244, %v9242, 0.0
    %9289 = vadd.xlane.f32.xlu0 %v9288
    %v9290 = vpop.xlane.xlu0 %9289
    %v9291 = vsel %vm244, %v9243, 0.0
    %9292 = vadd.xlane.f32.xlu0 %v9291
    %v9293 = vpop.xlane.xlu0 %9292
    %v9294 = vsel %vm244, %v9244, 0.0
    %9295 = vadd.xlane.f32.xlu0 %v9294
    %v9296 = vpop.xlane.xlu0 %9295
    %v9297 = vsel %vm244, %v9245, 0.0
    %9298 = vadd.xlane.f32.xlu0 %v9297
    %v9299 = vpop.xlane.xlu0 %9298
    %v9300 = vsel %vm244, %v9246, 0.0
    %9301 = vadd.xlane.f32.xlu0 %v9300
    %v9302 = vpop.xlane.xlu0 %9301
    %v9303 = vsel %vm244, %v9247, 0.0
    %9304 = vadd.xlane.f32.xlu0 %v9303
    %v9305 = vpop.xlane.xlu0 %9304
    %v9306 = vsel %vm244, %v9248, 0.0
    %9307 = vadd.xlane.f32.xlu0 %v9306
    %v9308 = vpop.xlane.xlu0 %9307
    %v9309 = vsel %vm244, %v9249, 0.0
    %9310 = vadd.xlane.f32.xlu0 %v9309
    %v9311 = vpop.xlane.xlu0 %9310
    %v9312 = vsel %vm244, %v9250, 0.0
    %9313 = vadd.xlane.f32.xlu0 %v9312
    %v9314 = vpop.xlane.xlu0 %9313
    %v9315 = vsel %vm244, %v9251, 0.0
    %9316 = vadd.xlane.f32.xlu0 %v9315
    %v9317 = vpop.xlane.xlu0 %9316
    %v9318 = vsel %vm244, %v9252, 0.0
    %9319 = vadd.xlane.f32.xlu0 %v9318
    %v9320 = vpop.xlane.xlu0 %9319
    %v9321 = vsel %vm244, %v9253, 0.0
    %9322 = vadd.xlane.f32.xlu0 %v9321
    %v9323 = vpop.xlane.xlu0 %9322
    %v9324 = vsel %vm244, %v9254, 0.0
    %9325 = vadd.xlane.f32.xlu0 %v9324
    %v9326 = vpop.xlane.xlu0 %9325
    %v9327 = vsel %vm244, %v9255, 0.0
    %9328 = vadd.xlane.f32.xlu0 %v9327
    %v9329 = vpop.xlane.xlu0 %9328
    %v9330 = vsel %vm244, %v9256, 0.0
    %9331 = vadd.xlane.f32.xlu0 %v9330
    %v9332 = vpop.xlane.xlu0 %9331
    %v9333 = vsel %vm244, %v9257, 0.0
    %9334 = vadd.xlane.f32.xlu0 %v9333
    %v9335 = vpop.xlane.xlu0 %9334
    %v9336 = vsel %vm244, %v9258, 0.0
    %9337 = vadd.xlane.f32.xlu0 %v9336
    %v9338 = vpop.xlane.xlu0 %9337
    %v9339 = vsel %vm244, %v9259, 0.0
    %9340 = vadd.xlane.f32.xlu0 %v9339
    %v9341 = vpop.xlane.xlu0 %9340
    %v9342 = vsel %vm244, %v9260, 0.0
    %9343 = vadd.xlane.f32.xlu0 %v9342
    %v9344 = vpop.xlane.xlu0 %9343
    %v9345 = vsel %vm244, %v9261, 0.0
    %9346 = vadd.xlane.f32.xlu0 %v9345
    %v9347 = vpop.xlane.xlu0 %9346
    %v9348 = vsel %vm244, %v9262, 0.0
    %9349 = vadd.xlane.f32.xlu0 %v9348
    %v9350 = vpop.xlane.xlu0 %9349
    %v9351 = vsel %vm244, %v9263, 0.0
    %9352 = vadd.xlane.f32.xlu0 %v9351
    %v9353 = vpop.xlane.xlu0 %9352
    %v9354 = vsel %vm244, %v9264, 0.0
    %9355 = vadd.xlane.f32.xlu0 %v9354
    %v9356 = vpop.xlane.xlu0 %9355
    %v9357 = vsel %vm244, %v9265, 0.0
    %9358 = vadd.xlane.f32.xlu0 %v9357
    %v9359 = vpop.xlane.xlu0 %9358
    %v9360 = vsel %vm244, %v9266, 0.0
    %9361 = vadd.xlane.f32.xlu0 %v9360
    %v9362 = vpop.xlane.xlu0 %9361
    %v9363 = vmul.f32 %v9269, %v9170
    %v9364 = vmul.f32 %v9272, %v9170
    %v9365 = vmul.f32 %v9275, %v9170
    %v9366 = vmul.f32 %v9278, %v9170
    %v9367 = vmul.f32 %v9281, %v9170
    %v9368 = vmul.f32 %v9284, %v9170
    %v9369 = vmul.f32 %v9287, %v9170
    %v9370 = vmul.f32 %v9290, %v9170
    %v9371 = vmul.f32 %v9293, %v9170
    %v9372 = vmul.f32 %v9296, %v9170
    %v9373 = vmul.f32 %v9299, %v9170
    %v9374 = vmul.f32 %v9302, %v9170
    %v9375 = vmul.f32 %v9305, %v9170
    %v9376 = vmul.f32 %v9308, %v9170
    %v9377 = vmul.f32 %v9311, %v9170
    %v9378 = vmul.f32 %v9314, %v9170
    %v9379 = vmul.f32 %v9317, %v9170
    %v9380 = vmul.f32 %v9320, %v9170
    %v9381 = vmul.f32 %v9323, %v9170
    %v9382 = vmul.f32 %v9326, %v9170
    %v9383 = vmul.f32 %v9329, %v9170
    %v9384 = vmul.f32 %v9332, %v9170
    %v9385 = vmul.f32 %v9335, %v9170
    %v9386 = vmul.f32 %v9338, %v9170
    %v9387 = vmul.f32 %v9341, %v9170
    %v9388 = vmul.f32 %v9344, %v9170
    %v9389 = vmul.f32 %v9347, %v9170
    %v9390 = vmul.f32 %v9350, %v9170
    %v9391 = vmul.f32 %v9353, %v9170
    %v9392 = vmul.f32 %v9356, %v9170
    %v9393 = vmul.f32 %v9359, %v9170
    %v9394 = vmul.f32 %v9362, %v9170
    %v9395 = vadd.f32 %v9363, 1e-05
    %v9396 = vadd.f32 %v9364, 1e-05
    %v9397 = vadd.f32 %v9365, 1e-05
    %v9398 = vadd.f32 %v9366, 1e-05
    %v9399 = vadd.f32 %v9367, 1e-05
    %v9400 = vadd.f32 %v9368, 1e-05
    %v9401 = vadd.f32 %v9369, 1e-05
    %v9402 = vadd.f32 %v9370, 1e-05
    %v9403 = vadd.f32 %v9371, 1e-05
    %v9404 = vadd.f32 %v9372, 1e-05
    %v9405 = vadd.f32 %v9373, 1e-05
    %v9406 = vadd.f32 %v9374, 1e-05
    %v9407 = vadd.f32 %v9375, 1e-05
    %v9408 = vadd.f32 %v9376, 1e-05
    %v9409 = vadd.f32 %v9377, 1e-05
    %v9410 = vadd.f32 %v9378, 1e-05
    %v9411 = vadd.f32 %v9379, 1e-05
    %v9412 = vadd.f32 %v9380, 1e-05
    %v9413 = vadd.f32 %v9381, 1e-05
    %v9414 = vadd.f32 %v9382, 1e-05
    %v9415 = vadd.f32 %v9383, 1e-05
    %v9416 = vadd.f32 %v9384, 1e-05
    %v9417 = vadd.f32 %v9385, 1e-05
    %v9418 = vadd.f32 %v9386, 1e-05
    %v9419 = vadd.f32 %v9387, 1e-05
    %v9420 = vadd.f32 %v9388, 1e-05
    %v9421 = vadd.f32 %v9389, 1e-05
    %v9422 = vadd.f32 %v9390, 1e-05
    %v9423 = vadd.f32 %v9391, 1e-05
    %v9424 = vadd.f32 %v9392, 1e-05
    %v9425 = vadd.f32 %v9393, 1e-05
    %v9426 = vadd.f32 %v9394, 1e-05
    %v9427 = vrsqrt.pop %v9395
    %v9428 = vrsqrt.pop %v9396
    %v9429 = vrsqrt.pop %v9397
    %v9430 = vrsqrt.pop %v9398
    %v9431 = vrsqrt.pop %v9399
    %v9432 = vrsqrt.pop %v9400
    %v9433 = vrsqrt.pop %v9401
    %v9434 = vrsqrt.pop %v9402
    %v9435 = vrsqrt.pop %v9403
    %v9436 = vrsqrt.pop %v9404
    %v9437 = vrsqrt.pop %v9405
    %v9438 = vrsqrt.pop %v9406
    %v9439 = vrsqrt.pop %v9407
    %v9440 = vrsqrt.pop %v9408
    %v9441 = vrsqrt.pop %v9409
    %v9442 = vrsqrt.pop %v9410
    %v9443 = vrsqrt.pop %v9411
    %v9444 = vrsqrt.pop %v9412
    %v9445 = vrsqrt.pop %v9413
    %v9446 = vrsqrt.pop %v9414
    %v9447 = vrsqrt.pop %v9415
    %v9448 = vrsqrt.pop %v9416
    %v9449 = vrsqrt.pop %v9417
    %v9450 = vrsqrt.pop %v9418
    %v9451 = vrsqrt.pop %v9419
    %v9452 = vrsqrt.pop %v9420
    %v9453 = vrsqrt.pop %v9421
    %v9454 = vrsqrt.pop %v9422
    %v9455 = vrsqrt.pop %v9423
    %v9456 = vrsqrt.pop %v9424
    %v9457 = vrsqrt.pop %v9425
    %v9458 = vrsqrt.pop %v9426
    %v9459 = vmul.f32 %v9203, %v9427
    %v9460 = vmul.f32 %v9204, %v9428
    %v9461 = vmul.f32 %v9205, %v9429
    %v9462 = vmul.f32 %v9206, %v9430
    %v9463 = vmul.f32 %v9207, %v9431
    %v9464 = vmul.f32 %v9208, %v9432
    %v9465 = vmul.f32 %v9209, %v9433
    %v9466 = vmul.f32 %v9210, %v9434
    %v9467 = vmul.f32 %v9211, %v9435
    %v9468 = vmul.f32 %v9212, %v9436
    %v9469 = vmul.f32 %v9213, %v9437
    %v9470 = vmul.f32 %v9214, %v9438
    %v9471 = vmul.f32 %v9215, %v9439
    %v9472 = vmul.f32 %v9216, %v9440
    %v9473 = vmul.f32 %v9217, %v9441
    %v9474 = vmul.f32 %v9218, %v9442
    %v9475 = vmul.f32 %v9219, %v9443
    %v9476 = vmul.f32 %v9220, %v9444
    %v9477 = vmul.f32 %v9221, %v9445
    %v9478 = vmul.f32 %v9222, %v9446
    %v9479 = vmul.f32 %v9223, %v9447
    %v9480 = vmul.f32 %v9224, %v9448
    %v9481 = vmul.f32 %v9225, %v9449
    %v9482 = vmul.f32 %v9226, %v9450
    %v9483 = vmul.f32 %v9227, %v9451
    %v9484 = vmul.f32 %v9228, %v9452
    %v9485 = vmul.f32 %v9229, %v9453
    %v9486 = vmul.f32 %v9230, %v9454
    %v9487 = vmul.f32 %v9231, %v9455
    %v9488 = vmul.f32 %v9232, %v9456
    %v9489 = vmul.f32 %v9233, %v9457
    %v9490 = vmul.f32 %v9234, %v9458
    %v9491 = vld [vmem:[%s15] sm:$0x1]
    %v9493 = vlaneseq
    %v9494 = vshrl.u32 %v9493, 7
    %v9495 = vsub.s32 0, %v9494
    %v9496 = vrot.slane %v9491, %v9495
    %v9498 = vmul.f32 %v9459, %v9496
    %v9499 = vmul.f32 %v9460, %v9496
    %v9500 = vmul.f32 %v9461, %v9496
    %v9501 = vmul.f32 %v9462, %v9496
    %v9502 = vmul.f32 %v9463, %v9496
    %v9503 = vmul.f32 %v9464, %v9496
    %v9504 = vmul.f32 %v9465, %v9496
    %v9505 = vmul.f32 %v9466, %v9496
    %v9506 = vmul.f32 %v9467, %v9496
    %v9507 = vmul.f32 %v9468, %v9496
    %v9508 = vmul.f32 %v9469, %v9496
    %v9509 = vmul.f32 %v9470, %v9496
    %v9510 = vmul.f32 %v9471, %v9496
    %v9511 = vmul.f32 %v9472, %v9496
    %v9512 = vmul.f32 %v9473, %v9496
    %v9513 = vmul.f32 %v9474, %v9496
    %v9514 = vmul.f32 %v9475, %v9496
    %v9515 = vmul.f32 %v9476, %v9496
    %v9516 = vmul.f32 %v9477, %v9496
    %v9517 = vmul.f32 %v9478, %v9496
    %v9518 = vmul.f32 %v9479, %v9496
    %v9519 = vmul.f32 %v9480, %v9496
    %v9520 = vmul.f32 %v9481, %v9496
    %v9521 = vmul.f32 %v9482, %v9496
    %v9522 = vmul.f32 %v9483, %v9496
    %v9523 = vmul.f32 %v9484, %v9496
    %v9524 = vmul.f32 %v9485, %v9496
    %v9525 = vmul.f32 %v9486, %v9496
    %v9526 = vmul.f32 %v9487, %v9496
    %v9527 = vmul.f32 %v9488, %v9496
    %v9528 = vmul.f32 %v9489, %v9496
    %v9529 = vmul.f32 %v9490, %v9496
    %v9530 = vld [vmem:[%s16] sm:$0x1]
    %v9532 = vlaneseq
    %v9533 = vshrl.u32 %v9532, 7
    %v9534 = vsub.s32 0, %v9533
    %v9535 = vrot.slane %v9530, %v9534
    %v9537 = vadd.f32 %v9498, %v9535
    %v9538 = vadd.f32 %v9499, %v9535
    %v9539 = vadd.f32 %v9500, %v9535
    %v9540 = vadd.f32 %v9501, %v9535
    %v9541 = vadd.f32 %v9502, %v9535
    %v9542 = vadd.f32 %v9503, %v9535
    %v9543 = vadd.f32 %v9504, %v9535
    %v9544 = vadd.f32 %v9505, %v9535
    %v9545 = vadd.f32 %v9506, %v9535
    %v9546 = vadd.f32 %v9507, %v9535
    %v9547 = vadd.f32 %v9508, %v9535
    %v9548 = vadd.f32 %v9509, %v9535
    %v9549 = vadd.f32 %v9510, %v9535
    %v9550 = vadd.f32 %v9511, %v9535
    %v9551 = vadd.f32 %v9512, %v9535
    %v9552 = vadd.f32 %v9513, %v9535
    %v9553 = vadd.f32 %v9514, %v9535
    %v9554 = vadd.f32 %v9515, %v9535
    %v9555 = vadd.f32 %v9516, %v9535
    %v9556 = vadd.f32 %v9517, %v9535
    %v9557 = vadd.f32 %v9518, %v9535
    %v9558 = vadd.f32 %v9519, %v9535
    %v9559 = vadd.f32 %v9520, %v9535
    %v9560 = vadd.f32 %v9521, %v9535
    %v9561 = vadd.f32 %v9522, %v9535
    %v9562 = vadd.f32 %v9523, %v9535
    %v9563 = vadd.f32 %v9524, %v9535
    %v9564 = vadd.f32 %v9525, %v9535
    %v9565 = vadd.f32 %v9526, %v9535
    %v9566 = vadd.f32 %v9527, %v9535
    %v9567 = vadd.f32 %v9528, %v9535
    %v9568 = vadd.f32 %v9529, %v9535
    %v9569 = vpack.c.bf16 %v9538, %v9537
    %v9570 = vpack.c.bf16 %v9540, %v9539
    %v9571 = vpack.c.bf16 %v9542, %v9541
    %v9572 = vpack.c.bf16 %v9544, %v9543
    %v9573 = vpack.c.bf16 %v9546, %v9545
    %v9574 = vpack.c.bf16 %v9548, %v9547
    %v9575 = vpack.c.bf16 %v9550, %v9549
    %v9576 = vpack.c.bf16 %v9552, %v9551
    %v9577 = vpack.c.bf16 %v9554, %v9553
    %v9578 = vpack.c.bf16 %v9556, %v9555
    %v9579 = vpack.c.bf16 %v9558, %v9557
    %v9580 = vpack.c.bf16 %v9560, %v9559
    %v9581 = vpack.c.bf16 %v9562, %v9561
    %v9582 = vpack.c.bf16 %v9564, %v9563
    %v9583 = vpack.c.bf16 %v9566, %v9565
    %v9584 = vpack.c.bf16 %v9568, %v9567
    %v9585 = vld [vmem:[%s11] sm:$0xf]
    %v9586 = vld [vmem:[%s11 + $0x4] sm:$0xf]
    %v9587 = vld [vmem:[%s11 + $0x8] sm:$0xf]
    %v9588 = vld [vmem:[%s11 + $0xc] sm:$0xf]
    %v9589 = vld [vmem:[%s12] sm:$0x1]
    %v9591 = vlaneseq
    %v9592 = vshrl.u32 %v9591, 7
    %v9593 = vsub.s32 0, %v9592
    %v9594 = vrot.slane %v9589, %v9593
    %v9600 = vunpack.c.l.b16 %v9585
    %v9601 = vunpack.c.l.b16 %v9586
    %v9602 = vunpack.c.l.b16 %v9587
    %v9603 = vunpack.c.l.b16 %v9588
    %v9604 = vpack.c.b16 %v9601, %v9600
    %v9605 = vpack.c.b16 %v9603, %v9602
    %v9609 = vsel %vm244, %v9569, 0
    %v9612 = vsel %vm244, %v9570, 0
    %v9615 = vsel %vm244, %v9571, 0
    %v9618 = vsel %vm244, %v9572, 0
    %v9621 = vsel %vm244, %v9573, 0
    %v9624 = vsel %vm244, %v9574, 0
    %v9627 = vsel %vm244, %v9575, 0
    %v9630 = vsel %vm244, %v9576, 0
    %v9633 = vsel %vm244, %v9577, 0
    %v9636 = vsel %vm244, %v9578, 0
    %v9639 = vsel %vm244, %v9579, 0
    %v9642 = vsel %vm244, %v9580, 0
    %v9645 = vsel %vm244, %v9581, 0
    %v9648 = vsel %vm244, %v9582, 0
    %v9651 = vsel %vm244, %v9583, 0
    %v9654 = vsel %vm244, %v9584, 0
    %9656 = vmatprep.subr.bf16.mxu0 0
    %9657 = vmatpush1.bf16.msra.mxu0 %v9604
    %9658 = vmatprep.subr.bf16.mxu0 0
    %9659 = vmatpush1.bf16.msra.mxu0 %v9605
    %9660 = vmatprep.subr.bf16.mxu0 0
    %9661 = vmatpush1.bf16.msra.mxu0 0
    %9662 = vmatprep.subr.bf16.mxu0 0
    %9663 = vmatpush1.bf16.msra.mxu0 0
    %9664 = vmatprep.subr.bf16.mxu0 0
    %9665 = vmatpush1.bf16.msra.mxu0 0
    %9666 = vmatprep.subr.bf16.mxu0 0
    %9667 = vmatpush1.bf16.msra.mxu0 0
    %9668 = vmatprep.subr.bf16.mxu0 0
    %9669 = vmatpush1.bf16.msra.mxu0 0
    %9670 = vmatprep.subr.bf16.mxu0 0
    %9671 = vmatpush1.bf16.msra.mxu0 0
    %9672 = vmatprep.subr.bf16.mxu0 0
    %9673 = vmatpush1.bf16.msra.mxu0 0
    %9674 = vmatprep.subr.bf16.mxu0 0
    %9675 = vmatpush1.bf16.msra.mxu0 0
    %9676 = vmatprep.subr.bf16.mxu0 0
    %9677 = vmatpush1.bf16.msra.mxu0 0
    %9678 = vmatprep.subr.bf16.mxu0 0
    %9679 = vmatpush1.bf16.msra.mxu0 0
    %9680 = vmatprep.subr.bf16.mxu0 0
    %9681 = vmatpush1.bf16.msra.mxu0 0
    %9682 = vmatprep.subr.bf16.mxu0 0
    %9683 = vmatpush1.bf16.msra.mxu0 0
    %9684 = vmatprep.subr.bf16.mxu0 0
    %9685 = vmatpush1.bf16.msra.mxu0 0
    %9686 = vmatprep.subr.bf16.mxu0 0
    %9687 = vmatpush1.bf16.msra.mxu0 0
    %9688 = vmatprep.mubr.bf16.mxu0 0
    %9689 = vmatmul.mubr.bf16.gmra.mrb[0].mxu0 %v9609
    %v9690 = vpop.f32.mrb[0].mxu0
    %v9691 = vadd.f32 %v9594, %v9690
    %v9692 = vpop.f32.mrb[0].mxu0
    %v9693 = vpop.f32.mrb[0].mxu0
    %v9694 = vadd.f32 %v9594, %v9693
    %v9695 = vpop.f32.mrb[0].mxu0
    %9696 = vmatprep.mubr.bf16.mxu0 0
    %9697 = vmatmul.mubr.bf16.gmra.mrb[0].mxu0 %v9612
    %v9698 = vpop.f32.mrb[0].mxu0
    %v9699 = vadd.f32 %v9594, %v9698
    %v9700 = vpop.f32.mrb[0].mxu0
    %v9701 = vpop.f32.mrb[0].mxu0
    %v9702 = vadd.f32 %v9594, %v9701
    %v9703 = vpop.f32.mrb[0].mxu0
    %9704 = vmatprep.mubr.bf16.mxu0 0
    %9705 = vmatmul.mubr.bf16.gmra.mrb[0].mxu0 %v9615
    %v9706 = vpop.f32.mrb[0].mxu0
    %v9707 = vadd.f32 %v9594, %v9706
    %v9708 = vpop.f32.mrb[0].mxu0
    %v9709 = vpop.f32.mrb[0].mxu0
    %v9710 = vadd.f32 %v9594, %v9709
    %v9711 = vpop.f32.mrb[0].mxu0
    %9712 = vmatprep.mubr.bf16.mxu0 0
    %9713 = vmatmul.mubr.bf16.gmra.mrb[0].mxu0 %v9618
    %v9714 = vpop.f32.mrb[0].mxu0
    %v9715 = vadd.f32 %v9594, %v9714
    %v9716 = vpop.f32.mrb[0].mxu0
    %v9717 = vpop.f32.mrb[0].mxu0
    %v9718 = vadd.f32 %v9594, %v9717
    %v9719 = vpop.f32.mrb[0].mxu0
    %9720 = vmatprep.mubr.bf16.mxu0 0
    %9721 = vmatmul.mubr.bf16.gmra.mrb[0].mxu0 %v9621
    %v9722 = vpop.f32.mrb[0].mxu0
    %v9723 = vadd.f32 %v9594, %v9722
    %v9724 = vpop.f32.mrb[0].mxu0
    %v9725 = vpop.f32.mrb[0].mxu0
    %v9726 = vadd.f32 %v9594, %v9725
    %v9727 = vpop.f32.mrb[0].mxu0
    %9728 = vmatprep.mubr.bf16.mxu0 0
    %9729 = vmatmul.mubr.bf16.gmra.mrb[0].mxu0 %v9624
    %v9730 = vpop.f32.mrb[0].mxu0
    %v9731 = vadd.f32 %v9594, %v9730
    %v9732 = vpop.f32.mrb[0].mxu0
    %v9733 = vpop.f32.mrb[0].mxu0
    %v9734 = vadd.f32 %v9594, %v9733
    %v9735 = vpop.f32.mrb[0].mxu0
    %9736 = vmatprep.mubr.bf16.mxu0 0
    %9737 = vmatmul.mubr.bf16.gmra.mrb[0].mxu0 %v9627
    %v9738 = vpop.f32.mrb[0].mxu0
    %v9739 = vadd.f32 %v9594, %v9738
    %v9740 = vpop.f32.mrb[0].mxu0
    %v9741 = vpop.f32.mrb[0].mxu0
    %v9742 = vadd.f32 %v9594, %v9741
    %v9743 = vpop.f32.mrb[0].mxu0
    %9744 = vmatprep.mubr.bf16.mxu0 0
    %9745 = vmatmul.mubr.bf16.gmra.mrb[0].mxu0 %v9630
    %v9746 = vpop.f32.mrb[0].mxu0
    %v9747 = vadd.f32 %v9594, %v9746
    %v9748 = vpop.f32.mrb[0].mxu0
    %v9749 = vpop.f32.mrb[0].mxu0
    %v9750 = vadd.f32 %v9594, %v9749
    %v9751 = vpop.f32.mrb[0].mxu0
    %9752 = vmatprep.mubr.bf16.mxu0 0
    %9753 = vmatmul.mubr.bf16.gmra.mrb[0].mxu0 %v9633
    %v9754 = vpop.f32.mrb[0].mxu0
    %v9755 = vadd.f32 %v9594, %v9754
    %v9756 = vpop.f32.mrb[0].mxu0
    %v9757 = vpop.f32.mrb[0].mxu0
    %v9758 = vadd.f32 %v9594, %v9757
    %v9759 = vpop.f32.mrb[0].mxu0
    %9760 = vmatprep.mubr.bf16.mxu0 0
    %9761 = vmatmul.mubr.bf16.gmra.mrb[0].mxu0 %v9636
    %v9762 = vpop.f32.mrb[0].mxu0
    %v9763 = vadd.f32 %v9594, %v9762
    %v9764 = vpop.f32.mrb[0].mxu0
    %v9765 = vpop.f32.mrb[0].mxu0
    %v9766 = vadd.f32 %v9594, %v9765
    %v9767 = vpop.f32.mrb[0].mxu0
    %9768 = vmatprep.mubr.bf16.mxu0 0
    %9769 = vmatmul.mubr.bf16.gmra.mrb[0].mxu0 %v9639
    %v9770 = vpop.f32.mrb[0].mxu0
    %v9771 = vadd.f32 %v9594, %v9770
    %v9772 = vpop.f32.mrb[0].mxu0
    %v9773 = vpop.f32.mrb[0].mxu0
    %v9774 = vadd.f32 %v9594, %v9773
    %v9775 = vpop.f32.mrb[0].mxu0
    %9776 = vmatprep.mubr.bf16.mxu0 0
    %9777 = vmatmul.mubr.bf16.gmra.mrb[0].mxu0 %v9642
    %v9778 = vpop.f32.mrb[0].mxu0
    %v9779 = vadd.f32 %v9594, %v9778
    %v9780 = vpop.f32.mrb[0].mxu0
    %v9781 = vpop.f32.mrb[0].mxu0
    %v9782 = vadd.f32 %v9594, %v9781
    %v9783 = vpop.f32.mrb[0].mxu0
    %9784 = vmatprep.mubr.bf16.mxu0 0
    %9785 = vmatmul.mubr.bf16.gmra.mrb[0].mxu0 %v9645
    %v9786 = vpop.f32.mrb[0].mxu0
    %v9787 = vadd.f32 %v9594, %v9786
    %v9788 = vpop.f32.mrb[0].mxu0
    %v9789 = vpop.f32.mrb[0].mxu0
    %v9790 = vadd.f32 %v9594, %v9789
    %v9791 = vpop.f32.mrb[0].mxu0
    %9792 = vmatprep.mubr.bf16.mxu0 0
    %9793 = vmatmul.mubr.bf16.gmra.mrb[0].mxu0 %v9648
    %v9794 = vpop.f32.mrb[0].mxu0
    %v9795 = vadd.f32 %v9594, %v9794
    %v9796 = vpop.f32.mrb[0].mxu0
    %v9797 = vpop.f32.mrb[0].mxu0
    %v9798 = vadd.f32 %v9594, %v9797
    %v9799 = vpop.f32.mrb[0].mxu0
    %9800 = vmatprep.mubr.bf16.mxu0 0
    %9801 = vmatmul.mubr.bf16.gmra.mrb[0].mxu0 %v9651
    %v9802 = vpop.f32.mrb[0].mxu0
    %v9803 = vadd.f32 %v9594, %v9802
    %v9804 = vpop.f32.mrb[0].mxu0
    %v9805 = vpop.f32.mrb[0].mxu0
    %v9806 = vadd.f32 %v9594, %v9805
    %v9807 = vpop.f32.mrb[0].mxu0
    %9808 = vmatprep.mubr.bf16.mxu0 0
    %9809 = vmatmul.mubr.bf16.gmra.mrb[0].mxu0 %v9654
    %v9810 = vpop.f32.mrb[0].mxu0
    %v9811 = vadd.f32 %v9594, %v9810
    %v9812 = vpop.f32.mrb[0].mxu0
    %v9813 = vpop.f32.mrb[0].mxu0
    %v9814 = vadd.f32 %v9594, %v9813
    %v9815 = vpop.f32.mrb[0].mxu0
    %9816 = vdwg.mxu0
    %v9817 = vmax.f32 %v9691, 0.0
    %v9818 = vmax.f32 %v9694, 0.0
    %v9819 = vmax.f32 %v9699, 0.0
    %v9820 = vmax.f32 %v9702, 0.0
    %v9821 = vmax.f32 %v9707, 0.0
    %v9822 = vmax.f32 %v9710, 0.0
    %v9823 = vmax.f32 %v9715, 0.0
    %v9824 = vmax.f32 %v9718, 0.0
    %v9825 = vmax.f32 %v9723, 0.0
    %v9826 = vmax.f32 %v9726, 0.0
    %v9827 = vmax.f32 %v9731, 0.0
    %v9828 = vmax.f32 %v9734, 0.0
    %v9829 = vmax.f32 %v9739, 0.0
    %v9830 = vmax.f32 %v9742, 0.0
    %v9831 = vmax.f32 %v9747, 0.0
    %v9832 = vmax.f32 %v9750, 0.0
    %v9833 = vmax.f32 %v9755, 0.0
    %v9834 = vmax.f32 %v9758, 0.0
    %v9835 = vmax.f32 %v9763, 0.0
    %v9836 = vmax.f32 %v9766, 0.0
    %v9837 = vmax.f32 %v9771, 0.0
    %v9838 = vmax.f32 %v9774, 0.0
    %v9839 = vmax.f32 %v9779, 0.0
    %v9840 = vmax.f32 %v9782, 0.0
    %v9841 = vmax.f32 %v9787, 0.0
    %v9842 = vmax.f32 %v9790, 0.0
    %v9843 = vmax.f32 %v9795, 0.0
    %v9844 = vmax.f32 %v9798, 0.0
    %v9845 = vmax.f32 %v9803, 0.0
    %v9846 = vmax.f32 %v9806, 0.0
    %v9847 = vmax.f32 %v9811, 0.0
    %v9848 = vmax.f32 %v9814, 0.0
    %v9849 = vpack.c.bf16 %v9818, %v9817
    %v9850 = vpack.c.bf16 %v9820, %v9819
    %v9851 = vpack.c.bf16 %v9822, %v9821
    %v9852 = vpack.c.bf16 %v9824, %v9823
    %v9853 = vpack.c.bf16 %v9826, %v9825
    %v9854 = vpack.c.bf16 %v9828, %v9827
    %v9855 = vpack.c.bf16 %v9830, %v9829
    %v9856 = vpack.c.bf16 %v9832, %v9831
    %v9857 = vpack.c.bf16 %v9834, %v9833
    %v9858 = vpack.c.bf16 %v9836, %v9835
    %v9859 = vpack.c.bf16 %v9838, %v9837
    %v9860 = vpack.c.bf16 %v9840, %v9839
    %v9861 = vpack.c.bf16 %v9842, %v9841
    %v9862 = vpack.c.bf16 %v9844, %v9843
    %v9863 = vpack.c.bf16 %v9846, %v9845
    %v9864 = vpack.c.bf16 %v9848, %v9847
    %v9865 = vld [vmem:[%s13] sm:$0xf]
    %v9866 = vld [vmem:[%s13 + $0x4] sm:$0xf]
    %v9867 = vld [vmem:[%s13 + $0x8] sm:$0xf]
    %v9868 = vld [vmem:[%s13 + $0xc] sm:$0xf]
    %v9869 = vld [vmem:[%s13 + $0x10] sm:$0xf]
    %v9870 = vld [vmem:[%s13 + $0x14] sm:$0xf]
    %v9871 = vld [vmem:[%s13 + $0x18] sm:$0xf]
    %v9872 = vld [vmem:[%s13 + $0x1c] sm:$0xf]
    %v9873 = vld [vmem:[%s14] sm:$0x1]
    %v9875 = vlaneseq
    %v9876 = vshrl.u32 %v9875, 7
    %v9877 = vsub.s32 0, %v9876
    %v9878 = vrot.slane %v9873, %v9877
    %v9888 = vunpack.c.l.b16 %v9865
    %v9889 = vunpack.c.l.b16 %v9866
    %v9890 = vunpack.c.l.b16 %v9867
    %v9891 = vunpack.c.l.b16 %v9868
    %v9892 = vunpack.c.l.b16 %v9869
    %v9893 = vunpack.c.l.b16 %v9870
    %v9894 = vunpack.c.l.b16 %v9871
    %v9895 = vunpack.c.l.b16 %v9872
    %v9896 = vpack.c.b16 %v9889, %v9888
    %v9897 = vpack.c.b16 %v9891, %v9890
    %v9898 = vpack.c.b16 %v9893, %v9892
    %v9899 = vpack.c.b16 %v9895, %v9894
    %vm9904 = vcmask 523264
    %v9906 = vsel %vm9904, %v9849, 0
    %v9909 = vsel %vm9904, %v9850, 0
    %v9912 = vsel %vm9904, %v9851, 0
    %v9915 = vsel %vm9904, %v9852, 0
    %v9918 = vsel %vm9904, %v9853, 0
    %v9921 = vsel %vm9904, %v9854, 0
    %v9924 = vsel %vm9904, %v9855, 0
    %v9927 = vsel %vm9904, %v9856, 0
    %v9930 = vsel %vm9904, %v9857, 0
    %v9933 = vsel %vm9904, %v9858, 0
    %v9936 = vsel %vm9904, %v9859, 0
    %v9939 = vsel %vm9904, %v9860, 0
    %v9942 = vsel %vm9904, %v9861, 0
    %v9945 = vsel %vm9904, %v9862, 0
    %v9948 = vsel %vm9904, %v9863, 0
    %v9951 = vsel %vm9904, %v9864, 0
    %9953 = vmatprep.subr.bf16.mxu0 0
    %9954 = vmatpush1.bf16.msra.mxu0 %v9896
    %9955 = vmatprep.subr.bf16.mxu0 0
    %9956 = vmatpush1.bf16.msra.mxu0 %v9897
    %9957 = vmatprep.subr.bf16.mxu0 0
    %9958 = vmatpush1.bf16.msra.mxu0 %v9898
    %9959 = vmatprep.subr.bf16.mxu0 0
    %9960 = vmatpush1.bf16.msra.mxu0 %v9899
    %9961 = vmatprep.subr.bf16.mxu0 0
    %9962 = vmatpush1.bf16.msra.mxu0 0
    %9963 = vmatprep.subr.bf16.mxu0 0
    %9964 = vmatpush1.bf16.msra.mxu0 0
    %9965 = vmatprep.subr.bf16.mxu0 0
    %9966 = vmatpush1.bf16.msra.mxu0 0
    %9967 = vmatprep.subr.bf16.mxu0 0
    %9968 = vmatpush1.bf16.msra.mxu0 0
    %9969 = vmatprep.subr.bf16.mxu0 0
    %9970 = vmatpush1.bf16.msra.mxu0 0
    %9971 = vmatprep.subr.bf16.mxu0 0
    %9972 = vmatpush1.bf16.msra.mxu0 0
    %9973 = vmatprep.subr.bf16.mxu0 0
    %9974 = vmatpush1.bf16.msra.mxu0 0
    %9975 = vmatprep.subr.bf16.mxu0 0
    %9976 = vmatpush1.bf16.msra.mxu0 0
    %9977 = vmatprep.subr.bf16.mxu0 0
    %9978 = vmatpush1.bf16.msra.mxu0 0
    %9979 = vmatprep.subr.bf16.mxu0 0
    %9980 = vmatpush1.bf16.msra.mxu0 0
    %9981 = vmatprep.subr.bf16.mxu0 0
    %9982 = vmatpush1.bf16.msra.mxu0 0
    %9983 = vmatprep.subr.bf16.mxu0 0
    %9984 = vmatpush1.bf16.msra.mxu0 0
    %9985 = vmatprep.mubr.bf16.mxu0 0
    %9986 = vmatmul.mubr.bf16.gmra.mrb[0].mxu0 %v9906
    %v9987 = vpop.f32.mrb[0].mxu0
    %v9988 = vadd.f32 %v9878, %v9987
    %v9989 = vpop.f32.mrb[0].mxu0
    %v9990 = vpop.f32.mrb[0].mxu0
    %v9991 = vadd.f32 %v9878, %v9990
    %v9992 = vpop.f32.mrb[0].mxu0
    %9993 = vmatprep.mubr.bf16.mxu0 0
    %9994 = vmatmul.mubr.bf16.gmra.mrb[0].mxu0 %v9909
    %v9995 = vpop.f32.mrb[0].mxu0
    %v9996 = vadd.f32 %v9878, %v9995
    %v9997 = vpop.f32.mrb[0].mxu0
    %v9998 = vpop.f32.mrb[0].mxu0
    %v9999 = vadd.f32 %v9878, %v9998
    %v10000 = vpop.f32.mrb[0].mxu0
    %10001 = vmatprep.mubr.bf16.mxu0 0
    %10002 = vmatmul.mubr.bf16.gmra.mrb[0].mxu0 %v9912
    %v10003 = vpop.f32.mrb[0].mxu0
    %v10004 = vadd.f32 %v9878, %v10003
    %v10005 = vpop.f32.mrb[0].mxu0
    %v10006 = vpop.f32.mrb[0].mxu0
    %v10007 = vadd.f32 %v9878, %v10006
    %v10008 = vpop.f32.mrb[0].mxu0
    %10009 = vmatprep.mubr.bf16.mxu0 0
    %10010 = vmatmul.mubr.bf16.gmra.mrb[0].mxu0 %v9915
    %v10011 = vpop.f32.mrb[0].mxu0
    %v10012 = vadd.f32 %v9878, %v10011
    %v10013 = vpop.f32.mrb[0].mxu0
    %v10014 = vpop.f32.mrb[0].mxu0
    %v10015 = vadd.f32 %v9878, %v10014
    %v10016 = vpop.f32.mrb[0].mxu0
    %10017 = vmatprep.mubr.bf16.mxu0 0
    %10018 = vmatmul.mubr.bf16.gmra.mrb[0].mxu0 %v9918
    %v10019 = vpop.f32.mrb[0].mxu0
    %v10020 = vadd.f32 %v9878, %v10019
    %v10021 = vpop.f32.mrb[0].mxu0
    %v10022 = vpop.f32.mrb[0].mxu0
    %v10023 = vadd.f32 %v9878, %v10022
    %v10024 = vpop.f32.mrb[0].mxu0
    %10025 = vmatprep.mubr.bf16.mxu0 0
    %10026 = vmatmul.mubr.bf16.gmra.mrb[0].mxu0 %v9921
    %v10027 = vpop.f32.mrb[0].mxu0
    %v10028 = vadd.f32 %v9878, %v10027
    %v10029 = vpop.f32.mrb[0].mxu0
    %v10030 = vpop.f32.mrb[0].mxu0
    %v10031 = vadd.f32 %v9878, %v10030
    %v10032 = vpop.f32.mrb[0].mxu0
    %10033 = vmatprep.mubr.bf16.mxu0 0
    %10034 = vmatmul.mubr.bf16.gmra.mrb[0].mxu0 %v9924
    %v10035 = vpop.f32.mrb[0].mxu0
    %v10036 = vadd.f32 %v9878, %v10035
    %v10037 = vpop.f32.mrb[0].mxu0
    %v10038 = vpop.f32.mrb[0].mxu0
    %v10039 = vadd.f32 %v9878, %v10038
    %v10040 = vpop.f32.mrb[0].mxu0
    %10041 = vmatprep.mubr.bf16.mxu0 0
    %10042 = vmatmul.mubr.bf16.gmra.mrb[0].mxu0 %v9927
    %v10043 = vpop.f32.mrb[0].mxu0
    %v10044 = vadd.f32 %v9878, %v10043
    %v10045 = vpop.f32.mrb[0].mxu0
    %v10046 = vpop.f32.mrb[0].mxu0
    %v10047 = vadd.f32 %v9878, %v10046
    %v10048 = vpop.f32.mrb[0].mxu0
    %10049 = vmatprep.mubr.bf16.mxu0 0
    %10050 = vmatmul.mubr.bf16.gmra.mrb[0].mxu0 %v9930
    %v10051 = vpop.f32.mrb[0].mxu0
    %v10052 = vadd.f32 %v9878, %v10051
    %v10053 = vpop.f32.mrb[0].mxu0
    %v10054 = vpop.f32.mrb[0].mxu0
    %v10055 = vadd.f32 %v9878, %v10054
    %v10056 = vpop.f32.mrb[0].mxu0
    %10057 = vmatprep.mubr.bf16.mxu0 0
    %10058 = vmatmul.mubr.bf16.gmra.mrb[0].mxu0 %v9933
    %v10059 = vpop.f32.mrb[0].mxu0
    %v10060 = vadd.f32 %v9878, %v10059
    %v10061 = vpop.f32.mrb[0].mxu0
    %v10062 = vpop.f32.mrb[0].mxu0
    %v10063 = vadd.f32 %v9878, %v10062
    %v10064 = vpop.f32.mrb[0].mxu0
    %10065 = vmatprep.mubr.bf16.mxu0 0
    %10066 = vmatmul.mubr.bf16.gmra.mrb[0].mxu0 %v9936
    %v10067 = vpop.f32.mrb[0].mxu0
    %v10068 = vadd.f32 %v9878, %v10067
    %v10069 = vpop.f32.mrb[0].mxu0
    %v10070 = vpop.f32.mrb[0].mxu0
    %v10071 = vadd.f32 %v9878, %v10070
    %v10072 = vpop.f32.mrb[0].mxu0
    %10073 = vmatprep.mubr.bf16.mxu0 0
    %10074 = vmatmul.mubr.bf16.gmra.mrb[0].mxu0 %v9939
    %v10075 = vpop.f32.mrb[0].mxu0
    %v10076 = vadd.f32 %v9878, %v10075
    %v10077 = vpop.f32.mrb[0].mxu0
    %v10078 = vpop.f32.mrb[0].mxu0
    %v10079 = vadd.f32 %v9878, %v10078
    %v10080 = vpop.f32.mrb[0].mxu0
    %10081 = vmatprep.mubr.bf16.mxu0 0
    %10082 = vmatmul.mubr.bf16.gmra.mrb[0].mxu0 %v9942
    %v10083 = vpop.f32.mrb[0].mxu0
    %v10084 = vadd.f32 %v9878, %v10083
    %v10085 = vpop.f32.mrb[0].mxu0
    %v10086 = vpop.f32.mrb[0].mxu0
    %v10087 = vadd.f32 %v9878, %v10086
    %v10088 = vpop.f32.mrb[0].mxu0
    %10089 = vmatprep.mubr.bf16.mxu0 0
    %10090 = vmatmul.mubr.bf16.gmra.mrb[0].mxu0 %v9945
    %v10091 = vpop.f32.mrb[0].mxu0
    %v10092 = vadd.f32 %v9878, %v10091
    %v10093 = vpop.f32.mrb[0].mxu0
    %v10094 = vpop.f32.mrb[0].mxu0
    %v10095 = vadd.f32 %v9878, %v10094
    %v10096 = vpop.f32.mrb[0].mxu0
    %10097 = vmatprep.mubr.bf16.mxu0 0
    %10098 = vmatmul.mubr.bf16.gmra.mrb[0].mxu0 %v9948
    %v10099 = vpop.f32.mrb[0].mxu0
    %v10100 = vadd.f32 %v9878, %v10099
    %v10101 = vpop.f32.mrb[0].mxu0
    %v10102 = vpop.f32.mrb[0].mxu0
    %v10103 = vadd.f32 %v9878, %v10102
    %v10104 = vpop.f32.mrb[0].mxu0
    %10105 = vmatprep.mubr.bf16.mxu0 0
    %10106 = vmatmul.mubr.bf16.gmra.mrb[0].mxu0 %v9951
    %v10107 = vpop.f32.mrb[0].mxu0
    %v10108 = vadd.f32 %v9878, %v10107
    %v10109 = vpop.f32.mrb[0].mxu0
    %v10110 = vpop.f32.mrb[0].mxu0
    %v10111 = vadd.f32 %v9878, %v10110
    %v10112 = vpop.f32.mrb[0].mxu0
    %10113 = vdwg.mxu0
    %v10114 = vadd.f32 %v9537, %v9988
    %v10115 = vadd.f32 %v9538, %v9991
    %v10116 = vadd.f32 %v9539, %v9996
    %v10117 = vadd.f32 %v9540, %v9999
    %v10118 = vadd.f32 %v9541, %v10004
    %v10119 = vadd.f32 %v9542, %v10007
    %v10120 = vadd.f32 %v9543, %v10012
    %v10121 = vadd.f32 %v9544, %v10015
    %v10122 = vadd.f32 %v9545, %v10020
    %v10123 = vadd.f32 %v9546, %v10023
    %v10124 = vadd.f32 %v9547, %v10028
    %v10125 = vadd.f32 %v9548, %v10031
    %v10126 = vadd.f32 %v9549, %v10036
    %v10127 = vadd.f32 %v9550, %v10039
    %v10128 = vadd.f32 %v9551, %v10044
    %v10129 = vadd.f32 %v9552, %v10047
    %v10130 = vadd.f32 %v9553, %v10052
    %v10131 = vadd.f32 %v9554, %v10055
    %v10132 = vadd.f32 %v9555, %v10060
    %v10133 = vadd.f32 %v9556, %v10063
    %v10134 = vadd.f32 %v9557, %v10068
    %v10135 = vadd.f32 %v9558, %v10071
    %v10136 = vadd.f32 %v9559, %v10076
    %v10137 = vadd.f32 %v9560, %v10079
    %v10138 = vadd.f32 %v9561, %v10084
    %v10139 = vadd.f32 %v9562, %v10087
    %v10140 = vadd.f32 %v9563, %v10092
    %v10141 = vadd.f32 %v9564, %v10095
    %v10142 = vadd.f32 %v9565, %v10100
    %v10143 = vadd.f32 %v9566, %v10103
    %v10144 = vadd.f32 %v9567, %v10108
    %v10145 = vadd.f32 %v9568, %v10111
    %v10146 = vsel %vm244, %v10114, 0.0
    %10147 = vadd.xlane.f32.xlu0 %v10146
    %v10148 = vpop.xlane.xlu0 %10147
    %v10149 = vsel %vm244, %v10115, 0.0
    %10150 = vadd.xlane.f32.xlu0 %v10149
    %v10151 = vpop.xlane.xlu0 %10150
    %v10152 = vsel %vm244, %v10116, 0.0
    %10153 = vadd.xlane.f32.xlu0 %v10152
    %v10154 = vpop.xlane.xlu0 %10153
    %v10155 = vsel %vm244, %v10117, 0.0
    %10156 = vadd.xlane.f32.xlu0 %v10155
    %v10157 = vpop.xlane.xlu0 %10156
    %v10158 = vsel %vm244, %v10118, 0.0
    %10159 = vadd.xlane.f32.xlu0 %v10158
    %v10160 = vpop.xlane.xlu0 %10159
    %v10161 = vsel %vm244, %v10119, 0.0
    %10162 = vadd.xlane.f32.xlu0 %v10161
    %v10163 = vpop.xlane.xlu0 %10162
    %v10164 = vsel %vm244, %v10120, 0.0
    %10165 = vadd.xlane.f32.xlu0 %v10164
    %v10166 = vpop.xlane.xlu0 %10165
    %v10167 = vsel %vm244, %v10121, 0.0
    %10168 = vadd.xlane.f32.xlu0 %v10167
    %v10169 = vpop.xlane.xlu0 %10168
    %v10170 = vsel %vm244, %v10122, 0.0
    %10171 = vadd.xlane.f32.xlu0 %v10170
    %v10172 = vpop.xlane.xlu0 %10171
    %v10173 = vsel %vm244, %v10123, 0.0
    %10174 = vadd.xlane.f32.xlu0 %v10173
    %v10175 = vpop.xlane.xlu0 %10174
    %v10176 = vsel %vm244, %v10124, 0.0
    %10177 = vadd.xlane.f32.xlu0 %v10176
    %v10178 = vpop.xlane.xlu0 %10177
    %v10179 = vsel %vm244, %v10125, 0.0
    %10180 = vadd.xlane.f32.xlu0 %v10179
    %v10181 = vpop.xlane.xlu0 %10180
    %v10182 = vsel %vm244, %v10126, 0.0
    %10183 = vadd.xlane.f32.xlu0 %v10182
    %v10184 = vpop.xlane.xlu0 %10183
    %v10185 = vsel %vm244, %v10127, 0.0
    %10186 = vadd.xlane.f32.xlu0 %v10185
    %v10187 = vpop.xlane.xlu0 %10186
    %v10188 = vsel %vm244, %v10128, 0.0
    %10189 = vadd.xlane.f32.xlu0 %v10188
    %v10190 = vpop.xlane.xlu0 %10189
    %v10191 = vsel %vm244, %v10129, 0.0
    %10192 = vadd.xlane.f32.xlu0 %v10191
    %v10193 = vpop.xlane.xlu0 %10192
    %v10194 = vsel %vm244, %v10130, 0.0
    %10195 = vadd.xlane.f32.xlu0 %v10194
    %v10196 = vpop.xlane.xlu0 %10195
    %v10197 = vsel %vm244, %v10131, 0.0
    %10198 = vadd.xlane.f32.xlu0 %v10197
    %v10199 = vpop.xlane.xlu0 %10198
    %v10200 = vsel %vm244, %v10132, 0.0
    %10201 = vadd.xlane.f32.xlu0 %v10200
    %v10202 = vpop.xlane.xlu0 %10201
    %v10203 = vsel %vm244, %v10133, 0.0
    %10204 = vadd.xlane.f32.xlu0 %v10203
    %v10205 = vpop.xlane.xlu0 %10204
    %v10206 = vsel %vm244, %v10134, 0.0
    %10207 = vadd.xlane.f32.xlu0 %v10206
    %v10208 = vpop.xlane.xlu0 %10207
    %v10209 = vsel %vm244, %v10135, 0.0
    %10210 = vadd.xlane.f32.xlu0 %v10209
    %v10211 = vpop.xlane.xlu0 %10210
    %v10212 = vsel %vm244, %v10136, 0.0
    %10213 = vadd.xlane.f32.xlu0 %v10212
    %v10214 = vpop.xlane.xlu0 %10213
    %v10215 = vsel %vm244, %v10137, 0.0
    %10216 = vadd.xlane.f32.xlu0 %v10215
    %v10217 = vpop.xlane.xlu0 %10216
    %v10218 = vsel %vm244, %v10138, 0.0
    %10219 = vadd.xlane.f32.xlu0 %v10218
    %v10220 = vpop.xlane.xlu0 %10219
    %v10221 = vsel %vm244, %v10139, 0.0
    %10222 = vadd.xlane.f32.xlu0 %v10221
    %v10223 = vpop.xlane.xlu0 %10222
    %v10224 = vsel %vm244, %v10140, 0.0
    %10225 = vadd.xlane.f32.xlu0 %v10224
    %v10226 = vpop.xlane.xlu0 %10225
    %v10227 = vsel %vm244, %v10141, 0.0
    %10228 = vadd.xlane.f32.xlu0 %v10227
    %v10229 = vpop.xlane.xlu0 %10228
    %v10230 = vsel %vm244, %v10142, 0.0
    %10231 = vadd.xlane.f32.xlu0 %v10230
    %v10232 = vpop.xlane.xlu0 %10231
    %v10233 = vsel %vm244, %v10143, 0.0
    %10234 = vadd.xlane.f32.xlu0 %v10233
    %v10235 = vpop.xlane.xlu0 %10234
    %v10236 = vsel %vm244, %v10144, 0.0
    %10237 = vadd.xlane.f32.xlu0 %v10236
    %v10238 = vpop.xlane.xlu0 %10237
    %v10239 = vsel %vm244, %v10145, 0.0
    %10240 = vadd.xlane.f32.xlu0 %v10239
    %v10241 = vpop.xlane.xlu0 %10240
    %v10242 = vmul.f32 %v10148, %v9170
    %v10243 = vmul.f32 %v10151, %v9170
    %v10244 = vmul.f32 %v10154, %v9170
    %v10245 = vmul.f32 %v10157, %v9170
    %v10246 = vmul.f32 %v10160, %v9170
    %v10247 = vmul.f32 %v10163, %v9170
    %v10248 = vmul.f32 %v10166, %v9170
    %v10249 = vmul.f32 %v10169, %v9170
    %v10250 = vmul.f32 %v10172, %v9170
    %v10251 = vmul.f32 %v10175, %v9170
    %v10252 = vmul.f32 %v10178, %v9170
    %v10253 = vmul.f32 %v10181, %v9170
    %v10254 = vmul.f32 %v10184, %v9170
    %v10255 = vmul.f32 %v10187, %v9170
    %v10256 = vmul.f32 %v10190, %v9170
    %v10257 = vmul.f32 %v10193, %v9170
    %v10258 = vmul.f32 %v10196, %v9170
    %v10259 = vmul.f32 %v10199, %v9170
    %v10260 = vmul.f32 %v10202, %v9170
    %v10261 = vmul.f32 %v10205, %v9170
    %v10262 = vmul.f32 %v10208, %v9170
    %v10263 = vmul.f32 %v10211, %v9170
    %v10264 = vmul.f32 %v10214, %v9170
    %v10265 = vmul.f32 %v10217, %v9170
    %v10266 = vmul.f32 %v10220, %v9170
    %v10267 = vmul.f32 %v10223, %v9170
    %v10268 = vmul.f32 %v10226, %v9170
    %v10269 = vmul.f32 %v10229, %v9170
    %v10270 = vmul.f32 %v10232, %v9170
    %v10271 = vmul.f32 %v10235, %v9170
    %v10272 = vmul.f32 %v10238, %v9170
    %v10273 = vmul.f32 %v10241, %v9170
    %v10274 = vsub.f32 %v10114, %v10242
    %v10275 = vsub.f32 %v10115, %v10243
    %v10276 = vsub.f32 %v10116, %v10244
    %v10277 = vsub.f32 %v10117, %v10245
    %v10278 = vsub.f32 %v10118, %v10246
    %v10279 = vsub.f32 %v10119, %v10247
    %v10280 = vsub.f32 %v10120, %v10248
    %v10281 = vsub.f32 %v10121, %v10249
    %v10282 = vsub.f32 %v10122, %v10250
    %v10283 = vsub.f32 %v10123, %v10251
    %v10284 = vsub.f32 %v10124, %v10252
    %v10285 = vsub.f32 %v10125, %v10253
    %v10286 = vsub.f32 %v10126, %v10254
    %v10287 = vsub.f32 %v10127, %v10255
    %v10288 = vsub.f32 %v10128, %v10256
    %v10289 = vsub.f32 %v10129, %v10257
    %v10290 = vsub.f32 %v10130, %v10258
    %v10291 = vsub.f32 %v10131, %v10259
    %v10292 = vsub.f32 %v10132, %v10260
    %v10293 = vsub.f32 %v10133, %v10261
    %v10294 = vsub.f32 %v10134, %v10262
    %v10295 = vsub.f32 %v10135, %v10263
    %v10296 = vsub.f32 %v10136, %v10264
    %v10297 = vsub.f32 %v10137, %v10265
    %v10298 = vsub.f32 %v10138, %v10266
    %v10299 = vsub.f32 %v10139, %v10267
    %v10300 = vsub.f32 %v10140, %v10268
    %v10301 = vsub.f32 %v10141, %v10269
    %v10302 = vsub.f32 %v10142, %v10270
    %v10303 = vsub.f32 %v10143, %v10271
    %v10304 = vsub.f32 %v10144, %v10272
    %v10305 = vsub.f32 %v10145, %v10273
    %v10306 = vmul.f32 %v10274, %v10274
    %v10307 = vmul.f32 %v10275, %v10275
    %v10308 = vmul.f32 %v10276, %v10276
    %v10309 = vmul.f32 %v10277, %v10277
    %v10310 = vmul.f32 %v10278, %v10278
    %v10311 = vmul.f32 %v10279, %v10279
    %v10312 = vmul.f32 %v10280, %v10280
    %v10313 = vmul.f32 %v10281, %v10281
    %v10314 = vmul.f32 %v10282, %v10282
    %v10315 = vmul.f32 %v10283, %v10283
    %v10316 = vmul.f32 %v10284, %v10284
    %v10317 = vmul.f32 %v10285, %v10285
    %v10318 = vmul.f32 %v10286, %v10286
    %v10319 = vmul.f32 %v10287, %v10287
    %v10320 = vmul.f32 %v10288, %v10288
    %v10321 = vmul.f32 %v10289, %v10289
    %v10322 = vmul.f32 %v10290, %v10290
    %v10323 = vmul.f32 %v10291, %v10291
    %v10324 = vmul.f32 %v10292, %v10292
    %v10325 = vmul.f32 %v10293, %v10293
    %v10326 = vmul.f32 %v10294, %v10294
    %v10327 = vmul.f32 %v10295, %v10295
    %v10328 = vmul.f32 %v10296, %v10296
    %v10329 = vmul.f32 %v10297, %v10297
    %v10330 = vmul.f32 %v10298, %v10298
    %v10331 = vmul.f32 %v10299, %v10299
    %v10332 = vmul.f32 %v10300, %v10300
    %v10333 = vmul.f32 %v10301, %v10301
    %v10334 = vmul.f32 %v10302, %v10302
    %v10335 = vmul.f32 %v10303, %v10303
    %v10336 = vmul.f32 %v10304, %v10304
    %v10337 = vmul.f32 %v10305, %v10305
    %v10338 = vsel %vm244, %v10306, 0.0
    %10339 = vadd.xlane.f32.xlu0 %v10338
    %v10340 = vpop.xlane.xlu0 %10339
    %v10341 = vsel %vm244, %v10307, 0.0
    %10342 = vadd.xlane.f32.xlu0 %v10341
    %v10343 = vpop.xlane.xlu0 %10342
    %v10344 = vsel %vm244, %v10308, 0.0
    %10345 = vadd.xlane.f32.xlu0 %v10344
    %v10346 = vpop.xlane.xlu0 %10345
    %v10347 = vsel %vm244, %v10309, 0.0
    %10348 = vadd.xlane.f32.xlu0 %v10347
    %v10349 = vpop.xlane.xlu0 %10348
    %v10350 = vsel %vm244, %v10310, 0.0
    %10351 = vadd.xlane.f32.xlu0 %v10350
    %v10352 = vpop.xlane.xlu0 %10351
    %v10353 = vsel %vm244, %v10311, 0.0
    %10354 = vadd.xlane.f32.xlu0 %v10353
    %v10355 = vpop.xlane.xlu0 %10354
    %v10356 = vsel %vm244, %v10312, 0.0
    %10357 = vadd.xlane.f32.xlu0 %v10356
    %v10358 = vpop.xlane.xlu0 %10357
    %v10359 = vsel %vm244, %v10313, 0.0
    %10360 = vadd.xlane.f32.xlu0 %v10359
    %v10361 = vpop.xlane.xlu0 %10360
    %v10362 = vsel %vm244, %v10314, 0.0
    %10363 = vadd.xlane.f32.xlu0 %v10362
    %v10364 = vpop.xlane.xlu0 %10363
    %v10365 = vsel %vm244, %v10315, 0.0
    %10366 = vadd.xlane.f32.xlu0 %v10365
    %v10367 = vpop.xlane.xlu0 %10366
    %v10368 = vsel %vm244, %v10316, 0.0
    %10369 = vadd.xlane.f32.xlu0 %v10368
    %v10370 = vpop.xlane.xlu0 %10369
    %v10371 = vsel %vm244, %v10317, 0.0
    %10372 = vadd.xlane.f32.xlu0 %v10371
    %v10373 = vpop.xlane.xlu0 %10372
    %v10374 = vsel %vm244, %v10318, 0.0
    %10375 = vadd.xlane.f32.xlu0 %v10374
    %v10376 = vpop.xlane.xlu0 %10375
    %v10377 = vsel %vm244, %v10319, 0.0
    %10378 = vadd.xlane.f32.xlu0 %v10377
    %v10379 = vpop.xlane.xlu0 %10378
    %v10380 = vsel %vm244, %v10320, 0.0
    %10381 = vadd.xlane.f32.xlu0 %v10380
    %v10382 = vpop.xlane.xlu0 %10381
    %v10383 = vsel %vm244, %v10321, 0.0
    %10384 = vadd.xlane.f32.xlu0 %v10383
    %v10385 = vpop.xlane.xlu0 %10384
    %v10386 = vsel %vm244, %v10322, 0.0
    %10387 = vadd.xlane.f32.xlu0 %v10386
    %v10388 = vpop.xlane.xlu0 %10387
    %v10389 = vsel %vm244, %v10323, 0.0
    %10390 = vadd.xlane.f32.xlu0 %v10389
    %v10391 = vpop.xlane.xlu0 %10390
    %v10392 = vsel %vm244, %v10324, 0.0
    %10393 = vadd.xlane.f32.xlu0 %v10392
    %v10394 = vpop.xlane.xlu0 %10393
    %v10395 = vsel %vm244, %v10325, 0.0
    %10396 = vadd.xlane.f32.xlu0 %v10395
    %v10397 = vpop.xlane.xlu0 %10396
    %v10398 = vsel %vm244, %v10326, 0.0
    %10399 = vadd.xlane.f32.xlu0 %v10398
    %v10400 = vpop.xlane.xlu0 %10399
    %v10401 = vsel %vm244, %v10327, 0.0
    %10402 = vadd.xlane.f32.xlu0 %v10401
    %v10403 = vpop.xlane.xlu0 %10402
    %v10404 = vsel %vm244, %v10328, 0.0
    %10405 = vadd.xlane.f32.xlu0 %v10404
    %v10406 = vpop.xlane.xlu0 %10405
    %v10407 = vsel %vm244, %v10329, 0.0
    %10408 = vadd.xlane.f32.xlu0 %v10407
    %v10409 = vpop.xlane.xlu0 %10408
    %v10410 = vsel %vm244, %v10330, 0.0
    %10411 = vadd.xlane.f32.xlu0 %v10410
    %v10412 = vpop.xlane.xlu0 %10411
    %v10413 = vsel %vm244, %v10331, 0.0
    %10414 = vadd.xlane.f32.xlu0 %v10413
    %v10415 = vpop.xlane.xlu0 %10414
    %v10416 = vsel %vm244, %v10332, 0.0
    %10417 = vadd.xlane.f32.xlu0 %v10416
    %v10418 = vpop.xlane.xlu0 %10417
    %v10419 = vsel %vm244, %v10333, 0.0
    %10420 = vadd.xlane.f32.xlu0 %v10419
    %v10421 = vpop.xlane.xlu0 %10420
    %v10422 = vsel %vm244, %v10334, 0.0
    %10423 = vadd.xlane.f32.xlu0 %v10422
    %v10424 = vpop.xlane.xlu0 %10423
    %v10425 = vsel %vm244, %v10335, 0.0
    %10426 = vadd.xlane.f32.xlu0 %v10425
    %v10427 = vpop.xlane.xlu0 %10426
    %v10428 = vsel %vm244, %v10336, 0.0
    %10429 = vadd.xlane.f32.xlu0 %v10428
    %v10430 = vpop.xlane.xlu0 %10429
    %v10431 = vsel %vm244, %v10337, 0.0
    %10432 = vadd.xlane.f32.xlu0 %v10431
    %v10433 = vpop.xlane.xlu0 %10432
    %v10434 = vmul.f32 %v10340, %v9170
    %v10435 = vmul.f32 %v10343, %v9170
    %v10436 = vmul.f32 %v10346, %v9170
    %v10437 = vmul.f32 %v10349, %v9170
    %v10438 = vmul.f32 %v10352, %v9170
    %v10439 = vmul.f32 %v10355, %v9170
    %v10440 = vmul.f32 %v10358, %v9170
    %v10441 = vmul.f32 %v10361, %v9170
    %v10442 = vmul.f32 %v10364, %v9170
    %v10443 = vmul.f32 %v10367, %v9170
    %v10444 = vmul.f32 %v10370, %v9170
    %v10445 = vmul.f32 %v10373, %v9170
    %v10446 = vmul.f32 %v10376, %v9170
    %v10447 = vmul.f32 %v10379, %v9170
    %v10448 = vmul.f32 %v10382, %v9170
    %v10449 = vmul.f32 %v10385, %v9170
    %v10450 = vmul.f32 %v10388, %v9170
    %v10451 = vmul.f32 %v10391, %v9170
    %v10452 = vmul.f32 %v10394, %v9170
    %v10453 = vmul.f32 %v10397, %v9170
    %v10454 = vmul.f32 %v10400, %v9170
    %v10455 = vmul.f32 %v10403, %v9170
    %v10456 = vmul.f32 %v10406, %v9170
    %v10457 = vmul.f32 %v10409, %v9170
    %v10458 = vmul.f32 %v10412, %v9170
    %v10459 = vmul.f32 %v10415, %v9170
    %v10460 = vmul.f32 %v10418, %v9170
    %v10461 = vmul.f32 %v10421, %v9170
    %v10462 = vmul.f32 %v10424, %v9170
    %v10463 = vmul.f32 %v10427, %v9170
    %v10464 = vmul.f32 %v10430, %v9170
    %v10465 = vmul.f32 %v10433, %v9170
    %v10466 = vadd.f32 %v10434, 1e-05
    %v10467 = vadd.f32 %v10435, 1e-05
    %v10468 = vadd.f32 %v10436, 1e-05
    %v10469 = vadd.f32 %v10437, 1e-05
    %v10470 = vadd.f32 %v10438, 1e-05
    %v10471 = vadd.f32 %v10439, 1e-05
    %v10472 = vadd.f32 %v10440, 1e-05
    %v10473 = vadd.f32 %v10441, 1e-05
    %v10474 = vadd.f32 %v10442, 1e-05
    %v10475 = vadd.f32 %v10443, 1e-05
    %v10476 = vadd.f32 %v10444, 1e-05
    %v10477 = vadd.f32 %v10445, 1e-05
    %v10478 = vadd.f32 %v10446, 1e-05
    %v10479 = vadd.f32 %v10447, 1e-05
    %v10480 = vadd.f32 %v10448, 1e-05
    %v10481 = vadd.f32 %v10449, 1e-05
    %v10482 = vadd.f32 %v10450, 1e-05
    %v10483 = vadd.f32 %v10451, 1e-05
    %v10484 = vadd.f32 %v10452, 1e-05
    %v10485 = vadd.f32 %v10453, 1e-05
    %v10486 = vadd.f32 %v10454, 1e-05
    %v10487 = vadd.f32 %v10455, 1e-05
    %v10488 = vadd.f32 %v10456, 1e-05
    %v10489 = vadd.f32 %v10457, 1e-05
    %v10490 = vadd.f32 %v10458, 1e-05
    %v10491 = vadd.f32 %v10459, 1e-05
    %v10492 = vadd.f32 %v10460, 1e-05
    %v10493 = vadd.f32 %v10461, 1e-05
    %v10494 = vadd.f32 %v10462, 1e-05
    %v10495 = vadd.f32 %v10463, 1e-05
    %v10496 = vadd.f32 %v10464, 1e-05
    %v10497 = vadd.f32 %v10465, 1e-05
    %v10498 = vrsqrt.pop %v10466
    %v10499 = vrsqrt.pop %v10467
    %v10500 = vrsqrt.pop %v10468
    %v10501 = vrsqrt.pop %v10469
    %v10502 = vrsqrt.pop %v10470
    %v10503 = vrsqrt.pop %v10471
    %v10504 = vrsqrt.pop %v10472
    %v10505 = vrsqrt.pop %v10473
    %v10506 = vrsqrt.pop %v10474
    %v10507 = vrsqrt.pop %v10475
    %v10508 = vrsqrt.pop %v10476
    %v10509 = vrsqrt.pop %v10477
    %v10510 = vrsqrt.pop %v10478
    %v10511 = vrsqrt.pop %v10479
    %v10512 = vrsqrt.pop %v10480
    %v10513 = vrsqrt.pop %v10481
    %v10514 = vrsqrt.pop %v10482
    %v10515 = vrsqrt.pop %v10483
    %v10516 = vrsqrt.pop %v10484
    %v10517 = vrsqrt.pop %v10485
    %v10518 = vrsqrt.pop %v10486
    %v10519 = vrsqrt.pop %v10487
    %v10520 = vrsqrt.pop %v10488
    %v10521 = vrsqrt.pop %v10489
    %v10522 = vrsqrt.pop %v10490
    %v10523 = vrsqrt.pop %v10491
    %v10524 = vrsqrt.pop %v10492
    %v10525 = vrsqrt.pop %v10493
    %v10526 = vrsqrt.pop %v10494
    %v10527 = vrsqrt.pop %v10495
    %v10528 = vrsqrt.pop %v10496
    %v10529 = vrsqrt.pop %v10497
    %v10530 = vmul.f32 %v10274, %v10498
    %v10531 = vmul.f32 %v10275, %v10499
    %v10532 = vmul.f32 %v10276, %v10500
    %v10533 = vmul.f32 %v10277, %v10501
    %v10534 = vmul.f32 %v10278, %v10502
    %v10535 = vmul.f32 %v10279, %v10503
    %v10536 = vmul.f32 %v10280, %v10504
    %v10537 = vmul.f32 %v10281, %v10505
    %v10538 = vmul.f32 %v10282, %v10506
    %v10539 = vmul.f32 %v10283, %v10507
    %v10540 = vmul.f32 %v10284, %v10508
    %v10541 = vmul.f32 %v10285, %v10509
    %v10542 = vmul.f32 %v10286, %v10510
    %v10543 = vmul.f32 %v10287, %v10511
    %v10544 = vmul.f32 %v10288, %v10512
    %v10545 = vmul.f32 %v10289, %v10513
    %v10546 = vmul.f32 %v10290, %v10514
    %v10547 = vmul.f32 %v10291, %v10515
    %v10548 = vmul.f32 %v10292, %v10516
    %v10549 = vmul.f32 %v10293, %v10517
    %v10550 = vmul.f32 %v10294, %v10518
    %v10551 = vmul.f32 %v10295, %v10519
    %v10552 = vmul.f32 %v10296, %v10520
    %v10553 = vmul.f32 %v10297, %v10521
    %v10554 = vmul.f32 %v10298, %v10522
    %v10555 = vmul.f32 %v10299, %v10523
    %v10556 = vmul.f32 %v10300, %v10524
    %v10557 = vmul.f32 %v10301, %v10525
    %v10558 = vmul.f32 %v10302, %v10526
    %v10559 = vmul.f32 %v10303, %v10527
    %v10560 = vmul.f32 %v10304, %v10528
    %v10561 = vmul.f32 %v10305, %v10529
    %v10562 = vld [vmem:[%s17] sm:$0x1]
    %v10564 = vlaneseq
    %v10565 = vshrl.u32 %v10564, 7
    %v10566 = vsub.s32 0, %v10565
    %v10567 = vrot.slane %v10562, %v10566
    %v10569 = vmul.f32 %v10530, %v10567
    %v10570 = vmul.f32 %v10531, %v10567
    %v10571 = vmul.f32 %v10532, %v10567
    %v10572 = vmul.f32 %v10533, %v10567
    %v10573 = vmul.f32 %v10534, %v10567
    %v10574 = vmul.f32 %v10535, %v10567
    %v10575 = vmul.f32 %v10536, %v10567
    %v10576 = vmul.f32 %v10537, %v10567
    %v10577 = vmul.f32 %v10538, %v10567
    %v10578 = vmul.f32 %v10539, %v10567
    %v10579 = vmul.f32 %v10540, %v10567
    %v10580 = vmul.f32 %v10541, %v10567
    %v10581 = vmul.f32 %v10542, %v10567
    %v10582 = vmul.f32 %v10543, %v10567
    %v10583 = vmul.f32 %v10544, %v10567
    %v10584 = vmul.f32 %v10545, %v10567
    %v10585 = vmul.f32 %v10546, %v10567
    %v10586 = vmul.f32 %v10547, %v10567
    %v10587 = vmul.f32 %v10548, %v10567
    %v10588 = vmul.f32 %v10549, %v10567
    %v10589 = vmul.f32 %v10550, %v10567
    %v10590 = vmul.f32 %v10551, %v10567
    %v10591 = vmul.f32 %v10552, %v10567
    %v10592 = vmul.f32 %v10553, %v10567
    %v10593 = vmul.f32 %v10554, %v10567
    %v10594 = vmul.f32 %v10555, %v10567
    %v10595 = vmul.f32 %v10556, %v10567
    %v10596 = vmul.f32 %v10557, %v10567
    %v10597 = vmul.f32 %v10558, %v10567
    %v10598 = vmul.f32 %v10559, %v10567
    %v10599 = vmul.f32 %v10560, %v10567
    %v10600 = vmul.f32 %v10561, %v10567
    %v10601 = vld [vmem:[%s18] sm:$0x1]
    %v10603 = vlaneseq
    %v10604 = vshrl.u32 %v10603, 7
    %v10605 = vsub.s32 0, %v10604
    %v10606 = vrot.slane %v10601, %v10605
    %v10608 = vadd.f32 %v10569, %v10606
    %v10609 = vadd.f32 %v10570, %v10606
    %v10610 = vadd.f32 %v10571, %v10606
    %v10611 = vadd.f32 %v10572, %v10606
    %v10612 = vadd.f32 %v10573, %v10606
    %v10613 = vadd.f32 %v10574, %v10606
    %v10614 = vadd.f32 %v10575, %v10606
    %v10615 = vadd.f32 %v10576, %v10606
    %v10616 = vadd.f32 %v10577, %v10606
    %v10617 = vadd.f32 %v10578, %v10606
    %v10618 = vadd.f32 %v10579, %v10606
    %v10619 = vadd.f32 %v10580, %v10606
    %v10620 = vadd.f32 %v10581, %v10606
    %v10621 = vadd.f32 %v10582, %v10606
    %v10622 = vadd.f32 %v10583, %v10606
    %v10623 = vadd.f32 %v10584, %v10606
    %v10624 = vadd.f32 %v10585, %v10606
    %v10625 = vadd.f32 %v10586, %v10606
    %v10626 = vadd.f32 %v10587, %v10606
    %v10627 = vadd.f32 %v10588, %v10606
    %v10628 = vadd.f32 %v10589, %v10606
    %v10629 = vadd.f32 %v10590, %v10606
    %v10630 = vadd.f32 %v10591, %v10606
    %v10631 = vadd.f32 %v10592, %v10606
    %v10632 = vadd.f32 %v10593, %v10606
    %v10633 = vadd.f32 %v10594, %v10606
    %v10634 = vadd.f32 %v10595, %v10606
    %v10635 = vadd.f32 %v10596, %v10606
    %v10636 = vadd.f32 %v10597, %v10606
    %v10637 = vadd.f32 %v10598, %v10606
    %v10638 = vadd.f32 %v10599, %v10606
    %v10639 = vadd.f32 %v10600, %v10606
    %10640 = vst.msk [vmem:[%s19] sm:$0xff] %vm244, %v10608
    %10641 = vst.msk [vmem:[%s19 + $0x8] sm:$0xff] %vm244, %v10609
    %10642 = vst.msk [vmem:[%s19 + $0x10] sm:$0xff] %vm244, %v10610
    %10643 = vst.msk [vmem:[%s19 + $0x18] sm:$0xff] %vm244, %v10611
    %10644 = vst.msk [vmem:[%s19 + $0x20] sm:$0xff] %vm244, %v10612
    %10645 = vst.msk [vmem:[%s19 + $0x28] sm:$0xff] %vm244, %v10613
    %10646 = vst.msk [vmem:[%s19 + $0x30] sm:$0xff] %vm244, %v10614
    %10647 = vst.msk [vmem:[%s19 + $0x38] sm:$0xff] %vm244, %v10615
    %10648 = vst.msk [vmem:[%s19 + $0x40] sm:$0xff] %vm244, %v10616
    %10649 = vst.msk [vmem:[%s19 + $0x48] sm:$0xff] %vm244, %v10617
    %10650 = vst.msk [vmem:[%s19 + $0x50] sm:$0xff] %vm244, %v10618
    %10651 = vst.msk [vmem:[%s19 + $0x58] sm:$0xff] %vm244, %v10619
    %10652 = vst.msk [vmem:[%s19 + $0x60] sm:$0xff] %vm244, %v10620
    %10653 = vst.msk [vmem:[%s19 + $0x68] sm:$0xff] %vm244, %v10621
    %10654 = vst.msk [vmem:[%s19 + $0x70] sm:$0xff] %vm244, %v10622
    %10655 = vst.msk [vmem:[%s19 + $0x78] sm:$0xff] %vm244, %v10623
    %10656 = vst.msk [vmem:[%s19 + $0x80] sm:$0xff] %vm244, %v10624
    %10657 = vst.msk [vmem:[%s19 + $0x88] sm:$0xff] %vm244, %v10625
    %10658 = vst.msk [vmem:[%s19 + $0x90] sm:$0xff] %vm244, %v10626
    %10659 = vst.msk [vmem:[%s19 + $0x98] sm:$0xff] %vm244, %v10627
    %10660 = vst.msk [vmem:[%s19 + $0xa0] sm:$0xff] %vm244, %v10628
    %10661 = vst.msk [vmem:[%s19 + $0xa8] sm:$0xff] %vm244, %v10629
    %10662 = vst.msk [vmem:[%s19 + $0xb0] sm:$0xff] %vm244, %v10630
    %10663 = vst.msk [vmem:[%s19 + $0xb8] sm:$0xff] %vm244, %v10631
    %10664 = vst.msk [vmem:[%s19 + $0xc0] sm:$0xff] %vm244, %v10632
    %10665 = vst.msk [vmem:[%s19 + $0xc8] sm:$0xff] %vm244, %v10633
    %10666 = vst.msk [vmem:[%s19 + $0xd0] sm:$0xff] %vm244, %v10634
    %10667 = vst.msk [vmem:[%s19 + $0xd8] sm:$0xff] %vm244, %v10635
    %10668 = vst.msk [vmem:[%s19 + $0xe0] sm:$0xff] %vm244, %v10636
    %10669 = vst.msk [vmem:[%s19 + $0xe8] sm:$0xff] %vm244, %v10637
    %10670 = vst.msk [vmem:[%s19 + $0xf0] sm:$0xff] %vm244, %v10638
    %10671 = vst.msk [vmem:[%s19 + $0xf8] sm:$0xff] %vm244, %v10639
    // Predicated region
    $region82: #{tpu_custom_call.1} parent=1 // pred_check
      _
    $region83: #{tpu_custom_call.1} parent=1 // pred_check_branch
      %10673 = sbr.rel (0) target = $region85
    $region84: #{tpu_custom_call.1} parent=1 // pred_region
      _
    $region85: #{tpu_custom_call.1} parent=1 // pred_fallthru
      _
    // Predicated region
    $region86: #{tpu_custom_call.1} parent=1 // pred_check
      _
    $region87: #{tpu_custom_call.1} parent=1 // pred_check_branch
      %10675 = sbr.rel (0) target = $region89
    $region88: #{tpu_custom_call.1} parent=1 // pred_region
      _
    $region89: #{tpu_custom_call.1} parent=1 // pred_fallthru
      _
    %10676 = vsyncpa [#allocation3], 1

</llo_original>
